<compile_context>
chip_gen: v6e
topology: v6e:2x2x1
jax: 0.10.0
libtpu: 0.0.40
codegen_flags: <defaults>
</compile_context>

<pallas_src>
import math

import jax
import jax.numpy as jnp
import numpy as np
from jax.experimental import pallas as pl
from jax.experimental.pallas import tpu as pltpu

# ---- problem sizes (small, consistent with the module) ----
BATCH = 2
SEQ_LEN = 8
EMB_SIZE = 32
Q_SIZE = 16
K_SIZE = 16
V_SIZE = 16
NUM_HEADS = 8


def mha_kernel(q_ref, kv_ref, bias_ref, wq_ref, wk_ref, wv_ref, wfc_ref, out_ref):
    """Single grid step; whole problem resident in VMEM.

    q_ref   : (B, Lq, E)        query-side inputs
    kv_ref  : (B, Lk, E)        key/value-side inputs
    bias_ref: (B, H, Lq, Lk)    additive mask bias (0 visible / -1e9 masked), f32
    wq_ref  : (H, E, dq)        W_Q, head-major, 1/sqrt(dq) already folded in
    wk_ref  : (H, E, dk)        W_K, head-major
    wv_ref  : (H, E, dv)        W_V, head-major
    wfc_ref : (H, dv, E)        fc weight, head-major (concat folded into contraction)
    out_ref : (B, Lq, E)
    """
    B, Lq, E = q_ref.shape
    Lk = kv_ref.shape[1]
    H = wq_ref.shape[0]

    wq = wq_ref[...]
    wk = wk_ref[...]
    wv = wv_ref[...]
    wfc = wfc_ref[...]

    # B is tiny & static -> unrolled Python loop (no pipeline overhead, no relayouts).
    for b in range(B):
        # Broadcast activations across the head axis so every matmul is a
        # leading-batch batched MXU contraction (no transposes, no lane slicing).
        qx = jnp.broadcast_to(q_ref[b].astype(jnp.float32), (H, Lq, E))
        kx = jnp.broadcast_to(kv_ref[b].astype(jnp.float32), (H, Lk, E))

        # Head-batched projections: (H, L, E) @ (H, E, d) -> (H, L, d)
        q_h = jnp.einsum('hle,hed->hld', qx, wq, preferred_element_type=jnp.float32)
        k_h = jnp.einsum('hle,hed->hld', kx, wk, preferred_element_type=jnp.float32)
        v_h = jnp.einsum('hle,hed->hld', kx, wv, preferred_element_type=jnp.float32)

        # Scores (scale already folded into wq) + additive mask bias.
        s = jnp.einsum('hqd,hkd->hqk', q_h, k_h, preferred_element_type=jnp.float32)
        s = s + bias_ref[b]

        # Numerically stable softmax over keys (f32 on VPU/EUP).
        s = s - jnp.max(s, axis=-1, keepdims=True)
        p = jnp.exp(s)
        p = p / jnp.sum(p, axis=-1, keepdims=True)

        # Attention-weighted values, then output projection with the head concat
        # folded into a per-head contraction + reduction over heads.
        ctx = jnp.einsum('hqk,hkd->hqd', p, v_h, preferred_element_type=jnp.float32)
        out_b = jnp.einsum('hqd,hde->hqe', ctx, wfc, preferred_element_type=jnp.float32)
        out_ref[b] = jnp.sum(out_b, axis=0).astype(out_ref.dtype)


def multi_head_attention(q_inputs, kv_inputs, mask, wq, wk, wv, wfc):
    B, Lq, E = q_inputs.shape
    Lk = kv_inputs.shape[1]
    H, DQ, DK, DV = NUM_HEADS, Q_SIZE, K_SIZE, V_SIZE

    # --- wrapper-side (plain JAX, outside the kernel) layout preparation ---
    inv_scale = jnp.float32(1.0 / math.sqrt(DQ))          # 0.25: exact power of two
    wq_h = (wq * inv_scale).reshape(E, H, DQ).transpose(1, 0, 2)   # (H, E, DQ)
    wk_h = wk.reshape(E, H, DK).transpose(1, 0, 2)                 # (H, E, DK)
    wv_h = wv.reshape(E, H, DV).transpose(1, 0, 2)                 # (H, E, DV)
    wfc_h = wfc.reshape(H, DV, E)                                  # (H, DV, E)

    # Additive mask bias: 0 where visible, -1e9 where masked.
    bias = jnp.where(mask != 0, jnp.float32(-1e9), jnp.float32(0.0))

    grid_spec = pltpu.PrefetchScalarGridSpec(
        num_scalar_prefetch=0,
        grid=(1,),
        in_specs=[
            pl.BlockSpec((B, Lq, E), lambda i: (0, 0, 0)),
            pl.BlockSpec((B, Lk, E), lambda i: (0, 0, 0)),
            pl.BlockSpec((B, H, Lq, Lk), lambda i: (0, 0, 0, 0)),
            pl.BlockSpec((H, E, DQ), lambda i: (0, 0, 0)),
            pl.BlockSpec((H, E, DK), lambda i: (0, 0, 0)),
            pl.BlockSpec((H, E, DV), lambda i: (0, 0, 0)),
            pl.BlockSpec((H, DV, E), lambda i: (0, 0, 0)),
        ],
        out_specs=pl.BlockSpec((B, Lq, E), lambda i: (0, 0, 0)),
    )

    return pl.pallas_call(
        mha_kernel,
        out_shape=jax.ShapeDtypeStruct((B, Lq, E), jnp.float32),
        grid_spec=grid_spec,
        compiler_params=pltpu.CompilerParams(dimension_semantics=("arbitrary",)),
    )(q_inputs, kv_inputs, bias, wq_h, wk_h, wv_h, wfc_h)


def reference_mha(q_inputs, kv_inputs, mask, wq, wk, wv, wfc):
    """Pure-JAX reference mirroring the PyTorch forward exactly (masked_fill -1e9)."""
    B, Lq, E = q_inputs.shape
    H = NUM_HEADS
    Q = (q_inputs @ wq).reshape(B, Lq, H, Q_SIZE).transpose(0, 2, 1, 3)
    K = (kv_inputs @ wk).reshape(B, -1, H, K_SIZE).transpose(0, 2, 1, 3)
    V = (kv_inputs @ wv).reshape(B, -1, H, V_SIZE).transpose(0, 2, 1, 3)
    scores = jnp.einsum("bhqd,bhkd->bhqk", Q, K) / np.sqrt(Q_SIZE)
    scores = jnp.where(mask != 0, -1e9, scores)
    attn = jax.nn.softmax(scores, axis=-1)
    ctx = jnp.einsum("bhqk,bhkd->bhqd", attn, V)
    ctx = ctx.transpose(0, 2, 1, 3).reshape(B, Lq, H * V_SIZE)
    return ctx @ wfc


if __name__ == "__main__":
    key = jax.random.PRNGKey(0)
    k_q, k_kv, k_m, k_wq, k_wk, k_wv, k_fc = jax.random.split(key, 7)

    q_inputs = jax.random.normal(k_q, (BATCH, SEQ_LEN, EMB_SIZE), dtype=jnp.float32)
    kv_inputs = jax.random.normal(k_kv, (BATCH, SEQ_LEN, EMB_SIZE), dtype=jnp.float32)

    # Padding-style mask: nonzero == masked. Force key 0 visible for every query so no
    # row is fully masked (degenerate rows are where additive -1e9 bias and
    # masked_fill(-1e9) could diverge; real padding masks never fully mask a row).
    mask_bool = jax.random.uniform(k_m, (BATCH, NUM_HEADS, SEQ_LEN, SEQ_LEN)) < 0.2
    mask_bool = mask_bool.at[..., 0].set(False)
    mask = mask_bool.astype(jnp.int32)

    # nn.Linear(bias=False)-style init, stored as (in, out) so forward is x @ W.
    def linear_init(k, fan_in, fan_out):
        bound = 1.0 / math.sqrt(fan_in)
        return jax.random.uniform(k, (fan_in, fan_out), minval=-bound, maxval=bound,
                                  dtype=jnp.float32)

    wq = linear_init(k_wq, EMB_SIZE, Q_SIZE * NUM_HEADS)
    wk = linear_init(k_wk, EMB_SIZE, K_SIZE * NUM_HEADS)
    wv = linear_init(k_wv, EMB_SIZE, V_SIZE * NUM_HEADS)
    wfc = linear_init(k_fc, V_SIZE * NUM_HEADS, EMB_SIZE)

    out = multi_head_attention(q_inputs, kv_inputs, mask, wq, wk, wv, wfc)
    out = jax.block_until_ready(out)

    ref = reference_mha(q_inputs, kv_inputs, mask, wq, wk, wv, wfc)
    np.testing.assert_allclose(np.asarray(out), np.asarray(ref), rtol=1e-5, atol=1e-5)

    print("KERNEL_OK")
</pallas_src>

<mosaic_0001>
module attributes {stable_mosaic.version = 11 : i64} {
  func.func @mha_kernel(%arg0: i32, %arg1: memref<2x8x32xf32, #tpu.memory_space<vmem>>, %arg2: memref<2x8x32xf32, #tpu.memory_space<vmem>>, %arg3: memref<2x8x8x8xf32, #tpu.memory_space<vmem>>, %arg4: memref<8x32x16xf32, #tpu.memory_space<vmem>>, %arg5: memref<8x32x16xf32, #tpu.memory_space<vmem>>, %arg6: memref<8x32x16xf32, #tpu.memory_space<vmem>>, %arg7: memref<8x16x32xf32, #tpu.memory_space<vmem>>, %arg8: memref<2x8x32xf32, #tpu.memory_space<vmem>>) attributes {dimension_semantics = [#tpu.dimension_semantics<arbitrary>], iteration_bounds = array<i64: 1>, scalar_prefetch = 0 : i64, scratch_operands = 0 : i64, tpu.core_type = #tpu.core_type<tc>, window_params = [{pipeline_mode = #tpu.pipeline_mode<synchronous>, transform_indices = @transform_0, window_bounds = array<i64: 2, 8, 32>}, {pipeline_mode = #tpu.pipeline_mode<synchronous>, transform_indices = @transform_1, window_bounds = array<i64: 2, 8, 32>}, {pipeline_mode = #tpu.pipeline_mode<synchronous>, transform_indices = @transform_2, window_bounds = array<i64: 2, 8, 8, 8>}, {pipeline_mode = #tpu.pipeline_mode<synchronous>, transform_indices = @transform_3, window_bounds = array<i64: 8, 32, 16>}, {pipeline_mode = #tpu.pipeline_mode<synchronous>, transform_indices = @transform_4, window_bounds = array<i64: 8, 32, 16>}, {pipeline_mode = #tpu.pipeline_mode<synchronous>, transform_indices = @transform_5, window_bounds = array<i64: 8, 32, 16>}, {pipeline_mode = #tpu.pipeline_mode<synchronous>, transform_indices = @transform_6, window_bounds = array<i64: 8, 16, 32>}, {pipeline_mode = #tpu.pipeline_mode<synchronous>, transform_indices = @transform_7, window_bounds = array<i64: 2, 8, 32>}]} {
    %c0 = arith.constant 0 : index
    %c0_0 = arith.constant 0 : index
    %c0_1 = arith.constant 0 : index
    %0 = vector.load %arg4[%c0, %c0_0, %c0_1] : memref<8x32x16xf32, #tpu.memory_space<vmem>>, vector<8x32x16xf32>
    %c0_2 = arith.constant 0 : index
    %c0_3 = arith.constant 0 : index
    %c0_4 = arith.constant 0 : index
    %1 = vector.load %arg5[%c0_2, %c0_3, %c0_4] : memref<8x32x16xf32, #tpu.memory_space<vmem>>, vector<8x32x16xf32>
    %c0_5 = arith.constant 0 : index
    %c0_6 = arith.constant 0 : index
    %c0_7 = arith.constant 0 : index
    %2 = vector.load %arg6[%c0_5, %c0_6, %c0_7] : memref<8x32x16xf32, #tpu.memory_space<vmem>>, vector<8x32x16xf32>
    %c0_8 = arith.constant 0 : index
    %c0_9 = arith.constant 0 : index
    %c0_10 = arith.constant 0 : index
    %3 = vector.load %arg7[%c0_8, %c0_9, %c0_10] : memref<8x16x32xf32, #tpu.memory_space<vmem>>, vector<8x16x32xf32>
    %c0_11 = arith.constant 0 : index
    %c0_12 = arith.constant 0 : index
    %c0_13 = arith.constant 0 : index
    %4 = vector.load %arg1[%c0_11, %c0_12, %c0_13] : memref<2x8x32xf32, #tpu.memory_space<vmem>>, vector<1x8x32xf32>
    %5 = vector.shape_cast %4 : vector<1x8x32xf32> to vector<8x32xf32>
    %6 = vector.shape_cast %5 : vector<8x32xf32> to vector<1x8x32xf32>
    %7 = vector.broadcast %6 : vector<1x8x32xf32> to vector<8x8x32xf32>
    %c0_14 = arith.constant 0 : index
    %c0_15 = arith.constant 0 : index
    %c0_16 = arith.constant 0 : index
    %8 = vector.load %arg2[%c0_14, %c0_15, %c0_16] : memref<2x8x32xf32, #tpu.memory_space<vmem>>, vector<1x8x32xf32>
    %9 = vector.shape_cast %8 : vector<1x8x32xf32> to vector<8x32xf32>
    %10 = vector.shape_cast %9 : vector<8x32xf32> to vector<1x8x32xf32>
    %11 = vector.broadcast %10 : vector<1x8x32xf32> to vector<8x8x32xf32>
    "tpu.trace_start"() <{level = 10 : i32, message = "hle,hed->hld"}> : () -> ()
    %cst = arith.constant dense<0.000000e+00> : vector<8x8x16xf32>
    %12 = tpu.matmul %7, %0, %cst {dimension_numbers = #tpu.dot_dimension_numbers<[2], [1], [1], [2], [0, 0, 0, 1, 1, 2], [0], [0]>} : vector<8x8x32xf32>, vector<8x32x16xf32>, vector<8x8x16xf32> -> vector<8x8x16xf32>
    %cst_17 = arith.constant dense<0.000000e+00> : vector<8x8x16xf32>
    %13 = tpu.matmul %11, %1, %cst_17 {dimension_numbers = #tpu.dot_dimension_numbers<[2], [1], [1], [2], [0, 0, 0, 1, 1, 2], [0], [0]>} : vector<8x8x32xf32>, vector<8x32x16xf32>, vector<8x8x16xf32> -> vector<8x8x16xf32>
    %cst_18 = arith.constant dense<0.000000e+00> : vector<8x8x16xf32>
    %14 = tpu.matmul %11, %2, %cst_18 {dimension_numbers = #tpu.dot_dimension_numbers<[2], [1], [1], [2], [0, 0, 0, 1, 1, 2], [0], [0]>} : vector<8x8x32xf32>, vector<8x32x16xf32>, vector<8x8x16xf32> -> vector<8x8x16xf32>
    "tpu.trace_stop"() : () -> ()
    "tpu.trace_start"() <{level = 10 : i32, message = "hqd,hkd->hqk"}> : () -> ()
    %cst_19 = arith.constant dense<0.000000e+00> : vector<8x8x8xf32>
    %15 = tpu.matmul %12, %13, %cst_19 {dimension_numbers = #tpu.dot_dimension_numbers<[2], [2], [1], [1], [0, 0, 0, 1, 1, 1], [0], [0]>} : vector<8x8x16xf32>, vector<8x8x16xf32>, vector<8x8x8xf32> -> vector<8x8x8xf32>
    "tpu.trace_stop"() : () -> ()
    %c0_20 = arith.constant 0 : index
    %c0_21 = arith.constant 0 : index
    %c0_22 = arith.constant 0 : index
    %c0_23 = arith.constant 0 : index
    %16 = vector.load %arg3[%c0_20, %c0_21, %c0_22, %c0_23] : memref<2x8x8x8xf32, #tpu.memory_space<vmem>>, vector<1x8x8x8xf32>
    %17 = vector.shape_cast %16 : vector<1x8x8x8xf32> to vector<8x8x8xf32>
    %18 = arith.addf %15, %17 : vector<8x8x8xf32>
    %cst_24 = arith.constant dense<0xFF800000> : vector<8x8xf32>
    %19 = vector.multi_reduction <maximumf>, %18, %cst_24 [2] : vector<8x8x8xf32> to vector<8x8xf32>
    %20 = vector.shape_cast %19 : vector<8x8xf32> to vector<8x8x1xf32>
    %21 = vector.broadcast %20 : vector<8x8x1xf32> to vector<8x8x8xf32>
    %22 = arith.subf %18, %21 : vector<8x8x8xf32>
    %23 = math.exp %22 : vector<8x8x8xf32>
    %cst_25 = arith.constant dense<0.000000e+00> : vector<8x8xf32>
    %24 = vector.multi_reduction <add>, %23, %cst_25 [2] : vector<8x8x8xf32> to vector<8x8xf32>
    %25 = vector.shape_cast %24 : vector<8x8xf32> to vector<8x8x1xf32>
    %26 = vector.broadcast %25 : vector<8x8x1xf32> to vector<8x8x8xf32>
    %27 = arith.divf %23, %26 : vector<8x8x8xf32>
    "tpu.trace_start"() <{level = 10 : i32, message = "hqk,hkd->hqd"}> : () -> ()
    %cst_26 = arith.constant dense<0.000000e+00> : vector<8x8x16xf32>
    %28 = tpu.matmul %27, %14, %cst_26 {dimension_numbers = #tpu.dot_dimension_numbers<[2], [1], [1], [2], [0, 0, 0, 1, 1, 2], [0], [0]>} : vector<8x8x8xf32>, vector<8x8x16xf32>, vector<8x8x16xf32> -> vector<8x8x16xf32>
    "tpu.trace_stop"() : () -> ()
    "tpu.trace_start"() <{level = 10 : i32, message = "hqd,hde->hqe"}> : () -> ()
    %cst_27 = arith.constant dense<0.000000e+00> : vector<8x8x32xf32>
    %29 = tpu.matmul %28, %3, %cst_27 {dimension_numbers = #tpu.dot_dimension_numbers<[2], [1], [1], [2], [0, 0, 0, 1, 1, 2], [0], [0]>} : vector<8x8x16xf32>, vector<8x16x32xf32>, vector<8x8x32xf32> -> vector<8x8x32xf32>
    "tpu.trace_stop"() : () -> ()
    %cst_28 = arith.constant dense<0.000000e+00> : vector<8x32xf32>
    %30 = vector.multi_reduction <add>, %29, %cst_28 [0] : vector<8x8x32xf32> to vector<8x32xf32>
    %c0_29 = arith.constant 0 : index
    %c0_30 = arith.constant 0 : index
    %c0_31 = arith.constant 0 : index
    %31 = vector.load %arg8[%c0_29, %c0_30, %c0_31] : memref<2x8x32xf32, #tpu.memory_space<vmem>>, vector<1x8x32xf32>
    %32 = vector.shape_cast %31 : vector<1x8x32xf32> to vector<8x32xf32>
    %33 = vector.shape_cast %30 : vector<8x32xf32> to vector<1x8x32xf32>
    tpu.vector_store %arg8[%c0_29, %c0_30, %c0_31], %33 {strides = array<i32>} : memref<2x8x32xf32, #tpu.memory_space<vmem>>, vector<1x8x32xf32>,
    %c1 = arith.constant 1 : index
    %c0_32 = arith.constant 0 : index
    %c0_33 = arith.constant 0 : index
    %34 = vector.load %arg1[%c1, %c0_32, %c0_33] : memref<2x8x32xf32, #tpu.memory_space<vmem>>, vector<1x8x32xf32>
    %35 = vector.shape_cast %34 : vector<1x8x32xf32> to vector<8x32xf32>
    %36 = vector.shape_cast %35 : vector<8x32xf32> to vector<1x8x32xf32>
    %37 = vector.broadcast %36 : vector<1x8x32xf32> to vector<8x8x32xf32>
    %c1_34 = arith.constant 1 : index
    %c0_35 = arith.constant 0 : index
    %c0_36 = arith.constant 0 : index
    %38 = vector.load %arg2[%c1_34, %c0_35, %c0_36] : memref<2x8x32xf32, #tpu.memory_space<vmem>>, vector<1x8x32xf32>
    %39 = vector.shape_cast %38 : vector<1x8x32xf32> to vector<8x32xf32>
    %40 = vector.shape_cast %39 : vector<8x32xf32> to vector<1x8x32xf32>
    %41 = vector.broadcast %40 : vector<1x8x32xf32> to vector<8x8x32xf32>
    "tpu.trace_start"() <{level = 10 : i32, message = "hle,hed->hld"}> : () -> ()
    %cst_37 = arith.constant dense<0.000000e+00> : vector<8x8x16xf32>
    %42 = tpu.matmul %37, %0, %cst_37 {dimension_numbers = #tpu.dot_dimension_numbers<[2], [1], [1], [2], [0, 0, 0, 1, 1, 2], [0], [0]>} : vector<8x8x32xf32>, vector<8x32x16xf32>, vector<8x8x16xf32> -> vector<8x8x16xf32>
    %cst_38 = arith.constant dense<0.000000e+00> : vector<8x8x16xf32>
    %43 = tpu.matmul %41, %1, %cst_38 {dimension_numbers = #tpu.dot_dimension_numbers<[2], [1], [1], [2], [0, 0, 0, 1, 1, 2], [0], [0]>} : vector<8x8x32xf32>, vector<8x32x16xf32>, vector<8x8x16xf32> -> vector<8x8x16xf32>
    %cst_39 = arith.constant dense<0.000000e+00> : vector<8x8x16xf32>
    %44 = tpu.matmul %41, %2, %cst_39 {dimension_numbers = #tpu.dot_dimension_numbers<[2], [1], [1], [2], [0, 0, 0, 1, 1, 2], [0], [0]>} : vector<8x8x32xf32>, vector<8x32x16xf32>, vector<8x8x16xf32> -> vector<8x8x16xf32>
    "tpu.trace_stop"() : () -> ()
    "tpu.trace_start"() <{level = 10 : i32, message = "hqd,hkd->hqk"}> : () -> ()
    %cst_40 = arith.constant dense<0.000000e+00> : vector<8x8x8xf32>
    %45 = tpu.matmul %42, %43, %cst_40 {dimension_numbers = #tpu.dot_dimension_numbers<[2], [2], [1], [1], [0, 0, 0, 1, 1, 1], [0], [0]>} : vector<8x8x16xf32>, vector<8x8x16xf32>, vector<8x8x8xf32> -> vector<8x8x8xf32>
    "tpu.trace_stop"() : () -> ()
    %c1_41 = arith.constant 1 : index
    %c0_42 = arith.constant 0 : index
    %c0_43 = arith.constant 0 : index
    %c0_44 = arith.constant 0 : index
    %46 = vector.load %arg3[%c1_41, %c0_42, %c0_43, %c0_44] : memref<2x8x8x8xf32, #tpu.memory_space<vmem>>, vector<1x8x8x8xf32>
    %47 = vector.shape_cast %46 : vector<1x8x8x8xf32> to vector<8x8x8xf32>
    %48 = arith.addf %45, %47 : vector<8x8x8xf32>
    %cst_45 = arith.constant dense<0xFF800000> : vector<8x8xf32>
    %49 = vector.multi_reduction <maximumf>, %48, %cst_45 [2] : vector<8x8x8xf32> to vector<8x8xf32>
    %50 = vector.shape_cast %49 : vector<8x8xf32> to vector<8x8x1xf32>
    %51 = vector.broadcast %50 : vector<8x8x1xf32> to vector<8x8x8xf32>
    %52 = arith.subf %48, %51 : vector<8x8x8xf32>
    %53 = math.exp %52 : vector<8x8x8xf32>
    %cst_46 = arith.constant dense<0.000000e+00> : vector<8x8xf32>
    %54 = vector.multi_reduction <add>, %53, %cst_46 [2] : vector<8x8x8xf32> to vector<8x8xf32>
    %55 = vector.shape_cast %54 : vector<8x8xf32> to vector<8x8x1xf32>
    %56 = vector.broadcast %55 : vector<8x8x1xf32> to vector<8x8x8xf32>
    %57 = arith.divf %53, %56 : vector<8x8x8xf32>
    "tpu.trace_start"() <{level = 10 : i32, message = "hqk,hkd->hqd"}> : () -> ()
    %cst_47 = arith.constant dense<0.000000e+00> : vector<8x8x16xf32>
    %58 = tpu.matmul %57, %44, %cst_47 {dimension_numbers = #tpu.dot_dimension_numbers<[2], [1], [1], [2], [0, 0, 0, 1, 1, 2], [0], [0]>} : vector<8x8x8xf32>, vector<8x8x16xf32>, vector<8x8x16xf32> -> vector<8x8x16xf32>
    "tpu.trace_stop"() : () -> ()
    "tpu.trace_start"() <{level = 10 : i32, message = "hqd,hde->hqe"}> : () -> ()
    %cst_48 = arith.constant dense<0.000000e+00> : vector<8x8x32xf32>
    %59 = tpu.matmul %58, %3, %cst_48 {dimension_numbers = #tpu.dot_dimension_numbers<[2], [1], [1], [2], [0, 0, 0, 1, 1, 2], [0], [0]>} : vector<8x8x16xf32>, vector<8x16x32xf32>, vector<8x8x32xf32> -> vector<8x8x32xf32>
    "tpu.trace_stop"() : () -> ()
    %cst_49 = arith.constant dense<0.000000e+00> : vector<8x32xf32>
    %60 = vector.multi_reduction <add>, %59, %cst_49 [0] : vector<8x8x32xf32> to vector<8x32xf32>
    %c1_50 = arith.constant 1 : index
    %c0_51 = arith.constant 0 : index
    %c0_52 = arith.constant 0 : index
    %61 = vector.load %arg8[%c1_50, %c0_51, %c0_52] : memref<2x8x32xf32, #tpu.memory_space<vmem>>, vector<1x8x32xf32>
    %62 = vector.shape_cast %61 : vector<1x8x32xf32> to vector<8x32xf32>
    %63 = vector.shape_cast %60 : vector<8x32xf32> to vector<1x8x32xf32>
    tpu.vector_store %arg8[%c1_50, %c0_51, %c0_52], %63 {strides = array<i32>} : memref<2x8x32xf32, #tpu.memory_space<vmem>>, vector<1x8x32xf32>,
    return
  }
  func.func @transform_0(%arg0: i32) -> (i32, i32, i32) {
    %c0_i32 = arith.constant 0 : i32
    %c0_i32_0 = arith.constant 0 : i32
    %c0_i32_1 = arith.constant 0 : i32
    %c0_i32_2 = arith.constant 0 : i32
    return %c0_i32, %c0_i32_0, %c0_i32_1 : i32, i32, i32
  }
  func.func @transform_1(%arg0: i32) -> (i32, i32, i32) {
    %c0_i32 = arith.constant 0 : i32
    %c0_i32_0 = arith.constant 0 : i32
    %c0_i32_1 = arith.constant 0 : i32
    %c0_i32_2 = arith.constant 0 : i32
    return %c0_i32, %c0_i32_0, %c0_i32_1 : i32, i32, i32
  }
  func.func @transform_2(%arg0: i32) -> (i32, i32, i32, i32) {
    %c0_i32 = arith.constant 0 : i32
    %c0_i32_0 = arith.constant 0 : i32
    %c0_i32_1 = arith.constant 0 : i32
    %c0_i32_2 = arith.constant 0 : i32
    %c0_i32_3 = arith.constant 0 : i32
    return %c0_i32, %c0_i32_0, %c0_i32_1, %c0_i32_2 : i32, i32, i32, i32
  }
  func.func @transform_3(%arg0: i32) -> (i32, i32, i32) {
    %c0_i32 = arith.constant 0 : i32
    %c0_i32_0 = arith.constant 0 : i32
    %c0_i32_1 = arith.constant 0 : i32
    %c0_i32_2 = arith.constant 0 : i32
    return %c0_i32, %c0_i32_0, %c0_i32_1 : i32, i32, i32
  }
  func.func @transform_4(%arg0: i32) -> (i32, i32, i32) {
    %c0_i32 = arith.constant 0 : i32
    %c0_i32_0 = arith.constant 0 : i32
    %c0_i32_1 = arith.constant 0 : i32
    %c0_i32_2 = arith.constant 0 : i32
    return %c0_i32, %c0_i32_0, %c0_i32_1 : i32, i32, i32
  }
  func.func @transform_5(%arg0: i32) -> (i32, i32, i32) {
    %c0_i32 = arith.constant 0 : i32
    %c0_i32_0 = arith.constant 0 : i32
    %c0_i32_1 = arith.constant 0 : i32
    %c0_i32_2 = arith.constant 0 : i32
    return %c0_i32, %c0_i32_0, %c0_i32_1 : i32, i32, i32
  }
  func.func @transform_6(%arg0: i32) -> (i32, i32, i32) {
    %c0_i32 = arith.constant 0 : i32
    %c0_i32_0 = arith.constant 0 : i32
    %c0_i32_1 = arith.constant 0 : i32
    %c0_i32_2 = arith.constant 0 : i32
    return %c0_i32, %c0_i32_0, %c0_i32_1 : i32, i32, i32
  }
  func.func @transform_7(%arg0: i32) -> (i32, i32, i32) {
    %c0_i32 = arith.constant 0 : i32
    %c0_i32_0 = arith.constant 0 : i32
    %c0_i32_1 = arith.constant 0 : i32
    %c0_i32_2 = arith.constant 0 : i32
    return %c0_i32, %c0_i32_0, %c0_i32_1 : i32, i32, i32
  }
}

</mosaic_0001>

<llo_original>
// kernel: tpu_custom_call.1
$region0: #{tpu_custom_call.1}
  #allocation0 [shape = 'u32[]', space=smem, size = 0x4, offset = 0x4, fixed_abs, tag = 'smem constant byte address 0x4 - core index']
  #allocation1 [shape = 'u32[144,128]{1,0:T(1,128)}', space=vmem, size = 0x12000, scoped, tag = 'internal scratch']
  %s0 = inlined_call_operand.vmem [shape: f32[2,8,32], index: 0, kind: input, shape index: {}]
  %s1 = inlined_call_operand.vmem [shape: f32[2,8,32], index: 1, kind: input, shape index: {}]
  %s2 = inlined_call_operand.vmem [shape: f32[2,8,8,8], index: 2, kind: input, shape index: {}]
  %s3 = inlined_call_operand.vmem [shape: f32[8,32,16], index: 3, kind: input, shape index: {}]
  %s4 = inlined_call_operand.vmem [shape: f32[8,32,16], index: 4, kind: input, shape index: {}]
  %s5 = inlined_call_operand.vmem [shape: f32[8,32,16], index: 5, kind: input, shape index: {}]
  %s6 = inlined_call_operand.vmem [shape: f32[8,16,32], index: 6, kind: input, shape index: {}]
  %s7 = inlined_call_operand.hbm [shape: f32[2,8,32], index: 7, kind: output, shape index: {}]
  %s8 = sld [smem:[#allocation0]]
  $region38: #{tpu_custom_call.1} parent=0
    _
  %s10 = ssub.s32 1, %s8
  %s11 = scalar_select 0, %s10, %s8
  $region1: #{tpu_custom_call.1} parent=0
    #allocation2 [shape = 'u8[8192]{0}', space=vmem, size = 0x2000, scoped, tag = 'output window, operand 0, single buffered']
    #allocation3 [shape = 's32[1]{0}', space=sflag, size = 0x4, scoped, tag = 'scoped memory for tpu_custom_call.1']
    %12 = vsyncpa [#allocation3], 0
    // Predicated region
    $region2: #{tpu_custom_call.1} parent=1 // pred_check
      _
    $region3: #{tpu_custom_call.1} parent=1 // pred_check_branch
      %14 = sbr.rel (0) target = $region5
    $region4: #{tpu_custom_call.1} parent=1 // pred_region
      _
    $region5: #{tpu_custom_call.1} parent=1 // pred_fallthru
      _
    // Predicated region
    $region6: #{tpu_custom_call.1} parent=1 // pred_check
      _
    $region7: #{tpu_custom_call.1} parent=1 // pred_check_branch
      %16 = sbr.rel (0) target = $region9
    $region8: #{tpu_custom_call.1} parent=1 // pred_region
      _
    $region9: #{tpu_custom_call.1} parent=1 // pred_fallthru
      _
    // Predicated region
    $region10: #{tpu_custom_call.1} parent=1 // pred_check
      _
    $region11: #{tpu_custom_call.1} parent=1 // pred_check_branch
      %18 = sbr.rel (0) target = $region13
    $region12: #{tpu_custom_call.1} parent=1 // pred_region
      _
    $region13: #{tpu_custom_call.1} parent=1 // pred_fallthru
      _
    // Predicated region
    $region14: #{tpu_custom_call.1} parent=1 // pred_check
      _
    $region15: #{tpu_custom_call.1} parent=1 // pred_check_branch
      %20 = sbr.rel (0) target = $region17
    $region16: #{tpu_custom_call.1} parent=1 // pred_region
      _
    $region17: #{tpu_custom_call.1} parent=1 // pred_fallthru
      _
    // Predicated region
    $region18: #{tpu_custom_call.1} parent=1 // pred_check
      _
    $region19: #{tpu_custom_call.1} parent=1 // pred_check_branch
      %22 = sbr.rel (0) target = $region21
    $region20: #{tpu_custom_call.1} parent=1 // pred_region
      _
    $region21: #{tpu_custom_call.1} parent=1 // pred_fallthru
      _
    // Predicated region
    $region22: #{tpu_custom_call.1} parent=1 // pred_check
      _
    $region23: #{tpu_custom_call.1} parent=1 // pred_check_branch
      %24 = sbr.rel (0) target = $region25
    $region24: #{tpu_custom_call.1} parent=1 // pred_region
      _
    $region25: #{tpu_custom_call.1} parent=1 // pred_fallthru
      _
    // Predicated region
    $region26: #{tpu_custom_call.1} parent=1 // pred_check
      _
    $region27: #{tpu_custom_call.1} parent=1 // pred_check_branch
      %26 = sbr.rel (0) target = $region29
    $region28: #{tpu_custom_call.1} parent=1 // pred_region
      _
    $region29: #{tpu_custom_call.1} parent=1 // pred_fallthru
      _
    %v27 = vld [vmem:[%s3] sm:$0xff]
    %v28 = vld [vmem:[%s3 + $0x8] sm:$0xff]
    %v29 = vld [vmem:[%s3 + $0x10] sm:$0xff]
    %v30 = vld [vmem:[%s3 + $0x18] sm:$0xff]
    %v31 = vld [vmem:[%s3 + $0x20] sm:$0xff]
    %v32 = vld [vmem:[%s3 + $0x28] sm:$0xff]
    %v33 = vld [vmem:[%s3 + $0x30] sm:$0xff]
    %v34 = vld [vmem:[%s3 + $0x38] sm:$0xff]
    %v35 = vld [vmem:[%s3 + $0x40] sm:$0xff]
    %v36 = vld [vmem:[%s3 + $0x48] sm:$0xff]
    %v37 = vld [vmem:[%s3 + $0x50] sm:$0xff]
    %v38 = vld [vmem:[%s3 + $0x58] sm:$0xff]
    %v39 = vld [vmem:[%s3 + $0x60] sm:$0xff]
    %v40 = vld [vmem:[%s3 + $0x68] sm:$0xff]
    %v41 = vld [vmem:[%s3 + $0x70] sm:$0xff]
    %v42 = vld [vmem:[%s3 + $0x78] sm:$0xff]
    %v43 = vld [vmem:[%s3 + $0x80] sm:$0xff]
    %v44 = vld [vmem:[%s3 + $0x88] sm:$0xff]
    %v45 = vld [vmem:[%s3 + $0x90] sm:$0xff]
    %v46 = vld [vmem:[%s3 + $0x98] sm:$0xff]
    %v47 = vld [vmem:[%s3 + $0xa0] sm:$0xff]
    %v48 = vld [vmem:[%s3 + $0xa8] sm:$0xff]
    %v49 = vld [vmem:[%s3 + $0xb0] sm:$0xff]
    %v50 = vld [vmem:[%s3 + $0xb8] sm:$0xff]
    %v51 = vld [vmem:[%s3 + $0xc0] sm:$0xff]
    %v52 = vld [vmem:[%s3 + $0xc8] sm:$0xff]
    %v53 = vld [vmem:[%s3 + $0xd0] sm:$0xff]
    %v54 = vld [vmem:[%s3 + $0xd8] sm:$0xff]
    %v55 = vld [vmem:[%s3 + $0xe0] sm:$0xff]
    %v56 = vld [vmem:[%s3 + $0xe8] sm:$0xff]
    %v57 = vld [vmem:[%s3 + $0xf0] sm:$0xff]
    %v58 = vld [vmem:[%s3 + $0xf8] sm:$0xff]
    %v59 = vld [vmem:[%s4] sm:$0xff]
    %v60 = vld [vmem:[%s4 + $0x8] sm:$0xff]
    %v61 = vld [vmem:[%s4 + $0x10] sm:$0xff]
    %v62 = vld [vmem:[%s4 + $0x18] sm:$0xff]
    %v63 = vld [vmem:[%s4 + $0x20] sm:$0xff]
    %v64 = vld [vmem:[%s4 + $0x28] sm:$0xff]
    %v65 = vld [vmem:[%s4 + $0x30] sm:$0xff]
    %v66 = vld [vmem:[%s4 + $0x38] sm:$0xff]
    %v67 = vld [vmem:[%s4 + $0x40] sm:$0xff]
    %v68 = vld [vmem:[%s4 + $0x48] sm:$0xff]
    %v69 = vld [vmem:[%s4 + $0x50] sm:$0xff]
    %v70 = vld [vmem:[%s4 + $0x58] sm:$0xff]
    %v71 = vld [vmem:[%s4 + $0x60] sm:$0xff]
    %v72 = vld [vmem:[%s4 + $0x68] sm:$0xff]
    %v73 = vld [vmem:[%s4 + $0x70] sm:$0xff]
    %v74 = vld [vmem:[%s4 + $0x78] sm:$0xff]
    %v75 = vld [vmem:[%s4 + $0x80] sm:$0xff]
    %v76 = vld [vmem:[%s4 + $0x88] sm:$0xff]
    %v77 = vld [vmem:[%s4 + $0x90] sm:$0xff]
    %v78 = vld [vmem:[%s4 + $0x98] sm:$0xff]
    %v79 = vld [vmem:[%s4 + $0xa0] sm:$0xff]
    %v80 = vld [vmem:[%s4 + $0xa8] sm:$0xff]
    %v81 = vld [vmem:[%s4 + $0xb0] sm:$0xff]
    %v82 = vld [vmem:[%s4 + $0xb8] sm:$0xff]
    %v83 = vld [vmem:[%s4 + $0xc0] sm:$0xff]
    %v84 = vld [vmem:[%s4 + $0xc8] sm:$0xff]
    %v85 = vld [vmem:[%s4 + $0xd0] sm:$0xff]
    %v86 = vld [vmem:[%s4 + $0xd8] sm:$0xff]
    %v87 = vld [vmem:[%s4 + $0xe0] sm:$0xff]
    %v88 = vld [vmem:[%s4 + $0xe8] sm:$0xff]
    %v89 = vld [vmem:[%s4 + $0xf0] sm:$0xff]
    %v90 = vld [vmem:[%s4 + $0xf8] sm:$0xff]
    %v91 = vld [vmem:[%s5] sm:$0xff]
    %v92 = vld [vmem:[%s5 + $0x8] sm:$0xff]
    %v93 = vld [vmem:[%s5 + $0x10] sm:$0xff]
    %v94 = vld [vmem:[%s5 + $0x18] sm:$0xff]
    %v95 = vld [vmem:[%s5 + $0x20] sm:$0xff]
    %v96 = vld [vmem:[%s5 + $0x28] sm:$0xff]
    %v97 = vld [vmem:[%s5 + $0x30] sm:$0xff]
    %v98 = vld [vmem:[%s5 + $0x38] sm:$0xff]
    %v99 = vld [vmem:[%s5 + $0x40] sm:$0xff]
    %v100 = vld [vmem:[%s5 + $0x48] sm:$0xff]
    %v101 = vld [vmem:[%s5 + $0x50] sm:$0xff]
    %v102 = vld [vmem:[%s5 + $0x58] sm:$0xff]
    %v103 = vld [vmem:[%s5 + $0x60] sm:$0xff]
    %v104 = vld [vmem:[%s5 + $0x68] sm:$0xff]
    %v105 = vld [vmem:[%s5 + $0x70] sm:$0xff]
    %v106 = vld [vmem:[%s5 + $0x78] sm:$0xff]
    %v107 = vld [vmem:[%s5 + $0x80] sm:$0xff]
    %v108 = vld [vmem:[%s5 + $0x88] sm:$0xff]
    %v109 = vld [vmem:[%s5 + $0x90] sm:$0xff]
    %v110 = vld [vmem:[%s5 + $0x98] sm:$0xff]
    %v111 = vld [vmem:[%s5 + $0xa0] sm:$0xff]
    %v112 = vld [vmem:[%s5 + $0xa8] sm:$0xff]
    %v113 = vld [vmem:[%s5 + $0xb0] sm:$0xff]
    %v114 = vld [vmem:[%s5 + $0xb8] sm:$0xff]
    %v115 = vld [vmem:[%s5 + $0xc0] sm:$0xff]
    %v116 = vld [vmem:[%s5 + $0xc8] sm:$0xff]
    %v117 = vld [vmem:[%s5 + $0xd0] sm:$0xff]
    %v118 = vld [vmem:[%s5 + $0xd8] sm:$0xff]
    %v119 = vld [vmem:[%s5 + $0xe0] sm:$0xff]
    %v120 = vld [vmem:[%s5 + $0xe8] sm:$0xff]
    %v121 = vld [vmem:[%s5 + $0xf0] sm:$0xff]
    %v122 = vld [vmem:[%s5 + $0xf8] sm:$0xff]
    %v123 = vld [vmem:[%s6] sm:$0xff]
    %v124 = vld [vmem:[%s6 + $0x8] sm:$0xff]
    %v125 = vld [vmem:[%s6 + $0x10] sm:$0xff]
    %v126 = vld [vmem:[%s6 + $0x18] sm:$0xff]
    %v127 = vld [vmem:[%s6 + $0x20] sm:$0xff]
    %v128 = vld [vmem:[%s6 + $0x28] sm:$0xff]
    %v129 = vld [vmem:[%s6 + $0x30] sm:$0xff]
    %v130 = vld [vmem:[%s6 + $0x38] sm:$0xff]
    %v131 = vld [vmem:[%s6 + $0x40] sm:$0xff]
    %v132 = vld [vmem:[%s6 + $0x48] sm:$0xff]
    %v133 = vld [vmem:[%s6 + $0x50] sm:$0xff]
    %v134 = vld [vmem:[%s6 + $0x58] sm:$0xff]
    %v135 = vld [vmem:[%s6 + $0x60] sm:$0xff]
    %v136 = vld [vmem:[%s6 + $0x68] sm:$0xff]
    %v137 = vld [vmem:[%s6 + $0x70] sm:$0xff]
    %v138 = vld [vmem:[%s6 + $0x78] sm:$0xff]
    %v139 = vld [vmem:[%s0] sm:$0xff]
    %v140 = vld [vmem:[%s1] sm:$0xff]
    %vm141 = vcmask 261120
    %v143 = vsel %vm141, %v139, 0
    %145 = vmatprep.subr.mxu0 0.0
    %146 = vmatpush1.msra.mxu0 0.0
    %147 = vmatprep.subr.mxu0 0.0
    %148 = vmatpush1.msra.mxu0 0.0
    %149 = vmatprep.subr.mxu0 0.0
    %150 = vmatpush1.msra.mxu0 0.0
    %151 = vmatprep.subr.mxu0 0.0
    %152 = vmatpush1.msra.mxu0 0.0
    %153 = vmatprep.subr.mxu0 0.0
    %154 = vmatpush1.msra.mxu0 0.0
    %155 = vmatprep.subr.mxu0 0.0
    %156 = vmatpush1.msra.mxu0 0.0
    %157 = vmatprep.subr.mxu0 0.0
    %158 = vmatpush1.msra.mxu0 0.0
    %159 = vmatprep.subr.mxu0 0.0
    %160 = vmatpush1.msra.mxu0 0.0
    %161 = vmatprep.subr.mxu0 0.0
    %162 = vmatpush1.msra.mxu0 0.0
    %163 = vmatprep.subr.mxu0 0.0
    %164 = vmatpush1.msra.mxu0 0.0
    %165 = vmatprep.subr.mxu0 0.0
    %166 = vmatpush1.msra.mxu0 0.0
    %167 = vmatprep.subr.mxu0 0.0
    %168 = vmatpush1.msra.mxu0 0.0
    %169 = vmatprep.subr.mxu0 0.0
    %170 = vmatpush1.msra.mxu0 %v30
    %171 = vmatprep.subr.mxu0 0.0
    %172 = vmatpush1.msra.mxu0 %v29
    %173 = vmatprep.subr.mxu0 0.0
    %174 = vmatpush1.msra.mxu0 %v28
    %175 = vmatprep.subr.mxu0 0.0
    %176 = vmatpush1.msra.mxu0 %v27
    %177 = vmatprep.subr.mxu0 0.0
    %178 = vmatpush2.msra.mxu0 0.0
    %179 = vmatprep.subr.mxu0 0.0
    %180 = vmatpush2.msra.mxu0 0.0
    %181 = vmatprep.subr.mxu0 0.0
    %182 = vmatpush2.msra.mxu0 0.0
    %183 = vmatprep.subr.mxu0 0.0
    %184 = vmatpush2.msra.mxu0 0.0
    %185 = vmatprep.subr.mxu0 0.0
    %186 = vmatpush2.msra.mxu0 0.0
    %187 = vmatprep.subr.mxu0 0.0
    %188 = vmatpush2.msra.mxu0 0.0
    %189 = vmatprep.subr.mxu0 0.0
    %190 = vmatpush2.msra.mxu0 0.0
    %191 = vmatprep.subr.mxu0 0.0
    %192 = vmatpush2.msra.mxu0 0.0
    %193 = vmatprep.subr.mxu0 0.0
    %194 = vmatpush2.msra.mxu0 0.0
    %195 = vmatprep.subr.mxu0 0.0
    %196 = vmatpush2.msra.mxu0 0.0
    %197 = vmatprep.subr.mxu0 0.0
    %198 = vmatpush2.msra.mxu0 0.0
    %199 = vmatprep.subr.mxu0 0.0
    %200 = vmatpush2.msra.mxu0 0.0
    %201 = vmatprep.subr.mxu0 0.0
    %202 = vmatpush2.msra.mxu0 0.0
    %203 = vmatprep.subr.mxu0 0.0
    %204 = vmatpush2.msra.mxu0 0.0
    %205 = vmatprep.subr.mxu0 0.0
    %206 = vmatpush2.msra.mxu0 0.0
    %207 = vmatprep.subr.mxu0 0.0
    %208 = vmatpush2.msra.mxu0 0.0
    %209 = vmatprep.mubr.f32.mxu0 0.0
    %210 = vmatmul.mubr.f32.gmra.mxu0 %v143
    %v211 = vpop.f32.mrf.mxu0
    %v212 = vadd.f32 0.0, %v211
    %v213 = vpop.f32.mrf.mxu0
    %214 = vdwg.mxu0
    %215 = vmatprep.subr.mxu0 0.0
    %216 = vmatpush1.msra.mxu0 0.0
    %217 = vmatprep.subr.mxu0 0.0
    %218 = vmatpush1.msra.mxu0 0.0
    %219 = vmatprep.subr.mxu0 0.0
    %220 = vmatpush1.msra.mxu0 0.0
    %221 = vmatprep.subr.mxu0 0.0
    %222 = vmatpush1.msra.mxu0 0.0
    %223 = vmatprep.subr.mxu0 0.0
    %224 = vmatpush1.msra.mxu0 0.0
    %225 = vmatprep.subr.mxu0 0.0
    %226 = vmatpush1.msra.mxu0 0.0
    %227 = vmatprep.subr.mxu0 0.0
    %228 = vmatpush1.msra.mxu0 0.0
    %229 = vmatprep.subr.mxu0 0.0
    %230 = vmatpush1.msra.mxu0 0.0
    %231 = vmatprep.subr.mxu0 0.0
    %232 = vmatpush1.msra.mxu0 0.0
    %233 = vmatprep.subr.mxu0 0.0
    %234 = vmatpush1.msra.mxu0 0.0
    %235 = vmatprep.subr.mxu0 0.0
    %236 = vmatpush1.msra.mxu0 0.0
    %237 = vmatprep.subr.mxu0 0.0
    %238 = vmatpush1.msra.mxu0 0.0
    %239 = vmatprep.subr.mxu0 0.0
    %240 = vmatpush1.msra.mxu0 %v34
    %241 = vmatprep.subr.mxu0 0.0
    %242 = vmatpush1.msra.mxu0 %v33
    %243 = vmatprep.subr.mxu0 0.0
    %244 = vmatpush1.msra.mxu0 %v32
    %245 = vmatprep.subr.mxu0 0.0
    %246 = vmatpush1.msra.mxu0 %v31
    %247 = vmatprep.subr.mxu0 0.0
    %248 = vmatpush2.msra.mxu0 0.0
    %249 = vmatprep.subr.mxu0 0.0
    %250 = vmatpush2.msra.mxu0 0.0
    %251 = vmatprep.subr.mxu0 0.0
    %252 = vmatpush2.msra.mxu0 0.0
    %253 = vmatprep.subr.mxu0 0.0
    %254 = vmatpush2.msra.mxu0 0.0
    %255 = vmatprep.subr.mxu0 0.0
    %256 = vmatpush2.msra.mxu0 0.0
    %257 = vmatprep.subr.mxu0 0.0
    %258 = vmatpush2.msra.mxu0 0.0
    %259 = vmatprep.subr.mxu0 0.0
    %260 = vmatpush2.msra.mxu0 0.0
    %261 = vmatprep.subr.mxu0 0.0
    %262 = vmatpush2.msra.mxu0 0.0
    %263 = vmatprep.subr.mxu0 0.0
    %264 = vmatpush2.msra.mxu0 0.0
    %265 = vmatprep.subr.mxu0 0.0
    %266 = vmatpush2.msra.mxu0 0.0
    %267 = vmatprep.subr.mxu0 0.0
    %268 = vmatpush2.msra.mxu0 0.0
    %269 = vmatprep.subr.mxu0 0.0
    %270 = vmatpush2.msra.mxu0 0.0
    %271 = vmatprep.subr.mxu0 0.0
    %272 = vmatpush2.msra.mxu0 0.0
    %273 = vmatprep.subr.mxu0 0.0
    %274 = vmatpush2.msra.mxu0 0.0
    %275 = vmatprep.subr.mxu0 0.0
    %276 = vmatpush2.msra.mxu0 0.0
    %277 = vmatprep.subr.mxu0 0.0
    %278 = vmatpush2.msra.mxu0 0.0
    %279 = vmatprep.mubr.f32.mxu0 0.0
    %280 = vmatmul.mubr.f32.gmra.mxu0 %v143
    %v281 = vpop.f32.mrf.mxu0
    %v282 = vadd.f32 0.0, %v281
    %v283 = vpop.f32.mrf.mxu0
    %284 = vdwg.mxu0
    %285 = vmatprep.subr.mxu0 0.0
    %286 = vmatpush1.msra.mxu0 0.0
    %287 = vmatprep.subr.mxu0 0.0
    %288 = vmatpush1.msra.mxu0 0.0
    %289 = vmatprep.subr.mxu0 0.0
    %290 = vmatpush1.msra.mxu0 0.0
    %291 = vmatprep.subr.mxu0 0.0
    %292 = vmatpush1.msra.mxu0 0.0
    %293 = vmatprep.subr.mxu0 0.0
    %294 = vmatpush1.msra.mxu0 0.0
    %295 = vmatprep.subr.mxu0 0.0
    %296 = vmatpush1.msra.mxu0 0.0
    %297 = vmatprep.subr.mxu0 0.0
    %298 = vmatpush1.msra.mxu0 0.0
    %299 = vmatprep.subr.mxu0 0.0
    %300 = vmatpush1.msra.mxu0 0.0
    %301 = vmatprep.subr.mxu0 0.0
    %302 = vmatpush1.msra.mxu0 0.0
    %303 = vmatprep.subr.mxu0 0.0
    %304 = vmatpush1.msra.mxu0 0.0
    %305 = vmatprep.subr.mxu0 0.0
    %306 = vmatpush1.msra.mxu0 0.0
    %307 = vmatprep.subr.mxu0 0.0
    %308 = vmatpush1.msra.mxu0 0.0
    %309 = vmatprep.subr.mxu0 0.0
    %310 = vmatpush1.msra.mxu0 %v38
    %311 = vmatprep.subr.mxu0 0.0
    %312 = vmatpush1.msra.mxu0 %v37
    %313 = vmatprep.subr.mxu0 0.0
    %314 = vmatpush1.msra.mxu0 %v36
    %315 = vmatprep.subr.mxu0 0.0
    %316 = vmatpush1.msra.mxu0 %v35
    %317 = vmatprep.subr.mxu0 0.0
    %318 = vmatpush2.msra.mxu0 0.0
    %319 = vmatprep.subr.mxu0 0.0
    %320 = vmatpush2.msra.mxu0 0.0
    %321 = vmatprep.subr.mxu0 0.0
    %322 = vmatpush2.msra.mxu0 0.0
    %323 = vmatprep.subr.mxu0 0.0
    %324 = vmatpush2.msra.mxu0 0.0
    %325 = vmatprep.subr.mxu0 0.0
    %326 = vmatpush2.msra.mxu0 0.0
    %327 = vmatprep.subr.mxu0 0.0
    %328 = vmatpush2.msra.mxu0 0.0
    %329 = vmatprep.subr.mxu0 0.0
    %330 = vmatpush2.msra.mxu0 0.0
    %331 = vmatprep.subr.mxu0 0.0
    %332 = vmatpush2.msra.mxu0 0.0
    %333 = vmatprep.subr.mxu0 0.0
    %334 = vmatpush2.msra.mxu0 0.0
    %335 = vmatprep.subr.mxu0 0.0
    %336 = vmatpush2.msra.mxu0 0.0
    %337 = vmatprep.subr.mxu0 0.0
    %338 = vmatpush2.msra.mxu0 0.0
    %339 = vmatprep.subr.mxu0 0.0
    %340 = vmatpush2.msra.mxu0 0.0
    %341 = vmatprep.subr.mxu0 0.0
    %342 = vmatpush2.msra.mxu0 0.0
    %343 = vmatprep.subr.mxu0 0.0
    %344 = vmatpush2.msra.mxu0 0.0
    %345 = vmatprep.subr.mxu0 0.0
    %346 = vmatpush2.msra.mxu0 0.0
    %347 = vmatprep.subr.mxu0 0.0
    %348 = vmatpush2.msra.mxu0 0.0
    %349 = vmatprep.mubr.f32.mxu0 0.0
    %350 = vmatmul.mubr.f32.gmra.mxu0 %v143
    %v351 = vpop.f32.mrf.mxu0
    %v352 = vadd.f32 0.0, %v351
    %v353 = vpop.f32.mrf.mxu0
    %354 = vdwg.mxu0
    %355 = vmatprep.subr.mxu0 0.0
    %356 = vmatpush1.msra.mxu0 0.0
    %357 = vmatprep.subr.mxu0 0.0
    %358 = vmatpush1.msra.mxu0 0.0
    %359 = vmatprep.subr.mxu0 0.0
    %360 = vmatpush1.msra.mxu0 0.0
    %361 = vmatprep.subr.mxu0 0.0
    %362 = vmatpush1.msra.mxu0 0.0
    %363 = vmatprep.subr.mxu0 0.0
    %364 = vmatpush1.msra.mxu0 0.0
    %365 = vmatprep.subr.mxu0 0.0
    %366 = vmatpush1.msra.mxu0 0.0
    %367 = vmatprep.subr.mxu0 0.0
    %368 = vmatpush1.msra.mxu0 0.0
    %369 = vmatprep.subr.mxu0 0.0
    %370 = vmatpush1.msra.mxu0 0.0
    %371 = vmatprep.subr.mxu0 0.0
    %372 = vmatpush1.msra.mxu0 0.0
    %373 = vmatprep.subr.mxu0 0.0
    %374 = vmatpush1.msra.mxu0 0.0
    %375 = vmatprep.subr.mxu0 0.0
    %376 = vmatpush1.msra.mxu0 0.0
    %377 = vmatprep.subr.mxu0 0.0
    %378 = vmatpush1.msra.mxu0 0.0
    %379 = vmatprep.subr.mxu0 0.0
    %380 = vmatpush1.msra.mxu0 %v42
    %381 = vmatprep.subr.mxu0 0.0
    %382 = vmatpush1.msra.mxu0 %v41
    %383 = vmatprep.subr.mxu0 0.0
    %384 = vmatpush1.msra.mxu0 %v40
    %385 = vmatprep.subr.mxu0 0.0
    %386 = vmatpush1.msra.mxu0 %v39
    %387 = vmatprep.subr.mxu0 0.0
    %388 = vmatpush2.msra.mxu0 0.0
    %389 = vmatprep.subr.mxu0 0.0
    %390 = vmatpush2.msra.mxu0 0.0
    %391 = vmatprep.subr.mxu0 0.0
    %392 = vmatpush2.msra.mxu0 0.0
    %393 = vmatprep.subr.mxu0 0.0
    %394 = vmatpush2.msra.mxu0 0.0
    %395 = vmatprep.subr.mxu0 0.0
    %396 = vmatpush2.msra.mxu0 0.0
    %397 = vmatprep.subr.mxu0 0.0
    %398 = vmatpush2.msra.mxu0 0.0
    %399 = vmatprep.subr.mxu0 0.0
    %400 = vmatpush2.msra.mxu0 0.0
    %401 = vmatprep.subr.mxu0 0.0
    %402 = vmatpush2.msra.mxu0 0.0
    %403 = vmatprep.subr.mxu0 0.0
    %404 = vmatpush2.msra.mxu0 0.0
    %405 = vmatprep.subr.mxu0 0.0
    %406 = vmatpush2.msra.mxu0 0.0
    %407 = vmatprep.subr.mxu0 0.0
    %408 = vmatpush2.msra.mxu0 0.0
    %409 = vmatprep.subr.mxu0 0.0
    %410 = vmatpush2.msra.mxu0 0.0
    %411 = vmatprep.subr.mxu0 0.0
    %412 = vmatpush2.msra.mxu0 0.0
    %413 = vmatprep.subr.mxu0 0.0
    %414 = vmatpush2.msra.mxu0 0.0
    %415 = vmatprep.subr.mxu0 0.0
    %416 = vmatpush2.msra.mxu0 0.0
    %417 = vmatprep.subr.mxu0 0.0
    %418 = vmatpush2.msra.mxu0 0.0
    %419 = vmatprep.mubr.f32.mxu0 0.0
    %420 = vmatmul.mubr.f32.gmra.mxu0 %v143
    %v421 = vpop.f32.mrf.mxu0
    %v422 = vadd.f32 0.0, %v421
    %v423 = vpop.f32.mrf.mxu0
    %424 = vdwg.mxu0
    %425 = vmatprep.subr.mxu0 0.0
    %426 = vmatpush1.msra.mxu0 0.0
    %427 = vmatprep.subr.mxu0 0.0
    %428 = vmatpush1.msra.mxu0 0.0
    %429 = vmatprep.subr.mxu0 0.0
    %430 = vmatpush1.msra.mxu0 0.0
    %431 = vmatprep.subr.mxu0 0.0
    %432 = vmatpush1.msra.mxu0 0.0
    %433 = vmatprep.subr.mxu0 0.0
    %434 = vmatpush1.msra.mxu0 0.0
    %435 = vmatprep.subr.mxu0 0.0
    %436 = vmatpush1.msra.mxu0 0.0
    %437 = vmatprep.subr.mxu0 0.0
    %438 = vmatpush1.msra.mxu0 0.0
    %439 = vmatprep.subr.mxu0 0.0
    %440 = vmatpush1.msra.mxu0 0.0
    %441 = vmatprep.subr.mxu0 0.0
    %442 = vmatpush1.msra.mxu0 0.0
    %443 = vmatprep.subr.mxu0 0.0
    %444 = vmatpush1.msra.mxu0 0.0
    %445 = vmatprep.subr.mxu0 0.0
    %446 = vmatpush1.msra.mxu0 0.0
    %447 = vmatprep.subr.mxu0 0.0
    %448 = vmatpush1.msra.mxu0 0.0
    %449 = vmatprep.subr.mxu0 0.0
    %450 = vmatpush1.msra.mxu0 %v46
    %451 = vmatprep.subr.mxu0 0.0
    %452 = vmatpush1.msra.mxu0 %v45
    %453 = vmatprep.subr.mxu0 0.0
    %454 = vmatpush1.msra.mxu0 %v44
    %455 = vmatprep.subr.mxu0 0.0
    %456 = vmatpush1.msra.mxu0 %v43
    %457 = vmatprep.subr.mxu0 0.0
    %458 = vmatpush2.msra.mxu0 0.0
    %459 = vmatprep.subr.mxu0 0.0
    %460 = vmatpush2.msra.mxu0 0.0
    %461 = vmatprep.subr.mxu0 0.0
    %462 = vmatpush2.msra.mxu0 0.0
    %463 = vmatprep.subr.mxu0 0.0
    %464 = vmatpush2.msra.mxu0 0.0
    %465 = vmatprep.subr.mxu0 0.0
    %466 = vmatpush2.msra.mxu0 0.0
    %467 = vmatprep.subr.mxu0 0.0
    %468 = vmatpush2.msra.mxu0 0.0
    %469 = vmatprep.subr.mxu0 0.0
    %470 = vmatpush2.msra.mxu0 0.0
    %471 = vmatprep.subr.mxu0 0.0
    %472 = vmatpush2.msra.mxu0 0.0
    %473 = vmatprep.subr.mxu0 0.0
    %474 = vmatpush2.msra.mxu0 0.0
    %475 = vmatprep.subr.mxu0 0.0
    %476 = vmatpush2.msra.mxu0 0.0
    %477 = vmatprep.subr.mxu0 0.0
    %478 = vmatpush2.msra.mxu0 0.0
    %479 = vmatprep.subr.mxu0 0.0
    %480 = vmatpush2.msra.mxu0 0.0
    %481 = vmatprep.subr.mxu0 0.0
    %482 = vmatpush2.msra.mxu0 0.0
    %483 = vmatprep.subr.mxu0 0.0
    %484 = vmatpush2.msra.mxu0 0.0
    %485 = vmatprep.subr.mxu0 0.0
    %486 = vmatpush2.msra.mxu0 0.0
    %487 = vmatprep.subr.mxu0 0.0
    %488 = vmatpush2.msra.mxu0 0.0
    %489 = vmatprep.mubr.f32.mxu0 0.0
    %490 = vmatmul.mubr.f32.gmra.mxu0 %v143
    %v491 = vpop.f32.mrf.mxu0
    %v492 = vadd.f32 0.0, %v491
    %v493 = vpop.f32.mrf.mxu0
    %494 = vdwg.mxu0
    %495 = vmatprep.subr.mxu0 0.0
    %496 = vmatpush1.msra.mxu0 0.0
    %497 = vmatprep.subr.mxu0 0.0
    %498 = vmatpush1.msra.mxu0 0.0
    %499 = vmatprep.subr.mxu0 0.0
    %500 = vmatpush1.msra.mxu0 0.0
    %501 = vmatprep.subr.mxu0 0.0
    %502 = vmatpush1.msra.mxu0 0.0
    %503 = vmatprep.subr.mxu0 0.0
    %504 = vmatpush1.msra.mxu0 0.0
    %505 = vmatprep.subr.mxu0 0.0
    %506 = vmatpush1.msra.mxu0 0.0
    %507 = vmatprep.subr.mxu0 0.0
    %508 = vmatpush1.msra.mxu0 0.0
    %509 = vmatprep.subr.mxu0 0.0
    %510 = vmatpush1.msra.mxu0 0.0
    %511 = vmatprep.subr.mxu0 0.0
    %512 = vmatpush1.msra.mxu0 0.0
    %513 = vmatprep.subr.mxu0 0.0
    %514 = vmatpush1.msra.mxu0 0.0
    %515 = vmatprep.subr.mxu0 0.0
    %516 = vmatpush1.msra.mxu0 0.0
    %517 = vmatprep.subr.mxu0 0.0
    %518 = vmatpush1.msra.mxu0 0.0
    %519 = vmatprep.subr.mxu0 0.0
    %520 = vmatpush1.msra.mxu0 %v50
    %521 = vmatprep.subr.mxu0 0.0
    %522 = vmatpush1.msra.mxu0 %v49
    %523 = vmatprep.subr.mxu0 0.0
    %524 = vmatpush1.msra.mxu0 %v48
    %525 = vmatprep.subr.mxu0 0.0
    %526 = vmatpush1.msra.mxu0 %v47
    %527 = vmatprep.subr.mxu0 0.0
    %528 = vmatpush2.msra.mxu0 0.0
    %529 = vmatprep.subr.mxu0 0.0
    %530 = vmatpush2.msra.mxu0 0.0
    %531 = vmatprep.subr.mxu0 0.0
    %532 = vmatpush2.msra.mxu0 0.0
    %533 = vmatprep.subr.mxu0 0.0
    %534 = vmatpush2.msra.mxu0 0.0
    %535 = vmatprep.subr.mxu0 0.0
    %536 = vmatpush2.msra.mxu0 0.0
    %537 = vmatprep.subr.mxu0 0.0
    %538 = vmatpush2.msra.mxu0 0.0
    %539 = vmatprep.subr.mxu0 0.0
    %540 = vmatpush2.msra.mxu0 0.0
    %541 = vmatprep.subr.mxu0 0.0
    %542 = vmatpush2.msra.mxu0 0.0
    %543 = vmatprep.subr.mxu0 0.0
    %544 = vmatpush2.msra.mxu0 0.0
    %545 = vmatprep.subr.mxu0 0.0
    %546 = vmatpush2.msra.mxu0 0.0
    %547 = vmatprep.subr.mxu0 0.0
    %548 = vmatpush2.msra.mxu0 0.0
    %549 = vmatprep.subr.mxu0 0.0
    %550 = vmatpush2.msra.mxu0 0.0
    %551 = vmatprep.subr.mxu0 0.0
    %552 = vmatpush2.msra.mxu0 0.0
    %553 = vmatprep.subr.mxu0 0.0
    %554 = vmatpush2.msra.mxu0 0.0
    %555 = vmatprep.subr.mxu0 0.0
    %556 = vmatpush2.msra.mxu0 0.0
    %557 = vmatprep.subr.mxu0 0.0
    %558 = vmatpush2.msra.mxu0 0.0
    %559 = vmatprep.mubr.f32.mxu0 0.0
    %560 = vmatmul.mubr.f32.gmra.mxu0 %v143
    %v561 = vpop.f32.mrf.mxu0
    %v562 = vadd.f32 0.0, %v561
    %v563 = vpop.f32.mrf.mxu0
    %564 = vdwg.mxu0
    %565 = vmatprep.subr.mxu0 0.0
    %566 = vmatpush1.msra.mxu0 0.0
    %567 = vmatprep.subr.mxu0 0.0
    %568 = vmatpush1.msra.mxu0 0.0
    %569 = vmatprep.subr.mxu0 0.0
    %570 = vmatpush1.msra.mxu0 0.0
    %571 = vmatprep.subr.mxu0 0.0
    %572 = vmatpush1.msra.mxu0 0.0
    %573 = vmatprep.subr.mxu0 0.0
    %574 = vmatpush1.msra.mxu0 0.0
    %575 = vmatprep.subr.mxu0 0.0
    %576 = vmatpush1.msra.mxu0 0.0
    %577 = vmatprep.subr.mxu0 0.0
    %578 = vmatpush1.msra.mxu0 0.0
    %579 = vmatprep.subr.mxu0 0.0
    %580 = vmatpush1.msra.mxu0 0.0
    %581 = vmatprep.subr.mxu0 0.0
    %582 = vmatpush1.msra.mxu0 0.0
    %583 = vmatprep.subr.mxu0 0.0
    %584 = vmatpush1.msra.mxu0 0.0
    %585 = vmatprep.subr.mxu0 0.0
    %586 = vmatpush1.msra.mxu0 0.0
    %587 = vmatprep.subr.mxu0 0.0
    %588 = vmatpush1.msra.mxu0 0.0
    %589 = vmatprep.subr.mxu0 0.0
    %590 = vmatpush1.msra.mxu0 %v54
    %591 = vmatprep.subr.mxu0 0.0
    %592 = vmatpush1.msra.mxu0 %v53
    %593 = vmatprep.subr.mxu0 0.0
    %594 = vmatpush1.msra.mxu0 %v52
    %595 = vmatprep.subr.mxu0 0.0
    %596 = vmatpush1.msra.mxu0 %v51
    %597 = vmatprep.subr.mxu0 0.0
    %598 = vmatpush2.msra.mxu0 0.0
    %599 = vmatprep.subr.mxu0 0.0
    %600 = vmatpush2.msra.mxu0 0.0
    %601 = vmatprep.subr.mxu0 0.0
    %602 = vmatpush2.msra.mxu0 0.0
    %603 = vmatprep.subr.mxu0 0.0
    %604 = vmatpush2.msra.mxu0 0.0
    %605 = vmatprep.subr.mxu0 0.0
    %606 = vmatpush2.msra.mxu0 0.0
    %607 = vmatprep.subr.mxu0 0.0
    %608 = vmatpush2.msra.mxu0 0.0
    %609 = vmatprep.subr.mxu0 0.0
    %610 = vmatpush2.msra.mxu0 0.0
    %611 = vmatprep.subr.mxu0 0.0
    %612 = vmatpush2.msra.mxu0 0.0
    %613 = vmatprep.subr.mxu0 0.0
    %614 = vmatpush2.msra.mxu0 0.0
    %615 = vmatprep.subr.mxu0 0.0
    %616 = vmatpush2.msra.mxu0 0.0
    %617 = vmatprep.subr.mxu0 0.0
    %618 = vmatpush2.msra.mxu0 0.0
    %619 = vmatprep.subr.mxu0 0.0
    %620 = vmatpush2.msra.mxu0 0.0
    %621 = vmatprep.subr.mxu0 0.0
    %622 = vmatpush2.msra.mxu0 0.0
    %623 = vmatprep.subr.mxu0 0.0
    %624 = vmatpush2.msra.mxu0 0.0
    %625 = vmatprep.subr.mxu0 0.0
    %626 = vmatpush2.msra.mxu0 0.0
    %627 = vmatprep.subr.mxu0 0.0
    %628 = vmatpush2.msra.mxu0 0.0
    %629 = vmatprep.mubr.f32.mxu0 0.0
    %630 = vmatmul.mubr.f32.gmra.mxu0 %v143
    %v631 = vpop.f32.mrf.mxu0
    %v632 = vadd.f32 0.0, %v631
    %v633 = vpop.f32.mrf.mxu0
    %634 = vdwg.mxu0
    %635 = vmatprep.subr.mxu0 0.0
    %636 = vmatpush1.msra.mxu0 0.0
    %637 = vmatprep.subr.mxu0 0.0
    %638 = vmatpush1.msra.mxu0 0.0
    %639 = vmatprep.subr.mxu0 0.0
    %640 = vmatpush1.msra.mxu0 0.0
    %641 = vmatprep.subr.mxu0 0.0
    %642 = vmatpush1.msra.mxu0 0.0
    %643 = vmatprep.subr.mxu0 0.0
    %644 = vmatpush1.msra.mxu0 0.0
    %645 = vmatprep.subr.mxu0 0.0
    %646 = vmatpush1.msra.mxu0 0.0
    %647 = vmatprep.subr.mxu0 0.0
    %648 = vmatpush1.msra.mxu0 0.0
    %649 = vmatprep.subr.mxu0 0.0
    %650 = vmatpush1.msra.mxu0 0.0
    %651 = vmatprep.subr.mxu0 0.0
    %652 = vmatpush1.msra.mxu0 0.0
    %653 = vmatprep.subr.mxu0 0.0
    %654 = vmatpush1.msra.mxu0 0.0
    %655 = vmatprep.subr.mxu0 0.0
    %656 = vmatpush1.msra.mxu0 0.0
    %657 = vmatprep.subr.mxu0 0.0
    %658 = vmatpush1.msra.mxu0 0.0
    %659 = vmatprep.subr.mxu0 0.0
    %660 = vmatpush1.msra.mxu0 %v58
    %661 = vmatprep.subr.mxu0 0.0
    %662 = vmatpush1.msra.mxu0 %v57
    %663 = vmatprep.subr.mxu0 0.0
    %664 = vmatpush1.msra.mxu0 %v56
    %665 = vmatprep.subr.mxu0 0.0
    %666 = vmatpush1.msra.mxu0 %v55
    %667 = vmatprep.subr.mxu0 0.0
    %668 = vmatpush2.msra.mxu0 0.0
    %669 = vmatprep.subr.mxu0 0.0
    %670 = vmatpush2.msra.mxu0 0.0
    %671 = vmatprep.subr.mxu0 0.0
    %672 = vmatpush2.msra.mxu0 0.0
    %673 = vmatprep.subr.mxu0 0.0
    %674 = vmatpush2.msra.mxu0 0.0
    %675 = vmatprep.subr.mxu0 0.0
    %676 = vmatpush2.msra.mxu0 0.0
    %677 = vmatprep.subr.mxu0 0.0
    %678 = vmatpush2.msra.mxu0 0.0
    %679 = vmatprep.subr.mxu0 0.0
    %680 = vmatpush2.msra.mxu0 0.0
    %681 = vmatprep.subr.mxu0 0.0
    %682 = vmatpush2.msra.mxu0 0.0
    %683 = vmatprep.subr.mxu0 0.0
    %684 = vmatpush2.msra.mxu0 0.0
    %685 = vmatprep.subr.mxu0 0.0
    %686 = vmatpush2.msra.mxu0 0.0
    %687 = vmatprep.subr.mxu0 0.0
    %688 = vmatpush2.msra.mxu0 0.0
    %689 = vmatprep.subr.mxu0 0.0
    %690 = vmatpush2.msra.mxu0 0.0
    %691 = vmatprep.subr.mxu0 0.0
    %692 = vmatpush2.msra.mxu0 0.0
    %693 = vmatprep.subr.mxu0 0.0
    %694 = vmatpush2.msra.mxu0 0.0
    %695 = vmatprep.subr.mxu0 0.0
    %696 = vmatpush2.msra.mxu0 0.0
    %697 = vmatprep.subr.mxu0 0.0
    %698 = vmatpush2.msra.mxu0 0.0
    %699 = vmatprep.mubr.f32.mxu0 0.0
    %700 = vmatmul.mubr.f32.gmra.mxu0 %v143
    %v701 = vpop.f32.mrf.mxu0
    %v702 = vadd.f32 0.0, %v701
    %v703 = vpop.f32.mrf.mxu0
    %704 = vdwg.mxu0
    %v706 = vsel %vm141, %v140, 0
    %708 = vmatprep.subr.mxu0 0.0
    %709 = vmatpush1.msra.mxu0 0.0
    %710 = vmatprep.subr.mxu0 0.0
    %711 = vmatpush1.msra.mxu0 0.0
    %712 = vmatprep.subr.mxu0 0.0
    %713 = vmatpush1.msra.mxu0 0.0
    %714 = vmatprep.subr.mxu0 0.0
    %715 = vmatpush1.msra.mxu0 0.0
    %716 = vmatprep.subr.mxu0 0.0
    %717 = vmatpush1.msra.mxu0 0.0
    %718 = vmatprep.subr.mxu0 0.0
    %719 = vmatpush1.msra.mxu0 0.0
    %720 = vmatprep.subr.mxu0 0.0
    %721 = vmatpush1.msra.mxu0 0.0
    %722 = vmatprep.subr.mxu0 0.0
    %723 = vmatpush1.msra.mxu0 0.0
    %724 = vmatprep.subr.mxu0 0.0
    %725 = vmatpush1.msra.mxu0 0.0
    %726 = vmatprep.subr.mxu0 0.0
    %727 = vmatpush1.msra.mxu0 0.0
    %728 = vmatprep.subr.mxu0 0.0
    %729 = vmatpush1.msra.mxu0 0.0
    %730 = vmatprep.subr.mxu0 0.0
    %731 = vmatpush1.msra.mxu0 0.0
    %732 = vmatprep.subr.mxu0 0.0
    %733 = vmatpush1.msra.mxu0 %v62
    %734 = vmatprep.subr.mxu0 0.0
    %735 = vmatpush1.msra.mxu0 %v61
    %736 = vmatprep.subr.mxu0 0.0
    %737 = vmatpush1.msra.mxu0 %v60
    %738 = vmatprep.subr.mxu0 0.0
    %739 = vmatpush1.msra.mxu0 %v59
    %740 = vmatprep.subr.mxu0 0.0
    %741 = vmatpush2.msra.mxu0 0.0
    %742 = vmatprep.subr.mxu0 0.0
    %743 = vmatpush2.msra.mxu0 0.0
    %744 = vmatprep.subr.mxu0 0.0
    %745 = vmatpush2.msra.mxu0 0.0
    %746 = vmatprep.subr.mxu0 0.0
    %747 = vmatpush2.msra.mxu0 0.0
    %748 = vmatprep.subr.mxu0 0.0
    %749 = vmatpush2.msra.mxu0 0.0
    %750 = vmatprep.subr.mxu0 0.0
    %751 = vmatpush2.msra.mxu0 0.0
    %752 = vmatprep.subr.mxu0 0.0
    %753 = vmatpush2.msra.mxu0 0.0
    %754 = vmatprep.subr.mxu0 0.0
    %755 = vmatpush2.msra.mxu0 0.0
    %756 = vmatprep.subr.mxu0 0.0
    %757 = vmatpush2.msra.mxu0 0.0
    %758 = vmatprep.subr.mxu0 0.0
    %759 = vmatpush2.msra.mxu0 0.0
    %760 = vmatprep.subr.mxu0 0.0
    %761 = vmatpush2.msra.mxu0 0.0
    %762 = vmatprep.subr.mxu0 0.0
    %763 = vmatpush2.msra.mxu0 0.0
    %764 = vmatprep.subr.mxu0 0.0
    %765 = vmatpush2.msra.mxu0 0.0
    %766 = vmatprep.subr.mxu0 0.0
    %767 = vmatpush2.msra.mxu0 0.0
    %768 = vmatprep.subr.mxu0 0.0
    %769 = vmatpush2.msra.mxu0 0.0
    %770 = vmatprep.subr.mxu0 0.0
    %771 = vmatpush2.msra.mxu0 0.0
    %772 = vmatprep.mubr.f32.mxu0 0.0
    %773 = vmatmul.mubr.f32.gmra.mxu0 %v706
    %v774 = vpop.f32.mrf.mxu0
    %v775 = vadd.f32 0.0, %v774
    %v776 = vpop.f32.mrf.mxu0
    %777 = vdwg.mxu0
    %778 = vmatprep.subr.mxu0 0.0
    %779 = vmatpush1.msra.mxu0 0.0
    %780 = vmatprep.subr.mxu0 0.0
    %781 = vmatpush1.msra.mxu0 0.0
    %782 = vmatprep.subr.mxu0 0.0
    %783 = vmatpush1.msra.mxu0 0.0
    %784 = vmatprep.subr.mxu0 0.0
    %785 = vmatpush1.msra.mxu0 0.0
    %786 = vmatprep.subr.mxu0 0.0
    %787 = vmatpush1.msra.mxu0 0.0
    %788 = vmatprep.subr.mxu0 0.0
    %789 = vmatpush1.msra.mxu0 0.0
    %790 = vmatprep.subr.mxu0 0.0
    %791 = vmatpush1.msra.mxu0 0.0
    %792 = vmatprep.subr.mxu0 0.0
    %793 = vmatpush1.msra.mxu0 0.0
    %794 = vmatprep.subr.mxu0 0.0
    %795 = vmatpush1.msra.mxu0 0.0
    %796 = vmatprep.subr.mxu0 0.0
    %797 = vmatpush1.msra.mxu0 0.0
    %798 = vmatprep.subr.mxu0 0.0
    %799 = vmatpush1.msra.mxu0 0.0
    %800 = vmatprep.subr.mxu0 0.0
    %801 = vmatpush1.msra.mxu0 0.0
    %802 = vmatprep.subr.mxu0 0.0
    %803 = vmatpush1.msra.mxu0 %v66
    %804 = vmatprep.subr.mxu0 0.0
    %805 = vmatpush1.msra.mxu0 %v65
    %806 = vmatprep.subr.mxu0 0.0
    %807 = vmatpush1.msra.mxu0 %v64
    %808 = vmatprep.subr.mxu0 0.0
    %809 = vmatpush1.msra.mxu0 %v63
    %810 = vmatprep.subr.mxu0 0.0
    %811 = vmatpush2.msra.mxu0 0.0
    %812 = vmatprep.subr.mxu0 0.0
    %813 = vmatpush2.msra.mxu0 0.0
    %814 = vmatprep.subr.mxu0 0.0
    %815 = vmatpush2.msra.mxu0 0.0
    %816 = vmatprep.subr.mxu0 0.0
    %817 = vmatpush2.msra.mxu0 0.0
    %818 = vmatprep.subr.mxu0 0.0
    %819 = vmatpush2.msra.mxu0 0.0
    %820 = vmatprep.subr.mxu0 0.0
    %821 = vmatpush2.msra.mxu0 0.0
    %822 = vmatprep.subr.mxu0 0.0
    %823 = vmatpush2.msra.mxu0 0.0
    %824 = vmatprep.subr.mxu0 0.0
    %825 = vmatpush2.msra.mxu0 0.0
    %826 = vmatprep.subr.mxu0 0.0
    %827 = vmatpush2.msra.mxu0 0.0
    %828 = vmatprep.subr.mxu0 0.0
    %829 = vmatpush2.msra.mxu0 0.0
    %830 = vmatprep.subr.mxu0 0.0
    %831 = vmatpush2.msra.mxu0 0.0
    %832 = vmatprep.subr.mxu0 0.0
    %833 = vmatpush2.msra.mxu0 0.0
    %834 = vmatprep.subr.mxu0 0.0
    %835 = vmatpush2.msra.mxu0 0.0
    %836 = vmatprep.subr.mxu0 0.0
    %837 = vmatpush2.msra.mxu0 0.0
    %838 = vmatprep.subr.mxu0 0.0
    %839 = vmatpush2.msra.mxu0 0.0
    %840 = vmatprep.subr.mxu0 0.0
    %841 = vmatpush2.msra.mxu0 0.0
    %842 = vmatprep.mubr.f32.mxu0 0.0
    %843 = vmatmul.mubr.f32.gmra.mxu0 %v706
    %v844 = vpop.f32.mrf.mxu0
    %v845 = vadd.f32 0.0, %v844
    %v846 = vpop.f32.mrf.mxu0
    %847 = vdwg.mxu0
    %848 = vmatprep.subr.mxu0 0.0
    %849 = vmatpush1.msra.mxu0 0.0
    %850 = vmatprep.subr.mxu0 0.0
    %851 = vmatpush1.msra.mxu0 0.0
    %852 = vmatprep.subr.mxu0 0.0
    %853 = vmatpush1.msra.mxu0 0.0
    %854 = vmatprep.subr.mxu0 0.0
    %855 = vmatpush1.msra.mxu0 0.0
    %856 = vmatprep.subr.mxu0 0.0
    %857 = vmatpush1.msra.mxu0 0.0
    %858 = vmatprep.subr.mxu0 0.0
    %859 = vmatpush1.msra.mxu0 0.0
    %860 = vmatprep.subr.mxu0 0.0
    %861 = vmatpush1.msra.mxu0 0.0
    %862 = vmatprep.subr.mxu0 0.0
    %863 = vmatpush1.msra.mxu0 0.0
    %864 = vmatprep.subr.mxu0 0.0
    %865 = vmatpush1.msra.mxu0 0.0
    %866 = vmatprep.subr.mxu0 0.0
    %867 = vmatpush1.msra.mxu0 0.0
    %868 = vmatprep.subr.mxu0 0.0
    %869 = vmatpush1.msra.mxu0 0.0
    %870 = vmatprep.subr.mxu0 0.0
    %871 = vmatpush1.msra.mxu0 0.0
    %872 = vmatprep.subr.mxu0 0.0
    %873 = vmatpush1.msra.mxu0 %v70
    %874 = vmatprep.subr.mxu0 0.0
    %875 = vmatpush1.msra.mxu0 %v69
    %876 = vmatprep.subr.mxu0 0.0
    %877 = vmatpush1.msra.mxu0 %v68
    %878 = vmatprep.subr.mxu0 0.0
    %879 = vmatpush1.msra.mxu0 %v67
    %880 = vmatprep.subr.mxu0 0.0
    %881 = vmatpush2.msra.mxu0 0.0
    %882 = vmatprep.subr.mxu0 0.0
    %883 = vmatpush2.msra.mxu0 0.0
    %884 = vmatprep.subr.mxu0 0.0
    %885 = vmatpush2.msra.mxu0 0.0
    %886 = vmatprep.subr.mxu0 0.0
    %887 = vmatpush2.msra.mxu0 0.0
    %888 = vmatprep.subr.mxu0 0.0
    %889 = vmatpush2.msra.mxu0 0.0
    %890 = vmatprep.subr.mxu0 0.0
    %891 = vmatpush2.msra.mxu0 0.0
    %892 = vmatprep.subr.mxu0 0.0
    %893 = vmatpush2.msra.mxu0 0.0
    %894 = vmatprep.subr.mxu0 0.0
    %895 = vmatpush2.msra.mxu0 0.0
    %896 = vmatprep.subr.mxu0 0.0
    %897 = vmatpush2.msra.mxu0 0.0
    %898 = vmatprep.subr.mxu0 0.0
    %899 = vmatpush2.msra.mxu0 0.0
    %900 = vmatprep.subr.mxu0 0.0
    %901 = vmatpush2.msra.mxu0 0.0
    %902 = vmatprep.subr.mxu0 0.0
    %903 = vmatpush2.msra.mxu0 0.0
    %904 = vmatprep.subr.mxu0 0.0
    %905 = vmatpush2.msra.mxu0 0.0
    %906 = vmatprep.subr.mxu0 0.0
    %907 = vmatpush2.msra.mxu0 0.0
    %908 = vmatprep.subr.mxu0 0.0
    %909 = vmatpush2.msra.mxu0 0.0
    %910 = vmatprep.subr.mxu0 0.0
    %911 = vmatpush2.msra.mxu0 0.0
    %912 = vmatprep.mubr.f32.mxu0 0.0
    %913 = vmatmul.mubr.f32.gmra.mxu0 %v706
    %v914 = vpop.f32.mrf.mxu0
    %v915 = vadd.f32 0.0, %v914
    %v916 = vpop.f32.mrf.mxu0
    %917 = vdwg.mxu0
    %918 = vmatprep.subr.mxu0 0.0
    %919 = vmatpush1.msra.mxu0 0.0
    %920 = vmatprep.subr.mxu0 0.0
    %921 = vmatpush1.msra.mxu0 0.0
    %922 = vmatprep.subr.mxu0 0.0
    %923 = vmatpush1.msra.mxu0 0.0
    %924 = vmatprep.subr.mxu0 0.0
    %925 = vmatpush1.msra.mxu0 0.0
    %926 = vmatprep.subr.mxu0 0.0
    %927 = vmatpush1.msra.mxu0 0.0
    %928 = vmatprep.subr.mxu0 0.0
    %929 = vmatpush1.msra.mxu0 0.0
    %930 = vmatprep.subr.mxu0 0.0
    %931 = vmatpush1.msra.mxu0 0.0
    %932 = vmatprep.subr.mxu0 0.0
    %933 = vmatpush1.msra.mxu0 0.0
    %934 = vmatprep.subr.mxu0 0.0
    %935 = vmatpush1.msra.mxu0 0.0
    %936 = vmatprep.subr.mxu0 0.0
    %937 = vmatpush1.msra.mxu0 0.0
    %938 = vmatprep.subr.mxu0 0.0
    %939 = vmatpush1.msra.mxu0 0.0
    %940 = vmatprep.subr.mxu0 0.0
    %941 = vmatpush1.msra.mxu0 0.0
    %942 = vmatprep.subr.mxu0 0.0
    %943 = vmatpush1.msra.mxu0 %v74
    %944 = vmatprep.subr.mxu0 0.0
    %945 = vmatpush1.msra.mxu0 %v73
    %946 = vmatprep.subr.mxu0 0.0
    %947 = vmatpush1.msra.mxu0 %v72
    %948 = vmatprep.subr.mxu0 0.0
    %949 = vmatpush1.msra.mxu0 %v71
    %950 = vmatprep.subr.mxu0 0.0
    %951 = vmatpush2.msra.mxu0 0.0
    %952 = vmatprep.subr.mxu0 0.0
    %953 = vmatpush2.msra.mxu0 0.0
    %954 = vmatprep.subr.mxu0 0.0
    %955 = vmatpush2.msra.mxu0 0.0
    %956 = vmatprep.subr.mxu0 0.0
    %957 = vmatpush2.msra.mxu0 0.0
    %958 = vmatprep.subr.mxu0 0.0
    %959 = vmatpush2.msra.mxu0 0.0
    %960 = vmatprep.subr.mxu0 0.0
    %961 = vmatpush2.msra.mxu0 0.0
    %962 = vmatprep.subr.mxu0 0.0
    %963 = vmatpush2.msra.mxu0 0.0
    %964 = vmatprep.subr.mxu0 0.0
    %965 = vmatpush2.msra.mxu0 0.0
    %966 = vmatprep.subr.mxu0 0.0
    %967 = vmatpush2.msra.mxu0 0.0
    %968 = vmatprep.subr.mxu0 0.0
    %969 = vmatpush2.msra.mxu0 0.0
    %970 = vmatprep.subr.mxu0 0.0
    %971 = vmatpush2.msra.mxu0 0.0
    %972 = vmatprep.subr.mxu0 0.0
    %973 = vmatpush2.msra.mxu0 0.0
    %974 = vmatprep.subr.mxu0 0.0
    %975 = vmatpush2.msra.mxu0 0.0
    %976 = vmatprep.subr.mxu0 0.0
    %977 = vmatpush2.msra.mxu0 0.0
    %978 = vmatprep.subr.mxu0 0.0
    %979 = vmatpush2.msra.mxu0 0.0
    %980 = vmatprep.subr.mxu0 0.0
    %981 = vmatpush2.msra.mxu0 0.0
    %982 = vmatprep.mubr.f32.mxu0 0.0
    %983 = vmatmul.mubr.f32.gmra.mxu0 %v706
    %v984 = vpop.f32.mrf.mxu0
    %v985 = vadd.f32 0.0, %v984
    %v986 = vpop.f32.mrf.mxu0
    %987 = vdwg.mxu0
    %988 = vmatprep.subr.mxu0 0.0
    %989 = vmatpush1.msra.mxu0 0.0
    %990 = vmatprep.subr.mxu0 0.0
    %991 = vmatpush1.msra.mxu0 0.0
    %992 = vmatprep.subr.mxu0 0.0
    %993 = vmatpush1.msra.mxu0 0.0
    %994 = vmatprep.subr.mxu0 0.0
    %995 = vmatpush1.msra.mxu0 0.0
    %996 = vmatprep.subr.mxu0 0.0
    %997 = vmatpush1.msra.mxu0 0.0
    %998 = vmatprep.subr.mxu0 0.0
    %999 = vmatpush1.msra.mxu0 0.0
    %1000 = vmatprep.subr.mxu0 0.0
    %1001 = vmatpush1.msra.mxu0 0.0
    %1002 = vmatprep.subr.mxu0 0.0
    %1003 = vmatpush1.msra.mxu0 0.0
    %1004 = vmatprep.subr.mxu0 0.0
    %1005 = vmatpush1.msra.mxu0 0.0
    %1006 = vmatprep.subr.mxu0 0.0
    %1007 = vmatpush1.msra.mxu0 0.0
    %1008 = vmatprep.subr.mxu0 0.0
    %1009 = vmatpush1.msra.mxu0 0.0
    %1010 = vmatprep.subr.mxu0 0.0
    %1011 = vmatpush1.msra.mxu0 0.0
    %1012 = vmatprep.subr.mxu0 0.0
    %1013 = vmatpush1.msra.mxu0 %v78
    %1014 = vmatprep.subr.mxu0 0.0
    %1015 = vmatpush1.msra.mxu0 %v77
    %1016 = vmatprep.subr.mxu0 0.0
    %1017 = vmatpush1.msra.mxu0 %v76
    %1018 = vmatprep.subr.mxu0 0.0
    %1019 = vmatpush1.msra.mxu0 %v75
    %1020 = vmatprep.subr.mxu0 0.0
    %1021 = vmatpush2.msra.mxu0 0.0
    %1022 = vmatprep.subr.mxu0 0.0
    %1023 = vmatpush2.msra.mxu0 0.0
    %1024 = vmatprep.subr.mxu0 0.0
    %1025 = vmatpush2.msra.mxu0 0.0
    %1026 = vmatprep.subr.mxu0 0.0
    %1027 = vmatpush2.msra.mxu0 0.0
    %1028 = vmatprep.subr.mxu0 0.0
    %1029 = vmatpush2.msra.mxu0 0.0
    %1030 = vmatprep.subr.mxu0 0.0
    %1031 = vmatpush2.msra.mxu0 0.0
    %1032 = vmatprep.subr.mxu0 0.0
    %1033 = vmatpush2.msra.mxu0 0.0
    %1034 = vmatprep.subr.mxu0 0.0
    %1035 = vmatpush2.msra.mxu0 0.0
    %1036 = vmatprep.subr.mxu0 0.0
    %1037 = vmatpush2.msra.mxu0 0.0
    %1038 = vmatprep.subr.mxu0 0.0
    %1039 = vmatpush2.msra.mxu0 0.0
    %1040 = vmatprep.subr.mxu0 0.0
    %1041 = vmatpush2.msra.mxu0 0.0
    %1042 = vmatprep.subr.mxu0 0.0
    %1043 = vmatpush2.msra.mxu0 0.0
    %1044 = vmatprep.subr.mxu0 0.0
    %1045 = vmatpush2.msra.mxu0 0.0
    %1046 = vmatprep.subr.mxu0 0.0
    %1047 = vmatpush2.msra.mxu0 0.0
    %1048 = vmatprep.subr.mxu0 0.0
    %1049 = vmatpush2.msra.mxu0 0.0
    %1050 = vmatprep.subr.mxu0 0.0
    %1051 = vmatpush2.msra.mxu0 0.0
    %1052 = vmatprep.mubr.f32.mxu0 0.0
    %1053 = vmatmul.mubr.f32.gmra.mxu0 %v706
    %v1054 = vpop.f32.mrf.mxu0
    %v1055 = vadd.f32 0.0, %v1054
    %v1056 = vpop.f32.mrf.mxu0
    %1057 = vdwg.mxu0
    %1058 = vmatprep.subr.mxu0 0.0
    %1059 = vmatpush1.msra.mxu0 0.0
    %1060 = vmatprep.subr.mxu0 0.0
    %1061 = vmatpush1.msra.mxu0 0.0
    %1062 = vmatprep.subr.mxu0 0.0
    %1063 = vmatpush1.msra.mxu0 0.0
    %1064 = vmatprep.subr.mxu0 0.0
    %1065 = vmatpush1.msra.mxu0 0.0
    %1066 = vmatprep.subr.mxu0 0.0
    %1067 = vmatpush1.msra.mxu0 0.0
    %1068 = vmatprep.subr.mxu0 0.0
    %1069 = vmatpush1.msra.mxu0 0.0
    %1070 = vmatprep.subr.mxu0 0.0
    %1071 = vmatpush1.msra.mxu0 0.0
    %1072 = vmatprep.subr.mxu0 0.0
    %1073 = vmatpush1.msra.mxu0 0.0
    %1074 = vmatprep.subr.mxu0 0.0
    %1075 = vmatpush1.msra.mxu0 0.0
    %1076 = vmatprep.subr.mxu0 0.0
    %1077 = vmatpush1.msra.mxu0 0.0
    %1078 = vmatprep.subr.mxu0 0.0
    %1079 = vmatpush1.msra.mxu0 0.0
    %1080 = vmatprep.subr.mxu0 0.0
    %1081 = vmatpush1.msra.mxu0 0.0
    %1082 = vmatprep.subr.mxu0 0.0
    %1083 = vmatpush1.msra.mxu0 %v82
    %1084 = vmatprep.subr.mxu0 0.0
    %1085 = vmatpush1.msra.mxu0 %v81
    %1086 = vmatprep.subr.mxu0 0.0
    %1087 = vmatpush1.msra.mxu0 %v80
    %1088 = vmatprep.subr.mxu0 0.0
    %1089 = vmatpush1.msra.mxu0 %v79
    %1090 = vmatprep.subr.mxu0 0.0
    %1091 = vmatpush2.msra.mxu0 0.0
    %1092 = vmatprep.subr.mxu0 0.0
    %1093 = vmatpush2.msra.mxu0 0.0
    %1094 = vmatprep.subr.mxu0 0.0
    %1095 = vmatpush2.msra.mxu0 0.0
    %1096 = vmatprep.subr.mxu0 0.0
    %1097 = vmatpush2.msra.mxu0 0.0
    %1098 = vmatprep.subr.mxu0 0.0
    %1099 = vmatpush2.msra.mxu0 0.0
    %1100 = vmatprep.subr.mxu0 0.0
    %1101 = vmatpush2.msra.mxu0 0.0
    %1102 = vmatprep.subr.mxu0 0.0
    %1103 = vmatpush2.msra.mxu0 0.0
    %1104 = vmatprep.subr.mxu0 0.0
    %1105 = vmatpush2.msra.mxu0 0.0
    %1106 = vmatprep.subr.mxu0 0.0
    %1107 = vmatpush2.msra.mxu0 0.0
    %1108 = vmatprep.subr.mxu0 0.0
    %1109 = vmatpush2.msra.mxu0 0.0
    %1110 = vmatprep.subr.mxu0 0.0
    %1111 = vmatpush2.msra.mxu0 0.0
    %1112 = vmatprep.subr.mxu0 0.0
    %1113 = vmatpush2.msra.mxu0 0.0
    %1114 = vmatprep.subr.mxu0 0.0
    %1115 = vmatpush2.msra.mxu0 0.0
    %1116 = vmatprep.subr.mxu0 0.0
    %1117 = vmatpush2.msra.mxu0 0.0
    %1118 = vmatprep.subr.mxu0 0.0
    %1119 = vmatpush2.msra.mxu0 0.0
    %1120 = vmatprep.subr.mxu0 0.0
    %1121 = vmatpush2.msra.mxu0 0.0
    %1122 = vmatprep.mubr.f32.mxu0 0.0
    %1123 = vmatmul.mubr.f32.gmra.mxu0 %v706
    %v1124 = vpop.f32.mrf.mxu0
    %v1125 = vadd.f32 0.0, %v1124
    %v1126 = vpop.f32.mrf.mxu0
    %1127 = vdwg.mxu0
    %1128 = vmatprep.subr.mxu0 0.0
    %1129 = vmatpush1.msra.mxu0 0.0
    %1130 = vmatprep.subr.mxu0 0.0
    %1131 = vmatpush1.msra.mxu0 0.0
    %1132 = vmatprep.subr.mxu0 0.0
    %1133 = vmatpush1.msra.mxu0 0.0
    %1134 = vmatprep.subr.mxu0 0.0
    %1135 = vmatpush1.msra.mxu0 0.0
    %1136 = vmatprep.subr.mxu0 0.0
    %1137 = vmatpush1.msra.mxu0 0.0
    %1138 = vmatprep.subr.mxu0 0.0
    %1139 = vmatpush1.msra.mxu0 0.0
    %1140 = vmatprep.subr.mxu0 0.0
    %1141 = vmatpush1.msra.mxu0 0.0
    %1142 = vmatprep.subr.mxu0 0.0
    %1143 = vmatpush1.msra.mxu0 0.0
    %1144 = vmatprep.subr.mxu0 0.0
    %1145 = vmatpush1.msra.mxu0 0.0
    %1146 = vmatprep.subr.mxu0 0.0
    %1147 = vmatpush1.msra.mxu0 0.0
    %1148 = vmatprep.subr.mxu0 0.0
    %1149 = vmatpush1.msra.mxu0 0.0
    %1150 = vmatprep.subr.mxu0 0.0
    %1151 = vmatpush1.msra.mxu0 0.0
    %1152 = vmatprep.subr.mxu0 0.0
    %1153 = vmatpush1.msra.mxu0 %v86
    %1154 = vmatprep.subr.mxu0 0.0
    %1155 = vmatpush1.msra.mxu0 %v85
    %1156 = vmatprep.subr.mxu0 0.0
    %1157 = vmatpush1.msra.mxu0 %v84
    %1158 = vmatprep.subr.mxu0 0.0
    %1159 = vmatpush1.msra.mxu0 %v83
    %1160 = vmatprep.subr.mxu0 0.0
    %1161 = vmatpush2.msra.mxu0 0.0
    %1162 = vmatprep.subr.mxu0 0.0
    %1163 = vmatpush2.msra.mxu0 0.0
    %1164 = vmatprep.subr.mxu0 0.0
    %1165 = vmatpush2.msra.mxu0 0.0
    %1166 = vmatprep.subr.mxu0 0.0
    %1167 = vmatpush2.msra.mxu0 0.0
    %1168 = vmatprep.subr.mxu0 0.0
    %1169 = vmatpush2.msra.mxu0 0.0
    %1170 = vmatprep.subr.mxu0 0.0
    %1171 = vmatpush2.msra.mxu0 0.0
    %1172 = vmatprep.subr.mxu0 0.0
    %1173 = vmatpush2.msra.mxu0 0.0
    %1174 = vmatprep.subr.mxu0 0.0
    %1175 = vmatpush2.msra.mxu0 0.0
    %1176 = vmatprep.subr.mxu0 0.0
    %1177 = vmatpush2.msra.mxu0 0.0
    %1178 = vmatprep.subr.mxu0 0.0
    %1179 = vmatpush2.msra.mxu0 0.0
    %1180 = vmatprep.subr.mxu0 0.0
    %1181 = vmatpush2.msra.mxu0 0.0
    %1182 = vmatprep.subr.mxu0 0.0
    %1183 = vmatpush2.msra.mxu0 0.0
    %1184 = vmatprep.subr.mxu0 0.0
    %1185 = vmatpush2.msra.mxu0 0.0
    %1186 = vmatprep.subr.mxu0 0.0
    %1187 = vmatpush2.msra.mxu0 0.0
    %1188 = vmatprep.subr.mxu0 0.0
    %1189 = vmatpush2.msra.mxu0 0.0
    %1190 = vmatprep.subr.mxu0 0.0
    %1191 = vmatpush2.msra.mxu0 0.0
    %1192 = vmatprep.mubr.f32.mxu0 0.0
    %1193 = vmatmul.mubr.f32.gmra.mxu0 %v706
    %v1194 = vpop.f32.mrf.mxu0
    %v1195 = vadd.f32 0.0, %v1194
    %v1196 = vpop.f32.mrf.mxu0
    %1197 = vdwg.mxu0
    %1198 = vmatprep.subr.mxu0 0.0
    %1199 = vmatpush1.msra.mxu0 0.0
    %1200 = vmatprep.subr.mxu0 0.0
    %1201 = vmatpush1.msra.mxu0 0.0
    %1202 = vmatprep.subr.mxu0 0.0
    %1203 = vmatpush1.msra.mxu0 0.0
    %1204 = vmatprep.subr.mxu0 0.0
    %1205 = vmatpush1.msra.mxu0 0.0
    %1206 = vmatprep.subr.mxu0 0.0
    %1207 = vmatpush1.msra.mxu0 0.0
    %1208 = vmatprep.subr.mxu0 0.0
    %1209 = vmatpush1.msra.mxu0 0.0
    %1210 = vmatprep.subr.mxu0 0.0
    %1211 = vmatpush1.msra.mxu0 0.0
    %1212 = vmatprep.subr.mxu0 0.0
    %1213 = vmatpush1.msra.mxu0 0.0
    %1214 = vmatprep.subr.mxu0 0.0
    %1215 = vmatpush1.msra.mxu0 0.0
    %1216 = vmatprep.subr.mxu0 0.0
    %1217 = vmatpush1.msra.mxu0 0.0
    %1218 = vmatprep.subr.mxu0 0.0
    %1219 = vmatpush1.msra.mxu0 0.0
    %1220 = vmatprep.subr.mxu0 0.0
    %1221 = vmatpush1.msra.mxu0 0.0
    %1222 = vmatprep.subr.mxu0 0.0
    %1223 = vmatpush1.msra.mxu0 %v90
    %1224 = vmatprep.subr.mxu0 0.0
    %1225 = vmatpush1.msra.mxu0 %v89
    %1226 = vmatprep.subr.mxu0 0.0
    %1227 = vmatpush1.msra.mxu0 %v88
    %1228 = vmatprep.subr.mxu0 0.0
    %1229 = vmatpush1.msra.mxu0 %v87
    %1230 = vmatprep.subr.mxu0 0.0
    %1231 = vmatpush2.msra.mxu0 0.0
    %1232 = vmatprep.subr.mxu0 0.0
    %1233 = vmatpush2.msra.mxu0 0.0
    %1234 = vmatprep.subr.mxu0 0.0
    %1235 = vmatpush2.msra.mxu0 0.0
    %1236 = vmatprep.subr.mxu0 0.0
    %1237 = vmatpush2.msra.mxu0 0.0
    %1238 = vmatprep.subr.mxu0 0.0
    %1239 = vmatpush2.msra.mxu0 0.0
    %1240 = vmatprep.subr.mxu0 0.0
    %1241 = vmatpush2.msra.mxu0 0.0
    %1242 = vmatprep.subr.mxu0 0.0
    %1243 = vmatpush2.msra.mxu0 0.0
    %1244 = vmatprep.subr.mxu0 0.0
    %1245 = vmatpush2.msra.mxu0 0.0
    %1246 = vmatprep.subr.mxu0 0.0
    %1247 = vmatpush2.msra.mxu0 0.0
    %1248 = vmatprep.subr.mxu0 0.0
    %1249 = vmatpush2.msra.mxu0 0.0
    %1250 = vmatprep.subr.mxu0 0.0
    %1251 = vmatpush2.msra.mxu0 0.0
    %1252 = vmatprep.subr.mxu0 0.0
    %1253 = vmatpush2.msra.mxu0 0.0
    %1254 = vmatprep.subr.mxu0 0.0
    %1255 = vmatpush2.msra.mxu0 0.0
    %1256 = vmatprep.subr.mxu0 0.0
    %1257 = vmatpush2.msra.mxu0 0.0
    %1258 = vmatprep.subr.mxu0 0.0
    %1259 = vmatpush2.msra.mxu0 0.0
    %1260 = vmatprep.subr.mxu0 0.0
    %1261 = vmatpush2.msra.mxu0 0.0
    %1262 = vmatprep.mubr.f32.mxu0 0.0
    %1263 = vmatmul.mubr.f32.gmra.mxu0 %v706
    %v1264 = vpop.f32.mrf.mxu0
    %v1265 = vadd.f32 0.0, %v1264
    %v1266 = vpop.f32.mrf.mxu0
    %1267 = vdwg.mxu0
    %1268 = vmatprep.subr.mxu0 0.0
    %1269 = vmatpush1.msra.mxu0 0.0
    %1270 = vmatprep.subr.mxu0 0.0
    %1271 = vmatpush1.msra.mxu0 0.0
    %1272 = vmatprep.subr.mxu0 0.0
    %1273 = vmatpush1.msra.mxu0 0.0
    %1274 = vmatprep.subr.mxu0 0.0
    %1275 = vmatpush1.msra.mxu0 0.0
    %1276 = vmatprep.subr.mxu0 0.0
    %1277 = vmatpush1.msra.mxu0 0.0
    %1278 = vmatprep.subr.mxu0 0.0
    %1279 = vmatpush1.msra.mxu0 0.0
    %1280 = vmatprep.subr.mxu0 0.0
    %1281 = vmatpush1.msra.mxu0 0.0
    %1282 = vmatprep.subr.mxu0 0.0
    %1283 = vmatpush1.msra.mxu0 0.0
    %1284 = vmatprep.subr.mxu0 0.0
    %1285 = vmatpush1.msra.mxu0 0.0
    %1286 = vmatprep.subr.mxu0 0.0
    %1287 = vmatpush1.msra.mxu0 0.0
    %1288 = vmatprep.subr.mxu0 0.0
    %1289 = vmatpush1.msra.mxu0 0.0
    %1290 = vmatprep.subr.mxu0 0.0
    %1291 = vmatpush1.msra.mxu0 0.0
    %1292 = vmatprep.subr.mxu0 0.0
    %1293 = vmatpush1.msra.mxu0 %v94
    %1294 = vmatprep.subr.mxu0 0.0
    %1295 = vmatpush1.msra.mxu0 %v93
    %1296 = vmatprep.subr.mxu0 0.0
    %1297 = vmatpush1.msra.mxu0 %v92
    %1298 = vmatprep.subr.mxu0 0.0
    %1299 = vmatpush1.msra.mxu0 %v91
    %1300 = vmatprep.subr.mxu0 0.0
    %1301 = vmatpush2.msra.mxu0 0.0
    %1302 = vmatprep.subr.mxu0 0.0
    %1303 = vmatpush2.msra.mxu0 0.0
    %1304 = vmatprep.subr.mxu0 0.0
    %1305 = vmatpush2.msra.mxu0 0.0
    %1306 = vmatprep.subr.mxu0 0.0
    %1307 = vmatpush2.msra.mxu0 0.0
    %1308 = vmatprep.subr.mxu0 0.0
    %1309 = vmatpush2.msra.mxu0 0.0
    %1310 = vmatprep.subr.mxu0 0.0
    %1311 = vmatpush2.msra.mxu0 0.0
    %1312 = vmatprep.subr.mxu0 0.0
    %1313 = vmatpush2.msra.mxu0 0.0
    %1314 = vmatprep.subr.mxu0 0.0
    %1315 = vmatpush2.msra.mxu0 0.0
    %1316 = vmatprep.subr.mxu0 0.0
    %1317 = vmatpush2.msra.mxu0 0.0
    %1318 = vmatprep.subr.mxu0 0.0
    %1319 = vmatpush2.msra.mxu0 0.0
    %1320 = vmatprep.subr.mxu0 0.0
    %1321 = vmatpush2.msra.mxu0 0.0
    %1322 = vmatprep.subr.mxu0 0.0
    %1323 = vmatpush2.msra.mxu0 0.0
    %1324 = vmatprep.subr.mxu0 0.0
    %1325 = vmatpush2.msra.mxu0 0.0
    %1326 = vmatprep.subr.mxu0 0.0
    %1327 = vmatpush2.msra.mxu0 0.0
    %1328 = vmatprep.subr.mxu0 0.0
    %1329 = vmatpush2.msra.mxu0 0.0
    %1330 = vmatprep.subr.mxu0 0.0
    %1331 = vmatpush2.msra.mxu0 0.0
    %1332 = vmatprep.mubr.f32.mxu0 0.0
    %1333 = vmatmul.mubr.f32.gmra.mxu0 %v706
    %v1334 = vpop.f32.mrf.mxu0
    %v1335 = vadd.f32 0.0, %v1334
    %v1336 = vpop.f32.mrf.mxu0
    %1337 = vdwg.mxu0
    %1338 = vmatprep.subr.mxu0 0.0
    %1339 = vmatpush1.msra.mxu0 0.0
    %1340 = vmatprep.subr.mxu0 0.0
    %1341 = vmatpush1.msra.mxu0 0.0
    %1342 = vmatprep.subr.mxu0 0.0
    %1343 = vmatpush1.msra.mxu0 0.0
    %1344 = vmatprep.subr.mxu0 0.0
    %1345 = vmatpush1.msra.mxu0 0.0
    %1346 = vmatprep.subr.mxu0 0.0
    %1347 = vmatpush1.msra.mxu0 0.0
    %1348 = vmatprep.subr.mxu0 0.0
    %1349 = vmatpush1.msra.mxu0 0.0
    %1350 = vmatprep.subr.mxu0 0.0
    %1351 = vmatpush1.msra.mxu0 0.0
    %1352 = vmatprep.subr.mxu0 0.0
    %1353 = vmatpush1.msra.mxu0 0.0
    %1354 = vmatprep.subr.mxu0 0.0
    %1355 = vmatpush1.msra.mxu0 0.0
    %1356 = vmatprep.subr.mxu0 0.0
    %1357 = vmatpush1.msra.mxu0 0.0
    %1358 = vmatprep.subr.mxu0 0.0
    %1359 = vmatpush1.msra.mxu0 0.0
    %1360 = vmatprep.subr.mxu0 0.0
    %1361 = vmatpush1.msra.mxu0 0.0
    %1362 = vmatprep.subr.mxu0 0.0
    %1363 = vmatpush1.msra.mxu0 %v98
    %1364 = vmatprep.subr.mxu0 0.0
    %1365 = vmatpush1.msra.mxu0 %v97
    %1366 = vmatprep.subr.mxu0 0.0
    %1367 = vmatpush1.msra.mxu0 %v96
    %1368 = vmatprep.subr.mxu0 0.0
    %1369 = vmatpush1.msra.mxu0 %v95
    %1370 = vmatprep.subr.mxu0 0.0
    %1371 = vmatpush2.msra.mxu0 0.0
    %1372 = vmatprep.subr.mxu0 0.0
    %1373 = vmatpush2.msra.mxu0 0.0
    %1374 = vmatprep.subr.mxu0 0.0
    %1375 = vmatpush2.msra.mxu0 0.0
    %1376 = vmatprep.subr.mxu0 0.0
    %1377 = vmatpush2.msra.mxu0 0.0
    %1378 = vmatprep.subr.mxu0 0.0
    %1379 = vmatpush2.msra.mxu0 0.0
    %1380 = vmatprep.subr.mxu0 0.0
    %1381 = vmatpush2.msra.mxu0 0.0
    %1382 = vmatprep.subr.mxu0 0.0
    %1383 = vmatpush2.msra.mxu0 0.0
    %1384 = vmatprep.subr.mxu0 0.0
    %1385 = vmatpush2.msra.mxu0 0.0
    %1386 = vmatprep.subr.mxu0 0.0
    %1387 = vmatpush2.msra.mxu0 0.0
    %1388 = vmatprep.subr.mxu0 0.0
    %1389 = vmatpush2.msra.mxu0 0.0
    %1390 = vmatprep.subr.mxu0 0.0
    %1391 = vmatpush2.msra.mxu0 0.0
    %1392 = vmatprep.subr.mxu0 0.0
    %1393 = vmatpush2.msra.mxu0 0.0
    %1394 = vmatprep.subr.mxu0 0.0
    %1395 = vmatpush2.msra.mxu0 0.0
    %1396 = vmatprep.subr.mxu0 0.0
    %1397 = vmatpush2.msra.mxu0 0.0
    %1398 = vmatprep.subr.mxu0 0.0
    %1399 = vmatpush2.msra.mxu0 0.0
    %1400 = vmatprep.subr.mxu0 0.0
    %1401 = vmatpush2.msra.mxu0 0.0
    %1402 = vmatprep.mubr.f32.mxu0 0.0
    %1403 = vmatmul.mubr.f32.gmra.mxu0 %v706
    %v1404 = vpop.f32.mrf.mxu0
    %v1405 = vadd.f32 0.0, %v1404
    %v1406 = vpop.f32.mrf.mxu0
    %1407 = vdwg.mxu0
    %1408 = vmatprep.subr.mxu0 0.0
    %1409 = vmatpush1.msra.mxu0 0.0
    %1410 = vmatprep.subr.mxu0 0.0
    %1411 = vmatpush1.msra.mxu0 0.0
    %1412 = vmatprep.subr.mxu0 0.0
    %1413 = vmatpush1.msra.mxu0 0.0
    %1414 = vmatprep.subr.mxu0 0.0
    %1415 = vmatpush1.msra.mxu0 0.0
    %1416 = vmatprep.subr.mxu0 0.0
    %1417 = vmatpush1.msra.mxu0 0.0
    %1418 = vmatprep.subr.mxu0 0.0
    %1419 = vmatpush1.msra.mxu0 0.0
    %1420 = vmatprep.subr.mxu0 0.0
    %1421 = vmatpush1.msra.mxu0 0.0
    %1422 = vmatprep.subr.mxu0 0.0
    %1423 = vmatpush1.msra.mxu0 0.0
    %1424 = vmatprep.subr.mxu0 0.0
    %1425 = vmatpush1.msra.mxu0 0.0
    %1426 = vmatprep.subr.mxu0 0.0
    %1427 = vmatpush1.msra.mxu0 0.0
    %1428 = vmatprep.subr.mxu0 0.0
    %1429 = vmatpush1.msra.mxu0 0.0
    %1430 = vmatprep.subr.mxu0 0.0
    %1431 = vmatpush1.msra.mxu0 0.0
    %1432 = vmatprep.subr.mxu0 0.0
    %1433 = vmatpush1.msra.mxu0 %v102
    %1434 = vmatprep.subr.mxu0 0.0
    %1435 = vmatpush1.msra.mxu0 %v101
    %1436 = vmatprep.subr.mxu0 0.0
    %1437 = vmatpush1.msra.mxu0 %v100
    %1438 = vmatprep.subr.mxu0 0.0
    %1439 = vmatpush1.msra.mxu0 %v99
    %1440 = vmatprep.subr.mxu0 0.0
    %1441 = vmatpush2.msra.mxu0 0.0
    %1442 = vmatprep.subr.mxu0 0.0
    %1443 = vmatpush2.msra.mxu0 0.0
    %1444 = vmatprep.subr.mxu0 0.0
    %1445 = vmatpush2.msra.mxu0 0.0
    %1446 = vmatprep.subr.mxu0 0.0
    %1447 = vmatpush2.msra.mxu0 0.0
    %1448 = vmatprep.subr.mxu0 0.0
    %1449 = vmatpush2.msra.mxu0 0.0
    %1450 = vmatprep.subr.mxu0 0.0
    %1451 = vmatpush2.msra.mxu0 0.0
    %1452 = vmatprep.subr.mxu0 0.0
    %1453 = vmatpush2.msra.mxu0 0.0
    %1454 = vmatprep.subr.mxu0 0.0
    %1455 = vmatpush2.msra.mxu0 0.0
    %1456 = vmatprep.subr.mxu0 0.0
    %1457 = vmatpush2.msra.mxu0 0.0
    %1458 = vmatprep.subr.mxu0 0.0
    %1459 = vmatpush2.msra.mxu0 0.0
    %1460 = vmatprep.subr.mxu0 0.0
    %1461 = vmatpush2.msra.mxu0 0.0
    %1462 = vmatprep.subr.mxu0 0.0
    %1463 = vmatpush2.msra.mxu0 0.0
    %1464 = vmatprep.subr.mxu0 0.0
    %1465 = vmatpush2.msra.mxu0 0.0
    %1466 = vmatprep.subr.mxu0 0.0
    %1467 = vmatpush2.msra.mxu0 0.0
    %1468 = vmatprep.subr.mxu0 0.0
    %1469 = vmatpush2.msra.mxu0 0.0
    %1470 = vmatprep.subr.mxu0 0.0
    %1471 = vmatpush2.msra.mxu0 0.0
    %1472 = vmatprep.mubr.f32.mxu0 0.0
    %1473 = vmatmul.mubr.f32.gmra.mxu0 %v706
    %v1474 = vpop.f32.mrf.mxu0
    %v1475 = vadd.f32 0.0, %v1474
    %v1476 = vpop.f32.mrf.mxu0
    %1477 = vdwg.mxu0
    %1478 = vmatprep.subr.mxu0 0.0
    %1479 = vmatpush1.msra.mxu0 0.0
    %1480 = vmatprep.subr.mxu0 0.0
    %1481 = vmatpush1.msra.mxu0 0.0
    %1482 = vmatprep.subr.mxu0 0.0
    %1483 = vmatpush1.msra.mxu0 0.0
    %1484 = vmatprep.subr.mxu0 0.0
    %1485 = vmatpush1.msra.mxu0 0.0
    %1486 = vmatprep.subr.mxu0 0.0
    %1487 = vmatpush1.msra.mxu0 0.0
    %1488 = vmatprep.subr.mxu0 0.0
    %1489 = vmatpush1.msra.mxu0 0.0
    %1490 = vmatprep.subr.mxu0 0.0
    %1491 = vmatpush1.msra.mxu0 0.0
    %1492 = vmatprep.subr.mxu0 0.0
    %1493 = vmatpush1.msra.mxu0 0.0
    %1494 = vmatprep.subr.mxu0 0.0
    %1495 = vmatpush1.msra.mxu0 0.0
    %1496 = vmatprep.subr.mxu0 0.0
    %1497 = vmatpush1.msra.mxu0 0.0
    %1498 = vmatprep.subr.mxu0 0.0
    %1499 = vmatpush1.msra.mxu0 0.0
    %1500 = vmatprep.subr.mxu0 0.0
    %1501 = vmatpush1.msra.mxu0 0.0
    %1502 = vmatprep.subr.mxu0 0.0
    %1503 = vmatpush1.msra.mxu0 %v106
    %1504 = vmatprep.subr.mxu0 0.0
    %1505 = vmatpush1.msra.mxu0 %v105
    %1506 = vmatprep.subr.mxu0 0.0
    %1507 = vmatpush1.msra.mxu0 %v104
    %1508 = vmatprep.subr.mxu0 0.0
    %1509 = vmatpush1.msra.mxu0 %v103
    %1510 = vmatprep.subr.mxu0 0.0
    %1511 = vmatpush2.msra.mxu0 0.0
    %1512 = vmatprep.subr.mxu0 0.0
    %1513 = vmatpush2.msra.mxu0 0.0
    %1514 = vmatprep.subr.mxu0 0.0
    %1515 = vmatpush2.msra.mxu0 0.0
    %1516 = vmatprep.subr.mxu0 0.0
    %1517 = vmatpush2.msra.mxu0 0.0
    %1518 = vmatprep.subr.mxu0 0.0
    %1519 = vmatpush2.msra.mxu0 0.0
    %1520 = vmatprep.subr.mxu0 0.0
    %1521 = vmatpush2.msra.mxu0 0.0
    %1522 = vmatprep.subr.mxu0 0.0
    %1523 = vmatpush2.msra.mxu0 0.0
    %1524 = vmatprep.subr.mxu0 0.0
    %1525 = vmatpush2.msra.mxu0 0.0
    %1526 = vmatprep.subr.mxu0 0.0
    %1527 = vmatpush2.msra.mxu0 0.0
    %1528 = vmatprep.subr.mxu0 0.0
    %1529 = vmatpush2.msra.mxu0 0.0
    %1530 = vmatprep.subr.mxu0 0.0
    %1531 = vmatpush2.msra.mxu0 0.0
    %1532 = vmatprep.subr.mxu0 0.0
    %1533 = vmatpush2.msra.mxu0 0.0
    %1534 = vmatprep.subr.mxu0 0.0
    %1535 = vmatpush2.msra.mxu0 0.0
    %1536 = vmatprep.subr.mxu0 0.0
    %1537 = vmatpush2.msra.mxu0 0.0
    %1538 = vmatprep.subr.mxu0 0.0
    %1539 = vmatpush2.msra.mxu0 0.0
    %1540 = vmatprep.subr.mxu0 0.0
    %1541 = vmatpush2.msra.mxu0 0.0
    %1542 = vmatprep.mubr.f32.mxu0 0.0
    %1543 = vmatmul.mubr.f32.gmra.mxu0 %v706
    %v1544 = vpop.f32.mrf.mxu0
    %v1545 = vadd.f32 0.0, %v1544
    %v1546 = vpop.f32.mrf.mxu0
    %1547 = vdwg.mxu0
    %1548 = vmatprep.subr.mxu0 0.0
    %1549 = vmatpush1.msra.mxu0 0.0
    %1550 = vmatprep.subr.mxu0 0.0
    %1551 = vmatpush1.msra.mxu0 0.0
    %1552 = vmatprep.subr.mxu0 0.0
    %1553 = vmatpush1.msra.mxu0 0.0
    %1554 = vmatprep.subr.mxu0 0.0
    %1555 = vmatpush1.msra.mxu0 0.0
    %1556 = vmatprep.subr.mxu0 0.0
    %1557 = vmatpush1.msra.mxu0 0.0
    %1558 = vmatprep.subr.mxu0 0.0
    %1559 = vmatpush1.msra.mxu0 0.0
    %1560 = vmatprep.subr.mxu0 0.0
    %1561 = vmatpush1.msra.mxu0 0.0
    %1562 = vmatprep.subr.mxu0 0.0
    %1563 = vmatpush1.msra.mxu0 0.0
    %1564 = vmatprep.subr.mxu0 0.0
    %1565 = vmatpush1.msra.mxu0 0.0
    %1566 = vmatprep.subr.mxu0 0.0
    %1567 = vmatpush1.msra.mxu0 0.0
    %1568 = vmatprep.subr.mxu0 0.0
    %1569 = vmatpush1.msra.mxu0 0.0
    %1570 = vmatprep.subr.mxu0 0.0
    %1571 = vmatpush1.msra.mxu0 0.0
    %1572 = vmatprep.subr.mxu0 0.0
    %1573 = vmatpush1.msra.mxu0 %v110
    %1574 = vmatprep.subr.mxu0 0.0
    %1575 = vmatpush1.msra.mxu0 %v109
    %1576 = vmatprep.subr.mxu0 0.0
    %1577 = vmatpush1.msra.mxu0 %v108
    %1578 = vmatprep.subr.mxu0 0.0
    %1579 = vmatpush1.msra.mxu0 %v107
    %1580 = vmatprep.subr.mxu0 0.0
    %1581 = vmatpush2.msra.mxu0 0.0
    %1582 = vmatprep.subr.mxu0 0.0
    %1583 = vmatpush2.msra.mxu0 0.0
    %1584 = vmatprep.subr.mxu0 0.0
    %1585 = vmatpush2.msra.mxu0 0.0
    %1586 = vmatprep.subr.mxu0 0.0
    %1587 = vmatpush2.msra.mxu0 0.0
    %1588 = vmatprep.subr.mxu0 0.0
    %1589 = vmatpush2.msra.mxu0 0.0
    %1590 = vmatprep.subr.mxu0 0.0
    %1591 = vmatpush2.msra.mxu0 0.0
    %1592 = vmatprep.subr.mxu0 0.0
    %1593 = vmatpush2.msra.mxu0 0.0
    %1594 = vmatprep.subr.mxu0 0.0
    %1595 = vmatpush2.msra.mxu0 0.0
    %1596 = vmatprep.subr.mxu0 0.0
    %1597 = vmatpush2.msra.mxu0 0.0
    %1598 = vmatprep.subr.mxu0 0.0
    %1599 = vmatpush2.msra.mxu0 0.0
    %1600 = vmatprep.subr.mxu0 0.0
    %1601 = vmatpush2.msra.mxu0 0.0
    %1602 = vmatprep.subr.mxu0 0.0
    %1603 = vmatpush2.msra.mxu0 0.0
    %1604 = vmatprep.subr.mxu0 0.0
    %1605 = vmatpush2.msra.mxu0 0.0
    %1606 = vmatprep.subr.mxu0 0.0
    %1607 = vmatpush2.msra.mxu0 0.0
    %1608 = vmatprep.subr.mxu0 0.0
    %1609 = vmatpush2.msra.mxu0 0.0
    %1610 = vmatprep.subr.mxu0 0.0
    %1611 = vmatpush2.msra.mxu0 0.0
    %1612 = vmatprep.mubr.f32.mxu0 0.0
    %1613 = vmatmul.mubr.f32.gmra.mxu0 %v706
    %v1614 = vpop.f32.mrf.mxu0
    %v1615 = vadd.f32 0.0, %v1614
    %v1616 = vpop.f32.mrf.mxu0
    %1617 = vdwg.mxu0
    %1618 = vmatprep.subr.mxu0 0.0
    %1619 = vmatpush1.msra.mxu0 0.0
    %1620 = vmatprep.subr.mxu0 0.0
    %1621 = vmatpush1.msra.mxu0 0.0
    %1622 = vmatprep.subr.mxu0 0.0
    %1623 = vmatpush1.msra.mxu0 0.0
    %1624 = vmatprep.subr.mxu0 0.0
    %1625 = vmatpush1.msra.mxu0 0.0
    %1626 = vmatprep.subr.mxu0 0.0
    %1627 = vmatpush1.msra.mxu0 0.0
    %1628 = vmatprep.subr.mxu0 0.0
    %1629 = vmatpush1.msra.mxu0 0.0
    %1630 = vmatprep.subr.mxu0 0.0
    %1631 = vmatpush1.msra.mxu0 0.0
    %1632 = vmatprep.subr.mxu0 0.0
    %1633 = vmatpush1.msra.mxu0 0.0
    %1634 = vmatprep.subr.mxu0 0.0
    %1635 = vmatpush1.msra.mxu0 0.0
    %1636 = vmatprep.subr.mxu0 0.0
    %1637 = vmatpush1.msra.mxu0 0.0
    %1638 = vmatprep.subr.mxu0 0.0
    %1639 = vmatpush1.msra.mxu0 0.0
    %1640 = vmatprep.subr.mxu0 0.0
    %1641 = vmatpush1.msra.mxu0 0.0
    %1642 = vmatprep.subr.mxu0 0.0
    %1643 = vmatpush1.msra.mxu0 %v114
    %1644 = vmatprep.subr.mxu0 0.0
    %1645 = vmatpush1.msra.mxu0 %v113
    %1646 = vmatprep.subr.mxu0 0.0
    %1647 = vmatpush1.msra.mxu0 %v112
    %1648 = vmatprep.subr.mxu0 0.0
    %1649 = vmatpush1.msra.mxu0 %v111
    %1650 = vmatprep.subr.mxu0 0.0
    %1651 = vmatpush2.msra.mxu0 0.0
    %1652 = vmatprep.subr.mxu0 0.0
    %1653 = vmatpush2.msra.mxu0 0.0
    %1654 = vmatprep.subr.mxu0 0.0
    %1655 = vmatpush2.msra.mxu0 0.0
    %1656 = vmatprep.subr.mxu0 0.0
    %1657 = vmatpush2.msra.mxu0 0.0
    %1658 = vmatprep.subr.mxu0 0.0
    %1659 = vmatpush2.msra.mxu0 0.0
    %1660 = vmatprep.subr.mxu0 0.0
    %1661 = vmatpush2.msra.mxu0 0.0
    %1662 = vmatprep.subr.mxu0 0.0
    %1663 = vmatpush2.msra.mxu0 0.0
    %1664 = vmatprep.subr.mxu0 0.0
    %1665 = vmatpush2.msra.mxu0 0.0
    %1666 = vmatprep.subr.mxu0 0.0
    %1667 = vmatpush2.msra.mxu0 0.0
    %1668 = vmatprep.subr.mxu0 0.0
    %1669 = vmatpush2.msra.mxu0 0.0
    %1670 = vmatprep.subr.mxu0 0.0
    %1671 = vmatpush2.msra.mxu0 0.0
    %1672 = vmatprep.subr.mxu0 0.0
    %1673 = vmatpush2.msra.mxu0 0.0
    %1674 = vmatprep.subr.mxu0 0.0
    %1675 = vmatpush2.msra.mxu0 0.0
    %1676 = vmatprep.subr.mxu0 0.0
    %1677 = vmatpush2.msra.mxu0 0.0
    %1678 = vmatprep.subr.mxu0 0.0
    %1679 = vmatpush2.msra.mxu0 0.0
    %1680 = vmatprep.subr.mxu0 0.0
    %1681 = vmatpush2.msra.mxu0 0.0
    %1682 = vmatprep.mubr.f32.mxu0 0.0
    %1683 = vmatmul.mubr.f32.gmra.mxu0 %v706
    %v1684 = vpop.f32.mrf.mxu0
    %v1685 = vadd.f32 0.0, %v1684
    %v1686 = vpop.f32.mrf.mxu0
    %1687 = vdwg.mxu0
    %1688 = vmatprep.subr.mxu0 0.0
    %1689 = vmatpush1.msra.mxu0 0.0
    %1690 = vmatprep.subr.mxu0 0.0
    %1691 = vmatpush1.msra.mxu0 0.0
    %1692 = vmatprep.subr.mxu0 0.0
    %1693 = vmatpush1.msra.mxu0 0.0
    %1694 = vmatprep.subr.mxu0 0.0
    %1695 = vmatpush1.msra.mxu0 0.0
    %1696 = vmatprep.subr.mxu0 0.0
    %1697 = vmatpush1.msra.mxu0 0.0
    %1698 = vmatprep.subr.mxu0 0.0
    %1699 = vmatpush1.msra.mxu0 0.0
    %1700 = vmatprep.subr.mxu0 0.0
    %1701 = vmatpush1.msra.mxu0 0.0
    %1702 = vmatprep.subr.mxu0 0.0
    %1703 = vmatpush1.msra.mxu0 0.0
    %1704 = vmatprep.subr.mxu0 0.0
    %1705 = vmatpush1.msra.mxu0 0.0
    %1706 = vmatprep.subr.mxu0 0.0
    %1707 = vmatpush1.msra.mxu0 0.0
    %1708 = vmatprep.subr.mxu0 0.0
    %1709 = vmatpush1.msra.mxu0 0.0
    %1710 = vmatprep.subr.mxu0 0.0
    %1711 = vmatpush1.msra.mxu0 0.0
    %1712 = vmatprep.subr.mxu0 0.0
    %1713 = vmatpush1.msra.mxu0 %v118
    %1714 = vmatprep.subr.mxu0 0.0
    %1715 = vmatpush1.msra.mxu0 %v117
    %1716 = vmatprep.subr.mxu0 0.0
    %1717 = vmatpush1.msra.mxu0 %v116
    %1718 = vmatprep.subr.mxu0 0.0
    %1719 = vmatpush1.msra.mxu0 %v115
    %1720 = vmatprep.subr.mxu0 0.0
    %1721 = vmatpush2.msra.mxu0 0.0
    %1722 = vmatprep.subr.mxu0 0.0
    %1723 = vmatpush2.msra.mxu0 0.0
    %1724 = vmatprep.subr.mxu0 0.0
    %1725 = vmatpush2.msra.mxu0 0.0
    %1726 = vmatprep.subr.mxu0 0.0
    %1727 = vmatpush2.msra.mxu0 0.0
    %1728 = vmatprep.subr.mxu0 0.0
    %1729 = vmatpush2.msra.mxu0 0.0
    %1730 = vmatprep.subr.mxu0 0.0
    %1731 = vmatpush2.msra.mxu0 0.0
    %1732 = vmatprep.subr.mxu0 0.0
    %1733 = vmatpush2.msra.mxu0 0.0
    %1734 = vmatprep.subr.mxu0 0.0
    %1735 = vmatpush2.msra.mxu0 0.0
    %1736 = vmatprep.subr.mxu0 0.0
    %1737 = vmatpush2.msra.mxu0 0.0
    %1738 = vmatprep.subr.mxu0 0.0
    %1739 = vmatpush2.msra.mxu0 0.0
    %1740 = vmatprep.subr.mxu0 0.0
    %1741 = vmatpush2.msra.mxu0 0.0
    %1742 = vmatprep.subr.mxu0 0.0
    %1743 = vmatpush2.msra.mxu0 0.0
    %1744 = vmatprep.subr.mxu0 0.0
    %1745 = vmatpush2.msra.mxu0 0.0
    %1746 = vmatprep.subr.mxu0 0.0
    %1747 = vmatpush2.msra.mxu0 0.0
    %1748 = vmatprep.subr.mxu0 0.0
    %1749 = vmatpush2.msra.mxu0 0.0
    %1750 = vmatprep.subr.mxu0 0.0
    %1751 = vmatpush2.msra.mxu0 0.0
    %1752 = vmatprep.mubr.f32.mxu0 0.0
    %1753 = vmatmul.mubr.f32.gmra.mxu0 %v706
    %v1754 = vpop.f32.mrf.mxu0
    %v1755 = vadd.f32 0.0, %v1754
    %v1756 = vpop.f32.mrf.mxu0
    %1757 = vdwg.mxu0
    %1758 = vmatprep.subr.mxu0 0.0
    %1759 = vmatpush1.msra.mxu0 0.0
    %1760 = vmatprep.subr.mxu0 0.0
    %1761 = vmatpush1.msra.mxu0 0.0
    %1762 = vmatprep.subr.mxu0 0.0
    %1763 = vmatpush1.msra.mxu0 0.0
    %1764 = vmatprep.subr.mxu0 0.0
    %1765 = vmatpush1.msra.mxu0 0.0
    %1766 = vmatprep.subr.mxu0 0.0
    %1767 = vmatpush1.msra.mxu0 0.0
    %1768 = vmatprep.subr.mxu0 0.0
    %1769 = vmatpush1.msra.mxu0 0.0
    %1770 = vmatprep.subr.mxu0 0.0
    %1771 = vmatpush1.msra.mxu0 0.0
    %1772 = vmatprep.subr.mxu0 0.0
    %1773 = vmatpush1.msra.mxu0 0.0
    %1774 = vmatprep.subr.mxu0 0.0
    %1775 = vmatpush1.msra.mxu0 0.0
    %1776 = vmatprep.subr.mxu0 0.0
    %1777 = vmatpush1.msra.mxu0 0.0
    %1778 = vmatprep.subr.mxu0 0.0
    %1779 = vmatpush1.msra.mxu0 0.0
    %1780 = vmatprep.subr.mxu0 0.0
    %1781 = vmatpush1.msra.mxu0 0.0
    %1782 = vmatprep.subr.mxu0 0.0
    %1783 = vmatpush1.msra.mxu0 %v122
    %1784 = vmatprep.subr.mxu0 0.0
    %1785 = vmatpush1.msra.mxu0 %v121
    %1786 = vmatprep.subr.mxu0 0.0
    %1787 = vmatpush1.msra.mxu0 %v120
    %1788 = vmatprep.subr.mxu0 0.0
    %1789 = vmatpush1.msra.mxu0 %v119
    %1790 = vmatprep.subr.mxu0 0.0
    %1791 = vmatpush2.msra.mxu0 0.0
    %1792 = vmatprep.subr.mxu0 0.0
    %1793 = vmatpush2.msra.mxu0 0.0
    %1794 = vmatprep.subr.mxu0 0.0
    %1795 = vmatpush2.msra.mxu0 0.0
    %1796 = vmatprep.subr.mxu0 0.0
    %1797 = vmatpush2.msra.mxu0 0.0
    %1798 = vmatprep.subr.mxu0 0.0
    %1799 = vmatpush2.msra.mxu0 0.0
    %1800 = vmatprep.subr.mxu0 0.0
    %1801 = vmatpush2.msra.mxu0 0.0
    %1802 = vmatprep.subr.mxu0 0.0
    %1803 = vmatpush2.msra.mxu0 0.0
    %1804 = vmatprep.subr.mxu0 0.0
    %1805 = vmatpush2.msra.mxu0 0.0
    %1806 = vmatprep.subr.mxu0 0.0
    %1807 = vmatpush2.msra.mxu0 0.0
    %1808 = vmatprep.subr.mxu0 0.0
    %1809 = vmatpush2.msra.mxu0 0.0
    %1810 = vmatprep.subr.mxu0 0.0
    %1811 = vmatpush2.msra.mxu0 0.0
    %1812 = vmatprep.subr.mxu0 0.0
    %1813 = vmatpush2.msra.mxu0 0.0
    %1814 = vmatprep.subr.mxu0 0.0
    %1815 = vmatpush2.msra.mxu0 0.0
    %1816 = vmatprep.subr.mxu0 0.0
    %1817 = vmatpush2.msra.mxu0 0.0
    %1818 = vmatprep.subr.mxu0 0.0
    %1819 = vmatpush2.msra.mxu0 0.0
    %1820 = vmatprep.subr.mxu0 0.0
    %1821 = vmatpush2.msra.mxu0 0.0
    %1822 = vmatprep.mubr.f32.mxu0 0.0
    %1823 = vmatmul.mubr.f32.gmra.mxu0 %v706
    %v1824 = vpop.f32.mrf.mxu0
    %v1825 = vadd.f32 0.0, %v1824
    %v1826 = vpop.f32.mrf.mxu0
    %1827 = vdwg.mxu0
    %v1828 = vld [vmem:[%s2] sm:$0xff]
    %v1829 = vld [vmem:[%s2 + $0x8] sm:$0xff]
    %v1830 = vld [vmem:[%s2 + $0x10] sm:$0xff]
    %v1831 = vld [vmem:[%s2 + $0x18] sm:$0xff]
    %v1832 = vld [vmem:[%s2 + $0x20] sm:$0xff]
    %v1833 = vld [vmem:[%s2 + $0x28] sm:$0xff]
    %v1834 = vld [vmem:[%s2 + $0x30] sm:$0xff]
    %v1835 = vld [vmem:[%s2 + $0x38] sm:$0xff]
    %vm1836 = vcmask 130048
    %v1838 = vsel %vm1836, %v212, 0
    %v1841 = vsel %vm1836, %v775, 0
    %1843 = vmatprep.subr.mxu0 0.0
    %1844 = vmatpush1.xpose.msra.mxu0 0.0
    %1845 = vmatprep.subr.mxu0 0.0
    %1846 = vmatpush1.xpose.msra.mxu0 0.0
    %1847 = vmatprep.subr.mxu0 0.0
    %1848 = vmatpush1.xpose.msra.mxu0 0.0
    %1849 = vmatprep.subr.mxu0 0.0
    %1850 = vmatpush1.xpose.msra.mxu0 0.0
    %1851 = vmatprep.subr.mxu0 0.0
    %1852 = vmatpush1.xpose.msra.mxu0 0.0
    %1853 = vmatprep.subr.mxu0 0.0
    %1854 = vmatpush1.xpose.msra.mxu0 0.0
    %1855 = vmatprep.subr.mxu0 0.0
    %1856 = vmatpush1.xpose.msra.mxu0 0.0
    %1857 = vmatprep.subr.mxu0 0.0
    %1858 = vmatpush1.xpose.msra.mxu0 0.0
    %1859 = vmatprep.subr.mxu0 0.0
    %1860 = vmatpush1.xpose.msra.mxu0 0.0
    %1861 = vmatprep.subr.mxu0 0.0
    %1862 = vmatpush1.xpose.msra.mxu0 0.0
    %1863 = vmatprep.subr.mxu0 0.0
    %1864 = vmatpush1.xpose.msra.mxu0 0.0
    %1865 = vmatprep.subr.mxu0 0.0
    %1866 = vmatpush1.xpose.msra.mxu0 0.0
    %1867 = vmatprep.subr.mxu0 0.0
    %1868 = vmatpush1.xpose.msra.mxu0 0.0
    %1869 = vmatprep.subr.mxu0 0.0
    %1870 = vmatpush1.xpose.msra.mxu0 0.0
    %1871 = vmatprep.subr.mxu0 0.0
    %1872 = vmatpush1.xpose.msra.mxu0 0.0
    %1873 = vmatprep.subr.mxu0 0.0
    %1874 = vmatpush1.xpose.msra.mxu0 %v1841
    %1875 = vmatprep.subr.mxu0 0.0
    %1876 = vmatpush2.xpose.msra.mxu0 0.0
    %1877 = vmatprep.subr.mxu0 0.0
    %1878 = vmatpush2.xpose.msra.mxu0 0.0
    %1879 = vmatprep.subr.mxu0 0.0
    %1880 = vmatpush2.xpose.msra.mxu0 0.0
    %1881 = vmatprep.subr.mxu0 0.0
    %1882 = vmatpush2.xpose.msra.mxu0 0.0
    %1883 = vmatprep.subr.mxu0 0.0
    %1884 = vmatpush2.xpose.msra.mxu0 0.0
    %1885 = vmatprep.subr.mxu0 0.0
    %1886 = vmatpush2.xpose.msra.mxu0 0.0
    %1887 = vmatprep.subr.mxu0 0.0
    %1888 = vmatpush2.xpose.msra.mxu0 0.0
    %1889 = vmatprep.subr.mxu0 0.0
    %1890 = vmatpush2.xpose.msra.mxu0 0.0
    %1891 = vmatprep.subr.mxu0 0.0
    %1892 = vmatpush2.xpose.msra.mxu0 0.0
    %1893 = vmatprep.subr.mxu0 0.0
    %1894 = vmatpush2.xpose.msra.mxu0 0.0
    %1895 = vmatprep.subr.mxu0 0.0
    %1896 = vmatpush2.xpose.msra.mxu0 0.0
    %1897 = vmatprep.subr.mxu0 0.0
    %1898 = vmatpush2.xpose.msra.mxu0 0.0
    %1899 = vmatprep.subr.mxu0 0.0
    %1900 = vmatpush2.xpose.msra.mxu0 0.0
    %1901 = vmatprep.subr.mxu0 0.0
    %1902 = vmatpush2.xpose.msra.mxu0 0.0
    %1903 = vmatprep.subr.mxu0 0.0
    %1904 = vmatpush2.xpose.msra.mxu0 0.0
    %1905 = vmatprep.subr.mxu0 0.0
    %1906 = vmatpush2.xpose.msra.mxu0 0.0
    %1907 = vmatprep.mubr.f32.mxu0 0.0
    %1908 = vmatmul.mubr.f32.gmra.mxu0 %v1838
    %v1909 = vpop.f32.mrf.mxu0
    %v1910 = vadd.f32 %v1828, %v1909
    %v1911 = vpop.f32.mrf.mxu0
    %1912 = vdwg.mxu0
    %v1914 = vsel %vm1836, %v282, 0
    %v1917 = vsel %vm1836, %v845, 0
    %1919 = vmatprep.subr.mxu0 0.0
    %1920 = vmatpush1.xpose.msra.mxu0 0.0
    %1921 = vmatprep.subr.mxu0 0.0
    %1922 = vmatpush1.xpose.msra.mxu0 0.0
    %1923 = vmatprep.subr.mxu0 0.0
    %1924 = vmatpush1.xpose.msra.mxu0 0.0
    %1925 = vmatprep.subr.mxu0 0.0
    %1926 = vmatpush1.xpose.msra.mxu0 0.0
    %1927 = vmatprep.subr.mxu0 0.0
    %1928 = vmatpush1.xpose.msra.mxu0 0.0
    %1929 = vmatprep.subr.mxu0 0.0
    %1930 = vmatpush1.xpose.msra.mxu0 0.0
    %1931 = vmatprep.subr.mxu0 0.0
    %1932 = vmatpush1.xpose.msra.mxu0 0.0
    %1933 = vmatprep.subr.mxu0 0.0
    %1934 = vmatpush1.xpose.msra.mxu0 0.0
    %1935 = vmatprep.subr.mxu0 0.0
    %1936 = vmatpush1.xpose.msra.mxu0 0.0
    %1937 = vmatprep.subr.mxu0 0.0
    %1938 = vmatpush1.xpose.msra.mxu0 0.0
    %1939 = vmatprep.subr.mxu0 0.0
    %1940 = vmatpush1.xpose.msra.mxu0 0.0
    %1941 = vmatprep.subr.mxu0 0.0
    %1942 = vmatpush1.xpose.msra.mxu0 0.0
    %1943 = vmatprep.subr.mxu0 0.0
    %1944 = vmatpush1.xpose.msra.mxu0 0.0
    %1945 = vmatprep.subr.mxu0 0.0
    %1946 = vmatpush1.xpose.msra.mxu0 0.0
    %1947 = vmatprep.subr.mxu0 0.0
    %1948 = vmatpush1.xpose.msra.mxu0 0.0
    %1949 = vmatprep.subr.mxu0 0.0
    %1950 = vmatpush1.xpose.msra.mxu0 %v1917
    %1951 = vmatprep.subr.mxu0 0.0
    %1952 = vmatpush2.xpose.msra.mxu0 0.0
    %1953 = vmatprep.subr.mxu0 0.0
    %1954 = vmatpush2.xpose.msra.mxu0 0.0
    %1955 = vmatprep.subr.mxu0 0.0
    %1956 = vmatpush2.xpose.msra.mxu0 0.0
    %1957 = vmatprep.subr.mxu0 0.0
    %1958 = vmatpush2.xpose.msra.mxu0 0.0
    %1959 = vmatprep.subr.mxu0 0.0
    %1960 = vmatpush2.xpose.msra.mxu0 0.0
    %1961 = vmatprep.subr.mxu0 0.0
    %1962 = vmatpush2.xpose.msra.mxu0 0.0
    %1963 = vmatprep.subr.mxu0 0.0
    %1964 = vmatpush2.xpose.msra.mxu0 0.0
    %1965 = vmatprep.subr.mxu0 0.0
    %1966 = vmatpush2.xpose.msra.mxu0 0.0
    %1967 = vmatprep.subr.mxu0 0.0
    %1968 = vmatpush2.xpose.msra.mxu0 0.0
    %1969 = vmatprep.subr.mxu0 0.0
    %1970 = vmatpush2.xpose.msra.mxu0 0.0
    %1971 = vmatprep.subr.mxu0 0.0
    %1972 = vmatpush2.xpose.msra.mxu0 0.0
    %1973 = vmatprep.subr.mxu0 0.0
    %1974 = vmatpush2.xpose.msra.mxu0 0.0
    %1975 = vmatprep.subr.mxu0 0.0
    %1976 = vmatpush2.xpose.msra.mxu0 0.0
    %1977 = vmatprep.subr.mxu0 0.0
    %1978 = vmatpush2.xpose.msra.mxu0 0.0
    %1979 = vmatprep.subr.mxu0 0.0
    %1980 = vmatpush2.xpose.msra.mxu0 0.0
    %1981 = vmatprep.subr.mxu0 0.0
    %1982 = vmatpush2.xpose.msra.mxu0 0.0
    %1983 = vmatprep.mubr.f32.mxu0 0.0
    %1984 = vmatmul.mubr.f32.gmra.mxu0 %v1914
    %v1985 = vpop.f32.mrf.mxu0
    %v1986 = vadd.f32 %v1829, %v1985
    %v1987 = vpop.f32.mrf.mxu0
    %1988 = vdwg.mxu0
    %v1990 = vsel %vm1836, %v352, 0
    %v1993 = vsel %vm1836, %v915, 0
    %1995 = vmatprep.subr.mxu0 0.0
    %1996 = vmatpush1.xpose.msra.mxu0 0.0
    %1997 = vmatprep.subr.mxu0 0.0
    %1998 = vmatpush1.xpose.msra.mxu0 0.0
    %1999 = vmatprep.subr.mxu0 0.0
    %2000 = vmatpush1.xpose.msra.mxu0 0.0
    %2001 = vmatprep.subr.mxu0 0.0
    %2002 = vmatpush1.xpose.msra.mxu0 0.0
    %2003 = vmatprep.subr.mxu0 0.0
    %2004 = vmatpush1.xpose.msra.mxu0 0.0
    %2005 = vmatprep.subr.mxu0 0.0
    %2006 = vmatpush1.xpose.msra.mxu0 0.0
    %2007 = vmatprep.subr.mxu0 0.0
    %2008 = vmatpush1.xpose.msra.mxu0 0.0
    %2009 = vmatprep.subr.mxu0 0.0
    %2010 = vmatpush1.xpose.msra.mxu0 0.0
    %2011 = vmatprep.subr.mxu0 0.0
    %2012 = vmatpush1.xpose.msra.mxu0 0.0
    %2013 = vmatprep.subr.mxu0 0.0
    %2014 = vmatpush1.xpose.msra.mxu0 0.0
    %2015 = vmatprep.subr.mxu0 0.0
    %2016 = vmatpush1.xpose.msra.mxu0 0.0
    %2017 = vmatprep.subr.mxu0 0.0
    %2018 = vmatpush1.xpose.msra.mxu0 0.0
    %2019 = vmatprep.subr.mxu0 0.0
    %2020 = vmatpush1.xpose.msra.mxu0 0.0
    %2021 = vmatprep.subr.mxu0 0.0
    %2022 = vmatpush1.xpose.msra.mxu0 0.0
    %2023 = vmatprep.subr.mxu0 0.0
    %2024 = vmatpush1.xpose.msra.mxu0 0.0
    %2025 = vmatprep.subr.mxu0 0.0
    %2026 = vmatpush1.xpose.msra.mxu0 %v1993
    %2027 = vmatprep.subr.mxu0 0.0
    %2028 = vmatpush2.xpose.msra.mxu0 0.0
    %2029 = vmatprep.subr.mxu0 0.0
    %2030 = vmatpush2.xpose.msra.mxu0 0.0
    %2031 = vmatprep.subr.mxu0 0.0
    %2032 = vmatpush2.xpose.msra.mxu0 0.0
    %2033 = vmatprep.subr.mxu0 0.0
    %2034 = vmatpush2.xpose.msra.mxu0 0.0
    %2035 = vmatprep.subr.mxu0 0.0
    %2036 = vmatpush2.xpose.msra.mxu0 0.0
    %2037 = vmatprep.subr.mxu0 0.0
    %2038 = vmatpush2.xpose.msra.mxu0 0.0
    %2039 = vmatprep.subr.mxu0 0.0
    %2040 = vmatpush2.xpose.msra.mxu0 0.0
    %2041 = vmatprep.subr.mxu0 0.0
    %2042 = vmatpush2.xpose.msra.mxu0 0.0
    %2043 = vmatprep.subr.mxu0 0.0
    %2044 = vmatpush2.xpose.msra.mxu0 0.0
    %2045 = vmatprep.subr.mxu0 0.0
    %2046 = vmatpush2.xpose.msra.mxu0 0.0
    %2047 = vmatprep.subr.mxu0 0.0
    %2048 = vmatpush2.xpose.msra.mxu0 0.0
    %2049 = vmatprep.subr.mxu0 0.0
    %2050 = vmatpush2.xpose.msra.mxu0 0.0
    %2051 = vmatprep.subr.mxu0 0.0
    %2052 = vmatpush2.xpose.msra.mxu0 0.0
    %2053 = vmatprep.subr.mxu0 0.0
    %2054 = vmatpush2.xpose.msra.mxu0 0.0
    %2055 = vmatprep.subr.mxu0 0.0
    %2056 = vmatpush2.xpose.msra.mxu0 0.0
    %2057 = vmatprep.subr.mxu0 0.0
    %2058 = vmatpush2.xpose.msra.mxu0 0.0
    %2059 = vmatprep.mubr.f32.mxu0 0.0
    %2060 = vmatmul.mubr.f32.gmra.mxu0 %v1990
    %v2061 = vpop.f32.mrf.mxu0
    %v2062 = vadd.f32 %v1830, %v2061
    %v2063 = vpop.f32.mrf.mxu0
    %2064 = vdwg.mxu0
    %v2066 = vsel %vm1836, %v422, 0
    %v2069 = vsel %vm1836, %v985, 0
    %2071 = vmatprep.subr.mxu0 0.0
    %2072 = vmatpush1.xpose.msra.mxu0 0.0
    %2073 = vmatprep.subr.mxu0 0.0
    %2074 = vmatpush1.xpose.msra.mxu0 0.0
    %2075 = vmatprep.subr.mxu0 0.0
    %2076 = vmatpush1.xpose.msra.mxu0 0.0
    %2077 = vmatprep.subr.mxu0 0.0
    %2078 = vmatpush1.xpose.msra.mxu0 0.0
    %2079 = vmatprep.subr.mxu0 0.0
    %2080 = vmatpush1.xpose.msra.mxu0 0.0
    %2081 = vmatprep.subr.mxu0 0.0
    %2082 = vmatpush1.xpose.msra.mxu0 0.0
    %2083 = vmatprep.subr.mxu0 0.0
    %2084 = vmatpush1.xpose.msra.mxu0 0.0
    %2085 = vmatprep.subr.mxu0 0.0
    %2086 = vmatpush1.xpose.msra.mxu0 0.0
    %2087 = vmatprep.subr.mxu0 0.0
    %2088 = vmatpush1.xpose.msra.mxu0 0.0
    %2089 = vmatprep.subr.mxu0 0.0
    %2090 = vmatpush1.xpose.msra.mxu0 0.0
    %2091 = vmatprep.subr.mxu0 0.0
    %2092 = vmatpush1.xpose.msra.mxu0 0.0
    %2093 = vmatprep.subr.mxu0 0.0
    %2094 = vmatpush1.xpose.msra.mxu0 0.0
    %2095 = vmatprep.subr.mxu0 0.0
    %2096 = vmatpush1.xpose.msra.mxu0 0.0
    %2097 = vmatprep.subr.mxu0 0.0
    %2098 = vmatpush1.xpose.msra.mxu0 0.0
    %2099 = vmatprep.subr.mxu0 0.0
    %2100 = vmatpush1.xpose.msra.mxu0 0.0
    %2101 = vmatprep.subr.mxu0 0.0
    %2102 = vmatpush1.xpose.msra.mxu0 %v2069
    %2103 = vmatprep.subr.mxu0 0.0
    %2104 = vmatpush2.xpose.msra.mxu0 0.0
    %2105 = vmatprep.subr.mxu0 0.0
    %2106 = vmatpush2.xpose.msra.mxu0 0.0
    %2107 = vmatprep.subr.mxu0 0.0
    %2108 = vmatpush2.xpose.msra.mxu0 0.0
    %2109 = vmatprep.subr.mxu0 0.0
    %2110 = vmatpush2.xpose.msra.mxu0 0.0
    %2111 = vmatprep.subr.mxu0 0.0
    %2112 = vmatpush2.xpose.msra.mxu0 0.0
    %2113 = vmatprep.subr.mxu0 0.0
    %2114 = vmatpush2.xpose.msra.mxu0 0.0
    %2115 = vmatprep.subr.mxu0 0.0
    %2116 = vmatpush2.xpose.msra.mxu0 0.0
    %2117 = vmatprep.subr.mxu0 0.0
    %2118 = vmatpush2.xpose.msra.mxu0 0.0
    %2119 = vmatprep.subr.mxu0 0.0
    %2120 = vmatpush2.xpose.msra.mxu0 0.0
    %2121 = vmatprep.subr.mxu0 0.0
    %2122 = vmatpush2.xpose.msra.mxu0 0.0
    %2123 = vmatprep.subr.mxu0 0.0
    %2124 = vmatpush2.xpose.msra.mxu0 0.0
    %2125 = vmatprep.subr.mxu0 0.0
    %2126 = vmatpush2.xpose.msra.mxu0 0.0
    %2127 = vmatprep.subr.mxu0 0.0
    %2128 = vmatpush2.xpose.msra.mxu0 0.0
    %2129 = vmatprep.subr.mxu0 0.0
    %2130 = vmatpush2.xpose.msra.mxu0 0.0
    %2131 = vmatprep.subr.mxu0 0.0
    %2132 = vmatpush2.xpose.msra.mxu0 0.0
    %2133 = vmatprep.subr.mxu0 0.0
    %2134 = vmatpush2.xpose.msra.mxu0 0.0
    %2135 = vmatprep.mubr.f32.mxu0 0.0
    %2136 = vmatmul.mubr.f32.gmra.mxu0 %v2066
    %v2137 = vpop.f32.mrf.mxu0
    %v2138 = vadd.f32 %v1831, %v2137
    %v2139 = vpop.f32.mrf.mxu0
    %2140 = vdwg.mxu0
    %v2142 = vsel %vm1836, %v492, 0
    %v2145 = vsel %vm1836, %v1055, 0
    %2147 = vmatprep.subr.mxu0 0.0
    %2148 = vmatpush1.xpose.msra.mxu0 0.0
    %2149 = vmatprep.subr.mxu0 0.0
    %2150 = vmatpush1.xpose.msra.mxu0 0.0
    %2151 = vmatprep.subr.mxu0 0.0
    %2152 = vmatpush1.xpose.msra.mxu0 0.0
    %2153 = vmatprep.subr.mxu0 0.0
    %2154 = vmatpush1.xpose.msra.mxu0 0.0
    %2155 = vmatprep.subr.mxu0 0.0
    %2156 = vmatpush1.xpose.msra.mxu0 0.0
    %2157 = vmatprep.subr.mxu0 0.0
    %2158 = vmatpush1.xpose.msra.mxu0 0.0
    %2159 = vmatprep.subr.mxu0 0.0
    %2160 = vmatpush1.xpose.msra.mxu0 0.0
    %2161 = vmatprep.subr.mxu0 0.0
    %2162 = vmatpush1.xpose.msra.mxu0 0.0
    %2163 = vmatprep.subr.mxu0 0.0
    %2164 = vmatpush1.xpose.msra.mxu0 0.0
    %2165 = vmatprep.subr.mxu0 0.0
    %2166 = vmatpush1.xpose.msra.mxu0 0.0
    %2167 = vmatprep.subr.mxu0 0.0
    %2168 = vmatpush1.xpose.msra.mxu0 0.0
    %2169 = vmatprep.subr.mxu0 0.0
    %2170 = vmatpush1.xpose.msra.mxu0 0.0
    %2171 = vmatprep.subr.mxu0 0.0
    %2172 = vmatpush1.xpose.msra.mxu0 0.0
    %2173 = vmatprep.subr.mxu0 0.0
    %2174 = vmatpush1.xpose.msra.mxu0 0.0
    %2175 = vmatprep.subr.mxu0 0.0
    %2176 = vmatpush1.xpose.msra.mxu0 0.0
    %2177 = vmatprep.subr.mxu0 0.0
    %2178 = vmatpush1.xpose.msra.mxu0 %v2145
    %2179 = vmatprep.subr.mxu0 0.0
    %2180 = vmatpush2.xpose.msra.mxu0 0.0
    %2181 = vmatprep.subr.mxu0 0.0
    %2182 = vmatpush2.xpose.msra.mxu0 0.0
    %2183 = vmatprep.subr.mxu0 0.0
    %2184 = vmatpush2.xpose.msra.mxu0 0.0
    %2185 = vmatprep.subr.mxu0 0.0
    %2186 = vmatpush2.xpose.msra.mxu0 0.0
    %2187 = vmatprep.subr.mxu0 0.0
    %2188 = vmatpush2.xpose.msra.mxu0 0.0
    %2189 = vmatprep.subr.mxu0 0.0
    %2190 = vmatpush2.xpose.msra.mxu0 0.0
    %2191 = vmatprep.subr.mxu0 0.0
    %2192 = vmatpush2.xpose.msra.mxu0 0.0
    %2193 = vmatprep.subr.mxu0 0.0
    %2194 = vmatpush2.xpose.msra.mxu0 0.0
    %2195 = vmatprep.subr.mxu0 0.0
    %2196 = vmatpush2.xpose.msra.mxu0 0.0
    %2197 = vmatprep.subr.mxu0 0.0
    %2198 = vmatpush2.xpose.msra.mxu0 0.0
    %2199 = vmatprep.subr.mxu0 0.0
    %2200 = vmatpush2.xpose.msra.mxu0 0.0
    %2201 = vmatprep.subr.mxu0 0.0
    %2202 = vmatpush2.xpose.msra.mxu0 0.0
    %2203 = vmatprep.subr.mxu0 0.0
    %2204 = vmatpush2.xpose.msra.mxu0 0.0
    %2205 = vmatprep.subr.mxu0 0.0
    %2206 = vmatpush2.xpose.msra.mxu0 0.0
    %2207 = vmatprep.subr.mxu0 0.0
    %2208 = vmatpush2.xpose.msra.mxu0 0.0
    %2209 = vmatprep.subr.mxu0 0.0
    %2210 = vmatpush2.xpose.msra.mxu0 0.0
    %2211 = vmatprep.mubr.f32.mxu0 0.0
    %2212 = vmatmul.mubr.f32.gmra.mxu0 %v2142
    %v2213 = vpop.f32.mrf.mxu0
    %v2214 = vadd.f32 %v1832, %v2213
    %v2215 = vpop.f32.mrf.mxu0
    %2216 = vdwg.mxu0
    %v2218 = vsel %vm1836, %v562, 0
    %v2221 = vsel %vm1836, %v1125, 0
    %2223 = vmatprep.subr.mxu0 0.0
    %2224 = vmatpush1.xpose.msra.mxu0 0.0
    %2225 = vmatprep.subr.mxu0 0.0
    %2226 = vmatpush1.xpose.msra.mxu0 0.0
    %2227 = vmatprep.subr.mxu0 0.0
    %2228 = vmatpush1.xpose.msra.mxu0 0.0
    %2229 = vmatprep.subr.mxu0 0.0
    %2230 = vmatpush1.xpose.msra.mxu0 0.0
    %2231 = vmatprep.subr.mxu0 0.0
    %2232 = vmatpush1.xpose.msra.mxu0 0.0
    %2233 = vmatprep.subr.mxu0 0.0
    %2234 = vmatpush1.xpose.msra.mxu0 0.0
    %2235 = vmatprep.subr.mxu0 0.0
    %2236 = vmatpush1.xpose.msra.mxu0 0.0
    %2237 = vmatprep.subr.mxu0 0.0
    %2238 = vmatpush1.xpose.msra.mxu0 0.0
    %2239 = vmatprep.subr.mxu0 0.0
    %2240 = vmatpush1.xpose.msra.mxu0 0.0
    %2241 = vmatprep.subr.mxu0 0.0
    %2242 = vmatpush1.xpose.msra.mxu0 0.0
    %2243 = vmatprep.subr.mxu0 0.0
    %2244 = vmatpush1.xpose.msra.mxu0 0.0
    %2245 = vmatprep.subr.mxu0 0.0
    %2246 = vmatpush1.xpose.msra.mxu0 0.0
    %2247 = vmatprep.subr.mxu0 0.0
    %2248 = vmatpush1.xpose.msra.mxu0 0.0
    %2249 = vmatprep.subr.mxu0 0.0
    %2250 = vmatpush1.xpose.msra.mxu0 0.0
    %2251 = vmatprep.subr.mxu0 0.0
    %2252 = vmatpush1.xpose.msra.mxu0 0.0
    %2253 = vmatprep.subr.mxu0 0.0
    %2254 = vmatpush1.xpose.msra.mxu0 %v2221
    %2255 = vmatprep.subr.mxu0 0.0
    %2256 = vmatpush2.xpose.msra.mxu0 0.0
    %2257 = vmatprep.subr.mxu0 0.0
    %2258 = vmatpush2.xpose.msra.mxu0 0.0
    %2259 = vmatprep.subr.mxu0 0.0
    %2260 = vmatpush2.xpose.msra.mxu0 0.0
    %2261 = vmatprep.subr.mxu0 0.0
    %2262 = vmatpush2.xpose.msra.mxu0 0.0
    %2263 = vmatprep.subr.mxu0 0.0
    %2264 = vmatpush2.xpose.msra.mxu0 0.0
    %2265 = vmatprep.subr.mxu0 0.0
    %2266 = vmatpush2.xpose.msra.mxu0 0.0
    %2267 = vmatprep.subr.mxu0 0.0
    %2268 = vmatpush2.xpose.msra.mxu0 0.0
    %2269 = vmatprep.subr.mxu0 0.0
    %2270 = vmatpush2.xpose.msra.mxu0 0.0
    %2271 = vmatprep.subr.mxu0 0.0
    %2272 = vmatpush2.xpose.msra.mxu0 0.0
    %2273 = vmatprep.subr.mxu0 0.0
    %2274 = vmatpush2.xpose.msra.mxu0 0.0
    %2275 = vmatprep.subr.mxu0 0.0
    %2276 = vmatpush2.xpose.msra.mxu0 0.0
    %2277 = vmatprep.subr.mxu0 0.0
    %2278 = vmatpush2.xpose.msra.mxu0 0.0
    %2279 = vmatprep.subr.mxu0 0.0
    %2280 = vmatpush2.xpose.msra.mxu0 0.0
    %2281 = vmatprep.subr.mxu0 0.0
    %2282 = vmatpush2.xpose.msra.mxu0 0.0
    %2283 = vmatprep.subr.mxu0 0.0
    %2284 = vmatpush2.xpose.msra.mxu0 0.0
    %2285 = vmatprep.subr.mxu0 0.0
    %2286 = vmatpush2.xpose.msra.mxu0 0.0
    %2287 = vmatprep.mubr.f32.mxu0 0.0
    %2288 = vmatmul.mubr.f32.gmra.mxu0 %v2218
    %v2289 = vpop.f32.mrf.mxu0
    %v2290 = vadd.f32 %v1833, %v2289
    %v2291 = vpop.f32.mrf.mxu0
    %2292 = vdwg.mxu0
    %v2294 = vsel %vm1836, %v632, 0
    %v2297 = vsel %vm1836, %v1195, 0
    %2299 = vmatprep.subr.mxu0 0.0
    %2300 = vmatpush1.xpose.msra.mxu0 0.0
    %2301 = vmatprep.subr.mxu0 0.0
    %2302 = vmatpush1.xpose.msra.mxu0 0.0
    %2303 = vmatprep.subr.mxu0 0.0
    %2304 = vmatpush1.xpose.msra.mxu0 0.0
    %2305 = vmatprep.subr.mxu0 0.0
    %2306 = vmatpush1.xpose.msra.mxu0 0.0
    %2307 = vmatprep.subr.mxu0 0.0
    %2308 = vmatpush1.xpose.msra.mxu0 0.0
    %2309 = vmatprep.subr.mxu0 0.0
    %2310 = vmatpush1.xpose.msra.mxu0 0.0
    %2311 = vmatprep.subr.mxu0 0.0
    %2312 = vmatpush1.xpose.msra.mxu0 0.0
    %2313 = vmatprep.subr.mxu0 0.0
    %2314 = vmatpush1.xpose.msra.mxu0 0.0
    %2315 = vmatprep.subr.mxu0 0.0
    %2316 = vmatpush1.xpose.msra.mxu0 0.0
    %2317 = vmatprep.subr.mxu0 0.0
    %2318 = vmatpush1.xpose.msra.mxu0 0.0
    %2319 = vmatprep.subr.mxu0 0.0
    %2320 = vmatpush1.xpose.msra.mxu0 0.0
    %2321 = vmatprep.subr.mxu0 0.0
    %2322 = vmatpush1.xpose.msra.mxu0 0.0
    %2323 = vmatprep.subr.mxu0 0.0
    %2324 = vmatpush1.xpose.msra.mxu0 0.0
    %2325 = vmatprep.subr.mxu0 0.0
    %2326 = vmatpush1.xpose.msra.mxu0 0.0
    %2327 = vmatprep.subr.mxu0 0.0
    %2328 = vmatpush1.xpose.msra.mxu0 0.0
    %2329 = vmatprep.subr.mxu0 0.0
    %2330 = vmatpush1.xpose.msra.mxu0 %v2297
    %2331 = vmatprep.subr.mxu0 0.0
    %2332 = vmatpush2.xpose.msra.mxu0 0.0
    %2333 = vmatprep.subr.mxu0 0.0
    %2334 = vmatpush2.xpose.msra.mxu0 0.0
    %2335 = vmatprep.subr.mxu0 0.0
    %2336 = vmatpush2.xpose.msra.mxu0 0.0
    %2337 = vmatprep.subr.mxu0 0.0
    %2338 = vmatpush2.xpose.msra.mxu0 0.0
    %2339 = vmatprep.subr.mxu0 0.0
    %2340 = vmatpush2.xpose.msra.mxu0 0.0
    %2341 = vmatprep.subr.mxu0 0.0
    %2342 = vmatpush2.xpose.msra.mxu0 0.0
    %2343 = vmatprep.subr.mxu0 0.0
    %2344 = vmatpush2.xpose.msra.mxu0 0.0
    %2345 = vmatprep.subr.mxu0 0.0
    %2346 = vmatpush2.xpose.msra.mxu0 0.0
    %2347 = vmatprep.subr.mxu0 0.0
    %2348 = vmatpush2.xpose.msra.mxu0 0.0
    %2349 = vmatprep.subr.mxu0 0.0
    %2350 = vmatpush2.xpose.msra.mxu0 0.0
    %2351 = vmatprep.subr.mxu0 0.0
    %2352 = vmatpush2.xpose.msra.mxu0 0.0
    %2353 = vmatprep.subr.mxu0 0.0
    %2354 = vmatpush2.xpose.msra.mxu0 0.0
    %2355 = vmatprep.subr.mxu0 0.0
    %2356 = vmatpush2.xpose.msra.mxu0 0.0
    %2357 = vmatprep.subr.mxu0 0.0
    %2358 = vmatpush2.xpose.msra.mxu0 0.0
    %2359 = vmatprep.subr.mxu0 0.0
    %2360 = vmatpush2.xpose.msra.mxu0 0.0
    %2361 = vmatprep.subr.mxu0 0.0
    %2362 = vmatpush2.xpose.msra.mxu0 0.0
    %2363 = vmatprep.mubr.f32.mxu0 0.0
    %2364 = vmatmul.mubr.f32.gmra.mxu0 %v2294
    %v2365 = vpop.f32.mrf.mxu0
    %v2366 = vadd.f32 %v1834, %v2365
    %v2367 = vpop.f32.mrf.mxu0
    %2368 = vdwg.mxu0
    %v2370 = vsel %vm1836, %v702, 0
    %v2373 = vsel %vm1836, %v1265, 0
    %2375 = vmatprep.subr.mxu0 0.0
    %2376 = vmatpush1.xpose.msra.mxu0 0.0
    %2377 = vmatprep.subr.mxu0 0.0
    %2378 = vmatpush1.xpose.msra.mxu0 0.0
    %2379 = vmatprep.subr.mxu0 0.0
    %2380 = vmatpush1.xpose.msra.mxu0 0.0
    %2381 = vmatprep.subr.mxu0 0.0
    %2382 = vmatpush1.xpose.msra.mxu0 0.0
    %2383 = vmatprep.subr.mxu0 0.0
    %2384 = vmatpush1.xpose.msra.mxu0 0.0
    %2385 = vmatprep.subr.mxu0 0.0
    %2386 = vmatpush1.xpose.msra.mxu0 0.0
    %2387 = vmatprep.subr.mxu0 0.0
    %2388 = vmatpush1.xpose.msra.mxu0 0.0
    %2389 = vmatprep.subr.mxu0 0.0
    %2390 = vmatpush1.xpose.msra.mxu0 0.0
    %2391 = vmatprep.subr.mxu0 0.0
    %2392 = vmatpush1.xpose.msra.mxu0 0.0
    %2393 = vmatprep.subr.mxu0 0.0
    %2394 = vmatpush1.xpose.msra.mxu0 0.0
    %2395 = vmatprep.subr.mxu0 0.0
    %2396 = vmatpush1.xpose.msra.mxu0 0.0
    %2397 = vmatprep.subr.mxu0 0.0
    %2398 = vmatpush1.xpose.msra.mxu0 0.0
    %2399 = vmatprep.subr.mxu0 0.0
    %2400 = vmatpush1.xpose.msra.mxu0 0.0
    %2401 = vmatprep.subr.mxu0 0.0
    %2402 = vmatpush1.xpose.msra.mxu0 0.0
    %2403 = vmatprep.subr.mxu0 0.0
    %2404 = vmatpush1.xpose.msra.mxu0 0.0
    %2405 = vmatprep.subr.mxu0 0.0
    %2406 = vmatpush1.xpose.msra.mxu0 %v2373
    %2407 = vmatprep.subr.mxu0 0.0
    %2408 = vmatpush2.xpose.msra.mxu0 0.0
    %2409 = vmatprep.subr.mxu0 0.0
    %2410 = vmatpush2.xpose.msra.mxu0 0.0
    %2411 = vmatprep.subr.mxu0 0.0
    %2412 = vmatpush2.xpose.msra.mxu0 0.0
    %2413 = vmatprep.subr.mxu0 0.0
    %2414 = vmatpush2.xpose.msra.mxu0 0.0
    %2415 = vmatprep.subr.mxu0 0.0
    %2416 = vmatpush2.xpose.msra.mxu0 0.0
    %2417 = vmatprep.subr.mxu0 0.0
    %2418 = vmatpush2.xpose.msra.mxu0 0.0
    %2419 = vmatprep.subr.mxu0 0.0
    %2420 = vmatpush2.xpose.msra.mxu0 0.0
    %2421 = vmatprep.subr.mxu0 0.0
    %2422 = vmatpush2.xpose.msra.mxu0 0.0
    %2423 = vmatprep.subr.mxu0 0.0
    %2424 = vmatpush2.xpose.msra.mxu0 0.0
    %2425 = vmatprep.subr.mxu0 0.0
    %2426 = vmatpush2.xpose.msra.mxu0 0.0
    %2427 = vmatprep.subr.mxu0 0.0
    %2428 = vmatpush2.xpose.msra.mxu0 0.0
    %2429 = vmatprep.subr.mxu0 0.0
    %2430 = vmatpush2.xpose.msra.mxu0 0.0
    %2431 = vmatprep.subr.mxu0 0.0
    %2432 = vmatpush2.xpose.msra.mxu0 0.0
    %2433 = vmatprep.subr.mxu0 0.0
    %2434 = vmatpush2.xpose.msra.mxu0 0.0
    %2435 = vmatprep.subr.mxu0 0.0
    %2436 = vmatpush2.xpose.msra.mxu0 0.0
    %2437 = vmatprep.subr.mxu0 0.0
    %2438 = vmatpush2.xpose.msra.mxu0 0.0
    %2439 = vmatprep.mubr.f32.mxu0 0.0
    %2440 = vmatmul.mubr.f32.gmra.mxu0 %v2370
    %v2441 = vpop.f32.mrf.mxu0
    %v2442 = vadd.f32 %v1835, %v2441
    %v2443 = vpop.f32.mrf.mxu0
    %2444 = vdwg.mxu0
    %vm2445 = vcmask 64512
    %v2446 = vsel %vm2445, %v1910, -inf
    %2447 = vmax.xlane.f32.xlu0 %v2446
    %v2448 = vpop.xlane.xlu0 %2447
    %v2449 = vsel %vm2445, %v1986, -inf
    %2450 = vmax.xlane.f32.xlu0 %v2449
    %v2451 = vpop.xlane.xlu0 %2450
    %v2452 = vsel %vm2445, %v2062, -inf
    %2453 = vmax.xlane.f32.xlu0 %v2452
    %v2454 = vpop.xlane.xlu0 %2453
    %v2455 = vsel %vm2445, %v2138, -inf
    %2456 = vmax.xlane.f32.xlu0 %v2455
    %v2457 = vpop.xlane.xlu0 %2456
    %v2458 = vsel %vm2445, %v2214, -inf
    %2459 = vmax.xlane.f32.xlu0 %v2458
    %v2460 = vpop.xlane.xlu0 %2459
    %v2461 = vsel %vm2445, %v2290, -inf
    %2462 = vmax.xlane.f32.xlu0 %v2461
    %v2463 = vpop.xlane.xlu0 %2462
    %v2464 = vsel %vm2445, %v2366, -inf
    %2465 = vmax.xlane.f32.xlu0 %v2464
    %v2466 = vpop.xlane.xlu0 %2465
    %v2467 = vsel %vm2445, %v2442, -inf
    %2468 = vmax.xlane.f32.xlu0 %v2467
    %v2469 = vpop.xlane.xlu0 %2468
    %v2470 = vsub.f32 %v1910, %v2448
    %v2471 = vsub.f32 %v1986, %v2451
    %v2472 = vsub.f32 %v2062, %v2454
    %v2473 = vsub.f32 %v2138, %v2457
    %v2474 = vsub.f32 %v2214, %v2460
    %v2475 = vsub.f32 %v2290, %v2463
    %v2476 = vsub.f32 %v2366, %v2466
    %v2477 = vsub.f32 %v2442, %v2469
    %v2478 = vmul.f32 %v2470, 1.442695
    %v2479 = vpow.pop %v2478
    %v2480 = vmul.f32 %v2471, 1.442695
    %v2481 = vpow.pop %v2480
    %v2482 = vmul.f32 %v2472, 1.442695
    %v2483 = vpow.pop %v2482
    %v2484 = vmul.f32 %v2473, 1.442695
    %v2485 = vpow.pop %v2484
    %v2486 = vmul.f32 %v2474, 1.442695
    %v2487 = vpow.pop %v2486
    %v2488 = vmul.f32 %v2475, 1.442695
    %v2489 = vpow.pop %v2488
    %v2490 = vmul.f32 %v2476, 1.442695
    %v2491 = vpow.pop %v2490
    %v2492 = vmul.f32 %v2477, 1.442695
    %v2493 = vpow.pop %v2492
    %v2494 = vsel %vm2445, %v2479, 0.0
    %2495 = vadd.xlane.f32.xlu0 %v2494
    %v2496 = vpop.xlane.xlu0 %2495
    %v2497 = vsel %vm2445, %v2481, 0.0
    %2498 = vadd.xlane.f32.xlu0 %v2497
    %v2499 = vpop.xlane.xlu0 %2498
    %v2500 = vsel %vm2445, %v2483, 0.0
    %2501 = vadd.xlane.f32.xlu0 %v2500
    %v2502 = vpop.xlane.xlu0 %2501
    %v2503 = vsel %vm2445, %v2485, 0.0
    %2504 = vadd.xlane.f32.xlu0 %v2503
    %v2505 = vpop.xlane.xlu0 %2504
    %v2506 = vsel %vm2445, %v2487, 0.0
    %2507 = vadd.xlane.f32.xlu0 %v2506
    %v2508 = vpop.xlane.xlu0 %2507
    %v2509 = vsel %vm2445, %v2489, 0.0
    %2510 = vadd.xlane.f32.xlu0 %v2509
    %v2511 = vpop.xlane.xlu0 %2510
    %v2512 = vsel %vm2445, %v2491, 0.0
    %2513 = vadd.xlane.f32.xlu0 %v2512
    %v2514 = vpop.xlane.xlu0 %2513
    %v2515 = vsel %vm2445, %v2493, 0.0
    %2516 = vadd.xlane.f32.xlu0 %v2515
    %v2517 = vpop.xlane.xlu0 %2516
    %v2518 = vrcp.pop %v2496
    %v2519 = vmul.f32 %v2479, %v2518
    %v2520 = vrcp.pop %v2499
    %v2521 = vmul.f32 %v2481, %v2520
    %v2522 = vrcp.pop %v2502
    %v2523 = vmul.f32 %v2483, %v2522
    %v2524 = vrcp.pop %v2505
    %v2525 = vmul.f32 %v2485, %v2524
    %v2526 = vrcp.pop %v2508
    %v2527 = vmul.f32 %v2487, %v2526
    %v2528 = vrcp.pop %v2511
    %v2529 = vmul.f32 %v2489, %v2528
    %v2530 = vrcp.pop %v2514
    %v2531 = vmul.f32 %v2491, %v2530
    %v2532 = vrcp.pop %v2517
    %v2533 = vmul.f32 %v2493, %v2532
    %v2535 = vsel %vm2445, %v2519, 0
    %2537 = vmatprep.subr.mxu0 0.0
    %2538 = vmatpush1.msra.mxu0 0.0
    %2539 = vmatprep.subr.mxu0 0.0
    %2540 = vmatpush1.msra.mxu0 0.0
    %2541 = vmatprep.subr.mxu0 0.0
    %2542 = vmatpush1.msra.mxu0 0.0
    %2543 = vmatprep.subr.mxu0 0.0
    %2544 = vmatpush1.msra.mxu0 0.0
    %2545 = vmatprep.subr.mxu0 0.0
    %2546 = vmatpush1.msra.mxu0 0.0
    %2547 = vmatprep.subr.mxu0 0.0
    %2548 = vmatpush1.msra.mxu0 0.0
    %2549 = vmatprep.subr.mxu0 0.0
    %2550 = vmatpush1.msra.mxu0 0.0
    %2551 = vmatprep.subr.mxu0 0.0
    %2552 = vmatpush1.msra.mxu0 0.0
    %2553 = vmatprep.subr.mxu0 0.0
    %2554 = vmatpush1.msra.mxu0 0.0
    %2555 = vmatprep.subr.mxu0 0.0
    %2556 = vmatpush1.msra.mxu0 0.0
    %2557 = vmatprep.subr.mxu0 0.0
    %2558 = vmatpush1.msra.mxu0 0.0
    %2559 = vmatprep.subr.mxu0 0.0
    %2560 = vmatpush1.msra.mxu0 0.0
    %2561 = vmatprep.subr.mxu0 0.0
    %2562 = vmatpush1.msra.mxu0 0.0
    %2563 = vmatprep.subr.mxu0 0.0
    %2564 = vmatpush1.msra.mxu0 0.0
    %2565 = vmatprep.subr.mxu0 0.0
    %2566 = vmatpush1.msra.mxu0 0.0
    %2567 = vmatprep.subr.mxu0 0.0
    %2568 = vmatpush1.msra.mxu0 %v1335
    %2569 = vmatprep.subr.mxu0 0.0
    %2570 = vmatpush2.msra.mxu0 0.0
    %2571 = vmatprep.subr.mxu0 0.0
    %2572 = vmatpush2.msra.mxu0 0.0
    %2573 = vmatprep.subr.mxu0 0.0
    %2574 = vmatpush2.msra.mxu0 0.0
    %2575 = vmatprep.subr.mxu0 0.0
    %2576 = vmatpush2.msra.mxu0 0.0
    %2577 = vmatprep.subr.mxu0 0.0
    %2578 = vmatpush2.msra.mxu0 0.0
    %2579 = vmatprep.subr.mxu0 0.0
    %2580 = vmatpush2.msra.mxu0 0.0
    %2581 = vmatprep.subr.mxu0 0.0
    %2582 = vmatpush2.msra.mxu0 0.0
    %2583 = vmatprep.subr.mxu0 0.0
    %2584 = vmatpush2.msra.mxu0 0.0
    %2585 = vmatprep.subr.mxu0 0.0
    %2586 = vmatpush2.msra.mxu0 0.0
    %2587 = vmatprep.subr.mxu0 0.0
    %2588 = vmatpush2.msra.mxu0 0.0
    %2589 = vmatprep.subr.mxu0 0.0
    %2590 = vmatpush2.msra.mxu0 0.0
    %2591 = vmatprep.subr.mxu0 0.0
    %2592 = vmatpush2.msra.mxu0 0.0
    %2593 = vmatprep.subr.mxu0 0.0
    %2594 = vmatpush2.msra.mxu0 0.0
    %2595 = vmatprep.subr.mxu0 0.0
    %2596 = vmatpush2.msra.mxu0 0.0
    %2597 = vmatprep.subr.mxu0 0.0
    %2598 = vmatpush2.msra.mxu0 0.0
    %2599 = vmatprep.subr.mxu0 0.0
    %2600 = vmatpush2.msra.mxu0 0.0
    %2601 = vmatprep.mubr.f32.mxu0 0.0
    %2602 = vmatmul.mubr.f32.gmra.mxu0 %v2535
    %v2603 = vpop.f32.mrf.mxu0
    %v2604 = vadd.f32 0.0, %v2603
    %v2605 = vpop.f32.mrf.mxu0
    %2606 = vdwg.mxu0
    %v2608 = vsel %vm2445, %v2521, 0
    %2610 = vmatprep.subr.mxu0 0.0
    %2611 = vmatpush1.msra.mxu0 0.0
    %2612 = vmatprep.subr.mxu0 0.0
    %2613 = vmatpush1.msra.mxu0 0.0
    %2614 = vmatprep.subr.mxu0 0.0
    %2615 = vmatpush1.msra.mxu0 0.0
    %2616 = vmatprep.subr.mxu0 0.0
    %2617 = vmatpush1.msra.mxu0 0.0
    %2618 = vmatprep.subr.mxu0 0.0
    %2619 = vmatpush1.msra.mxu0 0.0
    %2620 = vmatprep.subr.mxu0 0.0
    %2621 = vmatpush1.msra.mxu0 0.0
    %2622 = vmatprep.subr.mxu0 0.0
    %2623 = vmatpush1.msra.mxu0 0.0
    %2624 = vmatprep.subr.mxu0 0.0
    %2625 = vmatpush1.msra.mxu0 0.0
    %2626 = vmatprep.subr.mxu0 0.0
    %2627 = vmatpush1.msra.mxu0 0.0
    %2628 = vmatprep.subr.mxu0 0.0
    %2629 = vmatpush1.msra.mxu0 0.0
    %2630 = vmatprep.subr.mxu0 0.0
    %2631 = vmatpush1.msra.mxu0 0.0
    %2632 = vmatprep.subr.mxu0 0.0
    %2633 = vmatpush1.msra.mxu0 0.0
    %2634 = vmatprep.subr.mxu0 0.0
    %2635 = vmatpush1.msra.mxu0 0.0
    %2636 = vmatprep.subr.mxu0 0.0
    %2637 = vmatpush1.msra.mxu0 0.0
    %2638 = vmatprep.subr.mxu0 0.0
    %2639 = vmatpush1.msra.mxu0 0.0
    %2640 = vmatprep.subr.mxu0 0.0
    %2641 = vmatpush1.msra.mxu0 %v1405
    %2642 = vmatprep.subr.mxu0 0.0
    %2643 = vmatpush2.msra.mxu0 0.0
    %2644 = vmatprep.subr.mxu0 0.0
    %2645 = vmatpush2.msra.mxu0 0.0
    %2646 = vmatprep.subr.mxu0 0.0
    %2647 = vmatpush2.msra.mxu0 0.0
    %2648 = vmatprep.subr.mxu0 0.0
    %2649 = vmatpush2.msra.mxu0 0.0
    %2650 = vmatprep.subr.mxu0 0.0
    %2651 = vmatpush2.msra.mxu0 0.0
    %2652 = vmatprep.subr.mxu0 0.0
    %2653 = vmatpush2.msra.mxu0 0.0
    %2654 = vmatprep.subr.mxu0 0.0
    %2655 = vmatpush2.msra.mxu0 0.0
    %2656 = vmatprep.subr.mxu0 0.0
    %2657 = vmatpush2.msra.mxu0 0.0
    %2658 = vmatprep.subr.mxu0 0.0
    %2659 = vmatpush2.msra.mxu0 0.0
    %2660 = vmatprep.subr.mxu0 0.0
    %2661 = vmatpush2.msra.mxu0 0.0
    %2662 = vmatprep.subr.mxu0 0.0
    %2663 = vmatpush2.msra.mxu0 0.0
    %2664 = vmatprep.subr.mxu0 0.0
    %2665 = vmatpush2.msra.mxu0 0.0
    %2666 = vmatprep.subr.mxu0 0.0
    %2667 = vmatpush2.msra.mxu0 0.0
    %2668 = vmatprep.subr.mxu0 0.0
    %2669 = vmatpush2.msra.mxu0 0.0
    %2670 = vmatprep.subr.mxu0 0.0
    %2671 = vmatpush2.msra.mxu0 0.0
    %2672 = vmatprep.subr.mxu0 0.0
    %2673 = vmatpush2.msra.mxu0 0.0
    %2674 = vmatprep.mubr.f32.mxu0 0.0
    %2675 = vmatmul.mubr.f32.gmra.mxu0 %v2608
    %v2676 = vpop.f32.mrf.mxu0
    %v2677 = vadd.f32 0.0, %v2676
    %v2678 = vpop.f32.mrf.mxu0
    %2679 = vdwg.mxu0
    %v2681 = vsel %vm2445, %v2523, 0
    %2683 = vmatprep.subr.mxu0 0.0
    %2684 = vmatpush1.msra.mxu0 0.0
    %2685 = vmatprep.subr.mxu0 0.0
    %2686 = vmatpush1.msra.mxu0 0.0
    %2687 = vmatprep.subr.mxu0 0.0
    %2688 = vmatpush1.msra.mxu0 0.0
    %2689 = vmatprep.subr.mxu0 0.0
    %2690 = vmatpush1.msra.mxu0 0.0
    %2691 = vmatprep.subr.mxu0 0.0
    %2692 = vmatpush1.msra.mxu0 0.0
    %2693 = vmatprep.subr.mxu0 0.0
    %2694 = vmatpush1.msra.mxu0 0.0
    %2695 = vmatprep.subr.mxu0 0.0
    %2696 = vmatpush1.msra.mxu0 0.0
    %2697 = vmatprep.subr.mxu0 0.0
    %2698 = vmatpush1.msra.mxu0 0.0
    %2699 = vmatprep.subr.mxu0 0.0
    %2700 = vmatpush1.msra.mxu0 0.0
    %2701 = vmatprep.subr.mxu0 0.0
    %2702 = vmatpush1.msra.mxu0 0.0
    %2703 = vmatprep.subr.mxu0 0.0
    %2704 = vmatpush1.msra.mxu0 0.0
    %2705 = vmatprep.subr.mxu0 0.0
    %2706 = vmatpush1.msra.mxu0 0.0
    %2707 = vmatprep.subr.mxu0 0.0
    %2708 = vmatpush1.msra.mxu0 0.0
    %2709 = vmatprep.subr.mxu0 0.0
    %2710 = vmatpush1.msra.mxu0 0.0
    %2711 = vmatprep.subr.mxu0 0.0
    %2712 = vmatpush1.msra.mxu0 0.0
    %2713 = vmatprep.subr.mxu0 0.0
    %2714 = vmatpush1.msra.mxu0 %v1475
    %2715 = vmatprep.subr.mxu0 0.0
    %2716 = vmatpush2.msra.mxu0 0.0
    %2717 = vmatprep.subr.mxu0 0.0
    %2718 = vmatpush2.msra.mxu0 0.0
    %2719 = vmatprep.subr.mxu0 0.0
    %2720 = vmatpush2.msra.mxu0 0.0
    %2721 = vmatprep.subr.mxu0 0.0
    %2722 = vmatpush2.msra.mxu0 0.0
    %2723 = vmatprep.subr.mxu0 0.0
    %2724 = vmatpush2.msra.mxu0 0.0
    %2725 = vmatprep.subr.mxu0 0.0
    %2726 = vmatpush2.msra.mxu0 0.0
    %2727 = vmatprep.subr.mxu0 0.0
    %2728 = vmatpush2.msra.mxu0 0.0
    %2729 = vmatprep.subr.mxu0 0.0
    %2730 = vmatpush2.msra.mxu0 0.0
    %2731 = vmatprep.subr.mxu0 0.0
    %2732 = vmatpush2.msra.mxu0 0.0
    %2733 = vmatprep.subr.mxu0 0.0
    %2734 = vmatpush2.msra.mxu0 0.0
    %2735 = vmatprep.subr.mxu0 0.0
    %2736 = vmatpush2.msra.mxu0 0.0
    %2737 = vmatprep.subr.mxu0 0.0
    %2738 = vmatpush2.msra.mxu0 0.0
    %2739 = vmatprep.subr.mxu0 0.0
    %2740 = vmatpush2.msra.mxu0 0.0
    %2741 = vmatprep.subr.mxu0 0.0
    %2742 = vmatpush2.msra.mxu0 0.0
    %2743 = vmatprep.subr.mxu0 0.0
    %2744 = vmatpush2.msra.mxu0 0.0
    %2745 = vmatprep.subr.mxu0 0.0
    %2746 = vmatpush2.msra.mxu0 0.0
    %2747 = vmatprep.mubr.f32.mxu0 0.0
    %2748 = vmatmul.mubr.f32.gmra.mxu0 %v2681
    %v2749 = vpop.f32.mrf.mxu0
    %v2750 = vadd.f32 0.0, %v2749
    %v2751 = vpop.f32.mrf.mxu0
    %2752 = vdwg.mxu0
    %v2754 = vsel %vm2445, %v2525, 0
    %2756 = vmatprep.subr.mxu0 0.0
    %2757 = vmatpush1.msra.mxu0 0.0
    %2758 = vmatprep.subr.mxu0 0.0
    %2759 = vmatpush1.msra.mxu0 0.0
    %2760 = vmatprep.subr.mxu0 0.0
    %2761 = vmatpush1.msra.mxu0 0.0
    %2762 = vmatprep.subr.mxu0 0.0
    %2763 = vmatpush1.msra.mxu0 0.0
    %2764 = vmatprep.subr.mxu0 0.0
    %2765 = vmatpush1.msra.mxu0 0.0
    %2766 = vmatprep.subr.mxu0 0.0
    %2767 = vmatpush1.msra.mxu0 0.0
    %2768 = vmatprep.subr.mxu0 0.0
    %2769 = vmatpush1.msra.mxu0 0.0
    %2770 = vmatprep.subr.mxu0 0.0
    %2771 = vmatpush1.msra.mxu0 0.0
    %2772 = vmatprep.subr.mxu0 0.0
    %2773 = vmatpush1.msra.mxu0 0.0
    %2774 = vmatprep.subr.mxu0 0.0
    %2775 = vmatpush1.msra.mxu0 0.0
    %2776 = vmatprep.subr.mxu0 0.0
    %2777 = vmatpush1.msra.mxu0 0.0
    %2778 = vmatprep.subr.mxu0 0.0
    %2779 = vmatpush1.msra.mxu0 0.0
    %2780 = vmatprep.subr.mxu0 0.0
    %2781 = vmatpush1.msra.mxu0 0.0
    %2782 = vmatprep.subr.mxu0 0.0
    %2783 = vmatpush1.msra.mxu0 0.0
    %2784 = vmatprep.subr.mxu0 0.0
    %2785 = vmatpush1.msra.mxu0 0.0
    %2786 = vmatprep.subr.mxu0 0.0
    %2787 = vmatpush1.msra.mxu0 %v1545
    %2788 = vmatprep.subr.mxu0 0.0
    %2789 = vmatpush2.msra.mxu0 0.0
    %2790 = vmatprep.subr.mxu0 0.0
    %2791 = vmatpush2.msra.mxu0 0.0
    %2792 = vmatprep.subr.mxu0 0.0
    %2793 = vmatpush2.msra.mxu0 0.0
    %2794 = vmatprep.subr.mxu0 0.0
    %2795 = vmatpush2.msra.mxu0 0.0
    %2796 = vmatprep.subr.mxu0 0.0
    %2797 = vmatpush2.msra.mxu0 0.0
    %2798 = vmatprep.subr.mxu0 0.0
    %2799 = vmatpush2.msra.mxu0 0.0
    %2800 = vmatprep.subr.mxu0 0.0
    %2801 = vmatpush2.msra.mxu0 0.0
    %2802 = vmatprep.subr.mxu0 0.0
    %2803 = vmatpush2.msra.mxu0 0.0
    %2804 = vmatprep.subr.mxu0 0.0
    %2805 = vmatpush2.msra.mxu0 0.0
    %2806 = vmatprep.subr.mxu0 0.0
    %2807 = vmatpush2.msra.mxu0 0.0
    %2808 = vmatprep.subr.mxu0 0.0
    %2809 = vmatpush2.msra.mxu0 0.0
    %2810 = vmatprep.subr.mxu0 0.0
    %2811 = vmatpush2.msra.mxu0 0.0
    %2812 = vmatprep.subr.mxu0 0.0
    %2813 = vmatpush2.msra.mxu0 0.0
    %2814 = vmatprep.subr.mxu0 0.0
    %2815 = vmatpush2.msra.mxu0 0.0
    %2816 = vmatprep.subr.mxu0 0.0
    %2817 = vmatpush2.msra.mxu0 0.0
    %2818 = vmatprep.subr.mxu0 0.0
    %2819 = vmatpush2.msra.mxu0 0.0
    %2820 = vmatprep.mubr.f32.mxu0 0.0
    %2821 = vmatmul.mubr.f32.gmra.mxu0 %v2754
    %v2822 = vpop.f32.mrf.mxu0
    %v2823 = vadd.f32 0.0, %v2822
    %v2824 = vpop.f32.mrf.mxu0
    %2825 = vdwg.mxu0
    %v2827 = vsel %vm2445, %v2527, 0
    %2829 = vmatprep.subr.mxu0 0.0
    %2830 = vmatpush1.msra.mxu0 0.0
    %2831 = vmatprep.subr.mxu0 0.0
    %2832 = vmatpush1.msra.mxu0 0.0
    %2833 = vmatprep.subr.mxu0 0.0
    %2834 = vmatpush1.msra.mxu0 0.0
    %2835 = vmatprep.subr.mxu0 0.0
    %2836 = vmatpush1.msra.mxu0 0.0
    %2837 = vmatprep.subr.mxu0 0.0
    %2838 = vmatpush1.msra.mxu0 0.0
    %2839 = vmatprep.subr.mxu0 0.0
    %2840 = vmatpush1.msra.mxu0 0.0
    %2841 = vmatprep.subr.mxu0 0.0
    %2842 = vmatpush1.msra.mxu0 0.0
    %2843 = vmatprep.subr.mxu0 0.0
    %2844 = vmatpush1.msra.mxu0 0.0
    %2845 = vmatprep.subr.mxu0 0.0
    %2846 = vmatpush1.msra.mxu0 0.0
    %2847 = vmatprep.subr.mxu0 0.0
    %2848 = vmatpush1.msra.mxu0 0.0
    %2849 = vmatprep.subr.mxu0 0.0
    %2850 = vmatpush1.msra.mxu0 0.0
    %2851 = vmatprep.subr.mxu0 0.0
    %2852 = vmatpush1.msra.mxu0 0.0
    %2853 = vmatprep.subr.mxu0 0.0
    %2854 = vmatpush1.msra.mxu0 0.0
    %2855 = vmatprep.subr.mxu0 0.0
    %2856 = vmatpush1.msra.mxu0 0.0
    %2857 = vmatprep.subr.mxu0 0.0
    %2858 = vmatpush1.msra.mxu0 0.0
    %2859 = vmatprep.subr.mxu0 0.0
    %2860 = vmatpush1.msra.mxu0 %v1615
    %2861 = vmatprep.subr.mxu0 0.0
    %2862 = vmatpush2.msra.mxu0 0.0
    %2863 = vmatprep.subr.mxu0 0.0
    %2864 = vmatpush2.msra.mxu0 0.0
    %2865 = vmatprep.subr.mxu0 0.0
    %2866 = vmatpush2.msra.mxu0 0.0
    %2867 = vmatprep.subr.mxu0 0.0
    %2868 = vmatpush2.msra.mxu0 0.0
    %2869 = vmatprep.subr.mxu0 0.0
    %2870 = vmatpush2.msra.mxu0 0.0
    %2871 = vmatprep.subr.mxu0 0.0
    %2872 = vmatpush2.msra.mxu0 0.0
    %2873 = vmatprep.subr.mxu0 0.0
    %2874 = vmatpush2.msra.mxu0 0.0
    %2875 = vmatprep.subr.mxu0 0.0
    %2876 = vmatpush2.msra.mxu0 0.0
    %2877 = vmatprep.subr.mxu0 0.0
    %2878 = vmatpush2.msra.mxu0 0.0
    %2879 = vmatprep.subr.mxu0 0.0
    %2880 = vmatpush2.msra.mxu0 0.0
    %2881 = vmatprep.subr.mxu0 0.0
    %2882 = vmatpush2.msra.mxu0 0.0
    %2883 = vmatprep.subr.mxu0 0.0
    %2884 = vmatpush2.msra.mxu0 0.0
    %2885 = vmatprep.subr.mxu0 0.0
    %2886 = vmatpush2.msra.mxu0 0.0
    %2887 = vmatprep.subr.mxu0 0.0
    %2888 = vmatpush2.msra.mxu0 0.0
    %2889 = vmatprep.subr.mxu0 0.0
    %2890 = vmatpush2.msra.mxu0 0.0
    %2891 = vmatprep.subr.mxu0 0.0
    %2892 = vmatpush2.msra.mxu0 0.0
    %2893 = vmatprep.mubr.f32.mxu0 0.0
    %2894 = vmatmul.mubr.f32.gmra.mxu0 %v2827
    %v2895 = vpop.f32.mrf.mxu0
    %v2896 = vadd.f32 0.0, %v2895
    %v2897 = vpop.f32.mrf.mxu0
    %2898 = vdwg.mxu0
    %v2900 = vsel %vm2445, %v2529, 0
    %2902 = vmatprep.subr.mxu0 0.0
    %2903 = vmatpush1.msra.mxu0 0.0
    %2904 = vmatprep.subr.mxu0 0.0
    %2905 = vmatpush1.msra.mxu0 0.0
    %2906 = vmatprep.subr.mxu0 0.0
    %2907 = vmatpush1.msra.mxu0 0.0
    %2908 = vmatprep.subr.mxu0 0.0
    %2909 = vmatpush1.msra.mxu0 0.0
    %2910 = vmatprep.subr.mxu0 0.0
    %2911 = vmatpush1.msra.mxu0 0.0
    %2912 = vmatprep.subr.mxu0 0.0
    %2913 = vmatpush1.msra.mxu0 0.0
    %2914 = vmatprep.subr.mxu0 0.0
    %2915 = vmatpush1.msra.mxu0 0.0
    %2916 = vmatprep.subr.mxu0 0.0
    %2917 = vmatpush1.msra.mxu0 0.0
    %2918 = vmatprep.subr.mxu0 0.0
    %2919 = vmatpush1.msra.mxu0 0.0
    %2920 = vmatprep.subr.mxu0 0.0
    %2921 = vmatpush1.msra.mxu0 0.0
    %2922 = vmatprep.subr.mxu0 0.0
    %2923 = vmatpush1.msra.mxu0 0.0
    %2924 = vmatprep.subr.mxu0 0.0
    %2925 = vmatpush1.msra.mxu0 0.0
    %2926 = vmatprep.subr.mxu0 0.0
    %2927 = vmatpush1.msra.mxu0 0.0
    %2928 = vmatprep.subr.mxu0 0.0
    %2929 = vmatpush1.msra.mxu0 0.0
    %2930 = vmatprep.subr.mxu0 0.0
    %2931 = vmatpush1.msra.mxu0 0.0
    %2932 = vmatprep.subr.mxu0 0.0
    %2933 = vmatpush1.msra.mxu0 %v1685
    %2934 = vmatprep.subr.mxu0 0.0
    %2935 = vmatpush2.msra.mxu0 0.0
    %2936 = vmatprep.subr.mxu0 0.0
    %2937 = vmatpush2.msra.mxu0 0.0
    %2938 = vmatprep.subr.mxu0 0.0
    %2939 = vmatpush2.msra.mxu0 0.0
    %2940 = vmatprep.subr.mxu0 0.0
    %2941 = vmatpush2.msra.mxu0 0.0
    %2942 = vmatprep.subr.mxu0 0.0
    %2943 = vmatpush2.msra.mxu0 0.0
    %2944 = vmatprep.subr.mxu0 0.0
    %2945 = vmatpush2.msra.mxu0 0.0
    %2946 = vmatprep.subr.mxu0 0.0
    %2947 = vmatpush2.msra.mxu0 0.0
    %2948 = vmatprep.subr.mxu0 0.0
    %2949 = vmatpush2.msra.mxu0 0.0
    %2950 = vmatprep.subr.mxu0 0.0
    %2951 = vmatpush2.msra.mxu0 0.0
    %2952 = vmatprep.subr.mxu0 0.0
    %2953 = vmatpush2.msra.mxu0 0.0
    %2954 = vmatprep.subr.mxu0 0.0
    %2955 = vmatpush2.msra.mxu0 0.0
    %2956 = vmatprep.subr.mxu0 0.0
    %2957 = vmatpush2.msra.mxu0 0.0
    %2958 = vmatprep.subr.mxu0 0.0
    %2959 = vmatpush2.msra.mxu0 0.0
    %2960 = vmatprep.subr.mxu0 0.0
    %2961 = vmatpush2.msra.mxu0 0.0
    %2962 = vmatprep.subr.mxu0 0.0
    %2963 = vmatpush2.msra.mxu0 0.0
    %2964 = vmatprep.subr.mxu0 0.0
    %2965 = vmatpush2.msra.mxu0 0.0
    %2966 = vmatprep.mubr.f32.mxu0 0.0
    %2967 = vmatmul.mubr.f32.gmra.mxu0 %v2900
    %v2968 = vpop.f32.mrf.mxu0
    %v2969 = vadd.f32 0.0, %v2968
    %v2970 = vpop.f32.mrf.mxu0
    %2971 = vdwg.mxu0
    %v2973 = vsel %vm2445, %v2531, 0
    %2975 = vmatprep.subr.mxu0 0.0
    %2976 = vmatpush1.msra.mxu0 0.0
    %2977 = vmatprep.subr.mxu0 0.0
    %2978 = vmatpush1.msra.mxu0 0.0
    %2979 = vmatprep.subr.mxu0 0.0
    %2980 = vmatpush1.msra.mxu0 0.0
    %2981 = vmatprep.subr.mxu0 0.0
    %2982 = vmatpush1.msra.mxu0 0.0
    %2983 = vmatprep.subr.mxu0 0.0
    %2984 = vmatpush1.msra.mxu0 0.0
    %2985 = vmatprep.subr.mxu0 0.0
    %2986 = vmatpush1.msra.mxu0 0.0
    %2987 = vmatprep.subr.mxu0 0.0
    %2988 = vmatpush1.msra.mxu0 0.0
    %2989 = vmatprep.subr.mxu0 0.0
    %2990 = vmatpush1.msra.mxu0 0.0
    %2991 = vmatprep.subr.mxu0 0.0
    %2992 = vmatpush1.msra.mxu0 0.0
    %2993 = vmatprep.subr.mxu0 0.0
    %2994 = vmatpush1.msra.mxu0 0.0
    %2995 = vmatprep.subr.mxu0 0.0
    %2996 = vmatpush1.msra.mxu0 0.0
    %2997 = vmatprep.subr.mxu0 0.0
    %2998 = vmatpush1.msra.mxu0 0.0
    %2999 = vmatprep.subr.mxu0 0.0
    %3000 = vmatpush1.msra.mxu0 0.0
    %3001 = vmatprep.subr.mxu0 0.0
    %3002 = vmatpush1.msra.mxu0 0.0
    %3003 = vmatprep.subr.mxu0 0.0
    %3004 = vmatpush1.msra.mxu0 0.0
    %3005 = vmatprep.subr.mxu0 0.0
    %3006 = vmatpush1.msra.mxu0 %v1755
    %3007 = vmatprep.subr.mxu0 0.0
    %3008 = vmatpush2.msra.mxu0 0.0
    %3009 = vmatprep.subr.mxu0 0.0
    %3010 = vmatpush2.msra.mxu0 0.0
    %3011 = vmatprep.subr.mxu0 0.0
    %3012 = vmatpush2.msra.mxu0 0.0
    %3013 = vmatprep.subr.mxu0 0.0
    %3014 = vmatpush2.msra.mxu0 0.0
    %3015 = vmatprep.subr.mxu0 0.0
    %3016 = vmatpush2.msra.mxu0 0.0
    %3017 = vmatprep.subr.mxu0 0.0
    %3018 = vmatpush2.msra.mxu0 0.0
    %3019 = vmatprep.subr.mxu0 0.0
    %3020 = vmatpush2.msra.mxu0 0.0
    %3021 = vmatprep.subr.mxu0 0.0
    %3022 = vmatpush2.msra.mxu0 0.0
    %3023 = vmatprep.subr.mxu0 0.0
    %3024 = vmatpush2.msra.mxu0 0.0
    %3025 = vmatprep.subr.mxu0 0.0
    %3026 = vmatpush2.msra.mxu0 0.0
    %3027 = vmatprep.subr.mxu0 0.0
    %3028 = vmatpush2.msra.mxu0 0.0
    %3029 = vmatprep.subr.mxu0 0.0
    %3030 = vmatpush2.msra.mxu0 0.0
    %3031 = vmatprep.subr.mxu0 0.0
    %3032 = vmatpush2.msra.mxu0 0.0
    %3033 = vmatprep.subr.mxu0 0.0
    %3034 = vmatpush2.msra.mxu0 0.0
    %3035 = vmatprep.subr.mxu0 0.0
    %3036 = vmatpush2.msra.mxu0 0.0
    %3037 = vmatprep.subr.mxu0 0.0
    %3038 = vmatpush2.msra.mxu0 0.0
    %3039 = vmatprep.mubr.f32.mxu0 0.0
    %3040 = vmatmul.mubr.f32.gmra.mxu0 %v2973
    %v3041 = vpop.f32.mrf.mxu0
    %v3042 = vadd.f32 0.0, %v3041
    %v3043 = vpop.f32.mrf.mxu0
    %3044 = vdwg.mxu0
    %v3046 = vsel %vm2445, %v2533, 0
    %3048 = vmatprep.subr.mxu0 0.0
    %3049 = vmatpush1.msra.mxu0 0.0
    %3050 = vmatprep.subr.mxu0 0.0
    %3051 = vmatpush1.msra.mxu0 0.0
    %3052 = vmatprep.subr.mxu0 0.0
    %3053 = vmatpush1.msra.mxu0 0.0
    %3054 = vmatprep.subr.mxu0 0.0
    %3055 = vmatpush1.msra.mxu0 0.0
    %3056 = vmatprep.subr.mxu0 0.0
    %3057 = vmatpush1.msra.mxu0 0.0
    %3058 = vmatprep.subr.mxu0 0.0
    %3059 = vmatpush1.msra.mxu0 0.0
    %3060 = vmatprep.subr.mxu0 0.0
    %3061 = vmatpush1.msra.mxu0 0.0
    %3062 = vmatprep.subr.mxu0 0.0
    %3063 = vmatpush1.msra.mxu0 0.0
    %3064 = vmatprep.subr.mxu0 0.0
    %3065 = vmatpush1.msra.mxu0 0.0
    %3066 = vmatprep.subr.mxu0 0.0
    %3067 = vmatpush1.msra.mxu0 0.0
    %3068 = vmatprep.subr.mxu0 0.0
    %3069 = vmatpush1.msra.mxu0 0.0
    %3070 = vmatprep.subr.mxu0 0.0
    %3071 = vmatpush1.msra.mxu0 0.0
    %3072 = vmatprep.subr.mxu0 0.0
    %3073 = vmatpush1.msra.mxu0 0.0
    %3074 = vmatprep.subr.mxu0 0.0
    %3075 = vmatpush1.msra.mxu0 0.0
    %3076 = vmatprep.subr.mxu0 0.0
    %3077 = vmatpush1.msra.mxu0 0.0
    %3078 = vmatprep.subr.mxu0 0.0
    %3079 = vmatpush1.msra.mxu0 %v1825
    %3080 = vmatprep.subr.mxu0 0.0
    %3081 = vmatpush2.msra.mxu0 0.0
    %3082 = vmatprep.subr.mxu0 0.0
    %3083 = vmatpush2.msra.mxu0 0.0
    %3084 = vmatprep.subr.mxu0 0.0
    %3085 = vmatpush2.msra.mxu0 0.0
    %3086 = vmatprep.subr.mxu0 0.0
    %3087 = vmatpush2.msra.mxu0 0.0
    %3088 = vmatprep.subr.mxu0 0.0
    %3089 = vmatpush2.msra.mxu0 0.0
    %3090 = vmatprep.subr.mxu0 0.0
    %3091 = vmatpush2.msra.mxu0 0.0
    %3092 = vmatprep.subr.mxu0 0.0
    %3093 = vmatpush2.msra.mxu0 0.0
    %3094 = vmatprep.subr.mxu0 0.0
    %3095 = vmatpush2.msra.mxu0 0.0
    %3096 = vmatprep.subr.mxu0 0.0
    %3097 = vmatpush2.msra.mxu0 0.0
    %3098 = vmatprep.subr.mxu0 0.0
    %3099 = vmatpush2.msra.mxu0 0.0
    %3100 = vmatprep.subr.mxu0 0.0
    %3101 = vmatpush2.msra.mxu0 0.0
    %3102 = vmatprep.subr.mxu0 0.0
    %3103 = vmatpush2.msra.mxu0 0.0
    %3104 = vmatprep.subr.mxu0 0.0
    %3105 = vmatpush2.msra.mxu0 0.0
    %3106 = vmatprep.subr.mxu0 0.0
    %3107 = vmatpush2.msra.mxu0 0.0
    %3108 = vmatprep.subr.mxu0 0.0
    %3109 = vmatpush2.msra.mxu0 0.0
    %3110 = vmatprep.subr.mxu0 0.0
    %3111 = vmatpush2.msra.mxu0 0.0
    %3112 = vmatprep.mubr.f32.mxu0 0.0
    %3113 = vmatmul.mubr.f32.gmra.mxu0 %v3046
    %v3114 = vpop.f32.mrf.mxu0
    %v3115 = vadd.f32 0.0, %v3114
    %v3116 = vpop.f32.mrf.mxu0
    %3117 = vdwg.mxu0
    %v3119 = vsel %vm1836, %v2604, 0
    %3121 = vmatprep.subr.mxu0 0.0
    %3122 = vmatpush1.msra.mxu0 0.0
    %3123 = vmatprep.subr.mxu0 0.0
    %3124 = vmatpush1.msra.mxu0 0.0
    %3125 = vmatprep.subr.mxu0 0.0
    %3126 = vmatpush1.msra.mxu0 0.0
    %3127 = vmatprep.subr.mxu0 0.0
    %3128 = vmatpush1.msra.mxu0 0.0
    %3129 = vmatprep.subr.mxu0 0.0
    %3130 = vmatpush1.msra.mxu0 0.0
    %3131 = vmatprep.subr.mxu0 0.0
    %3132 = vmatpush1.msra.mxu0 0.0
    %3133 = vmatprep.subr.mxu0 0.0
    %3134 = vmatpush1.msra.mxu0 0.0
    %3135 = vmatprep.subr.mxu0 0.0
    %3136 = vmatpush1.msra.mxu0 0.0
    %3137 = vmatprep.subr.mxu0 0.0
    %3138 = vmatpush1.msra.mxu0 0.0
    %3139 = vmatprep.subr.mxu0 0.0
    %3140 = vmatpush1.msra.mxu0 0.0
    %3141 = vmatprep.subr.mxu0 0.0
    %3142 = vmatpush1.msra.mxu0 0.0
    %3143 = vmatprep.subr.mxu0 0.0
    %3144 = vmatpush1.msra.mxu0 0.0
    %3145 = vmatprep.subr.mxu0 0.0
    %3146 = vmatpush1.msra.mxu0 0.0
    %3147 = vmatprep.subr.mxu0 0.0
    %3148 = vmatpush1.msra.mxu0 0.0
    %3149 = vmatprep.subr.mxu0 0.0
    %3150 = vmatpush1.msra.mxu0 %v124
    %3151 = vmatprep.subr.mxu0 0.0
    %3152 = vmatpush1.msra.mxu0 %v123
    %3153 = vmatprep.subr.mxu0 0.0
    %3154 = vmatpush2.msra.mxu0 0.0
    %3155 = vmatprep.subr.mxu0 0.0
    %3156 = vmatpush2.msra.mxu0 0.0
    %3157 = vmatprep.subr.mxu0 0.0
    %3158 = vmatpush2.msra.mxu0 0.0
    %3159 = vmatprep.subr.mxu0 0.0
    %3160 = vmatpush2.msra.mxu0 0.0
    %3161 = vmatprep.subr.mxu0 0.0
    %3162 = vmatpush2.msra.mxu0 0.0
    %3163 = vmatprep.subr.mxu0 0.0
    %3164 = vmatpush2.msra.mxu0 0.0
    %3165 = vmatprep.subr.mxu0 0.0
    %3166 = vmatpush2.msra.mxu0 0.0
    %3167 = vmatprep.subr.mxu0 0.0
    %3168 = vmatpush2.msra.mxu0 0.0
    %3169 = vmatprep.subr.mxu0 0.0
    %3170 = vmatpush2.msra.mxu0 0.0
    %3171 = vmatprep.subr.mxu0 0.0
    %3172 = vmatpush2.msra.mxu0 0.0
    %3173 = vmatprep.subr.mxu0 0.0
    %3174 = vmatpush2.msra.mxu0 0.0
    %3175 = vmatprep.subr.mxu0 0.0
    %3176 = vmatpush2.msra.mxu0 0.0
    %3177 = vmatprep.subr.mxu0 0.0
    %3178 = vmatpush2.msra.mxu0 0.0
    %3179 = vmatprep.subr.mxu0 0.0
    %3180 = vmatpush2.msra.mxu0 0.0
    %3181 = vmatprep.subr.mxu0 0.0
    %3182 = vmatpush2.msra.mxu0 0.0
    %3183 = vmatprep.subr.mxu0 0.0
    %3184 = vmatpush2.msra.mxu0 0.0
    %3185 = vmatprep.mubr.f32.mxu0 0.0
    %3186 = vmatmul.mubr.f32.gmra.mxu0 %v3119
    %v3187 = vpop.f32.mrf.mxu0
    %v3188 = vadd.f32 0.0, %v3187
    %v3189 = vpop.f32.mrf.mxu0
    %3190 = vdwg.mxu0
    %v3192 = vsel %vm1836, %v2677, 0
    %3194 = vmatprep.subr.mxu0 0.0
    %3195 = vmatpush1.msra.mxu0 0.0
    %3196 = vmatprep.subr.mxu0 0.0
    %3197 = vmatpush1.msra.mxu0 0.0
    %3198 = vmatprep.subr.mxu0 0.0
    %3199 = vmatpush1.msra.mxu0 0.0
    %3200 = vmatprep.subr.mxu0 0.0
    %3201 = vmatpush1.msra.mxu0 0.0
    %3202 = vmatprep.subr.mxu0 0.0
    %3203 = vmatpush1.msra.mxu0 0.0
    %3204 = vmatprep.subr.mxu0 0.0
    %3205 = vmatpush1.msra.mxu0 0.0
    %3206 = vmatprep.subr.mxu0 0.0
    %3207 = vmatpush1.msra.mxu0 0.0
    %3208 = vmatprep.subr.mxu0 0.0
    %3209 = vmatpush1.msra.mxu0 0.0
    %3210 = vmatprep.subr.mxu0 0.0
    %3211 = vmatpush1.msra.mxu0 0.0
    %3212 = vmatprep.subr.mxu0 0.0
    %3213 = vmatpush1.msra.mxu0 0.0
    %3214 = vmatprep.subr.mxu0 0.0
    %3215 = vmatpush1.msra.mxu0 0.0
    %3216 = vmatprep.subr.mxu0 0.0
    %3217 = vmatpush1.msra.mxu0 0.0
    %3218 = vmatprep.subr.mxu0 0.0
    %3219 = vmatpush1.msra.mxu0 0.0
    %3220 = vmatprep.subr.mxu0 0.0
    %3221 = vmatpush1.msra.mxu0 0.0
    %3222 = vmatprep.subr.mxu0 0.0
    %3223 = vmatpush1.msra.mxu0 %v126
    %3224 = vmatprep.subr.mxu0 0.0
    %3225 = vmatpush1.msra.mxu0 %v125
    %3226 = vmatprep.subr.mxu0 0.0
    %3227 = vmatpush2.msra.mxu0 0.0
    %3228 = vmatprep.subr.mxu0 0.0
    %3229 = vmatpush2.msra.mxu0 0.0
    %3230 = vmatprep.subr.mxu0 0.0
    %3231 = vmatpush2.msra.mxu0 0.0
    %3232 = vmatprep.subr.mxu0 0.0
    %3233 = vmatpush2.msra.mxu0 0.0
    %3234 = vmatprep.subr.mxu0 0.0
    %3235 = vmatpush2.msra.mxu0 0.0
    %3236 = vmatprep.subr.mxu0 0.0
    %3237 = vmatpush2.msra.mxu0 0.0
    %3238 = vmatprep.subr.mxu0 0.0
    %3239 = vmatpush2.msra.mxu0 0.0
    %3240 = vmatprep.subr.mxu0 0.0
    %3241 = vmatpush2.msra.mxu0 0.0
    %3242 = vmatprep.subr.mxu0 0.0
    %3243 = vmatpush2.msra.mxu0 0.0
    %3244 = vmatprep.subr.mxu0 0.0
    %3245 = vmatpush2.msra.mxu0 0.0
    %3246 = vmatprep.subr.mxu0 0.0
    %3247 = vmatpush2.msra.mxu0 0.0
    %3248 = vmatprep.subr.mxu0 0.0
    %3249 = vmatpush2.msra.mxu0 0.0
    %3250 = vmatprep.subr.mxu0 0.0
    %3251 = vmatpush2.msra.mxu0 0.0
    %3252 = vmatprep.subr.mxu0 0.0
    %3253 = vmatpush2.msra.mxu0 0.0
    %3254 = vmatprep.subr.mxu0 0.0
    %3255 = vmatpush2.msra.mxu0 0.0
    %3256 = vmatprep.subr.mxu0 0.0
    %3257 = vmatpush2.msra.mxu0 0.0
    %3258 = vmatprep.mubr.f32.mxu0 0.0
    %3259 = vmatmul.mubr.f32.gmra.mxu0 %v3192
    %v3260 = vpop.f32.mrf.mxu0
    %v3261 = vadd.f32 0.0, %v3260
    %v3262 = vpop.f32.mrf.mxu0
    %3263 = vdwg.mxu0
    %v3265 = vsel %vm1836, %v2750, 0
    %3267 = vmatprep.subr.mxu0 0.0
    %3268 = vmatpush1.msra.mxu0 0.0
    %3269 = vmatprep.subr.mxu0 0.0
    %3270 = vmatpush1.msra.mxu0 0.0
    %3271 = vmatprep.subr.mxu0 0.0
    %3272 = vmatpush1.msra.mxu0 0.0
    %3273 = vmatprep.subr.mxu0 0.0
    %3274 = vmatpush1.msra.mxu0 0.0
    %3275 = vmatprep.subr.mxu0 0.0
    %3276 = vmatpush1.msra.mxu0 0.0
    %3277 = vmatprep.subr.mxu0 0.0
    %3278 = vmatpush1.msra.mxu0 0.0
    %3279 = vmatprep.subr.mxu0 0.0
    %3280 = vmatpush1.msra.mxu0 0.0
    %3281 = vmatprep.subr.mxu0 0.0
    %3282 = vmatpush1.msra.mxu0 0.0
    %3283 = vmatprep.subr.mxu0 0.0
    %3284 = vmatpush1.msra.mxu0 0.0
    %3285 = vmatprep.subr.mxu0 0.0
    %3286 = vmatpush1.msra.mxu0 0.0
    %3287 = vmatprep.subr.mxu0 0.0
    %3288 = vmatpush1.msra.mxu0 0.0
    %3289 = vmatprep.subr.mxu0 0.0
    %3290 = vmatpush1.msra.mxu0 0.0
    %3291 = vmatprep.subr.mxu0 0.0
    %3292 = vmatpush1.msra.mxu0 0.0
    %3293 = vmatprep.subr.mxu0 0.0
    %3294 = vmatpush1.msra.mxu0 0.0
    %3295 = vmatprep.subr.mxu0 0.0
    %3296 = vmatpush1.msra.mxu0 %v128
    %3297 = vmatprep.subr.mxu0 0.0
    %3298 = vmatpush1.msra.mxu0 %v127
    %3299 = vmatprep.subr.mxu0 0.0
    %3300 = vmatpush2.msra.mxu0 0.0
    %3301 = vmatprep.subr.mxu0 0.0
    %3302 = vmatpush2.msra.mxu0 0.0
    %3303 = vmatprep.subr.mxu0 0.0
    %3304 = vmatpush2.msra.mxu0 0.0
    %3305 = vmatprep.subr.mxu0 0.0
    %3306 = vmatpush2.msra.mxu0 0.0
    %3307 = vmatprep.subr.mxu0 0.0
    %3308 = vmatpush2.msra.mxu0 0.0
    %3309 = vmatprep.subr.mxu0 0.0
    %3310 = vmatpush2.msra.mxu0 0.0
    %3311 = vmatprep.subr.mxu0 0.0
    %3312 = vmatpush2.msra.mxu0 0.0
    %3313 = vmatprep.subr.mxu0 0.0
    %3314 = vmatpush2.msra.mxu0 0.0
    %3315 = vmatprep.subr.mxu0 0.0
    %3316 = vmatpush2.msra.mxu0 0.0
    %3317 = vmatprep.subr.mxu0 0.0
    %3318 = vmatpush2.msra.mxu0 0.0
    %3319 = vmatprep.subr.mxu0 0.0
    %3320 = vmatpush2.msra.mxu0 0.0
    %3321 = vmatprep.subr.mxu0 0.0
    %3322 = vmatpush2.msra.mxu0 0.0
    %3323 = vmatprep.subr.mxu0 0.0
    %3324 = vmatpush2.msra.mxu0 0.0
    %3325 = vmatprep.subr.mxu0 0.0
    %3326 = vmatpush2.msra.mxu0 0.0
    %3327 = vmatprep.subr.mxu0 0.0
    %3328 = vmatpush2.msra.mxu0 0.0
    %3329 = vmatprep.subr.mxu0 0.0
    %3330 = vmatpush2.msra.mxu0 0.0
    %3331 = vmatprep.mubr.f32.mxu0 0.0
    %3332 = vmatmul.mubr.f32.gmra.mxu0 %v3265
    %v3333 = vpop.f32.mrf.mxu0
    %v3334 = vadd.f32 0.0, %v3333
    %v3335 = vpop.f32.mrf.mxu0
    %3336 = vdwg.mxu0
    %v3338 = vsel %vm1836, %v2823, 0
    %3340 = vmatprep.subr.mxu0 0.0
    %3341 = vmatpush1.msra.mxu0 0.0
    %3342 = vmatprep.subr.mxu0 0.0
    %3343 = vmatpush1.msra.mxu0 0.0
    %3344 = vmatprep.subr.mxu0 0.0
    %3345 = vmatpush1.msra.mxu0 0.0
    %3346 = vmatprep.subr.mxu0 0.0
    %3347 = vmatpush1.msra.mxu0 0.0
    %3348 = vmatprep.subr.mxu0 0.0
    %3349 = vmatpush1.msra.mxu0 0.0
    %3350 = vmatprep.subr.mxu0 0.0
    %3351 = vmatpush1.msra.mxu0 0.0
    %3352 = vmatprep.subr.mxu0 0.0
    %3353 = vmatpush1.msra.mxu0 0.0
    %3354 = vmatprep.subr.mxu0 0.0
    %3355 = vmatpush1.msra.mxu0 0.0
    %3356 = vmatprep.subr.mxu0 0.0
    %3357 = vmatpush1.msra.mxu0 0.0
    %3358 = vmatprep.subr.mxu0 0.0
    %3359 = vmatpush1.msra.mxu0 0.0
    %3360 = vmatprep.subr.mxu0 0.0
    %3361 = vmatpush1.msra.mxu0 0.0
    %3362 = vmatprep.subr.mxu0 0.0
    %3363 = vmatpush1.msra.mxu0 0.0
    %3364 = vmatprep.subr.mxu0 0.0
    %3365 = vmatpush1.msra.mxu0 0.0
    %3366 = vmatprep.subr.mxu0 0.0
    %3367 = vmatpush1.msra.mxu0 0.0
    %3368 = vmatprep.subr.mxu0 0.0
    %3369 = vmatpush1.msra.mxu0 %v130
    %3370 = vmatprep.subr.mxu0 0.0
    %3371 = vmatpush1.msra.mxu0 %v129
    %3372 = vmatprep.subr.mxu0 0.0
    %3373 = vmatpush2.msra.mxu0 0.0
    %3374 = vmatprep.subr.mxu0 0.0
    %3375 = vmatpush2.msra.mxu0 0.0
    %3376 = vmatprep.subr.mxu0 0.0
    %3377 = vmatpush2.msra.mxu0 0.0
    %3378 = vmatprep.subr.mxu0 0.0
    %3379 = vmatpush2.msra.mxu0 0.0
    %3380 = vmatprep.subr.mxu0 0.0
    %3381 = vmatpush2.msra.mxu0 0.0
    %3382 = vmatprep.subr.mxu0 0.0
    %3383 = vmatpush2.msra.mxu0 0.0
    %3384 = vmatprep.subr.mxu0 0.0
    %3385 = vmatpush2.msra.mxu0 0.0
    %3386 = vmatprep.subr.mxu0 0.0
    %3387 = vmatpush2.msra.mxu0 0.0
    %3388 = vmatprep.subr.mxu0 0.0
    %3389 = vmatpush2.msra.mxu0 0.0
    %3390 = vmatprep.subr.mxu0 0.0
    %3391 = vmatpush2.msra.mxu0 0.0
    %3392 = vmatprep.subr.mxu0 0.0
    %3393 = vmatpush2.msra.mxu0 0.0
    %3394 = vmatprep.subr.mxu0 0.0
    %3395 = vmatpush2.msra.mxu0 0.0
    %3396 = vmatprep.subr.mxu0 0.0
    %3397 = vmatpush2.msra.mxu0 0.0
    %3398 = vmatprep.subr.mxu0 0.0
    %3399 = vmatpush2.msra.mxu0 0.0
    %3400 = vmatprep.subr.mxu0 0.0
    %3401 = vmatpush2.msra.mxu0 0.0
    %3402 = vmatprep.subr.mxu0 0.0
    %3403 = vmatpush2.msra.mxu0 0.0
    %3404 = vmatprep.mubr.f32.mxu0 0.0
    %3405 = vmatmul.mubr.f32.gmra.mxu0 %v3338
    %v3406 = vpop.f32.mrf.mxu0
    %v3407 = vadd.f32 0.0, %v3406
    %v3408 = vpop.f32.mrf.mxu0
    %3409 = vdwg.mxu0
    %v3411 = vsel %vm1836, %v2896, 0
    %3413 = vmatprep.subr.mxu0 0.0
    %3414 = vmatpush1.msra.mxu0 0.0
    %3415 = vmatprep.subr.mxu0 0.0
    %3416 = vmatpush1.msra.mxu0 0.0
    %3417 = vmatprep.subr.mxu0 0.0
    %3418 = vmatpush1.msra.mxu0 0.0
    %3419 = vmatprep.subr.mxu0 0.0
    %3420 = vmatpush1.msra.mxu0 0.0
    %3421 = vmatprep.subr.mxu0 0.0
    %3422 = vmatpush1.msra.mxu0 0.0
    %3423 = vmatprep.subr.mxu0 0.0
    %3424 = vmatpush1.msra.mxu0 0.0
    %3425 = vmatprep.subr.mxu0 0.0
    %3426 = vmatpush1.msra.mxu0 0.0
    %3427 = vmatprep.subr.mxu0 0.0
    %3428 = vmatpush1.msra.mxu0 0.0
    %3429 = vmatprep.subr.mxu0 0.0
    %3430 = vmatpush1.msra.mxu0 0.0
    %3431 = vmatprep.subr.mxu0 0.0
    %3432 = vmatpush1.msra.mxu0 0.0
    %3433 = vmatprep.subr.mxu0 0.0
    %3434 = vmatpush1.msra.mxu0 0.0
    %3435 = vmatprep.subr.mxu0 0.0
    %3436 = vmatpush1.msra.mxu0 0.0
    %3437 = vmatprep.subr.mxu0 0.0
    %3438 = vmatpush1.msra.mxu0 0.0
    %3439 = vmatprep.subr.mxu0 0.0
    %3440 = vmatpush1.msra.mxu0 0.0
    %3441 = vmatprep.subr.mxu0 0.0
    %3442 = vmatpush1.msra.mxu0 %v132
    %3443 = vmatprep.subr.mxu0 0.0
    %3444 = vmatpush1.msra.mxu0 %v131
    %3445 = vmatprep.subr.mxu0 0.0
    %3446 = vmatpush2.msra.mxu0 0.0
    %3447 = vmatprep.subr.mxu0 0.0
    %3448 = vmatpush2.msra.mxu0 0.0
    %3449 = vmatprep.subr.mxu0 0.0
    %3450 = vmatpush2.msra.mxu0 0.0
    %3451 = vmatprep.subr.mxu0 0.0
    %3452 = vmatpush2.msra.mxu0 0.0
    %3453 = vmatprep.subr.mxu0 0.0
    %3454 = vmatpush2.msra.mxu0 0.0
    %3455 = vmatprep.subr.mxu0 0.0
    %3456 = vmatpush2.msra.mxu0 0.0
    %3457 = vmatprep.subr.mxu0 0.0
    %3458 = vmatpush2.msra.mxu0 0.0
    %3459 = vmatprep.subr.mxu0 0.0
    %3460 = vmatpush2.msra.mxu0 0.0
    %3461 = vmatprep.subr.mxu0 0.0
    %3462 = vmatpush2.msra.mxu0 0.0
    %3463 = vmatprep.subr.mxu0 0.0
    %3464 = vmatpush2.msra.mxu0 0.0
    %3465 = vmatprep.subr.mxu0 0.0
    %3466 = vmatpush2.msra.mxu0 0.0
    %3467 = vmatprep.subr.mxu0 0.0
    %3468 = vmatpush2.msra.mxu0 0.0
    %3469 = vmatprep.subr.mxu0 0.0
    %3470 = vmatpush2.msra.mxu0 0.0
    %3471 = vmatprep.subr.mxu0 0.0
    %3472 = vmatpush2.msra.mxu0 0.0
    %3473 = vmatprep.subr.mxu0 0.0
    %3474 = vmatpush2.msra.mxu0 0.0
    %3475 = vmatprep.subr.mxu0 0.0
    %3476 = vmatpush2.msra.mxu0 0.0
    %3477 = vmatprep.mubr.f32.mxu0 0.0
    %3478 = vmatmul.mubr.f32.gmra.mxu0 %v3411
    %v3479 = vpop.f32.mrf.mxu0
    %v3480 = vadd.f32 0.0, %v3479
    %v3481 = vpop.f32.mrf.mxu0
    %3482 = vdwg.mxu0
    %v3484 = vsel %vm1836, %v2969, 0
    %3486 = vmatprep.subr.mxu0 0.0
    %3487 = vmatpush1.msra.mxu0 0.0
    %3488 = vmatprep.subr.mxu0 0.0
    %3489 = vmatpush1.msra.mxu0 0.0
    %3490 = vmatprep.subr.mxu0 0.0
    %3491 = vmatpush1.msra.mxu0 0.0
    %3492 = vmatprep.subr.mxu0 0.0
    %3493 = vmatpush1.msra.mxu0 0.0
    %3494 = vmatprep.subr.mxu0 0.0
    %3495 = vmatpush1.msra.mxu0 0.0
    %3496 = vmatprep.subr.mxu0 0.0
    %3497 = vmatpush1.msra.mxu0 0.0
    %3498 = vmatprep.subr.mxu0 0.0
    %3499 = vmatpush1.msra.mxu0 0.0
    %3500 = vmatprep.subr.mxu0 0.0
    %3501 = vmatpush1.msra.mxu0 0.0
    %3502 = vmatprep.subr.mxu0 0.0
    %3503 = vmatpush1.msra.mxu0 0.0
    %3504 = vmatprep.subr.mxu0 0.0
    %3505 = vmatpush1.msra.mxu0 0.0
    %3506 = vmatprep.subr.mxu0 0.0
    %3507 = vmatpush1.msra.mxu0 0.0
    %3508 = vmatprep.subr.mxu0 0.0
    %3509 = vmatpush1.msra.mxu0 0.0
    %3510 = vmatprep.subr.mxu0 0.0
    %3511 = vmatpush1.msra.mxu0 0.0
    %3512 = vmatprep.subr.mxu0 0.0
    %3513 = vmatpush1.msra.mxu0 0.0
    %3514 = vmatprep.subr.mxu0 0.0
    %3515 = vmatpush1.msra.mxu0 %v134
    %3516 = vmatprep.subr.mxu0 0.0
    %3517 = vmatpush1.msra.mxu0 %v133
    %3518 = vmatprep.subr.mxu0 0.0
    %3519 = vmatpush2.msra.mxu0 0.0
    %3520 = vmatprep.subr.mxu0 0.0
    %3521 = vmatpush2.msra.mxu0 0.0
    %3522 = vmatprep.subr.mxu0 0.0
    %3523 = vmatpush2.msra.mxu0 0.0
    %3524 = vmatprep.subr.mxu0 0.0
    %3525 = vmatpush2.msra.mxu0 0.0
    %3526 = vmatprep.subr.mxu0 0.0
    %3527 = vmatpush2.msra.mxu0 0.0
    %3528 = vmatprep.subr.mxu0 0.0
    %3529 = vmatpush2.msra.mxu0 0.0
    %3530 = vmatprep.subr.mxu0 0.0
    %3531 = vmatpush2.msra.mxu0 0.0
    %3532 = vmatprep.subr.mxu0 0.0
    %3533 = vmatpush2.msra.mxu0 0.0
    %3534 = vmatprep.subr.mxu0 0.0
    %3535 = vmatpush2.msra.mxu0 0.0
    %3536 = vmatprep.subr.mxu0 0.0
    %3537 = vmatpush2.msra.mxu0 0.0
    %3538 = vmatprep.subr.mxu0 0.0
    %3539 = vmatpush2.msra.mxu0 0.0
    %3540 = vmatprep.subr.mxu0 0.0
    %3541 = vmatpush2.msra.mxu0 0.0
    %3542 = vmatprep.subr.mxu0 0.0
    %3543 = vmatpush2.msra.mxu0 0.0
    %3544 = vmatprep.subr.mxu0 0.0
    %3545 = vmatpush2.msra.mxu0 0.0
    %3546 = vmatprep.subr.mxu0 0.0
    %3547 = vmatpush2.msra.mxu0 0.0
    %3548 = vmatprep.subr.mxu0 0.0
    %3549 = vmatpush2.msra.mxu0 0.0
    %3550 = vmatprep.mubr.f32.mxu0 0.0
    %3551 = vmatmul.mubr.f32.gmra.mxu0 %v3484
    %v3552 = vpop.f32.mrf.mxu0
    %v3553 = vadd.f32 0.0, %v3552
    %v3554 = vpop.f32.mrf.mxu0
    %3555 = vdwg.mxu0
    %v3557 = vsel %vm1836, %v3042, 0
    %3559 = vmatprep.subr.mxu0 0.0
    %3560 = vmatpush1.msra.mxu0 0.0
    %3561 = vmatprep.subr.mxu0 0.0
    %3562 = vmatpush1.msra.mxu0 0.0
    %3563 = vmatprep.subr.mxu0 0.0
    %3564 = vmatpush1.msra.mxu0 0.0
    %3565 = vmatprep.subr.mxu0 0.0
    %3566 = vmatpush1.msra.mxu0 0.0
    %3567 = vmatprep.subr.mxu0 0.0
    %3568 = vmatpush1.msra.mxu0 0.0
    %3569 = vmatprep.subr.mxu0 0.0
    %3570 = vmatpush1.msra.mxu0 0.0
    %3571 = vmatprep.subr.mxu0 0.0
    %3572 = vmatpush1.msra.mxu0 0.0
    %3573 = vmatprep.subr.mxu0 0.0
    %3574 = vmatpush1.msra.mxu0 0.0
    %3575 = vmatprep.subr.mxu0 0.0
    %3576 = vmatpush1.msra.mxu0 0.0
    %3577 = vmatprep.subr.mxu0 0.0
    %3578 = vmatpush1.msra.mxu0 0.0
    %3579 = vmatprep.subr.mxu0 0.0
    %3580 = vmatpush1.msra.mxu0 0.0
    %3581 = vmatprep.subr.mxu0 0.0
    %3582 = vmatpush1.msra.mxu0 0.0
    %3583 = vmatprep.subr.mxu0 0.0
    %3584 = vmatpush1.msra.mxu0 0.0
    %3585 = vmatprep.subr.mxu0 0.0
    %3586 = vmatpush1.msra.mxu0 0.0
    %3587 = vmatprep.subr.mxu0 0.0
    %3588 = vmatpush1.msra.mxu0 %v136
    %3589 = vmatprep.subr.mxu0 0.0
    %3590 = vmatpush1.msra.mxu0 %v135
    %3591 = vmatprep.subr.mxu0 0.0
    %3592 = vmatpush2.msra.mxu0 0.0
    %3593 = vmatprep.subr.mxu0 0.0
    %3594 = vmatpush2.msra.mxu0 0.0
    %3595 = vmatprep.subr.mxu0 0.0
    %3596 = vmatpush2.msra.mxu0 0.0
    %3597 = vmatprep.subr.mxu0 0.0
    %3598 = vmatpush2.msra.mxu0 0.0
    %3599 = vmatprep.subr.mxu0 0.0
    %3600 = vmatpush2.msra.mxu0 0.0
    %3601 = vmatprep.subr.mxu0 0.0
    %3602 = vmatpush2.msra.mxu0 0.0
    %3603 = vmatprep.subr.mxu0 0.0
    %3604 = vmatpush2.msra.mxu0 0.0
    %3605 = vmatprep.subr.mxu0 0.0
    %3606 = vmatpush2.msra.mxu0 0.0
    %3607 = vmatprep.subr.mxu0 0.0
    %3608 = vmatpush2.msra.mxu0 0.0
    %3609 = vmatprep.subr.mxu0 0.0
    %3610 = vmatpush2.msra.mxu0 0.0
    %3611 = vmatprep.subr.mxu0 0.0
    %3612 = vmatpush2.msra.mxu0 0.0
    %3613 = vmatprep.subr.mxu0 0.0
    %3614 = vmatpush2.msra.mxu0 0.0
    %3615 = vmatprep.subr.mxu0 0.0
    %3616 = vmatpush2.msra.mxu0 0.0
    %3617 = vmatprep.subr.mxu0 0.0
    %3618 = vmatpush2.msra.mxu0 0.0
    %3619 = vmatprep.subr.mxu0 0.0
    %3620 = vmatpush2.msra.mxu0 0.0
    %3621 = vmatprep.subr.mxu0 0.0
    %3622 = vmatpush2.msra.mxu0 0.0
    %3623 = vmatprep.mubr.f32.mxu0 0.0
    %3624 = vmatmul.mubr.f32.gmra.mxu0 %v3557
    %v3625 = vpop.f32.mrf.mxu0
    %v3626 = vadd.f32 0.0, %v3625
    %v3627 = vpop.f32.mrf.mxu0
    %3628 = vdwg.mxu0
    %v3630 = vsel %vm1836, %v3115, 0
    %3632 = vmatprep.subr.mxu0 0.0
    %3633 = vmatpush1.msra.mxu0 0.0
    %3634 = vmatprep.subr.mxu0 0.0
    %3635 = vmatpush1.msra.mxu0 0.0
    %3636 = vmatprep.subr.mxu0 0.0
    %3637 = vmatpush1.msra.mxu0 0.0
    %3638 = vmatprep.subr.mxu0 0.0
    %3639 = vmatpush1.msra.mxu0 0.0
    %3640 = vmatprep.subr.mxu0 0.0
    %3641 = vmatpush1.msra.mxu0 0.0
    %3642 = vmatprep.subr.mxu0 0.0
    %3643 = vmatpush1.msra.mxu0 0.0
    %3644 = vmatprep.subr.mxu0 0.0
    %3645 = vmatpush1.msra.mxu0 0.0
    %3646 = vmatprep.subr.mxu0 0.0
    %3647 = vmatpush1.msra.mxu0 0.0
    %3648 = vmatprep.subr.mxu0 0.0
    %3649 = vmatpush1.msra.mxu0 0.0
    %3650 = vmatprep.subr.mxu0 0.0
    %3651 = vmatpush1.msra.mxu0 0.0
    %3652 = vmatprep.subr.mxu0 0.0
    %3653 = vmatpush1.msra.mxu0 0.0
    %3654 = vmatprep.subr.mxu0 0.0
    %3655 = vmatpush1.msra.mxu0 0.0
    %3656 = vmatprep.subr.mxu0 0.0
    %3657 = vmatpush1.msra.mxu0 0.0
    %3658 = vmatprep.subr.mxu0 0.0
    %3659 = vmatpush1.msra.mxu0 0.0
    %3660 = vmatprep.subr.mxu0 0.0
    %3661 = vmatpush1.msra.mxu0 %v138
    %3662 = vmatprep.subr.mxu0 0.0
    %3663 = vmatpush1.msra.mxu0 %v137
    %3664 = vmatprep.subr.mxu0 0.0
    %3665 = vmatpush2.msra.mxu0 0.0
    %3666 = vmatprep.subr.mxu0 0.0
    %3667 = vmatpush2.msra.mxu0 0.0
    %3668 = vmatprep.subr.mxu0 0.0
    %3669 = vmatpush2.msra.mxu0 0.0
    %3670 = vmatprep.subr.mxu0 0.0
    %3671 = vmatpush2.msra.mxu0 0.0
    %3672 = vmatprep.subr.mxu0 0.0
    %3673 = vmatpush2.msra.mxu0 0.0
    %3674 = vmatprep.subr.mxu0 0.0
    %3675 = vmatpush2.msra.mxu0 0.0
    %3676 = vmatprep.subr.mxu0 0.0
    %3677 = vmatpush2.msra.mxu0 0.0
    %3678 = vmatprep.subr.mxu0 0.0
    %3679 = vmatpush2.msra.mxu0 0.0
    %3680 = vmatprep.subr.mxu0 0.0
    %3681 = vmatpush2.msra.mxu0 0.0
    %3682 = vmatprep.subr.mxu0 0.0
    %3683 = vmatpush2.msra.mxu0 0.0
    %3684 = vmatprep.subr.mxu0 0.0
    %3685 = vmatpush2.msra.mxu0 0.0
    %3686 = vmatprep.subr.mxu0 0.0
    %3687 = vmatpush2.msra.mxu0 0.0
    %3688 = vmatprep.subr.mxu0 0.0
    %3689 = vmatpush2.msra.mxu0 0.0
    %3690 = vmatprep.subr.mxu0 0.0
    %3691 = vmatpush2.msra.mxu0 0.0
    %3692 = vmatprep.subr.mxu0 0.0
    %3693 = vmatpush2.msra.mxu0 0.0
    %3694 = vmatprep.subr.mxu0 0.0
    %3695 = vmatpush2.msra.mxu0 0.0
    %3696 = vmatprep.mubr.f32.mxu0 0.0
    %3697 = vmatmul.mubr.f32.gmra.mxu0 %v3630
    %v3698 = vpop.f32.mrf.mxu0
    %v3699 = vadd.f32 0.0, %v3698
    %v3700 = vpop.f32.mrf.mxu0
    %3701 = vdwg.mxu0
    %v3702 = vsel %vm141, %v3188, 0.0
    %v3703 = vsel %vm141, %v3261, 0.0
    %v3704 = vadd.f32 %v3702, %v3703
    %v3705 = vsel %vm141, %v3334, 0.0
    %v3706 = vadd.f32 %v3704, %v3705
    %v3707 = vsel %vm141, %v3407, 0.0
    %v3708 = vadd.f32 %v3706, %v3707
    %v3709 = vsel %vm141, %v3480, 0.0
    %v3710 = vadd.f32 %v3708, %v3709
    %v3711 = vsel %vm141, %v3553, 0.0
    %v3712 = vadd.f32 %v3710, %v3711
    %v3713 = vsel %vm141, %v3626, 0.0
    %v3714 = vadd.f32 %v3712, %v3713
    %v3715 = vsel %vm141, %v3699, 0.0
    %v3716 = vadd.f32 %v3714, %v3715
    %3717 = vst.msk [vmem:[#allocation2] sm:$0xff] %vm141, %v3716
    %s3718 = scalar_lea.vmem %s0, 8
    %v3719 = vld [vmem:[%s3718] sm:$0xff]
    %s3720 = scalar_lea.vmem %s1, 8
    %v3721 = vld [vmem:[%s3720] sm:$0xff]
    %v3723 = vsel %vm141, %v3719, 0
    %3725 = vmatprep.subr.mxu0 0.0
    %3726 = vmatpush1.msra.mxu0 0.0
    %3727 = vmatprep.subr.mxu0 0.0
    %3728 = vmatpush1.msra.mxu0 0.0
    %3729 = vmatprep.subr.mxu0 0.0
    %3730 = vmatpush1.msra.mxu0 0.0
    %3731 = vmatprep.subr.mxu0 0.0
    %3732 = vmatpush1.msra.mxu0 0.0
    %3733 = vmatprep.subr.mxu0 0.0
    %3734 = vmatpush1.msra.mxu0 0.0
    %3735 = vmatprep.subr.mxu0 0.0
    %3736 = vmatpush1.msra.mxu0 0.0
    %3737 = vmatprep.subr.mxu0 0.0
    %3738 = vmatpush1.msra.mxu0 0.0
    %3739 = vmatprep.subr.mxu0 0.0
    %3740 = vmatpush1.msra.mxu0 0.0
    %3741 = vmatprep.subr.mxu0 0.0
    %3742 = vmatpush1.msra.mxu0 0.0
    %3743 = vmatprep.subr.mxu0 0.0
    %3744 = vmatpush1.msra.mxu0 0.0
    %3745 = vmatprep.subr.mxu0 0.0
    %3746 = vmatpush1.msra.mxu0 0.0
    %3747 = vmatprep.subr.mxu0 0.0
    %3748 = vmatpush1.msra.mxu0 0.0
    %3749 = vmatprep.subr.mxu0 0.0
    %3750 = vmatpush1.msra.mxu0 %v30
    %3751 = vmatprep.subr.mxu0 0.0
    %3752 = vmatpush1.msra.mxu0 %v29
    %3753 = vmatprep.subr.mxu0 0.0
    %3754 = vmatpush1.msra.mxu0 %v28
    %3755 = vmatprep.subr.mxu0 0.0
    %3756 = vmatpush1.msra.mxu0 %v27
    %3757 = vmatprep.subr.mxu0 0.0
    %3758 = vmatpush2.msra.mxu0 0.0
    %3759 = vmatprep.subr.mxu0 0.0
    %3760 = vmatpush2.msra.mxu0 0.0
    %3761 = vmatprep.subr.mxu0 0.0
    %3762 = vmatpush2.msra.mxu0 0.0
    %3763 = vmatprep.subr.mxu0 0.0
    %3764 = vmatpush2.msra.mxu0 0.0
    %3765 = vmatprep.subr.mxu0 0.0
    %3766 = vmatpush2.msra.mxu0 0.0
    %3767 = vmatprep.subr.mxu0 0.0
    %3768 = vmatpush2.msra.mxu0 0.0
    %3769 = vmatprep.subr.mxu0 0.0
    %3770 = vmatpush2.msra.mxu0 0.0
    %3771 = vmatprep.subr.mxu0 0.0
    %3772 = vmatpush2.msra.mxu0 0.0
    %3773 = vmatprep.subr.mxu0 0.0
    %3774 = vmatpush2.msra.mxu0 0.0
    %3775 = vmatprep.subr.mxu0 0.0
    %3776 = vmatpush2.msra.mxu0 0.0
    %3777 = vmatprep.subr.mxu0 0.0
    %3778 = vmatpush2.msra.mxu0 0.0
    %3779 = vmatprep.subr.mxu0 0.0
    %3780 = vmatpush2.msra.mxu0 0.0
    %3781 = vmatprep.subr.mxu0 0.0
    %3782 = vmatpush2.msra.mxu0 0.0
    %3783 = vmatprep.subr.mxu0 0.0
    %3784 = vmatpush2.msra.mxu0 0.0
    %3785 = vmatprep.subr.mxu0 0.0
    %3786 = vmatpush2.msra.mxu0 0.0
    %3787 = vmatprep.subr.mxu0 0.0
    %3788 = vmatpush2.msra.mxu0 0.0
    %3789 = vmatprep.mubr.f32.mxu0 0.0
    %3790 = vmatmul.mubr.f32.gmra.mxu0 %v3723
    %v3791 = vpop.f32.mrf.mxu0
    %v3792 = vadd.f32 0.0, %v3791
    %v3793 = vpop.f32.mrf.mxu0
    %3794 = vdwg.mxu0
    %3795 = vmatprep.subr.mxu0 0.0
    %3796 = vmatpush1.msra.mxu0 0.0
    %3797 = vmatprep.subr.mxu0 0.0
    %3798 = vmatpush1.msra.mxu0 0.0
    %3799 = vmatprep.subr.mxu0 0.0
    %3800 = vmatpush1.msra.mxu0 0.0
    %3801 = vmatprep.subr.mxu0 0.0
    %3802 = vmatpush1.msra.mxu0 0.0
    %3803 = vmatprep.subr.mxu0 0.0
    %3804 = vmatpush1.msra.mxu0 0.0
    %3805 = vmatprep.subr.mxu0 0.0
    %3806 = vmatpush1.msra.mxu0 0.0
    %3807 = vmatprep.subr.mxu0 0.0
    %3808 = vmatpush1.msra.mxu0 0.0
    %3809 = vmatprep.subr.mxu0 0.0
    %3810 = vmatpush1.msra.mxu0 0.0
    %3811 = vmatprep.subr.mxu0 0.0
    %3812 = vmatpush1.msra.mxu0 0.0
    %3813 = vmatprep.subr.mxu0 0.0
    %3814 = vmatpush1.msra.mxu0 0.0
    %3815 = vmatprep.subr.mxu0 0.0
    %3816 = vmatpush1.msra.mxu0 0.0
    %3817 = vmatprep.subr.mxu0 0.0
    %3818 = vmatpush1.msra.mxu0 0.0
    %3819 = vmatprep.subr.mxu0 0.0
    %3820 = vmatpush1.msra.mxu0 %v34
    %3821 = vmatprep.subr.mxu0 0.0
    %3822 = vmatpush1.msra.mxu0 %v33
    %3823 = vmatprep.subr.mxu0 0.0
    %3824 = vmatpush1.msra.mxu0 %v32
    %3825 = vmatprep.subr.mxu0 0.0
    %3826 = vmatpush1.msra.mxu0 %v31
    %3827 = vmatprep.subr.mxu0 0.0
    %3828 = vmatpush2.msra.mxu0 0.0
    %3829 = vmatprep.subr.mxu0 0.0
    %3830 = vmatpush2.msra.mxu0 0.0
    %3831 = vmatprep.subr.mxu0 0.0
    %3832 = vmatpush2.msra.mxu0 0.0
    %3833 = vmatprep.subr.mxu0 0.0
    %3834 = vmatpush2.msra.mxu0 0.0
    %3835 = vmatprep.subr.mxu0 0.0
    %3836 = vmatpush2.msra.mxu0 0.0
    %3837 = vmatprep.subr.mxu0 0.0
    %3838 = vmatpush2.msra.mxu0 0.0
    %3839 = vmatprep.subr.mxu0 0.0
    %3840 = vmatpush2.msra.mxu0 0.0
    %3841 = vmatprep.subr.mxu0 0.0
    %3842 = vmatpush2.msra.mxu0 0.0
    %3843 = vmatprep.subr.mxu0 0.0
    %3844 = vmatpush2.msra.mxu0 0.0
    %3845 = vmatprep.subr.mxu0 0.0
    %3846 = vmatpush2.msra.mxu0 0.0
    %3847 = vmatprep.subr.mxu0 0.0
    %3848 = vmatpush2.msra.mxu0 0.0
    %3849 = vmatprep.subr.mxu0 0.0
    %3850 = vmatpush2.msra.mxu0 0.0
    %3851 = vmatprep.subr.mxu0 0.0
    %3852 = vmatpush2.msra.mxu0 0.0
    %3853 = vmatprep.subr.mxu0 0.0
    %3854 = vmatpush2.msra.mxu0 0.0
    %3855 = vmatprep.subr.mxu0 0.0
    %3856 = vmatpush2.msra.mxu0 0.0
    %3857 = vmatprep.subr.mxu0 0.0
    %3858 = vmatpush2.msra.mxu0 0.0
    %3859 = vmatprep.mubr.f32.mxu0 0.0
    %3860 = vmatmul.mubr.f32.gmra.mxu0 %v3723
    %v3861 = vpop.f32.mrf.mxu0
    %v3862 = vadd.f32 0.0, %v3861
    %v3863 = vpop.f32.mrf.mxu0
    %3864 = vdwg.mxu0
    %3865 = vmatprep.subr.mxu0 0.0
    %3866 = vmatpush1.msra.mxu0 0.0
    %3867 = vmatprep.subr.mxu0 0.0
    %3868 = vmatpush1.msra.mxu0 0.0
    %3869 = vmatprep.subr.mxu0 0.0
    %3870 = vmatpush1.msra.mxu0 0.0
    %3871 = vmatprep.subr.mxu0 0.0
    %3872 = vmatpush1.msra.mxu0 0.0
    %3873 = vmatprep.subr.mxu0 0.0
    %3874 = vmatpush1.msra.mxu0 0.0
    %3875 = vmatprep.subr.mxu0 0.0
    %3876 = vmatpush1.msra.mxu0 0.0
    %3877 = vmatprep.subr.mxu0 0.0
    %3878 = vmatpush1.msra.mxu0 0.0
    %3879 = vmatprep.subr.mxu0 0.0
    %3880 = vmatpush1.msra.mxu0 0.0
    %3881 = vmatprep.subr.mxu0 0.0
    %3882 = vmatpush1.msra.mxu0 0.0
    %3883 = vmatprep.subr.mxu0 0.0
    %3884 = vmatpush1.msra.mxu0 0.0
    %3885 = vmatprep.subr.mxu0 0.0
    %3886 = vmatpush1.msra.mxu0 0.0
    %3887 = vmatprep.subr.mxu0 0.0
    %3888 = vmatpush1.msra.mxu0 0.0
    %3889 = vmatprep.subr.mxu0 0.0
    %3890 = vmatpush1.msra.mxu0 %v38
    %3891 = vmatprep.subr.mxu0 0.0
    %3892 = vmatpush1.msra.mxu0 %v37
    %3893 = vmatprep.subr.mxu0 0.0
    %3894 = vmatpush1.msra.mxu0 %v36
    %3895 = vmatprep.subr.mxu0 0.0
    %3896 = vmatpush1.msra.mxu0 %v35
    %3897 = vmatprep.subr.mxu0 0.0
    %3898 = vmatpush2.msra.mxu0 0.0
    %3899 = vmatprep.subr.mxu0 0.0
    %3900 = vmatpush2.msra.mxu0 0.0
    %3901 = vmatprep.subr.mxu0 0.0
    %3902 = vmatpush2.msra.mxu0 0.0
    %3903 = vmatprep.subr.mxu0 0.0
    %3904 = vmatpush2.msra.mxu0 0.0
    %3905 = vmatprep.subr.mxu0 0.0
    %3906 = vmatpush2.msra.mxu0 0.0
    %3907 = vmatprep.subr.mxu0 0.0
    %3908 = vmatpush2.msra.mxu0 0.0
    %3909 = vmatprep.subr.mxu0 0.0
    %3910 = vmatpush2.msra.mxu0 0.0
    %3911 = vmatprep.subr.mxu0 0.0
    %3912 = vmatpush2.msra.mxu0 0.0
    %3913 = vmatprep.subr.mxu0 0.0
    %3914 = vmatpush2.msra.mxu0 0.0
    %3915 = vmatprep.subr.mxu0 0.0
    %3916 = vmatpush2.msra.mxu0 0.0
    %3917 = vmatprep.subr.mxu0 0.0
    %3918 = vmatpush2.msra.mxu0 0.0
    %3919 = vmatprep.subr.mxu0 0.0
    %3920 = vmatpush2.msra.mxu0 0.0
    %3921 = vmatprep.subr.mxu0 0.0
    %3922 = vmatpush2.msra.mxu0 0.0
    %3923 = vmatprep.subr.mxu0 0.0
    %3924 = vmatpush2.msra.mxu0 0.0
    %3925 = vmatprep.subr.mxu0 0.0
    %3926 = vmatpush2.msra.mxu0 0.0
    %3927 = vmatprep.subr.mxu0 0.0
    %3928 = vmatpush2.msra.mxu0 0.0
    %3929 = vmatprep.mubr.f32.mxu0 0.0
    %3930 = vmatmul.mubr.f32.gmra.mxu0 %v3723
    %v3931 = vpop.f32.mrf.mxu0
    %v3932 = vadd.f32 0.0, %v3931
    %v3933 = vpop.f32.mrf.mxu0
    %3934 = vdwg.mxu0
    %3935 = vmatprep.subr.mxu0 0.0
    %3936 = vmatpush1.msra.mxu0 0.0
    %3937 = vmatprep.subr.mxu0 0.0
    %3938 = vmatpush1.msra.mxu0 0.0
    %3939 = vmatprep.subr.mxu0 0.0
    %3940 = vmatpush1.msra.mxu0 0.0
    %3941 = vmatprep.subr.mxu0 0.0
    %3942 = vmatpush1.msra.mxu0 0.0
    %3943 = vmatprep.subr.mxu0 0.0
    %3944 = vmatpush1.msra.mxu0 0.0
    %3945 = vmatprep.subr.mxu0 0.0
    %3946 = vmatpush1.msra.mxu0 0.0
    %3947 = vmatprep.subr.mxu0 0.0
    %3948 = vmatpush1.msra.mxu0 0.0
    %3949 = vmatprep.subr.mxu0 0.0
    %3950 = vmatpush1.msra.mxu0 0.0
    %3951 = vmatprep.subr.mxu0 0.0
    %3952 = vmatpush1.msra.mxu0 0.0
    %3953 = vmatprep.subr.mxu0 0.0
    %3954 = vmatpush1.msra.mxu0 0.0
    %3955 = vmatprep.subr.mxu0 0.0
    %3956 = vmatpush1.msra.mxu0 0.0
    %3957 = vmatprep.subr.mxu0 0.0
    %3958 = vmatpush1.msra.mxu0 0.0
    %3959 = vmatprep.subr.mxu0 0.0
    %3960 = vmatpush1.msra.mxu0 %v42
    %3961 = vmatprep.subr.mxu0 0.0
    %3962 = vmatpush1.msra.mxu0 %v41
    %3963 = vmatprep.subr.mxu0 0.0
    %3964 = vmatpush1.msra.mxu0 %v40
    %3965 = vmatprep.subr.mxu0 0.0
    %3966 = vmatpush1.msra.mxu0 %v39
    %3967 = vmatprep.subr.mxu0 0.0
    %3968 = vmatpush2.msra.mxu0 0.0
    %3969 = vmatprep.subr.mxu0 0.0
    %3970 = vmatpush2.msra.mxu0 0.0
    %3971 = vmatprep.subr.mxu0 0.0
    %3972 = vmatpush2.msra.mxu0 0.0
    %3973 = vmatprep.subr.mxu0 0.0
    %3974 = vmatpush2.msra.mxu0 0.0
    %3975 = vmatprep.subr.mxu0 0.0
    %3976 = vmatpush2.msra.mxu0 0.0
    %3977 = vmatprep.subr.mxu0 0.0
    %3978 = vmatpush2.msra.mxu0 0.0
    %3979 = vmatprep.subr.mxu0 0.0
    %3980 = vmatpush2.msra.mxu0 0.0
    %3981 = vmatprep.subr.mxu0 0.0
    %3982 = vmatpush2.msra.mxu0 0.0
    %3983 = vmatprep.subr.mxu0 0.0
    %3984 = vmatpush2.msra.mxu0 0.0
    %3985 = vmatprep.subr.mxu0 0.0
    %3986 = vmatpush2.msra.mxu0 0.0
    %3987 = vmatprep.subr.mxu0 0.0
    %3988 = vmatpush2.msra.mxu0 0.0
    %3989 = vmatprep.subr.mxu0 0.0
    %3990 = vmatpush2.msra.mxu0 0.0
    %3991 = vmatprep.subr.mxu0 0.0
    %3992 = vmatpush2.msra.mxu0 0.0
    %3993 = vmatprep.subr.mxu0 0.0
    %3994 = vmatpush2.msra.mxu0 0.0
    %3995 = vmatprep.subr.mxu0 0.0
    %3996 = vmatpush2.msra.mxu0 0.0
    %3997 = vmatprep.subr.mxu0 0.0
    %3998 = vmatpush2.msra.mxu0 0.0
    %3999 = vmatprep.mubr.f32.mxu0 0.0
    %4000 = vmatmul.mubr.f32.gmra.mxu0 %v3723
    %v4001 = vpop.f32.mrf.mxu0
    %v4002 = vadd.f32 0.0, %v4001
    %v4003 = vpop.f32.mrf.mxu0
    %4004 = vdwg.mxu0
    %4005 = vmatprep.subr.mxu0 0.0
    %4006 = vmatpush1.msra.mxu0 0.0
    %4007 = vmatprep.subr.mxu0 0.0
    %4008 = vmatpush1.msra.mxu0 0.0
    %4009 = vmatprep.subr.mxu0 0.0
    %4010 = vmatpush1.msra.mxu0 0.0
    %4011 = vmatprep.subr.mxu0 0.0
    %4012 = vmatpush1.msra.mxu0 0.0
    %4013 = vmatprep.subr.mxu0 0.0
    %4014 = vmatpush1.msra.mxu0 0.0
    %4015 = vmatprep.subr.mxu0 0.0
    %4016 = vmatpush1.msra.mxu0 0.0
    %4017 = vmatprep.subr.mxu0 0.0
    %4018 = vmatpush1.msra.mxu0 0.0
    %4019 = vmatprep.subr.mxu0 0.0
    %4020 = vmatpush1.msra.mxu0 0.0
    %4021 = vmatprep.subr.mxu0 0.0
    %4022 = vmatpush1.msra.mxu0 0.0
    %4023 = vmatprep.subr.mxu0 0.0
    %4024 = vmatpush1.msra.mxu0 0.0
    %4025 = vmatprep.subr.mxu0 0.0
    %4026 = vmatpush1.msra.mxu0 0.0
    %4027 = vmatprep.subr.mxu0 0.0
    %4028 = vmatpush1.msra.mxu0 0.0
    %4029 = vmatprep.subr.mxu0 0.0
    %4030 = vmatpush1.msra.mxu0 %v46
    %4031 = vmatprep.subr.mxu0 0.0
    %4032 = vmatpush1.msra.mxu0 %v45
    %4033 = vmatprep.subr.mxu0 0.0
    %4034 = vmatpush1.msra.mxu0 %v44
    %4035 = vmatprep.subr.mxu0 0.0
    %4036 = vmatpush1.msra.mxu0 %v43
    %4037 = vmatprep.subr.mxu0 0.0
    %4038 = vmatpush2.msra.mxu0 0.0
    %4039 = vmatprep.subr.mxu0 0.0
    %4040 = vmatpush2.msra.mxu0 0.0
    %4041 = vmatprep.subr.mxu0 0.0
    %4042 = vmatpush2.msra.mxu0 0.0
    %4043 = vmatprep.subr.mxu0 0.0
    %4044 = vmatpush2.msra.mxu0 0.0
    %4045 = vmatprep.subr.mxu0 0.0
    %4046 = vmatpush2.msra.mxu0 0.0
    %4047 = vmatprep.subr.mxu0 0.0
    %4048 = vmatpush2.msra.mxu0 0.0
    %4049 = vmatprep.subr.mxu0 0.0
    %4050 = vmatpush2.msra.mxu0 0.0
    %4051 = vmatprep.subr.mxu0 0.0
    %4052 = vmatpush2.msra.mxu0 0.0
    %4053 = vmatprep.subr.mxu0 0.0
    %4054 = vmatpush2.msra.mxu0 0.0
    %4055 = vmatprep.subr.mxu0 0.0
    %4056 = vmatpush2.msra.mxu0 0.0
    %4057 = vmatprep.subr.mxu0 0.0
    %4058 = vmatpush2.msra.mxu0 0.0
    %4059 = vmatprep.subr.mxu0 0.0
    %4060 = vmatpush2.msra.mxu0 0.0
    %4061 = vmatprep.subr.mxu0 0.0
    %4062 = vmatpush2.msra.mxu0 0.0
    %4063 = vmatprep.subr.mxu0 0.0
    %4064 = vmatpush2.msra.mxu0 0.0
    %4065 = vmatprep.subr.mxu0 0.0
    %4066 = vmatpush2.msra.mxu0 0.0
    %4067 = vmatprep.subr.mxu0 0.0
    %4068 = vmatpush2.msra.mxu0 0.0
    %4069 = vmatprep.mubr.f32.mxu0 0.0
    %4070 = vmatmul.mubr.f32.gmra.mxu0 %v3723
    %v4071 = vpop.f32.mrf.mxu0
    %v4072 = vadd.f32 0.0, %v4071
    %v4073 = vpop.f32.mrf.mxu0
    %4074 = vdwg.mxu0
    %4075 = vmatprep.subr.mxu0 0.0
    %4076 = vmatpush1.msra.mxu0 0.0
    %4077 = vmatprep.subr.mxu0 0.0
    %4078 = vmatpush1.msra.mxu0 0.0
    %4079 = vmatprep.subr.mxu0 0.0
    %4080 = vmatpush1.msra.mxu0 0.0
    %4081 = vmatprep.subr.mxu0 0.0
    %4082 = vmatpush1.msra.mxu0 0.0
    %4083 = vmatprep.subr.mxu0 0.0
    %4084 = vmatpush1.msra.mxu0 0.0
    %4085 = vmatprep.subr.mxu0 0.0
    %4086 = vmatpush1.msra.mxu0 0.0
    %4087 = vmatprep.subr.mxu0 0.0
    %4088 = vmatpush1.msra.mxu0 0.0
    %4089 = vmatprep.subr.mxu0 0.0
    %4090 = vmatpush1.msra.mxu0 0.0
    %4091 = vmatprep.subr.mxu0 0.0
    %4092 = vmatpush1.msra.mxu0 0.0
    %4093 = vmatprep.subr.mxu0 0.0
    %4094 = vmatpush1.msra.mxu0 0.0
    %4095 = vmatprep.subr.mxu0 0.0
    %4096 = vmatpush1.msra.mxu0 0.0
    %4097 = vmatprep.subr.mxu0 0.0
    %4098 = vmatpush1.msra.mxu0 0.0
    %4099 = vmatprep.subr.mxu0 0.0
    %4100 = vmatpush1.msra.mxu0 %v50
    %4101 = vmatprep.subr.mxu0 0.0
    %4102 = vmatpush1.msra.mxu0 %v49
    %4103 = vmatprep.subr.mxu0 0.0
    %4104 = vmatpush1.msra.mxu0 %v48
    %4105 = vmatprep.subr.mxu0 0.0
    %4106 = vmatpush1.msra.mxu0 %v47
    %4107 = vmatprep.subr.mxu0 0.0
    %4108 = vmatpush2.msra.mxu0 0.0
    %4109 = vmatprep.subr.mxu0 0.0
    %4110 = vmatpush2.msra.mxu0 0.0
    %4111 = vmatprep.subr.mxu0 0.0
    %4112 = vmatpush2.msra.mxu0 0.0
    %4113 = vmatprep.subr.mxu0 0.0
    %4114 = vmatpush2.msra.mxu0 0.0
    %4115 = vmatprep.subr.mxu0 0.0
    %4116 = vmatpush2.msra.mxu0 0.0
    %4117 = vmatprep.subr.mxu0 0.0
    %4118 = vmatpush2.msra.mxu0 0.0
    %4119 = vmatprep.subr.mxu0 0.0
    %4120 = vmatpush2.msra.mxu0 0.0
    %4121 = vmatprep.subr.mxu0 0.0
    %4122 = vmatpush2.msra.mxu0 0.0
    %4123 = vmatprep.subr.mxu0 0.0
    %4124 = vmatpush2.msra.mxu0 0.0
    %4125 = vmatprep.subr.mxu0 0.0
    %4126 = vmatpush2.msra.mxu0 0.0
    %4127 = vmatprep.subr.mxu0 0.0
    %4128 = vmatpush2.msra.mxu0 0.0
    %4129 = vmatprep.subr.mxu0 0.0
    %4130 = vmatpush2.msra.mxu0 0.0
    %4131 = vmatprep.subr.mxu0 0.0
    %4132 = vmatpush2.msra.mxu0 0.0
    %4133 = vmatprep.subr.mxu0 0.0
    %4134 = vmatpush2.msra.mxu0 0.0
    %4135 = vmatprep.subr.mxu0 0.0
    %4136 = vmatpush2.msra.mxu0 0.0
    %4137 = vmatprep.subr.mxu0 0.0
    %4138 = vmatpush2.msra.mxu0 0.0
    %4139 = vmatprep.mubr.f32.mxu0 0.0
    %4140 = vmatmul.mubr.f32.gmra.mxu0 %v3723
    %v4141 = vpop.f32.mrf.mxu0
    %v4142 = vadd.f32 0.0, %v4141
    %v4143 = vpop.f32.mrf.mxu0
    %4144 = vdwg.mxu0
    %4145 = vmatprep.subr.mxu0 0.0
    %4146 = vmatpush1.msra.mxu0 0.0
    %4147 = vmatprep.subr.mxu0 0.0
    %4148 = vmatpush1.msra.mxu0 0.0
    %4149 = vmatprep.subr.mxu0 0.0
    %4150 = vmatpush1.msra.mxu0 0.0
    %4151 = vmatprep.subr.mxu0 0.0
    %4152 = vmatpush1.msra.mxu0 0.0
    %4153 = vmatprep.subr.mxu0 0.0
    %4154 = vmatpush1.msra.mxu0 0.0
    %4155 = vmatprep.subr.mxu0 0.0
    %4156 = vmatpush1.msra.mxu0 0.0
    %4157 = vmatprep.subr.mxu0 0.0
    %4158 = vmatpush1.msra.mxu0 0.0
    %4159 = vmatprep.subr.mxu0 0.0
    %4160 = vmatpush1.msra.mxu0 0.0
    %4161 = vmatprep.subr.mxu0 0.0
    %4162 = vmatpush1.msra.mxu0 0.0
    %4163 = vmatprep.subr.mxu0 0.0
    %4164 = vmatpush1.msra.mxu0 0.0
    %4165 = vmatprep.subr.mxu0 0.0
    %4166 = vmatpush1.msra.mxu0 0.0
    %4167 = vmatprep.subr.mxu0 0.0
    %4168 = vmatpush1.msra.mxu0 0.0
    %4169 = vmatprep.subr.mxu0 0.0
    %4170 = vmatpush1.msra.mxu0 %v54
    %4171 = vmatprep.subr.mxu0 0.0
    %4172 = vmatpush1.msra.mxu0 %v53
    %4173 = vmatprep.subr.mxu0 0.0
    %4174 = vmatpush1.msra.mxu0 %v52
    %4175 = vmatprep.subr.mxu0 0.0
    %4176 = vmatpush1.msra.mxu0 %v51
    %4177 = vmatprep.subr.mxu0 0.0
    %4178 = vmatpush2.msra.mxu0 0.0
    %4179 = vmatprep.subr.mxu0 0.0
    %4180 = vmatpush2.msra.mxu0 0.0
    %4181 = vmatprep.subr.mxu0 0.0
    %4182 = vmatpush2.msra.mxu0 0.0
    %4183 = vmatprep.subr.mxu0 0.0
    %4184 = vmatpush2.msra.mxu0 0.0
    %4185 = vmatprep.subr.mxu0 0.0
    %4186 = vmatpush2.msra.mxu0 0.0
    %4187 = vmatprep.subr.mxu0 0.0
    %4188 = vmatpush2.msra.mxu0 0.0
    %4189 = vmatprep.subr.mxu0 0.0
    %4190 = vmatpush2.msra.mxu0 0.0
    %4191 = vmatprep.subr.mxu0 0.0
    %4192 = vmatpush2.msra.mxu0 0.0
    %4193 = vmatprep.subr.mxu0 0.0
    %4194 = vmatpush2.msra.mxu0 0.0
    %4195 = vmatprep.subr.mxu0 0.0
    %4196 = vmatpush2.msra.mxu0 0.0
    %4197 = vmatprep.subr.mxu0 0.0
    %4198 = vmatpush2.msra.mxu0 0.0
    %4199 = vmatprep.subr.mxu0 0.0
    %4200 = vmatpush2.msra.mxu0 0.0
    %4201 = vmatprep.subr.mxu0 0.0
    %4202 = vmatpush2.msra.mxu0 0.0
    %4203 = vmatprep.subr.mxu0 0.0
    %4204 = vmatpush2.msra.mxu0 0.0
    %4205 = vmatprep.subr.mxu0 0.0
    %4206 = vmatpush2.msra.mxu0 0.0
    %4207 = vmatprep.subr.mxu0 0.0
    %4208 = vmatpush2.msra.mxu0 0.0
    %4209 = vmatprep.mubr.f32.mxu0 0.0
    %4210 = vmatmul.mubr.f32.gmra.mxu0 %v3723
    %v4211 = vpop.f32.mrf.mxu0
    %v4212 = vadd.f32 0.0, %v4211
    %v4213 = vpop.f32.mrf.mxu0
    %4214 = vdwg.mxu0
    %4215 = vmatprep.subr.mxu0 0.0
    %4216 = vmatpush1.msra.mxu0 0.0
    %4217 = vmatprep.subr.mxu0 0.0
    %4218 = vmatpush1.msra.mxu0 0.0
    %4219 = vmatprep.subr.mxu0 0.0
    %4220 = vmatpush1.msra.mxu0 0.0
    %4221 = vmatprep.subr.mxu0 0.0
    %4222 = vmatpush1.msra.mxu0 0.0
    %4223 = vmatprep.subr.mxu0 0.0
    %4224 = vmatpush1.msra.mxu0 0.0
    %4225 = vmatprep.subr.mxu0 0.0
    %4226 = vmatpush1.msra.mxu0 0.0
    %4227 = vmatprep.subr.mxu0 0.0
    %4228 = vmatpush1.msra.mxu0 0.0
    %4229 = vmatprep.subr.mxu0 0.0
    %4230 = vmatpush1.msra.mxu0 0.0
    %4231 = vmatprep.subr.mxu0 0.0
    %4232 = vmatpush1.msra.mxu0 0.0
    %4233 = vmatprep.subr.mxu0 0.0
    %4234 = vmatpush1.msra.mxu0 0.0
    %4235 = vmatprep.subr.mxu0 0.0
    %4236 = vmatpush1.msra.mxu0 0.0
    %4237 = vmatprep.subr.mxu0 0.0
    %4238 = vmatpush1.msra.mxu0 0.0
    %4239 = vmatprep.subr.mxu0 0.0
    %4240 = vmatpush1.msra.mxu0 %v58
    %4241 = vmatprep.subr.mxu0 0.0
    %4242 = vmatpush1.msra.mxu0 %v57
    %4243 = vmatprep.subr.mxu0 0.0
    %4244 = vmatpush1.msra.mxu0 %v56
    %4245 = vmatprep.subr.mxu0 0.0
    %4246 = vmatpush1.msra.mxu0 %v55
    %4247 = vmatprep.subr.mxu0 0.0
    %4248 = vmatpush2.msra.mxu0 0.0
    %4249 = vmatprep.subr.mxu0 0.0
    %4250 = vmatpush2.msra.mxu0 0.0
    %4251 = vmatprep.subr.mxu0 0.0
    %4252 = vmatpush2.msra.mxu0 0.0
    %4253 = vmatprep.subr.mxu0 0.0
    %4254 = vmatpush2.msra.mxu0 0.0
    %4255 = vmatprep.subr.mxu0 0.0
    %4256 = vmatpush2.msra.mxu0 0.0
    %4257 = vmatprep.subr.mxu0 0.0
    %4258 = vmatpush2.msra.mxu0 0.0
    %4259 = vmatprep.subr.mxu0 0.0
    %4260 = vmatpush2.msra.mxu0 0.0
    %4261 = vmatprep.subr.mxu0 0.0
    %4262 = vmatpush2.msra.mxu0 0.0
    %4263 = vmatprep.subr.mxu0 0.0
    %4264 = vmatpush2.msra.mxu0 0.0
    %4265 = vmatprep.subr.mxu0 0.0
    %4266 = vmatpush2.msra.mxu0 0.0
    %4267 = vmatprep.subr.mxu0 0.0
    %4268 = vmatpush2.msra.mxu0 0.0
    %4269 = vmatprep.subr.mxu0 0.0
    %4270 = vmatpush2.msra.mxu0 0.0
    %4271 = vmatprep.subr.mxu0 0.0
    %4272 = vmatpush2.msra.mxu0 0.0
    %4273 = vmatprep.subr.mxu0 0.0
    %4274 = vmatpush2.msra.mxu0 0.0
    %4275 = vmatprep.subr.mxu0 0.0
    %4276 = vmatpush2.msra.mxu0 0.0
    %4277 = vmatprep.subr.mxu0 0.0
    %4278 = vmatpush2.msra.mxu0 0.0
    %4279 = vmatprep.mubr.f32.mxu0 0.0
    %4280 = vmatmul.mubr.f32.gmra.mxu0 %v3723
    %v4281 = vpop.f32.mrf.mxu0
    %v4282 = vadd.f32 0.0, %v4281
    %v4283 = vpop.f32.mrf.mxu0
    %4284 = vdwg.mxu0
    %v4286 = vsel %vm141, %v3721, 0
    %4288 = vmatprep.subr.mxu0 0.0
    %4289 = vmatpush1.msra.mxu0 0.0
    %4290 = vmatprep.subr.mxu0 0.0
    %4291 = vmatpush1.msra.mxu0 0.0
    %4292 = vmatprep.subr.mxu0 0.0
    %4293 = vmatpush1.msra.mxu0 0.0
    %4294 = vmatprep.subr.mxu0 0.0
    %4295 = vmatpush1.msra.mxu0 0.0
    %4296 = vmatprep.subr.mxu0 0.0
    %4297 = vmatpush1.msra.mxu0 0.0
    %4298 = vmatprep.subr.mxu0 0.0
    %4299 = vmatpush1.msra.mxu0 0.0
    %4300 = vmatprep.subr.mxu0 0.0
    %4301 = vmatpush1.msra.mxu0 0.0
    %4302 = vmatprep.subr.mxu0 0.0
    %4303 = vmatpush1.msra.mxu0 0.0
    %4304 = vmatprep.subr.mxu0 0.0
    %4305 = vmatpush1.msra.mxu0 0.0
    %4306 = vmatprep.subr.mxu0 0.0
    %4307 = vmatpush1.msra.mxu0 0.0
    %4308 = vmatprep.subr.mxu0 0.0
    %4309 = vmatpush1.msra.mxu0 0.0
    %4310 = vmatprep.subr.mxu0 0.0
    %4311 = vmatpush1.msra.mxu0 0.0
    %4312 = vmatprep.subr.mxu0 0.0
    %4313 = vmatpush1.msra.mxu0 %v62
    %4314 = vmatprep.subr.mxu0 0.0
    %4315 = vmatpush1.msra.mxu0 %v61
    %4316 = vmatprep.subr.mxu0 0.0
    %4317 = vmatpush1.msra.mxu0 %v60
    %4318 = vmatprep.subr.mxu0 0.0
    %4319 = vmatpush1.msra.mxu0 %v59
    %4320 = vmatprep.subr.mxu0 0.0
    %4321 = vmatpush2.msra.mxu0 0.0
    %4322 = vmatprep.subr.mxu0 0.0
    %4323 = vmatpush2.msra.mxu0 0.0
    %4324 = vmatprep.subr.mxu0 0.0
    %4325 = vmatpush2.msra.mxu0 0.0
    %4326 = vmatprep.subr.mxu0 0.0
    %4327 = vmatpush2.msra.mxu0 0.0
    %4328 = vmatprep.subr.mxu0 0.0
    %4329 = vmatpush2.msra.mxu0 0.0
    %4330 = vmatprep.subr.mxu0 0.0
    %4331 = vmatpush2.msra.mxu0 0.0
    %4332 = vmatprep.subr.mxu0 0.0
    %4333 = vmatpush2.msra.mxu0 0.0
    %4334 = vmatprep.subr.mxu0 0.0
    %4335 = vmatpush2.msra.mxu0 0.0
    %4336 = vmatprep.subr.mxu0 0.0
    %4337 = vmatpush2.msra.mxu0 0.0
    %4338 = vmatprep.subr.mxu0 0.0
    %4339 = vmatpush2.msra.mxu0 0.0
    %4340 = vmatprep.subr.mxu0 0.0
    %4341 = vmatpush2.msra.mxu0 0.0
    %4342 = vmatprep.subr.mxu0 0.0
    %4343 = vmatpush2.msra.mxu0 0.0
    %4344 = vmatprep.subr.mxu0 0.0
    %4345 = vmatpush2.msra.mxu0 0.0
    %4346 = vmatprep.subr.mxu0 0.0
    %4347 = vmatpush2.msra.mxu0 0.0
    %4348 = vmatprep.subr.mxu0 0.0
    %4349 = vmatpush2.msra.mxu0 0.0
    %4350 = vmatprep.subr.mxu0 0.0
    %4351 = vmatpush2.msra.mxu0 0.0
    %4352 = vmatprep.mubr.f32.mxu0 0.0
    %4353 = vmatmul.mubr.f32.gmra.mxu0 %v4286
    %v4354 = vpop.f32.mrf.mxu0
    %v4355 = vadd.f32 0.0, %v4354
    %v4356 = vpop.f32.mrf.mxu0
    %4357 = vdwg.mxu0
    %4358 = vmatprep.subr.mxu0 0.0
    %4359 = vmatpush1.msra.mxu0 0.0
    %4360 = vmatprep.subr.mxu0 0.0
    %4361 = vmatpush1.msra.mxu0 0.0
    %4362 = vmatprep.subr.mxu0 0.0
    %4363 = vmatpush1.msra.mxu0 0.0
    %4364 = vmatprep.subr.mxu0 0.0
    %4365 = vmatpush1.msra.mxu0 0.0
    %4366 = vmatprep.subr.mxu0 0.0
    %4367 = vmatpush1.msra.mxu0 0.0
    %4368 = vmatprep.subr.mxu0 0.0
    %4369 = vmatpush1.msra.mxu0 0.0
    %4370 = vmatprep.subr.mxu0 0.0
    %4371 = vmatpush1.msra.mxu0 0.0
    %4372 = vmatprep.subr.mxu0 0.0
    %4373 = vmatpush1.msra.mxu0 0.0
    %4374 = vmatprep.subr.mxu0 0.0
    %4375 = vmatpush1.msra.mxu0 0.0
    %4376 = vmatprep.subr.mxu0 0.0
    %4377 = vmatpush1.msra.mxu0 0.0
    %4378 = vmatprep.subr.mxu0 0.0
    %4379 = vmatpush1.msra.mxu0 0.0
    %4380 = vmatprep.subr.mxu0 0.0
    %4381 = vmatpush1.msra.mxu0 0.0
    %4382 = vmatprep.subr.mxu0 0.0
    %4383 = vmatpush1.msra.mxu0 %v66
    %4384 = vmatprep.subr.mxu0 0.0
    %4385 = vmatpush1.msra.mxu0 %v65
    %4386 = vmatprep.subr.mxu0 0.0
    %4387 = vmatpush1.msra.mxu0 %v64
    %4388 = vmatprep.subr.mxu0 0.0
    %4389 = vmatpush1.msra.mxu0 %v63
    %4390 = vmatprep.subr.mxu0 0.0
    %4391 = vmatpush2.msra.mxu0 0.0
    %4392 = vmatprep.subr.mxu0 0.0
    %4393 = vmatpush2.msra.mxu0 0.0
    %4394 = vmatprep.subr.mxu0 0.0
    %4395 = vmatpush2.msra.mxu0 0.0
    %4396 = vmatprep.subr.mxu0 0.0
    %4397 = vmatpush2.msra.mxu0 0.0
    %4398 = vmatprep.subr.mxu0 0.0
    %4399 = vmatpush2.msra.mxu0 0.0
    %4400 = vmatprep.subr.mxu0 0.0
    %4401 = vmatpush2.msra.mxu0 0.0
    %4402 = vmatprep.subr.mxu0 0.0
    %4403 = vmatpush2.msra.mxu0 0.0
    %4404 = vmatprep.subr.mxu0 0.0
    %4405 = vmatpush2.msra.mxu0 0.0
    %4406 = vmatprep.subr.mxu0 0.0
    %4407 = vmatpush2.msra.mxu0 0.0
    %4408 = vmatprep.subr.mxu0 0.0
    %4409 = vmatpush2.msra.mxu0 0.0
    %4410 = vmatprep.subr.mxu0 0.0
    %4411 = vmatpush2.msra.mxu0 0.0
    %4412 = vmatprep.subr.mxu0 0.0
    %4413 = vmatpush2.msra.mxu0 0.0
    %4414 = vmatprep.subr.mxu0 0.0
    %4415 = vmatpush2.msra.mxu0 0.0
    %4416 = vmatprep.subr.mxu0 0.0
    %4417 = vmatpush2.msra.mxu0 0.0
    %4418 = vmatprep.subr.mxu0 0.0
    %4419 = vmatpush2.msra.mxu0 0.0
    %4420 = vmatprep.subr.mxu0 0.0
    %4421 = vmatpush2.msra.mxu0 0.0
    %4422 = vmatprep.mubr.f32.mxu0 0.0
    %4423 = vmatmul.mubr.f32.gmra.mxu0 %v4286
    %v4424 = vpop.f32.mrf.mxu0
    %v4425 = vadd.f32 0.0, %v4424
    %v4426 = vpop.f32.mrf.mxu0
    %4427 = vdwg.mxu0
    %4428 = vmatprep.subr.mxu0 0.0
    %4429 = vmatpush1.msra.mxu0 0.0
    %4430 = vmatprep.subr.mxu0 0.0
    %4431 = vmatpush1.msra.mxu0 0.0
    %4432 = vmatprep.subr.mxu0 0.0
    %4433 = vmatpush1.msra.mxu0 0.0
    %4434 = vmatprep.subr.mxu0 0.0
    %4435 = vmatpush1.msra.mxu0 0.0
    %4436 = vmatprep.subr.mxu0 0.0
    %4437 = vmatpush1.msra.mxu0 0.0
    %4438 = vmatprep.subr.mxu0 0.0
    %4439 = vmatpush1.msra.mxu0 0.0
    %4440 = vmatprep.subr.mxu0 0.0
    %4441 = vmatpush1.msra.mxu0 0.0
    %4442 = vmatprep.subr.mxu0 0.0
    %4443 = vmatpush1.msra.mxu0 0.0
    %4444 = vmatprep.subr.mxu0 0.0
    %4445 = vmatpush1.msra.mxu0 0.0
    %4446 = vmatprep.subr.mxu0 0.0
    %4447 = vmatpush1.msra.mxu0 0.0
    %4448 = vmatprep.subr.mxu0 0.0
    %4449 = vmatpush1.msra.mxu0 0.0
    %4450 = vmatprep.subr.mxu0 0.0
    %4451 = vmatpush1.msra.mxu0 0.0
    %4452 = vmatprep.subr.mxu0 0.0
    %4453 = vmatpush1.msra.mxu0 %v70
    %4454 = vmatprep.subr.mxu0 0.0
    %4455 = vmatpush1.msra.mxu0 %v69
    %4456 = vmatprep.subr.mxu0 0.0
    %4457 = vmatpush1.msra.mxu0 %v68
    %4458 = vmatprep.subr.mxu0 0.0
    %4459 = vmatpush1.msra.mxu0 %v67
    %4460 = vmatprep.subr.mxu0 0.0
    %4461 = vmatpush2.msra.mxu0 0.0
    %4462 = vmatprep.subr.mxu0 0.0
    %4463 = vmatpush2.msra.mxu0 0.0
    %4464 = vmatprep.subr.mxu0 0.0
    %4465 = vmatpush2.msra.mxu0 0.0
    %4466 = vmatprep.subr.mxu0 0.0
    %4467 = vmatpush2.msra.mxu0 0.0
    %4468 = vmatprep.subr.mxu0 0.0
    %4469 = vmatpush2.msra.mxu0 0.0
    %4470 = vmatprep.subr.mxu0 0.0
    %4471 = vmatpush2.msra.mxu0 0.0
    %4472 = vmatprep.subr.mxu0 0.0
    %4473 = vmatpush2.msra.mxu0 0.0
    %4474 = vmatprep.subr.mxu0 0.0
    %4475 = vmatpush2.msra.mxu0 0.0
    %4476 = vmatprep.subr.mxu0 0.0
    %4477 = vmatpush2.msra.mxu0 0.0
    %4478 = vmatprep.subr.mxu0 0.0
    %4479 = vmatpush2.msra.mxu0 0.0
    %4480 = vmatprep.subr.mxu0 0.0
    %4481 = vmatpush2.msra.mxu0 0.0
    %4482 = vmatprep.subr.mxu0 0.0
    %4483 = vmatpush2.msra.mxu0 0.0
    %4484 = vmatprep.subr.mxu0 0.0
    %4485 = vmatpush2.msra.mxu0 0.0
    %4486 = vmatprep.subr.mxu0 0.0
    %4487 = vmatpush2.msra.mxu0 0.0
    %4488 = vmatprep.subr.mxu0 0.0
    %4489 = vmatpush2.msra.mxu0 0.0
    %4490 = vmatprep.subr.mxu0 0.0
    %4491 = vmatpush2.msra.mxu0 0.0
    %4492 = vmatprep.mubr.f32.mxu0 0.0
    %4493 = vmatmul.mubr.f32.gmra.mxu0 %v4286
    %v4494 = vpop.f32.mrf.mxu0
    %v4495 = vadd.f32 0.0, %v4494
    %v4496 = vpop.f32.mrf.mxu0
    %4497 = vdwg.mxu0
    %4498 = vmatprep.subr.mxu0 0.0
    %4499 = vmatpush1.msra.mxu0 0.0
    %4500 = vmatprep.subr.mxu0 0.0
    %4501 = vmatpush1.msra.mxu0 0.0
    %4502 = vmatprep.subr.mxu0 0.0
    %4503 = vmatpush1.msra.mxu0 0.0
    %4504 = vmatprep.subr.mxu0 0.0
    %4505 = vmatpush1.msra.mxu0 0.0
    %4506 = vmatprep.subr.mxu0 0.0
    %4507 = vmatpush1.msra.mxu0 0.0
    %4508 = vmatprep.subr.mxu0 0.0
    %4509 = vmatpush1.msra.mxu0 0.0
    %4510 = vmatprep.subr.mxu0 0.0
    %4511 = vmatpush1.msra.mxu0 0.0
    %4512 = vmatprep.subr.mxu0 0.0
    %4513 = vmatpush1.msra.mxu0 0.0
    %4514 = vmatprep.subr.mxu0 0.0
    %4515 = vmatpush1.msra.mxu0 0.0
    %4516 = vmatprep.subr.mxu0 0.0
    %4517 = vmatpush1.msra.mxu0 0.0
    %4518 = vmatprep.subr.mxu0 0.0
    %4519 = vmatpush1.msra.mxu0 0.0
    %4520 = vmatprep.subr.mxu0 0.0
    %4521 = vmatpush1.msra.mxu0 0.0
    %4522 = vmatprep.subr.mxu0 0.0
    %4523 = vmatpush1.msra.mxu0 %v74
    %4524 = vmatprep.subr.mxu0 0.0
    %4525 = vmatpush1.msra.mxu0 %v73
    %4526 = vmatprep.subr.mxu0 0.0
    %4527 = vmatpush1.msra.mxu0 %v72
    %4528 = vmatprep.subr.mxu0 0.0
    %4529 = vmatpush1.msra.mxu0 %v71
    %4530 = vmatprep.subr.mxu0 0.0
    %4531 = vmatpush2.msra.mxu0 0.0
    %4532 = vmatprep.subr.mxu0 0.0
    %4533 = vmatpush2.msra.mxu0 0.0
    %4534 = vmatprep.subr.mxu0 0.0
    %4535 = vmatpush2.msra.mxu0 0.0
    %4536 = vmatprep.subr.mxu0 0.0
    %4537 = vmatpush2.msra.mxu0 0.0
    %4538 = vmatprep.subr.mxu0 0.0
    %4539 = vmatpush2.msra.mxu0 0.0
    %4540 = vmatprep.subr.mxu0 0.0
    %4541 = vmatpush2.msra.mxu0 0.0
    %4542 = vmatprep.subr.mxu0 0.0
    %4543 = vmatpush2.msra.mxu0 0.0
    %4544 = vmatprep.subr.mxu0 0.0
    %4545 = vmatpush2.msra.mxu0 0.0
    %4546 = vmatprep.subr.mxu0 0.0
    %4547 = vmatpush2.msra.mxu0 0.0
    %4548 = vmatprep.subr.mxu0 0.0
    %4549 = vmatpush2.msra.mxu0 0.0
    %4550 = vmatprep.subr.mxu0 0.0
    %4551 = vmatpush2.msra.mxu0 0.0
    %4552 = vmatprep.subr.mxu0 0.0
    %4553 = vmatpush2.msra.mxu0 0.0
    %4554 = vmatprep.subr.mxu0 0.0
    %4555 = vmatpush2.msra.mxu0 0.0
    %4556 = vmatprep.subr.mxu0 0.0
    %4557 = vmatpush2.msra.mxu0 0.0
    %4558 = vmatprep.subr.mxu0 0.0
    %4559 = vmatpush2.msra.mxu0 0.0
    %4560 = vmatprep.subr.mxu0 0.0
    %4561 = vmatpush2.msra.mxu0 0.0
    %4562 = vmatprep.mubr.f32.mxu0 0.0
    %4563 = vmatmul.mubr.f32.gmra.mxu0 %v4286
    %v4564 = vpop.f32.mrf.mxu0
    %v4565 = vadd.f32 0.0, %v4564
    %v4566 = vpop.f32.mrf.mxu0
    %4567 = vdwg.mxu0
    %4568 = vmatprep.subr.mxu0 0.0
    %4569 = vmatpush1.msra.mxu0 0.0
    %4570 = vmatprep.subr.mxu0 0.0
    %4571 = vmatpush1.msra.mxu0 0.0
    %4572 = vmatprep.subr.mxu0 0.0
    %4573 = vmatpush1.msra.mxu0 0.0
    %4574 = vmatprep.subr.mxu0 0.0
    %4575 = vmatpush1.msra.mxu0 0.0
    %4576 = vmatprep.subr.mxu0 0.0
    %4577 = vmatpush1.msra.mxu0 0.0
    %4578 = vmatprep.subr.mxu0 0.0
    %4579 = vmatpush1.msra.mxu0 0.0
    %4580 = vmatprep.subr.mxu0 0.0
    %4581 = vmatpush1.msra.mxu0 0.0
    %4582 = vmatprep.subr.mxu0 0.0
    %4583 = vmatpush1.msra.mxu0 0.0
    %4584 = vmatprep.subr.mxu0 0.0
    %4585 = vmatpush1.msra.mxu0 0.0
    %4586 = vmatprep.subr.mxu0 0.0
    %4587 = vmatpush1.msra.mxu0 0.0
    %4588 = vmatprep.subr.mxu0 0.0
    %4589 = vmatpush1.msra.mxu0 0.0
    %4590 = vmatprep.subr.mxu0 0.0
    %4591 = vmatpush1.msra.mxu0 0.0
    %4592 = vmatprep.subr.mxu0 0.0
    %4593 = vmatpush1.msra.mxu0 %v78
    %4594 = vmatprep.subr.mxu0 0.0
    %4595 = vmatpush1.msra.mxu0 %v77
    %4596 = vmatprep.subr.mxu0 0.0
    %4597 = vmatpush1.msra.mxu0 %v76
    %4598 = vmatprep.subr.mxu0 0.0
    %4599 = vmatpush1.msra.mxu0 %v75
    %4600 = vmatprep.subr.mxu0 0.0
    %4601 = vmatpush2.msra.mxu0 0.0
    %4602 = vmatprep.subr.mxu0 0.0
    %4603 = vmatpush2.msra.mxu0 0.0
    %4604 = vmatprep.subr.mxu0 0.0
    %4605 = vmatpush2.msra.mxu0 0.0
    %4606 = vmatprep.subr.mxu0 0.0
    %4607 = vmatpush2.msra.mxu0 0.0
    %4608 = vmatprep.subr.mxu0 0.0
    %4609 = vmatpush2.msra.mxu0 0.0
    %4610 = vmatprep.subr.mxu0 0.0
    %4611 = vmatpush2.msra.mxu0 0.0
    %4612 = vmatprep.subr.mxu0 0.0
    %4613 = vmatpush2.msra.mxu0 0.0
    %4614 = vmatprep.subr.mxu0 0.0
    %4615 = vmatpush2.msra.mxu0 0.0
    %4616 = vmatprep.subr.mxu0 0.0
    %4617 = vmatpush2.msra.mxu0 0.0
    %4618 = vmatprep.subr.mxu0 0.0
    %4619 = vmatpush2.msra.mxu0 0.0
    %4620 = vmatprep.subr.mxu0 0.0
    %4621 = vmatpush2.msra.mxu0 0.0
    %4622 = vmatprep.subr.mxu0 0.0
    %4623 = vmatpush2.msra.mxu0 0.0
    %4624 = vmatprep.subr.mxu0 0.0
    %4625 = vmatpush2.msra.mxu0 0.0
    %4626 = vmatprep.subr.mxu0 0.0
    %4627 = vmatpush2.msra.mxu0 0.0
    %4628 = vmatprep.subr.mxu0 0.0
    %4629 = vmatpush2.msra.mxu0 0.0
    %4630 = vmatprep.subr.mxu0 0.0
    %4631 = vmatpush2.msra.mxu0 0.0
    %4632 = vmatprep.mubr.f32.mxu0 0.0
    %4633 = vmatmul.mubr.f32.gmra.mxu0 %v4286
    %v4634 = vpop.f32.mrf.mxu0
    %v4635 = vadd.f32 0.0, %v4634
    %v4636 = vpop.f32.mrf.mxu0
    %4637 = vdwg.mxu0
    %4638 = vmatprep.subr.mxu0 0.0
    %4639 = vmatpush1.msra.mxu0 0.0
    %4640 = vmatprep.subr.mxu0 0.0
    %4641 = vmatpush1.msra.mxu0 0.0
    %4642 = vmatprep.subr.mxu0 0.0
    %4643 = vmatpush1.msra.mxu0 0.0
    %4644 = vmatprep.subr.mxu0 0.0
    %4645 = vmatpush1.msra.mxu0 0.0
    %4646 = vmatprep.subr.mxu0 0.0
    %4647 = vmatpush1.msra.mxu0 0.0
    %4648 = vmatprep.subr.mxu0 0.0
    %4649 = vmatpush1.msra.mxu0 0.0
    %4650 = vmatprep.subr.mxu0 0.0
    %4651 = vmatpush1.msra.mxu0 0.0
    %4652 = vmatprep.subr.mxu0 0.0
    %4653 = vmatpush1.msra.mxu0 0.0
    %4654 = vmatprep.subr.mxu0 0.0
    %4655 = vmatpush1.msra.mxu0 0.0
    %4656 = vmatprep.subr.mxu0 0.0
    %4657 = vmatpush1.msra.mxu0 0.0
    %4658 = vmatprep.subr.mxu0 0.0
    %4659 = vmatpush1.msra.mxu0 0.0
    %4660 = vmatprep.subr.mxu0 0.0
    %4661 = vmatpush1.msra.mxu0 0.0
    %4662 = vmatprep.subr.mxu0 0.0
    %4663 = vmatpush1.msra.mxu0 %v82
    %4664 = vmatprep.subr.mxu0 0.0
    %4665 = vmatpush1.msra.mxu0 %v81
    %4666 = vmatprep.subr.mxu0 0.0
    %4667 = vmatpush1.msra.mxu0 %v80
    %4668 = vmatprep.subr.mxu0 0.0
    %4669 = vmatpush1.msra.mxu0 %v79
    %4670 = vmatprep.subr.mxu0 0.0
    %4671 = vmatpush2.msra.mxu0 0.0
    %4672 = vmatprep.subr.mxu0 0.0
    %4673 = vmatpush2.msra.mxu0 0.0
    %4674 = vmatprep.subr.mxu0 0.0
    %4675 = vmatpush2.msra.mxu0 0.0
    %4676 = vmatprep.subr.mxu0 0.0
    %4677 = vmatpush2.msra.mxu0 0.0
    %4678 = vmatprep.subr.mxu0 0.0
    %4679 = vmatpush2.msra.mxu0 0.0
    %4680 = vmatprep.subr.mxu0 0.0
    %4681 = vmatpush2.msra.mxu0 0.0
    %4682 = vmatprep.subr.mxu0 0.0
    %4683 = vmatpush2.msra.mxu0 0.0
    %4684 = vmatprep.subr.mxu0 0.0
    %4685 = vmatpush2.msra.mxu0 0.0
    %4686 = vmatprep.subr.mxu0 0.0
    %4687 = vmatpush2.msra.mxu0 0.0
    %4688 = vmatprep.subr.mxu0 0.0
    %4689 = vmatpush2.msra.mxu0 0.0
    %4690 = vmatprep.subr.mxu0 0.0
    %4691 = vmatpush2.msra.mxu0 0.0
    %4692 = vmatprep.subr.mxu0 0.0
    %4693 = vmatpush2.msra.mxu0 0.0
    %4694 = vmatprep.subr.mxu0 0.0
    %4695 = vmatpush2.msra.mxu0 0.0
    %4696 = vmatprep.subr.mxu0 0.0
    %4697 = vmatpush2.msra.mxu0 0.0
    %4698 = vmatprep.subr.mxu0 0.0
    %4699 = vmatpush2.msra.mxu0 0.0
    %4700 = vmatprep.subr.mxu0 0.0
    %4701 = vmatpush2.msra.mxu0 0.0
    %4702 = vmatprep.mubr.f32.mxu0 0.0
    %4703 = vmatmul.mubr.f32.gmra.mxu0 %v4286
    %v4704 = vpop.f32.mrf.mxu0
    %v4705 = vadd.f32 0.0, %v4704
    %v4706 = vpop.f32.mrf.mxu0
    %4707 = vdwg.mxu0
    %4708 = vmatprep.subr.mxu0 0.0
    %4709 = vmatpush1.msra.mxu0 0.0
    %4710 = vmatprep.subr.mxu0 0.0
    %4711 = vmatpush1.msra.mxu0 0.0
    %4712 = vmatprep.subr.mxu0 0.0
    %4713 = vmatpush1.msra.mxu0 0.0
    %4714 = vmatprep.subr.mxu0 0.0
    %4715 = vmatpush1.msra.mxu0 0.0
    %4716 = vmatprep.subr.mxu0 0.0
    %4717 = vmatpush1.msra.mxu0 0.0
    %4718 = vmatprep.subr.mxu0 0.0
    %4719 = vmatpush1.msra.mxu0 0.0
    %4720 = vmatprep.subr.mxu0 0.0
    %4721 = vmatpush1.msra.mxu0 0.0
    %4722 = vmatprep.subr.mxu0 0.0
    %4723 = vmatpush1.msra.mxu0 0.0
    %4724 = vmatprep.subr.mxu0 0.0
    %4725 = vmatpush1.msra.mxu0 0.0
    %4726 = vmatprep.subr.mxu0 0.0
    %4727 = vmatpush1.msra.mxu0 0.0
    %4728 = vmatprep.subr.mxu0 0.0
    %4729 = vmatpush1.msra.mxu0 0.0
    %4730 = vmatprep.subr.mxu0 0.0
    %4731 = vmatpush1.msra.mxu0 0.0
    %4732 = vmatprep.subr.mxu0 0.0
    %4733 = vmatpush1.msra.mxu0 %v86
    %4734 = vmatprep.subr.mxu0 0.0
    %4735 = vmatpush1.msra.mxu0 %v85
    %4736 = vmatprep.subr.mxu0 0.0
    %4737 = vmatpush1.msra.mxu0 %v84
    %4738 = vmatprep.subr.mxu0 0.0
    %4739 = vmatpush1.msra.mxu0 %v83
    %4740 = vmatprep.subr.mxu0 0.0
    %4741 = vmatpush2.msra.mxu0 0.0
    %4742 = vmatprep.subr.mxu0 0.0
    %4743 = vmatpush2.msra.mxu0 0.0
    %4744 = vmatprep.subr.mxu0 0.0
    %4745 = vmatpush2.msra.mxu0 0.0
    %4746 = vmatprep.subr.mxu0 0.0
    %4747 = vmatpush2.msra.mxu0 0.0
    %4748 = vmatprep.subr.mxu0 0.0
    %4749 = vmatpush2.msra.mxu0 0.0
    %4750 = vmatprep.subr.mxu0 0.0
    %4751 = vmatpush2.msra.mxu0 0.0
    %4752 = vmatprep.subr.mxu0 0.0
    %4753 = vmatpush2.msra.mxu0 0.0
    %4754 = vmatprep.subr.mxu0 0.0
    %4755 = vmatpush2.msra.mxu0 0.0
    %4756 = vmatprep.subr.mxu0 0.0
    %4757 = vmatpush2.msra.mxu0 0.0
    %4758 = vmatprep.subr.mxu0 0.0
    %4759 = vmatpush2.msra.mxu0 0.0
    %4760 = vmatprep.subr.mxu0 0.0
    %4761 = vmatpush2.msra.mxu0 0.0
    %4762 = vmatprep.subr.mxu0 0.0
    %4763 = vmatpush2.msra.mxu0 0.0
    %4764 = vmatprep.subr.mxu0 0.0
    %4765 = vmatpush2.msra.mxu0 0.0
    %4766 = vmatprep.subr.mxu0 0.0
    %4767 = vmatpush2.msra.mxu0 0.0
    %4768 = vmatprep.subr.mxu0 0.0
    %4769 = vmatpush2.msra.mxu0 0.0
    %4770 = vmatprep.subr.mxu0 0.0
    %4771 = vmatpush2.msra.mxu0 0.0
    %4772 = vmatprep.mubr.f32.mxu0 0.0
    %4773 = vmatmul.mubr.f32.gmra.mxu0 %v4286
    %v4774 = vpop.f32.mrf.mxu0
    %v4775 = vadd.f32 0.0, %v4774
    %v4776 = vpop.f32.mrf.mxu0
    %4777 = vdwg.mxu0
    %4778 = vmatprep.subr.mxu0 0.0
    %4779 = vmatpush1.msra.mxu0 0.0
    %4780 = vmatprep.subr.mxu0 0.0
    %4781 = vmatpush1.msra.mxu0 0.0
    %4782 = vmatprep.subr.mxu0 0.0
    %4783 = vmatpush1.msra.mxu0 0.0
    %4784 = vmatprep.subr.mxu0 0.0
    %4785 = vmatpush1.msra.mxu0 0.0
    %4786 = vmatprep.subr.mxu0 0.0
    %4787 = vmatpush1.msra.mxu0 0.0
    %4788 = vmatprep.subr.mxu0 0.0
    %4789 = vmatpush1.msra.mxu0 0.0
    %4790 = vmatprep.subr.mxu0 0.0
    %4791 = vmatpush1.msra.mxu0 0.0
    %4792 = vmatprep.subr.mxu0 0.0
    %4793 = vmatpush1.msra.mxu0 0.0
    %4794 = vmatprep.subr.mxu0 0.0
    %4795 = vmatpush1.msra.mxu0 0.0
    %4796 = vmatprep.subr.mxu0 0.0
    %4797 = vmatpush1.msra.mxu0 0.0
    %4798 = vmatprep.subr.mxu0 0.0
    %4799 = vmatpush1.msra.mxu0 0.0
    %4800 = vmatprep.subr.mxu0 0.0
    %4801 = vmatpush1.msra.mxu0 0.0
    %4802 = vmatprep.subr.mxu0 0.0
    %4803 = vmatpush1.msra.mxu0 %v90
    %4804 = vmatprep.subr.mxu0 0.0
    %4805 = vmatpush1.msra.mxu0 %v89
    %4806 = vmatprep.subr.mxu0 0.0
    %4807 = vmatpush1.msra.mxu0 %v88
    %4808 = vmatprep.subr.mxu0 0.0
    %4809 = vmatpush1.msra.mxu0 %v87
    %4810 = vmatprep.subr.mxu0 0.0
    %4811 = vmatpush2.msra.mxu0 0.0
    %4812 = vmatprep.subr.mxu0 0.0
    %4813 = vmatpush2.msra.mxu0 0.0
    %4814 = vmatprep.subr.mxu0 0.0
    %4815 = vmatpush2.msra.mxu0 0.0
    %4816 = vmatprep.subr.mxu0 0.0
    %4817 = vmatpush2.msra.mxu0 0.0
    %4818 = vmatprep.subr.mxu0 0.0
    %4819 = vmatpush2.msra.mxu0 0.0
    %4820 = vmatprep.subr.mxu0 0.0
    %4821 = vmatpush2.msra.mxu0 0.0
    %4822 = vmatprep.subr.mxu0 0.0
    %4823 = vmatpush2.msra.mxu0 0.0
    %4824 = vmatprep.subr.mxu0 0.0
    %4825 = vmatpush2.msra.mxu0 0.0
    %4826 = vmatprep.subr.mxu0 0.0
    %4827 = vmatpush2.msra.mxu0 0.0
    %4828 = vmatprep.subr.mxu0 0.0
    %4829 = vmatpush2.msra.mxu0 0.0
    %4830 = vmatprep.subr.mxu0 0.0
    %4831 = vmatpush2.msra.mxu0 0.0
    %4832 = vmatprep.subr.mxu0 0.0
    %4833 = vmatpush2.msra.mxu0 0.0
    %4834 = vmatprep.subr.mxu0 0.0
    %4835 = vmatpush2.msra.mxu0 0.0
    %4836 = vmatprep.subr.mxu0 0.0
    %4837 = vmatpush2.msra.mxu0 0.0
    %4838 = vmatprep.subr.mxu0 0.0
    %4839 = vmatpush2.msra.mxu0 0.0
    %4840 = vmatprep.subr.mxu0 0.0
    %4841 = vmatpush2.msra.mxu0 0.0
    %4842 = vmatprep.mubr.f32.mxu0 0.0
    %4843 = vmatmul.mubr.f32.gmra.mxu0 %v4286
    %v4844 = vpop.f32.mrf.mxu0
    %v4845 = vadd.f32 0.0, %v4844
    %v4846 = vpop.f32.mrf.mxu0
    %4847 = vdwg.mxu0
    %4848 = vmatprep.subr.mxu0 0.0
    %4849 = vmatpush1.msra.mxu0 0.0
    %4850 = vmatprep.subr.mxu0 0.0
    %4851 = vmatpush1.msra.mxu0 0.0
    %4852 = vmatprep.subr.mxu0 0.0
    %4853 = vmatpush1.msra.mxu0 0.0
    %4854 = vmatprep.subr.mxu0 0.0
    %4855 = vmatpush1.msra.mxu0 0.0
    %4856 = vmatprep.subr.mxu0 0.0
    %4857 = vmatpush1.msra.mxu0 0.0
    %4858 = vmatprep.subr.mxu0 0.0
    %4859 = vmatpush1.msra.mxu0 0.0
    %4860 = vmatprep.subr.mxu0 0.0
    %4861 = vmatpush1.msra.mxu0 0.0
    %4862 = vmatprep.subr.mxu0 0.0
    %4863 = vmatpush1.msra.mxu0 0.0
    %4864 = vmatprep.subr.mxu0 0.0
    %4865 = vmatpush1.msra.mxu0 0.0
    %4866 = vmatprep.subr.mxu0 0.0
    %4867 = vmatpush1.msra.mxu0 0.0
    %4868 = vmatprep.subr.mxu0 0.0
    %4869 = vmatpush1.msra.mxu0 0.0
    %4870 = vmatprep.subr.mxu0 0.0
    %4871 = vmatpush1.msra.mxu0 0.0
    %4872 = vmatprep.subr.mxu0 0.0
    %4873 = vmatpush1.msra.mxu0 %v94
    %4874 = vmatprep.subr.mxu0 0.0
    %4875 = vmatpush1.msra.mxu0 %v93
    %4876 = vmatprep.subr.mxu0 0.0
    %4877 = vmatpush1.msra.mxu0 %v92
    %4878 = vmatprep.subr.mxu0 0.0
    %4879 = vmatpush1.msra.mxu0 %v91
    %4880 = vmatprep.subr.mxu0 0.0
    %4881 = vmatpush2.msra.mxu0 0.0
    %4882 = vmatprep.subr.mxu0 0.0
    %4883 = vmatpush2.msra.mxu0 0.0
    %4884 = vmatprep.subr.mxu0 0.0
    %4885 = vmatpush2.msra.mxu0 0.0
    %4886 = vmatprep.subr.mxu0 0.0
    %4887 = vmatpush2.msra.mxu0 0.0
    %4888 = vmatprep.subr.mxu0 0.0
    %4889 = vmatpush2.msra.mxu0 0.0
    %4890 = vmatprep.subr.mxu0 0.0
    %4891 = vmatpush2.msra.mxu0 0.0
    %4892 = vmatprep.subr.mxu0 0.0
    %4893 = vmatpush2.msra.mxu0 0.0
    %4894 = vmatprep.subr.mxu0 0.0
    %4895 = vmatpush2.msra.mxu0 0.0
    %4896 = vmatprep.subr.mxu0 0.0
    %4897 = vmatpush2.msra.mxu0 0.0
    %4898 = vmatprep.subr.mxu0 0.0
    %4899 = vmatpush2.msra.mxu0 0.0
    %4900 = vmatprep.subr.mxu0 0.0
    %4901 = vmatpush2.msra.mxu0 0.0
    %4902 = vmatprep.subr.mxu0 0.0
    %4903 = vmatpush2.msra.mxu0 0.0
    %4904 = vmatprep.subr.mxu0 0.0
    %4905 = vmatpush2.msra.mxu0 0.0
    %4906 = vmatprep.subr.mxu0 0.0
    %4907 = vmatpush2.msra.mxu0 0.0
    %4908 = vmatprep.subr.mxu0 0.0
    %4909 = vmatpush2.msra.mxu0 0.0
    %4910 = vmatprep.subr.mxu0 0.0
    %4911 = vmatpush2.msra.mxu0 0.0
    %4912 = vmatprep.mubr.f32.mxu0 0.0
    %4913 = vmatmul.mubr.f32.gmra.mxu0 %v4286
    %v4914 = vpop.f32.mrf.mxu0
    %v4915 = vadd.f32 0.0, %v4914
    %v4916 = vpop.f32.mrf.mxu0
    %4917 = vdwg.mxu0
    %4918 = vmatprep.subr.mxu0 0.0
    %4919 = vmatpush1.msra.mxu0 0.0
    %4920 = vmatprep.subr.mxu0 0.0
    %4921 = vmatpush1.msra.mxu0 0.0
    %4922 = vmatprep.subr.mxu0 0.0
    %4923 = vmatpush1.msra.mxu0 0.0
    %4924 = vmatprep.subr.mxu0 0.0
    %4925 = vmatpush1.msra.mxu0 0.0
    %4926 = vmatprep.subr.mxu0 0.0
    %4927 = vmatpush1.msra.mxu0 0.0
    %4928 = vmatprep.subr.mxu0 0.0
    %4929 = vmatpush1.msra.mxu0 0.0
    %4930 = vmatprep.subr.mxu0 0.0
    %4931 = vmatpush1.msra.mxu0 0.0
    %4932 = vmatprep.subr.mxu0 0.0
    %4933 = vmatpush1.msra.mxu0 0.0
    %4934 = vmatprep.subr.mxu0 0.0
    %4935 = vmatpush1.msra.mxu0 0.0
    %4936 = vmatprep.subr.mxu0 0.0
    %4937 = vmatpush1.msra.mxu0 0.0
    %4938 = vmatprep.subr.mxu0 0.0
    %4939 = vmatpush1.msra.mxu0 0.0
    %4940 = vmatprep.subr.mxu0 0.0
    %4941 = vmatpush1.msra.mxu0 0.0
    %4942 = vmatprep.subr.mxu0 0.0
    %4943 = vmatpush1.msra.mxu0 %v98
    %4944 = vmatprep.subr.mxu0 0.0
    %4945 = vmatpush1.msra.mxu0 %v97
    %4946 = vmatprep.subr.mxu0 0.0
    %4947 = vmatpush1.msra.mxu0 %v96
    %4948 = vmatprep.subr.mxu0 0.0
    %4949 = vmatpush1.msra.mxu0 %v95
    %4950 = vmatprep.subr.mxu0 0.0
    %4951 = vmatpush2.msra.mxu0 0.0
    %4952 = vmatprep.subr.mxu0 0.0
    %4953 = vmatpush2.msra.mxu0 0.0
    %4954 = vmatprep.subr.mxu0 0.0
    %4955 = vmatpush2.msra.mxu0 0.0
    %4956 = vmatprep.subr.mxu0 0.0
    %4957 = vmatpush2.msra.mxu0 0.0
    %4958 = vmatprep.subr.mxu0 0.0
    %4959 = vmatpush2.msra.mxu0 0.0
    %4960 = vmatprep.subr.mxu0 0.0
    %4961 = vmatpush2.msra.mxu0 0.0
    %4962 = vmatprep.subr.mxu0 0.0
    %4963 = vmatpush2.msra.mxu0 0.0
    %4964 = vmatprep.subr.mxu0 0.0
    %4965 = vmatpush2.msra.mxu0 0.0
    %4966 = vmatprep.subr.mxu0 0.0
    %4967 = vmatpush2.msra.mxu0 0.0
    %4968 = vmatprep.subr.mxu0 0.0
    %4969 = vmatpush2.msra.mxu0 0.0
    %4970 = vmatprep.subr.mxu0 0.0
    %4971 = vmatpush2.msra.mxu0 0.0
    %4972 = vmatprep.subr.mxu0 0.0
    %4973 = vmatpush2.msra.mxu0 0.0
    %4974 = vmatprep.subr.mxu0 0.0
    %4975 = vmatpush2.msra.mxu0 0.0
    %4976 = vmatprep.subr.mxu0 0.0
    %4977 = vmatpush2.msra.mxu0 0.0
    %4978 = vmatprep.subr.mxu0 0.0
    %4979 = vmatpush2.msra.mxu0 0.0
    %4980 = vmatprep.subr.mxu0 0.0
    %4981 = vmatpush2.msra.mxu0 0.0
    %4982 = vmatprep.mubr.f32.mxu0 0.0
    %4983 = vmatmul.mubr.f32.gmra.mxu0 %v4286
    %v4984 = vpop.f32.mrf.mxu0
    %v4985 = vadd.f32 0.0, %v4984
    %v4986 = vpop.f32.mrf.mxu0
    %4987 = vdwg.mxu0
    %4988 = vmatprep.subr.mxu0 0.0
    %4989 = vmatpush1.msra.mxu0 0.0
    %4990 = vmatprep.subr.mxu0 0.0
    %4991 = vmatpush1.msra.mxu0 0.0
    %4992 = vmatprep.subr.mxu0 0.0
    %4993 = vmatpush1.msra.mxu0 0.0
    %4994 = vmatprep.subr.mxu0 0.0
    %4995 = vmatpush1.msra.mxu0 0.0
    %4996 = vmatprep.subr.mxu0 0.0
    %4997 = vmatpush1.msra.mxu0 0.0
    %4998 = vmatprep.subr.mxu0 0.0
    %4999 = vmatpush1.msra.mxu0 0.0
    %5000 = vmatprep.subr.mxu0 0.0
    %5001 = vmatpush1.msra.mxu0 0.0
    %5002 = vmatprep.subr.mxu0 0.0
    %5003 = vmatpush1.msra.mxu0 0.0
    %5004 = vmatprep.subr.mxu0 0.0
    %5005 = vmatpush1.msra.mxu0 0.0
    %5006 = vmatprep.subr.mxu0 0.0
    %5007 = vmatpush1.msra.mxu0 0.0
    %5008 = vmatprep.subr.mxu0 0.0
    %5009 = vmatpush1.msra.mxu0 0.0
    %5010 = vmatprep.subr.mxu0 0.0
    %5011 = vmatpush1.msra.mxu0 0.0
    %5012 = vmatprep.subr.mxu0 0.0
    %5013 = vmatpush1.msra.mxu0 %v102
    %5014 = vmatprep.subr.mxu0 0.0
    %5015 = vmatpush1.msra.mxu0 %v101
    %5016 = vmatprep.subr.mxu0 0.0
    %5017 = vmatpush1.msra.mxu0 %v100
    %5018 = vmatprep.subr.mxu0 0.0
    %5019 = vmatpush1.msra.mxu0 %v99
    %5020 = vmatprep.subr.mxu0 0.0
    %5021 = vmatpush2.msra.mxu0 0.0
    %5022 = vmatprep.subr.mxu0 0.0
    %5023 = vmatpush2.msra.mxu0 0.0
    %5024 = vmatprep.subr.mxu0 0.0
    %5025 = vmatpush2.msra.mxu0 0.0
    %5026 = vmatprep.subr.mxu0 0.0
    %5027 = vmatpush2.msra.mxu0 0.0
    %5028 = vmatprep.subr.mxu0 0.0
    %5029 = vmatpush2.msra.mxu0 0.0
    %5030 = vmatprep.subr.mxu0 0.0
    %5031 = vmatpush2.msra.mxu0 0.0
    %5032 = vmatprep.subr.mxu0 0.0
    %5033 = vmatpush2.msra.mxu0 0.0
    %5034 = vmatprep.subr.mxu0 0.0
    %5035 = vmatpush2.msra.mxu0 0.0
    %5036 = vmatprep.subr.mxu0 0.0
    %5037 = vmatpush2.msra.mxu0 0.0
    %5038 = vmatprep.subr.mxu0 0.0
    %5039 = vmatpush2.msra.mxu0 0.0
    %5040 = vmatprep.subr.mxu0 0.0
    %5041 = vmatpush2.msra.mxu0 0.0
    %5042 = vmatprep.subr.mxu0 0.0
    %5043 = vmatpush2.msra.mxu0 0.0
    %5044 = vmatprep.subr.mxu0 0.0
    %5045 = vmatpush2.msra.mxu0 0.0
    %5046 = vmatprep.subr.mxu0 0.0
    %5047 = vmatpush2.msra.mxu0 0.0
    %5048 = vmatprep.subr.mxu0 0.0
    %5049 = vmatpush2.msra.mxu0 0.0
    %5050 = vmatprep.subr.mxu0 0.0
    %5051 = vmatpush2.msra.mxu0 0.0
    %5052 = vmatprep.mubr.f32.mxu0 0.0
    %5053 = vmatmul.mubr.f32.gmra.mxu0 %v4286
    %v5054 = vpop.f32.mrf.mxu0
    %v5055 = vadd.f32 0.0, %v5054
    %v5056 = vpop.f32.mrf.mxu0
    %5057 = vdwg.mxu0
    %5058 = vmatprep.subr.mxu0 0.0
    %5059 = vmatpush1.msra.mxu0 0.0
    %5060 = vmatprep.subr.mxu0 0.0
    %5061 = vmatpush1.msra.mxu0 0.0
    %5062 = vmatprep.subr.mxu0 0.0
    %5063 = vmatpush1.msra.mxu0 0.0
    %5064 = vmatprep.subr.mxu0 0.0
    %5065 = vmatpush1.msra.mxu0 0.0
    %5066 = vmatprep.subr.mxu0 0.0
    %5067 = vmatpush1.msra.mxu0 0.0
    %5068 = vmatprep.subr.mxu0 0.0
    %5069 = vmatpush1.msra.mxu0 0.0
    %5070 = vmatprep.subr.mxu0 0.0
    %5071 = vmatpush1.msra.mxu0 0.0
    %5072 = vmatprep.subr.mxu0 0.0
    %5073 = vmatpush1.msra.mxu0 0.0
    %5074 = vmatprep.subr.mxu0 0.0
    %5075 = vmatpush1.msra.mxu0 0.0
    %5076 = vmatprep.subr.mxu0 0.0
    %5077 = vmatpush1.msra.mxu0 0.0
    %5078 = vmatprep.subr.mxu0 0.0
    %5079 = vmatpush1.msra.mxu0 0.0
    %5080 = vmatprep.subr.mxu0 0.0
    %5081 = vmatpush1.msra.mxu0 0.0
    %5082 = vmatprep.subr.mxu0 0.0
    %5083 = vmatpush1.msra.mxu0 %v106
    %5084 = vmatprep.subr.mxu0 0.0
    %5085 = vmatpush1.msra.mxu0 %v105
    %5086 = vmatprep.subr.mxu0 0.0
    %5087 = vmatpush1.msra.mxu0 %v104
    %5088 = vmatprep.subr.mxu0 0.0
    %5089 = vmatpush1.msra.mxu0 %v103
    %5090 = vmatprep.subr.mxu0 0.0
    %5091 = vmatpush2.msra.mxu0 0.0
    %5092 = vmatprep.subr.mxu0 0.0
    %5093 = vmatpush2.msra.mxu0 0.0
    %5094 = vmatprep.subr.mxu0 0.0
    %5095 = vmatpush2.msra.mxu0 0.0
    %5096 = vmatprep.subr.mxu0 0.0
    %5097 = vmatpush2.msra.mxu0 0.0
    %5098 = vmatprep.subr.mxu0 0.0
    %5099 = vmatpush2.msra.mxu0 0.0
    %5100 = vmatprep.subr.mxu0 0.0
    %5101 = vmatpush2.msra.mxu0 0.0
    %5102 = vmatprep.subr.mxu0 0.0
    %5103 = vmatpush2.msra.mxu0 0.0
    %5104 = vmatprep.subr.mxu0 0.0
    %5105 = vmatpush2.msra.mxu0 0.0
    %5106 = vmatprep.subr.mxu0 0.0
    %5107 = vmatpush2.msra.mxu0 0.0
    %5108 = vmatprep.subr.mxu0 0.0
    %5109 = vmatpush2.msra.mxu0 0.0
    %5110 = vmatprep.subr.mxu0 0.0
    %5111 = vmatpush2.msra.mxu0 0.0
    %5112 = vmatprep.subr.mxu0 0.0
    %5113 = vmatpush2.msra.mxu0 0.0
    %5114 = vmatprep.subr.mxu0 0.0
    %5115 = vmatpush2.msra.mxu0 0.0
    %5116 = vmatprep.subr.mxu0 0.0
    %5117 = vmatpush2.msra.mxu0 0.0
    %5118 = vmatprep.subr.mxu0 0.0
    %5119 = vmatpush2.msra.mxu0 0.0
    %5120 = vmatprep.subr.mxu0 0.0
    %5121 = vmatpush2.msra.mxu0 0.0
    %5122 = vmatprep.mubr.f32.mxu0 0.0
    %5123 = vmatmul.mubr.f32.gmra.mxu0 %v4286
    %v5124 = vpop.f32.mrf.mxu0
    %v5125 = vadd.f32 0.0, %v5124
    %v5126 = vpop.f32.mrf.mxu0
    %5127 = vdwg.mxu0
    %5128 = vmatprep.subr.mxu0 0.0
    %5129 = vmatpush1.msra.mxu0 0.0
    %5130 = vmatprep.subr.mxu0 0.0
    %5131 = vmatpush1.msra.mxu0 0.0
    %5132 = vmatprep.subr.mxu0 0.0
    %5133 = vmatpush1.msra.mxu0 0.0
    %5134 = vmatprep.subr.mxu0 0.0
    %5135 = vmatpush1.msra.mxu0 0.0
    %5136 = vmatprep.subr.mxu0 0.0
    %5137 = vmatpush1.msra.mxu0 0.0
    %5138 = vmatprep.subr.mxu0 0.0
    %5139 = vmatpush1.msra.mxu0 0.0
    %5140 = vmatprep.subr.mxu0 0.0
    %5141 = vmatpush1.msra.mxu0 0.0
    %5142 = vmatprep.subr.mxu0 0.0
    %5143 = vmatpush1.msra.mxu0 0.0
    %5144 = vmatprep.subr.mxu0 0.0
    %5145 = vmatpush1.msra.mxu0 0.0
    %5146 = vmatprep.subr.mxu0 0.0
    %5147 = vmatpush1.msra.mxu0 0.0
    %5148 = vmatprep.subr.mxu0 0.0
    %5149 = vmatpush1.msra.mxu0 0.0
    %5150 = vmatprep.subr.mxu0 0.0
    %5151 = vmatpush1.msra.mxu0 0.0
    %5152 = vmatprep.subr.mxu0 0.0
    %5153 = vmatpush1.msra.mxu0 %v110
    %5154 = vmatprep.subr.mxu0 0.0
    %5155 = vmatpush1.msra.mxu0 %v109
    %5156 = vmatprep.subr.mxu0 0.0
    %5157 = vmatpush1.msra.mxu0 %v108
    %5158 = vmatprep.subr.mxu0 0.0
    %5159 = vmatpush1.msra.mxu0 %v107
    %5160 = vmatprep.subr.mxu0 0.0
    %5161 = vmatpush2.msra.mxu0 0.0
    %5162 = vmatprep.subr.mxu0 0.0
    %5163 = vmatpush2.msra.mxu0 0.0
    %5164 = vmatprep.subr.mxu0 0.0
    %5165 = vmatpush2.msra.mxu0 0.0
    %5166 = vmatprep.subr.mxu0 0.0
    %5167 = vmatpush2.msra.mxu0 0.0
    %5168 = vmatprep.subr.mxu0 0.0
    %5169 = vmatpush2.msra.mxu0 0.0
    %5170 = vmatprep.subr.mxu0 0.0
    %5171 = vmatpush2.msra.mxu0 0.0
    %5172 = vmatprep.subr.mxu0 0.0
    %5173 = vmatpush2.msra.mxu0 0.0
    %5174 = vmatprep.subr.mxu0 0.0
    %5175 = vmatpush2.msra.mxu0 0.0
    %5176 = vmatprep.subr.mxu0 0.0
    %5177 = vmatpush2.msra.mxu0 0.0
    %5178 = vmatprep.subr.mxu0 0.0
    %5179 = vmatpush2.msra.mxu0 0.0
    %5180 = vmatprep.subr.mxu0 0.0
    %5181 = vmatpush2.msra.mxu0 0.0
    %5182 = vmatprep.subr.mxu0 0.0
    %5183 = vmatpush2.msra.mxu0 0.0
    %5184 = vmatprep.subr.mxu0 0.0
    %5185 = vmatpush2.msra.mxu0 0.0
    %5186 = vmatprep.subr.mxu0 0.0
    %5187 = vmatpush2.msra.mxu0 0.0
    %5188 = vmatprep.subr.mxu0 0.0
    %5189 = vmatpush2.msra.mxu0 0.0
    %5190 = vmatprep.subr.mxu0 0.0
    %5191 = vmatpush2.msra.mxu0 0.0
    %5192 = vmatprep.mubr.f32.mxu0 0.0
    %5193 = vmatmul.mubr.f32.gmra.mxu0 %v4286
    %v5194 = vpop.f32.mrf.mxu0
    %v5195 = vadd.f32 0.0, %v5194
    %v5196 = vpop.f32.mrf.mxu0
    %5197 = vdwg.mxu0
    %5198 = vmatprep.subr.mxu0 0.0
    %5199 = vmatpush1.msra.mxu0 0.0
    %5200 = vmatprep.subr.mxu0 0.0
    %5201 = vmatpush1.msra.mxu0 0.0
    %5202 = vmatprep.subr.mxu0 0.0
    %5203 = vmatpush1.msra.mxu0 0.0
    %5204 = vmatprep.subr.mxu0 0.0
    %5205 = vmatpush1.msra.mxu0 0.0
    %5206 = vmatprep.subr.mxu0 0.0
    %5207 = vmatpush1.msra.mxu0 0.0
    %5208 = vmatprep.subr.mxu0 0.0
    %5209 = vmatpush1.msra.mxu0 0.0
    %5210 = vmatprep.subr.mxu0 0.0
    %5211 = vmatpush1.msra.mxu0 0.0
    %5212 = vmatprep.subr.mxu0 0.0
    %5213 = vmatpush1.msra.mxu0 0.0
    %5214 = vmatprep.subr.mxu0 0.0
    %5215 = vmatpush1.msra.mxu0 0.0
    %5216 = vmatprep.subr.mxu0 0.0
    %5217 = vmatpush1.msra.mxu0 0.0
    %5218 = vmatprep.subr.mxu0 0.0
    %5219 = vmatpush1.msra.mxu0 0.0
    %5220 = vmatprep.subr.mxu0 0.0
    %5221 = vmatpush1.msra.mxu0 0.0
    %5222 = vmatprep.subr.mxu0 0.0
    %5223 = vmatpush1.msra.mxu0 %v114
    %5224 = vmatprep.subr.mxu0 0.0
    %5225 = vmatpush1.msra.mxu0 %v113
    %5226 = vmatprep.subr.mxu0 0.0
    %5227 = vmatpush1.msra.mxu0 %v112
    %5228 = vmatprep.subr.mxu0 0.0
    %5229 = vmatpush1.msra.mxu0 %v111
    %5230 = vmatprep.subr.mxu0 0.0
    %5231 = vmatpush2.msra.mxu0 0.0
    %5232 = vmatprep.subr.mxu0 0.0
    %5233 = vmatpush2.msra.mxu0 0.0
    %5234 = vmatprep.subr.mxu0 0.0
    %5235 = vmatpush2.msra.mxu0 0.0
    %5236 = vmatprep.subr.mxu0 0.0
    %5237 = vmatpush2.msra.mxu0 0.0
    %5238 = vmatprep.subr.mxu0 0.0
    %5239 = vmatpush2.msra.mxu0 0.0
    %5240 = vmatprep.subr.mxu0 0.0
    %5241 = vmatpush2.msra.mxu0 0.0
    %5242 = vmatprep.subr.mxu0 0.0
    %5243 = vmatpush2.msra.mxu0 0.0
    %5244 = vmatprep.subr.mxu0 0.0
    %5245 = vmatpush2.msra.mxu0 0.0
    %5246 = vmatprep.subr.mxu0 0.0
    %5247 = vmatpush2.msra.mxu0 0.0
    %5248 = vmatprep.subr.mxu0 0.0
    %5249 = vmatpush2.msra.mxu0 0.0
    %5250 = vmatprep.subr.mxu0 0.0
    %5251 = vmatpush2.msra.mxu0 0.0
    %5252 = vmatprep.subr.mxu0 0.0
    %5253 = vmatpush2.msra.mxu0 0.0
    %5254 = vmatprep.subr.mxu0 0.0
    %5255 = vmatpush2.msra.mxu0 0.0
    %5256 = vmatprep.subr.mxu0 0.0
    %5257 = vmatpush2.msra.mxu0 0.0
    %5258 = vmatprep.subr.mxu0 0.0
    %5259 = vmatpush2.msra.mxu0 0.0
    %5260 = vmatprep.subr.mxu0 0.0
    %5261 = vmatpush2.msra.mxu0 0.0
    %5262 = vmatprep.mubr.f32.mxu0 0.0
    %5263 = vmatmul.mubr.f32.gmra.mxu0 %v4286
    %v5264 = vpop.f32.mrf.mxu0
    %v5265 = vadd.f32 0.0, %v5264
    %v5266 = vpop.f32.mrf.mxu0
    %5267 = vdwg.mxu0
    %5268 = vmatprep.subr.mxu0 0.0
    %5269 = vmatpush1.msra.mxu0 0.0
    %5270 = vmatprep.subr.mxu0 0.0
    %5271 = vmatpush1.msra.mxu0 0.0
    %5272 = vmatprep.subr.mxu0 0.0
    %5273 = vmatpush1.msra.mxu0 0.0
    %5274 = vmatprep.subr.mxu0 0.0
    %5275 = vmatpush1.msra.mxu0 0.0
    %5276 = vmatprep.subr.mxu0 0.0
    %5277 = vmatpush1.msra.mxu0 0.0
    %5278 = vmatprep.subr.mxu0 0.0
    %5279 = vmatpush1.msra.mxu0 0.0
    %5280 = vmatprep.subr.mxu0 0.0
    %5281 = vmatpush1.msra.mxu0 0.0
    %5282 = vmatprep.subr.mxu0 0.0
    %5283 = vmatpush1.msra.mxu0 0.0
    %5284 = vmatprep.subr.mxu0 0.0
    %5285 = vmatpush1.msra.mxu0 0.0
    %5286 = vmatprep.subr.mxu0 0.0
    %5287 = vmatpush1.msra.mxu0 0.0
    %5288 = vmatprep.subr.mxu0 0.0
    %5289 = vmatpush1.msra.mxu0 0.0
    %5290 = vmatprep.subr.mxu0 0.0
    %5291 = vmatpush1.msra.mxu0 0.0
    %5292 = vmatprep.subr.mxu0 0.0
    %5293 = vmatpush1.msra.mxu0 %v118
    %5294 = vmatprep.subr.mxu0 0.0
    %5295 = vmatpush1.msra.mxu0 %v117
    %5296 = vmatprep.subr.mxu0 0.0
    %5297 = vmatpush1.msra.mxu0 %v116
    %5298 = vmatprep.subr.mxu0 0.0
    %5299 = vmatpush1.msra.mxu0 %v115
    %5300 = vmatprep.subr.mxu0 0.0
    %5301 = vmatpush2.msra.mxu0 0.0
    %5302 = vmatprep.subr.mxu0 0.0
    %5303 = vmatpush2.msra.mxu0 0.0
    %5304 = vmatprep.subr.mxu0 0.0
    %5305 = vmatpush2.msra.mxu0 0.0
    %5306 = vmatprep.subr.mxu0 0.0
    %5307 = vmatpush2.msra.mxu0 0.0
    %5308 = vmatprep.subr.mxu0 0.0
    %5309 = vmatpush2.msra.mxu0 0.0
    %5310 = vmatprep.subr.mxu0 0.0
    %5311 = vmatpush2.msra.mxu0 0.0
    %5312 = vmatprep.subr.mxu0 0.0
    %5313 = vmatpush2.msra.mxu0 0.0
    %5314 = vmatprep.subr.mxu0 0.0
    %5315 = vmatpush2.msra.mxu0 0.0
    %5316 = vmatprep.subr.mxu0 0.0
    %5317 = vmatpush2.msra.mxu0 0.0
    %5318 = vmatprep.subr.mxu0 0.0
    %5319 = vmatpush2.msra.mxu0 0.0
    %5320 = vmatprep.subr.mxu0 0.0
    %5321 = vmatpush2.msra.mxu0 0.0
    %5322 = vmatprep.subr.mxu0 0.0
    %5323 = vmatpush2.msra.mxu0 0.0
    %5324 = vmatprep.subr.mxu0 0.0
    %5325 = vmatpush2.msra.mxu0 0.0
    %5326 = vmatprep.subr.mxu0 0.0
    %5327 = vmatpush2.msra.mxu0 0.0
    %5328 = vmatprep.subr.mxu0 0.0
    %5329 = vmatpush2.msra.mxu0 0.0
    %5330 = vmatprep.subr.mxu0 0.0
    %5331 = vmatpush2.msra.mxu0 0.0
    %5332 = vmatprep.mubr.f32.mxu0 0.0
    %5333 = vmatmul.mubr.f32.gmra.mxu0 %v4286
    %v5334 = vpop.f32.mrf.mxu0
    %v5335 = vadd.f32 0.0, %v5334
    %v5336 = vpop.f32.mrf.mxu0
    %5337 = vdwg.mxu0
    %5338 = vmatprep.subr.mxu0 0.0
    %5339 = vmatpush1.msra.mxu0 0.0
    %5340 = vmatprep.subr.mxu0 0.0
    %5341 = vmatpush1.msra.mxu0 0.0
    %5342 = vmatprep.subr.mxu0 0.0
    %5343 = vmatpush1.msra.mxu0 0.0
    %5344 = vmatprep.subr.mxu0 0.0
    %5345 = vmatpush1.msra.mxu0 0.0
    %5346 = vmatprep.subr.mxu0 0.0
    %5347 = vmatpush1.msra.mxu0 0.0
    %5348 = vmatprep.subr.mxu0 0.0
    %5349 = vmatpush1.msra.mxu0 0.0
    %5350 = vmatprep.subr.mxu0 0.0
    %5351 = vmatpush1.msra.mxu0 0.0
    %5352 = vmatprep.subr.mxu0 0.0
    %5353 = vmatpush1.msra.mxu0 0.0
    %5354 = vmatprep.subr.mxu0 0.0
    %5355 = vmatpush1.msra.mxu0 0.0
    %5356 = vmatprep.subr.mxu0 0.0
    %5357 = vmatpush1.msra.mxu0 0.0
    %5358 = vmatprep.subr.mxu0 0.0
    %5359 = vmatpush1.msra.mxu0 0.0
    %5360 = vmatprep.subr.mxu0 0.0
    %5361 = vmatpush1.msra.mxu0 0.0
    %5362 = vmatprep.subr.mxu0 0.0
    %5363 = vmatpush1.msra.mxu0 %v122
    %5364 = vmatprep.subr.mxu0 0.0
    %5365 = vmatpush1.msra.mxu0 %v121
    %5366 = vmatprep.subr.mxu0 0.0
    %5367 = vmatpush1.msra.mxu0 %v120
    %5368 = vmatprep.subr.mxu0 0.0
    %5369 = vmatpush1.msra.mxu0 %v119
    %5370 = vmatprep.subr.mxu0 0.0
    %5371 = vmatpush2.msra.mxu0 0.0
    %5372 = vmatprep.subr.mxu0 0.0
    %5373 = vmatpush2.msra.mxu0 0.0
    %5374 = vmatprep.subr.mxu0 0.0
    %5375 = vmatpush2.msra.mxu0 0.0
    %5376 = vmatprep.subr.mxu0 0.0
    %5377 = vmatpush2.msra.mxu0 0.0
    %5378 = vmatprep.subr.mxu0 0.0
    %5379 = vmatpush2.msra.mxu0 0.0
    %5380 = vmatprep.subr.mxu0 0.0
    %5381 = vmatpush2.msra.mxu0 0.0
    %5382 = vmatprep.subr.mxu0 0.0
    %5383 = vmatpush2.msra.mxu0 0.0
    %5384 = vmatprep.subr.mxu0 0.0
    %5385 = vmatpush2.msra.mxu0 0.0
    %5386 = vmatprep.subr.mxu0 0.0
    %5387 = vmatpush2.msra.mxu0 0.0
    %5388 = vmatprep.subr.mxu0 0.0
    %5389 = vmatpush2.msra.mxu0 0.0
    %5390 = vmatprep.subr.mxu0 0.0
    %5391 = vmatpush2.msra.mxu0 0.0
    %5392 = vmatprep.subr.mxu0 0.0
    %5393 = vmatpush2.msra.mxu0 0.0
    %5394 = vmatprep.subr.mxu0 0.0
    %5395 = vmatpush2.msra.mxu0 0.0
    %5396 = vmatprep.subr.mxu0 0.0
    %5397 = vmatpush2.msra.mxu0 0.0
    %5398 = vmatprep.subr.mxu0 0.0
    %5399 = vmatpush2.msra.mxu0 0.0
    %5400 = vmatprep.subr.mxu0 0.0
    %5401 = vmatpush2.msra.mxu0 0.0
    %5402 = vmatprep.mubr.f32.mxu0 0.0
    %5403 = vmatmul.mubr.f32.gmra.mxu0 %v4286
    %v5404 = vpop.f32.mrf.mxu0
    %v5405 = vadd.f32 0.0, %v5404
    %v5406 = vpop.f32.mrf.mxu0
    %5407 = vdwg.mxu0
    %s5408 = scalar_lea.vmem %s2, 64
    %v5409 = vld [vmem:[%s5408] sm:$0xff]
    %v5410 = vld [vmem:[%s5408 + $0x8] sm:$0xff]
    %v5411 = vld [vmem:[%s5408 + $0x10] sm:$0xff]
    %v5412 = vld [vmem:[%s5408 + $0x18] sm:$0xff]
    %v5413 = vld [vmem:[%s5408 + $0x20] sm:$0xff]
    %v5414 = vld [vmem:[%s5408 + $0x28] sm:$0xff]
    %v5415 = vld [vmem:[%s5408 + $0x30] sm:$0xff]
    %v5416 = vld [vmem:[%s5408 + $0x38] sm:$0xff]
    %v5418 = vsel %vm1836, %v3792, 0
    %v5421 = vsel %vm1836, %v4355, 0
    %5423 = vmatprep.subr.mxu0 0.0
    %5424 = vmatpush1.xpose.msra.mxu0 0.0
    %5425 = vmatprep.subr.mxu0 0.0
    %5426 = vmatpush1.xpose.msra.mxu0 0.0
    %5427 = vmatprep.subr.mxu0 0.0
    %5428 = vmatpush1.xpose.msra.mxu0 0.0
    %5429 = vmatprep.subr.mxu0 0.0
    %5430 = vmatpush1.xpose.msra.mxu0 0.0
    %5431 = vmatprep.subr.mxu0 0.0
    %5432 = vmatpush1.xpose.msra.mxu0 0.0
    %5433 = vmatprep.subr.mxu0 0.0
    %5434 = vmatpush1.xpose.msra.mxu0 0.0
    %5435 = vmatprep.subr.mxu0 0.0
    %5436 = vmatpush1.xpose.msra.mxu0 0.0
    %5437 = vmatprep.subr.mxu0 0.0
    %5438 = vmatpush1.xpose.msra.mxu0 0.0
    %5439 = vmatprep.subr.mxu0 0.0
    %5440 = vmatpush1.xpose.msra.mxu0 0.0
    %5441 = vmatprep.subr.mxu0 0.0
    %5442 = vmatpush1.xpose.msra.mxu0 0.0
    %5443 = vmatprep.subr.mxu0 0.0
    %5444 = vmatpush1.xpose.msra.mxu0 0.0
    %5445 = vmatprep.subr.mxu0 0.0
    %5446 = vmatpush1.xpose.msra.mxu0 0.0
    %5447 = vmatprep.subr.mxu0 0.0
    %5448 = vmatpush1.xpose.msra.mxu0 0.0
    %5449 = vmatprep.subr.mxu0 0.0
    %5450 = vmatpush1.xpose.msra.mxu0 0.0
    %5451 = vmatprep.subr.mxu0 0.0
    %5452 = vmatpush1.xpose.msra.mxu0 0.0
    %5453 = vmatprep.subr.mxu0 0.0
    %5454 = vmatpush1.xpose.msra.mxu0 %v5421
    %5455 = vmatprep.subr.mxu0 0.0
    %5456 = vmatpush2.xpose.msra.mxu0 0.0
    %5457 = vmatprep.subr.mxu0 0.0
    %5458 = vmatpush2.xpose.msra.mxu0 0.0
    %5459 = vmatprep.subr.mxu0 0.0
    %5460 = vmatpush2.xpose.msra.mxu0 0.0
    %5461 = vmatprep.subr.mxu0 0.0
    %5462 = vmatpush2.xpose.msra.mxu0 0.0
    %5463 = vmatprep.subr.mxu0 0.0
    %5464 = vmatpush2.xpose.msra.mxu0 0.0
    %5465 = vmatprep.subr.mxu0 0.0
    %5466 = vmatpush2.xpose.msra.mxu0 0.0
    %5467 = vmatprep.subr.mxu0 0.0
    %5468 = vmatpush2.xpose.msra.mxu0 0.0
    %5469 = vmatprep.subr.mxu0 0.0
    %5470 = vmatpush2.xpose.msra.mxu0 0.0
    %5471 = vmatprep.subr.mxu0 0.0
    %5472 = vmatpush2.xpose.msra.mxu0 0.0
    %5473 = vmatprep.subr.mxu0 0.0
    %5474 = vmatpush2.xpose.msra.mxu0 0.0
    %5475 = vmatprep.subr.mxu0 0.0
    %5476 = vmatpush2.xpose.msra.mxu0 0.0
    %5477 = vmatprep.subr.mxu0 0.0
    %5478 = vmatpush2.xpose.msra.mxu0 0.0
    %5479 = vmatprep.subr.mxu0 0.0
    %5480 = vmatpush2.xpose.msra.mxu0 0.0
    %5481 = vmatprep.subr.mxu0 0.0
    %5482 = vmatpush2.xpose.msra.mxu0 0.0
    %5483 = vmatprep.subr.mxu0 0.0
    %5484 = vmatpush2.xpose.msra.mxu0 0.0
    %5485 = vmatprep.subr.mxu0 0.0
    %5486 = vmatpush2.xpose.msra.mxu0 0.0
    %5487 = vmatprep.mubr.f32.mxu0 0.0
    %5488 = vmatmul.mubr.f32.gmra.mxu0 %v5418
    %v5489 = vpop.f32.mrf.mxu0
    %v5490 = vadd.f32 %v5409, %v5489
    %v5491 = vpop.f32.mrf.mxu0
    %5492 = vdwg.mxu0
    %v5494 = vsel %vm1836, %v3862, 0
    %v5497 = vsel %vm1836, %v4425, 0
    %5499 = vmatprep.subr.mxu0 0.0
    %5500 = vmatpush1.xpose.msra.mxu0 0.0
    %5501 = vmatprep.subr.mxu0 0.0
    %5502 = vmatpush1.xpose.msra.mxu0 0.0
    %5503 = vmatprep.subr.mxu0 0.0
    %5504 = vmatpush1.xpose.msra.mxu0 0.0
    %5505 = vmatprep.subr.mxu0 0.0
    %5506 = vmatpush1.xpose.msra.mxu0 0.0
    %5507 = vmatprep.subr.mxu0 0.0
    %5508 = vmatpush1.xpose.msra.mxu0 0.0
    %5509 = vmatprep.subr.mxu0 0.0
    %5510 = vmatpush1.xpose.msra.mxu0 0.0
    %5511 = vmatprep.subr.mxu0 0.0
    %5512 = vmatpush1.xpose.msra.mxu0 0.0
    %5513 = vmatprep.subr.mxu0 0.0
    %5514 = vmatpush1.xpose.msra.mxu0 0.0
    %5515 = vmatprep.subr.mxu0 0.0
    %5516 = vmatpush1.xpose.msra.mxu0 0.0
    %5517 = vmatprep.subr.mxu0 0.0
    %5518 = vmatpush1.xpose.msra.mxu0 0.0
    %5519 = vmatprep.subr.mxu0 0.0
    %5520 = vmatpush1.xpose.msra.mxu0 0.0
    %5521 = vmatprep.subr.mxu0 0.0
    %5522 = vmatpush1.xpose.msra.mxu0 0.0
    %5523 = vmatprep.subr.mxu0 0.0
    %5524 = vmatpush1.xpose.msra.mxu0 0.0
    %5525 = vmatprep.subr.mxu0 0.0
    %5526 = vmatpush1.xpose.msra.mxu0 0.0
    %5527 = vmatprep.subr.mxu0 0.0
    %5528 = vmatpush1.xpose.msra.mxu0 0.0
    %5529 = vmatprep.subr.mxu0 0.0
    %5530 = vmatpush1.xpose.msra.mxu0 %v5497
    %5531 = vmatprep.subr.mxu0 0.0
    %5532 = vmatpush2.xpose.msra.mxu0 0.0
    %5533 = vmatprep.subr.mxu0 0.0
    %5534 = vmatpush2.xpose.msra.mxu0 0.0
    %5535 = vmatprep.subr.mxu0 0.0
    %5536 = vmatpush2.xpose.msra.mxu0 0.0
    %5537 = vmatprep.subr.mxu0 0.0
    %5538 = vmatpush2.xpose.msra.mxu0 0.0
    %5539 = vmatprep.subr.mxu0 0.0
    %5540 = vmatpush2.xpose.msra.mxu0 0.0
    %5541 = vmatprep.subr.mxu0 0.0
    %5542 = vmatpush2.xpose.msra.mxu0 0.0
    %5543 = vmatprep.subr.mxu0 0.0
    %5544 = vmatpush2.xpose.msra.mxu0 0.0
    %5545 = vmatprep.subr.mxu0 0.0
    %5546 = vmatpush2.xpose.msra.mxu0 0.0
    %5547 = vmatprep.subr.mxu0 0.0
    %5548 = vmatpush2.xpose.msra.mxu0 0.0
    %5549 = vmatprep.subr.mxu0 0.0
    %5550 = vmatpush2.xpose.msra.mxu0 0.0
    %5551 = vmatprep.subr.mxu0 0.0
    %5552 = vmatpush2.xpose.msra.mxu0 0.0
    %5553 = vmatprep.subr.mxu0 0.0
    %5554 = vmatpush2.xpose.msra.mxu0 0.0
    %5555 = vmatprep.subr.mxu0 0.0
    %5556 = vmatpush2.xpose.msra.mxu0 0.0
    %5557 = vmatprep.subr.mxu0 0.0
    %5558 = vmatpush2.xpose.msra.mxu0 0.0
    %5559 = vmatprep.subr.mxu0 0.0
    %5560 = vmatpush2.xpose.msra.mxu0 0.0
    %5561 = vmatprep.subr.mxu0 0.0
    %5562 = vmatpush2.xpose.msra.mxu0 0.0
    %5563 = vmatprep.mubr.f32.mxu0 0.0
    %5564 = vmatmul.mubr.f32.gmra.mxu0 %v5494
    %v5565 = vpop.f32.mrf.mxu0
    %v5566 = vadd.f32 %v5410, %v5565
    %v5567 = vpop.f32.mrf.mxu0
    %5568 = vdwg.mxu0
    %v5570 = vsel %vm1836, %v3932, 0
    %v5573 = vsel %vm1836, %v4495, 0
    %5575 = vmatprep.subr.mxu0 0.0
    %5576 = vmatpush1.xpose.msra.mxu0 0.0
    %5577 = vmatprep.subr.mxu0 0.0
    %5578 = vmatpush1.xpose.msra.mxu0 0.0
    %5579 = vmatprep.subr.mxu0 0.0
    %5580 = vmatpush1.xpose.msra.mxu0 0.0
    %5581 = vmatprep.subr.mxu0 0.0
    %5582 = vmatpush1.xpose.msra.mxu0 0.0
    %5583 = vmatprep.subr.mxu0 0.0
    %5584 = vmatpush1.xpose.msra.mxu0 0.0
    %5585 = vmatprep.subr.mxu0 0.0
    %5586 = vmatpush1.xpose.msra.mxu0 0.0
    %5587 = vmatprep.subr.mxu0 0.0
    %5588 = vmatpush1.xpose.msra.mxu0 0.0
    %5589 = vmatprep.subr.mxu0 0.0
    %5590 = vmatpush1.xpose.msra.mxu0 0.0
    %5591 = vmatprep.subr.mxu0 0.0
    %5592 = vmatpush1.xpose.msra.mxu0 0.0
    %5593 = vmatprep.subr.mxu0 0.0
    %5594 = vmatpush1.xpose.msra.mxu0 0.0
    %5595 = vmatprep.subr.mxu0 0.0
    %5596 = vmatpush1.xpose.msra.mxu0 0.0
    %5597 = vmatprep.subr.mxu0 0.0
    %5598 = vmatpush1.xpose.msra.mxu0 0.0
    %5599 = vmatprep.subr.mxu0 0.0
    %5600 = vmatpush1.xpose.msra.mxu0 0.0
    %5601 = vmatprep.subr.mxu0 0.0
    %5602 = vmatpush1.xpose.msra.mxu0 0.0
    %5603 = vmatprep.subr.mxu0 0.0
    %5604 = vmatpush1.xpose.msra.mxu0 0.0
    %5605 = vmatprep.subr.mxu0 0.0
    %5606 = vmatpush1.xpose.msra.mxu0 %v5573
    %5607 = vmatprep.subr.mxu0 0.0
    %5608 = vmatpush2.xpose.msra.mxu0 0.0
    %5609 = vmatprep.subr.mxu0 0.0
    %5610 = vmatpush2.xpose.msra.mxu0 0.0
    %5611 = vmatprep.subr.mxu0 0.0
    %5612 = vmatpush2.xpose.msra.mxu0 0.0
    %5613 = vmatprep.subr.mxu0 0.0
    %5614 = vmatpush2.xpose.msra.mxu0 0.0
    %5615 = vmatprep.subr.mxu0 0.0
    %5616 = vmatpush2.xpose.msra.mxu0 0.0
    %5617 = vmatprep.subr.mxu0 0.0
    %5618 = vmatpush2.xpose.msra.mxu0 0.0
    %5619 = vmatprep.subr.mxu0 0.0
    %5620 = vmatpush2.xpose.msra.mxu0 0.0
    %5621 = vmatprep.subr.mxu0 0.0
    %5622 = vmatpush2.xpose.msra.mxu0 0.0
    %5623 = vmatprep.subr.mxu0 0.0
    %5624 = vmatpush2.xpose.msra.mxu0 0.0
    %5625 = vmatprep.subr.mxu0 0.0
    %5626 = vmatpush2.xpose.msra.mxu0 0.0
    %5627 = vmatprep.subr.mxu0 0.0
    %5628 = vmatpush2.xpose.msra.mxu0 0.0
    %5629 = vmatprep.subr.mxu0 0.0
    %5630 = vmatpush2.xpose.msra.mxu0 0.0
    %5631 = vmatprep.subr.mxu0 0.0
    %5632 = vmatpush2.xpose.msra.mxu0 0.0
    %5633 = vmatprep.subr.mxu0 0.0
    %5634 = vmatpush2.xpose.msra.mxu0 0.0
    %5635 = vmatprep.subr.mxu0 0.0
    %5636 = vmatpush2.xpose.msra.mxu0 0.0
    %5637 = vmatprep.subr.mxu0 0.0
    %5638 = vmatpush2.xpose.msra.mxu0 0.0
    %5639 = vmatprep.mubr.f32.mxu0 0.0
    %5640 = vmatmul.mubr.f32.gmra.mxu0 %v5570
    %v5641 = vpop.f32.mrf.mxu0
    %v5642 = vadd.f32 %v5411, %v5641
    %v5643 = vpop.f32.mrf.mxu0
    %5644 = vdwg.mxu0
    %v5646 = vsel %vm1836, %v4002, 0
    %v5649 = vsel %vm1836, %v4565, 0
    %5651 = vmatprep.subr.mxu0 0.0
    %5652 = vmatpush1.xpose.msra.mxu0 0.0
    %5653 = vmatprep.subr.mxu0 0.0
    %5654 = vmatpush1.xpose.msra.mxu0 0.0
    %5655 = vmatprep.subr.mxu0 0.0
    %5656 = vmatpush1.xpose.msra.mxu0 0.0
    %5657 = vmatprep.subr.mxu0 0.0
    %5658 = vmatpush1.xpose.msra.mxu0 0.0
    %5659 = vmatprep.subr.mxu0 0.0
    %5660 = vmatpush1.xpose.msra.mxu0 0.0
    %5661 = vmatprep.subr.mxu0 0.0
    %5662 = vmatpush1.xpose.msra.mxu0 0.0
    %5663 = vmatprep.subr.mxu0 0.0
    %5664 = vmatpush1.xpose.msra.mxu0 0.0
    %5665 = vmatprep.subr.mxu0 0.0
    %5666 = vmatpush1.xpose.msra.mxu0 0.0
    %5667 = vmatprep.subr.mxu0 0.0
    %5668 = vmatpush1.xpose.msra.mxu0 0.0
    %5669 = vmatprep.subr.mxu0 0.0
    %5670 = vmatpush1.xpose.msra.mxu0 0.0
    %5671 = vmatprep.subr.mxu0 0.0
    %5672 = vmatpush1.xpose.msra.mxu0 0.0
    %5673 = vmatprep.subr.mxu0 0.0
    %5674 = vmatpush1.xpose.msra.mxu0 0.0
    %5675 = vmatprep.subr.mxu0 0.0
    %5676 = vmatpush1.xpose.msra.mxu0 0.0
    %5677 = vmatprep.subr.mxu0 0.0
    %5678 = vmatpush1.xpose.msra.mxu0 0.0
    %5679 = vmatprep.subr.mxu0 0.0
    %5680 = vmatpush1.xpose.msra.mxu0 0.0
    %5681 = vmatprep.subr.mxu0 0.0
    %5682 = vmatpush1.xpose.msra.mxu0 %v5649
    %5683 = vmatprep.subr.mxu0 0.0
    %5684 = vmatpush2.xpose.msra.mxu0 0.0
    %5685 = vmatprep.subr.mxu0 0.0
    %5686 = vmatpush2.xpose.msra.mxu0 0.0
    %5687 = vmatprep.subr.mxu0 0.0
    %5688 = vmatpush2.xpose.msra.mxu0 0.0
    %5689 = vmatprep.subr.mxu0 0.0
    %5690 = vmatpush2.xpose.msra.mxu0 0.0
    %5691 = vmatprep.subr.mxu0 0.0
    %5692 = vmatpush2.xpose.msra.mxu0 0.0
    %5693 = vmatprep.subr.mxu0 0.0
    %5694 = vmatpush2.xpose.msra.mxu0 0.0
    %5695 = vmatprep.subr.mxu0 0.0
    %5696 = vmatpush2.xpose.msra.mxu0 0.0
    %5697 = vmatprep.subr.mxu0 0.0
    %5698 = vmatpush2.xpose.msra.mxu0 0.0
    %5699 = vmatprep.subr.mxu0 0.0
    %5700 = vmatpush2.xpose.msra.mxu0 0.0
    %5701 = vmatprep.subr.mxu0 0.0
    %5702 = vmatpush2.xpose.msra.mxu0 0.0
    %5703 = vmatprep.subr.mxu0 0.0
    %5704 = vmatpush2.xpose.msra.mxu0 0.0
    %5705 = vmatprep.subr.mxu0 0.0
    %5706 = vmatpush2.xpose.msra.mxu0 0.0
    %5707 = vmatprep.subr.mxu0 0.0
    %5708 = vmatpush2.xpose.msra.mxu0 0.0
    %5709 = vmatprep.subr.mxu0 0.0
    %5710 = vmatpush2.xpose.msra.mxu0 0.0
    %5711 = vmatprep.subr.mxu0 0.0
    %5712 = vmatpush2.xpose.msra.mxu0 0.0
    %5713 = vmatprep.subr.mxu0 0.0
    %5714 = vmatpush2.xpose.msra.mxu0 0.0
    %5715 = vmatprep.mubr.f32.mxu0 0.0
    %5716 = vmatmul.mubr.f32.gmra.mxu0 %v5646
    %v5717 = vpop.f32.mrf.mxu0
    %v5718 = vadd.f32 %v5412, %v5717
    %v5719 = vpop.f32.mrf.mxu0
    %5720 = vdwg.mxu0
    %v5722 = vsel %vm1836, %v4072, 0
    %v5725 = vsel %vm1836, %v4635, 0
    %5727 = vmatprep.subr.mxu0 0.0
    %5728 = vmatpush1.xpose.msra.mxu0 0.0
    %5729 = vmatprep.subr.mxu0 0.0
    %5730 = vmatpush1.xpose.msra.mxu0 0.0
    %5731 = vmatprep.subr.mxu0 0.0
    %5732 = vmatpush1.xpose.msra.mxu0 0.0
    %5733 = vmatprep.subr.mxu0 0.0
    %5734 = vmatpush1.xpose.msra.mxu0 0.0
    %5735 = vmatprep.subr.mxu0 0.0
    %5736 = vmatpush1.xpose.msra.mxu0 0.0
    %5737 = vmatprep.subr.mxu0 0.0
    %5738 = vmatpush1.xpose.msra.mxu0 0.0
    %5739 = vmatprep.subr.mxu0 0.0
    %5740 = vmatpush1.xpose.msra.mxu0 0.0
    %5741 = vmatprep.subr.mxu0 0.0
    %5742 = vmatpush1.xpose.msra.mxu0 0.0
    %5743 = vmatprep.subr.mxu0 0.0
    %5744 = vmatpush1.xpose.msra.mxu0 0.0
    %5745 = vmatprep.subr.mxu0 0.0
    %5746 = vmatpush1.xpose.msra.mxu0 0.0
    %5747 = vmatprep.subr.mxu0 0.0
    %5748 = vmatpush1.xpose.msra.mxu0 0.0
    %5749 = vmatprep.subr.mxu0 0.0
    %5750 = vmatpush1.xpose.msra.mxu0 0.0
    %5751 = vmatprep.subr.mxu0 0.0
    %5752 = vmatpush1.xpose.msra.mxu0 0.0
    %5753 = vmatprep.subr.mxu0 0.0
    %5754 = vmatpush1.xpose.msra.mxu0 0.0
    %5755 = vmatprep.subr.mxu0 0.0
    %5756 = vmatpush1.xpose.msra.mxu0 0.0
    %5757 = vmatprep.subr.mxu0 0.0
    %5758 = vmatpush1.xpose.msra.mxu0 %v5725
    %5759 = vmatprep.subr.mxu0 0.0
    %5760 = vmatpush2.xpose.msra.mxu0 0.0
    %5761 = vmatprep.subr.mxu0 0.0
    %5762 = vmatpush2.xpose.msra.mxu0 0.0
    %5763 = vmatprep.subr.mxu0 0.0
    %5764 = vmatpush2.xpose.msra.mxu0 0.0
    %5765 = vmatprep.subr.mxu0 0.0
    %5766 = vmatpush2.xpose.msra.mxu0 0.0
    %5767 = vmatprep.subr.mxu0 0.0
    %5768 = vmatpush2.xpose.msra.mxu0 0.0
    %5769 = vmatprep.subr.mxu0 0.0
    %5770 = vmatpush2.xpose.msra.mxu0 0.0
    %5771 = vmatprep.subr.mxu0 0.0
    %5772 = vmatpush2.xpose.msra.mxu0 0.0
    %5773 = vmatprep.subr.mxu0 0.0
    %5774 = vmatpush2.xpose.msra.mxu0 0.0
    %5775 = vmatprep.subr.mxu0 0.0
    %5776 = vmatpush2.xpose.msra.mxu0 0.0
    %5777 = vmatprep.subr.mxu0 0.0
    %5778 = vmatpush2.xpose.msra.mxu0 0.0
    %5779 = vmatprep.subr.mxu0 0.0
    %5780 = vmatpush2.xpose.msra.mxu0 0.0
    %5781 = vmatprep.subr.mxu0 0.0
    %5782 = vmatpush2.xpose.msra.mxu0 0.0
    %5783 = vmatprep.subr.mxu0 0.0
    %5784 = vmatpush2.xpose.msra.mxu0 0.0
    %5785 = vmatprep.subr.mxu0 0.0
    %5786 = vmatpush2.xpose.msra.mxu0 0.0
    %5787 = vmatprep.subr.mxu0 0.0
    %5788 = vmatpush2.xpose.msra.mxu0 0.0
    %5789 = vmatprep.subr.mxu0 0.0
    %5790 = vmatpush2.xpose.msra.mxu0 0.0
    %5791 = vmatprep.mubr.f32.mxu0 0.0
    %5792 = vmatmul.mubr.f32.gmra.mxu0 %v5722
    %v5793 = vpop.f32.mrf.mxu0
    %v5794 = vadd.f32 %v5413, %v5793
    %v5795 = vpop.f32.mrf.mxu0
    %5796 = vdwg.mxu0
    %v5798 = vsel %vm1836, %v4142, 0
    %v5801 = vsel %vm1836, %v4705, 0
    %5803 = vmatprep.subr.mxu0 0.0
    %5804 = vmatpush1.xpose.msra.mxu0 0.0
    %5805 = vmatprep.subr.mxu0 0.0
    %5806 = vmatpush1.xpose.msra.mxu0 0.0
    %5807 = vmatprep.subr.mxu0 0.0
    %5808 = vmatpush1.xpose.msra.mxu0 0.0
    %5809 = vmatprep.subr.mxu0 0.0
    %5810 = vmatpush1.xpose.msra.mxu0 0.0
    %5811 = vmatprep.subr.mxu0 0.0
    %5812 = vmatpush1.xpose.msra.mxu0 0.0
    %5813 = vmatprep.subr.mxu0 0.0
    %5814 = vmatpush1.xpose.msra.mxu0 0.0
    %5815 = vmatprep.subr.mxu0 0.0
    %5816 = vmatpush1.xpose.msra.mxu0 0.0
    %5817 = vmatprep.subr.mxu0 0.0
    %5818 = vmatpush1.xpose.msra.mxu0 0.0
    %5819 = vmatprep.subr.mxu0 0.0
    %5820 = vmatpush1.xpose.msra.mxu0 0.0
    %5821 = vmatprep.subr.mxu0 0.0
    %5822 = vmatpush1.xpose.msra.mxu0 0.0
    %5823 = vmatprep.subr.mxu0 0.0
    %5824 = vmatpush1.xpose.msra.mxu0 0.0
    %5825 = vmatprep.subr.mxu0 0.0
    %5826 = vmatpush1.xpose.msra.mxu0 0.0
    %5827 = vmatprep.subr.mxu0 0.0
    %5828 = vmatpush1.xpose.msra.mxu0 0.0
    %5829 = vmatprep.subr.mxu0 0.0
    %5830 = vmatpush1.xpose.msra.mxu0 0.0
    %5831 = vmatprep.subr.mxu0 0.0
    %5832 = vmatpush1.xpose.msra.mxu0 0.0
    %5833 = vmatprep.subr.mxu0 0.0
    %5834 = vmatpush1.xpose.msra.mxu0 %v5801
    %5835 = vmatprep.subr.mxu0 0.0
    %5836 = vmatpush2.xpose.msra.mxu0 0.0
    %5837 = vmatprep.subr.mxu0 0.0
    %5838 = vmatpush2.xpose.msra.mxu0 0.0
    %5839 = vmatprep.subr.mxu0 0.0
    %5840 = vmatpush2.xpose.msra.mxu0 0.0
    %5841 = vmatprep.subr.mxu0 0.0
    %5842 = vmatpush2.xpose.msra.mxu0 0.0
    %5843 = vmatprep.subr.mxu0 0.0
    %5844 = vmatpush2.xpose.msra.mxu0 0.0
    %5845 = vmatprep.subr.mxu0 0.0
    %5846 = vmatpush2.xpose.msra.mxu0 0.0
    %5847 = vmatprep.subr.mxu0 0.0
    %5848 = vmatpush2.xpose.msra.mxu0 0.0
    %5849 = vmatprep.subr.mxu0 0.0
    %5850 = vmatpush2.xpose.msra.mxu0 0.0
    %5851 = vmatprep.subr.mxu0 0.0
    %5852 = vmatpush2.xpose.msra.mxu0 0.0
    %5853 = vmatprep.subr.mxu0 0.0
    %5854 = vmatpush2.xpose.msra.mxu0 0.0
    %5855 = vmatprep.subr.mxu0 0.0
    %5856 = vmatpush2.xpose.msra.mxu0 0.0
    %5857 = vmatprep.subr.mxu0 0.0
    %5858 = vmatpush2.xpose.msra.mxu0 0.0
    %5859 = vmatprep.subr.mxu0 0.0
    %5860 = vmatpush2.xpose.msra.mxu0 0.0
    %5861 = vmatprep.subr.mxu0 0.0
    %5862 = vmatpush2.xpose.msra.mxu0 0.0
    %5863 = vmatprep.subr.mxu0 0.0
    %5864 = vmatpush2.xpose.msra.mxu0 0.0
    %5865 = vmatprep.subr.mxu0 0.0
    %5866 = vmatpush2.xpose.msra.mxu0 0.0
    %5867 = vmatprep.mubr.f32.mxu0 0.0
    %5868 = vmatmul.mubr.f32.gmra.mxu0 %v5798
    %v5869 = vpop.f32.mrf.mxu0
    %v5870 = vadd.f32 %v5414, %v5869
    %v5871 = vpop.f32.mrf.mxu0
    %5872 = vdwg.mxu0
    %v5874 = vsel %vm1836, %v4212, 0
    %v5877 = vsel %vm1836, %v4775, 0
    %5879 = vmatprep.subr.mxu0 0.0
    %5880 = vmatpush1.xpose.msra.mxu0 0.0
    %5881 = vmatprep.subr.mxu0 0.0
    %5882 = vmatpush1.xpose.msra.mxu0 0.0
    %5883 = vmatprep.subr.mxu0 0.0
    %5884 = vmatpush1.xpose.msra.mxu0 0.0
    %5885 = vmatprep.subr.mxu0 0.0
    %5886 = vmatpush1.xpose.msra.mxu0 0.0
    %5887 = vmatprep.subr.mxu0 0.0
    %5888 = vmatpush1.xpose.msra.mxu0 0.0
    %5889 = vmatprep.subr.mxu0 0.0
    %5890 = vmatpush1.xpose.msra.mxu0 0.0
    %5891 = vmatprep.subr.mxu0 0.0
    %5892 = vmatpush1.xpose.msra.mxu0 0.0
    %5893 = vmatprep.subr.mxu0 0.0
    %5894 = vmatpush1.xpose.msra.mxu0 0.0
    %5895 = vmatprep.subr.mxu0 0.0
    %5896 = vmatpush1.xpose.msra.mxu0 0.0
    %5897 = vmatprep.subr.mxu0 0.0
    %5898 = vmatpush1.xpose.msra.mxu0 0.0
    %5899 = vmatprep.subr.mxu0 0.0
    %5900 = vmatpush1.xpose.msra.mxu0 0.0
    %5901 = vmatprep.subr.mxu0 0.0
    %5902 = vmatpush1.xpose.msra.mxu0 0.0
    %5903 = vmatprep.subr.mxu0 0.0
    %5904 = vmatpush1.xpose.msra.mxu0 0.0
    %5905 = vmatprep.subr.mxu0 0.0
    %5906 = vmatpush1.xpose.msra.mxu0 0.0
    %5907 = vmatprep.subr.mxu0 0.0
    %5908 = vmatpush1.xpose.msra.mxu0 0.0
    %5909 = vmatprep.subr.mxu0 0.0
    %5910 = vmatpush1.xpose.msra.mxu0 %v5877
    %5911 = vmatprep.subr.mxu0 0.0
    %5912 = vmatpush2.xpose.msra.mxu0 0.0
    %5913 = vmatprep.subr.mxu0 0.0
    %5914 = vmatpush2.xpose.msra.mxu0 0.0
    %5915 = vmatprep.subr.mxu0 0.0
    %5916 = vmatpush2.xpose.msra.mxu0 0.0
    %5917 = vmatprep.subr.mxu0 0.0
    %5918 = vmatpush2.xpose.msra.mxu0 0.0
    %5919 = vmatprep.subr.mxu0 0.0
    %5920 = vmatpush2.xpose.msra.mxu0 0.0
    %5921 = vmatprep.subr.mxu0 0.0
    %5922 = vmatpush2.xpose.msra.mxu0 0.0
    %5923 = vmatprep.subr.mxu0 0.0
    %5924 = vmatpush2.xpose.msra.mxu0 0.0
    %5925 = vmatprep.subr.mxu0 0.0
    %5926 = vmatpush2.xpose.msra.mxu0 0.0
    %5927 = vmatprep.subr.mxu0 0.0
    %5928 = vmatpush2.xpose.msra.mxu0 0.0
    %5929 = vmatprep.subr.mxu0 0.0
    %5930 = vmatpush2.xpose.msra.mxu0 0.0
    %5931 = vmatprep.subr.mxu0 0.0
    %5932 = vmatpush2.xpose.msra.mxu0 0.0
    %5933 = vmatprep.subr.mxu0 0.0
    %5934 = vmatpush2.xpose.msra.mxu0 0.0
    %5935 = vmatprep.subr.mxu0 0.0
    %5936 = vmatpush2.xpose.msra.mxu0 0.0
    %5937 = vmatprep.subr.mxu0 0.0
    %5938 = vmatpush2.xpose.msra.mxu0 0.0
    %5939 = vmatprep.subr.mxu0 0.0
    %5940 = vmatpush2.xpose.msra.mxu0 0.0
    %5941 = vmatprep.subr.mxu0 0.0
    %5942 = vmatpush2.xpose.msra.mxu0 0.0
    %5943 = vmatprep.mubr.f32.mxu0 0.0
    %5944 = vmatmul.mubr.f32.gmra.mxu0 %v5874
    %v5945 = vpop.f32.mrf.mxu0
    %v5946 = vadd.f32 %v5415, %v5945
    %v5947 = vpop.f32.mrf.mxu0
    %5948 = vdwg.mxu0
    %v5950 = vsel %vm1836, %v4282, 0
    %v5953 = vsel %vm1836, %v4845, 0
    %5955 = vmatprep.subr.mxu0 0.0
    %5956 = vmatpush1.xpose.msra.mxu0 0.0
    %5957 = vmatprep.subr.mxu0 0.0
    %5958 = vmatpush1.xpose.msra.mxu0 0.0
    %5959 = vmatprep.subr.mxu0 0.0
    %5960 = vmatpush1.xpose.msra.mxu0 0.0
    %5961 = vmatprep.subr.mxu0 0.0
    %5962 = vmatpush1.xpose.msra.mxu0 0.0
    %5963 = vmatprep.subr.mxu0 0.0
    %5964 = vmatpush1.xpose.msra.mxu0 0.0
    %5965 = vmatprep.subr.mxu0 0.0
    %5966 = vmatpush1.xpose.msra.mxu0 0.0
    %5967 = vmatprep.subr.mxu0 0.0
    %5968 = vmatpush1.xpose.msra.mxu0 0.0
    %5969 = vmatprep.subr.mxu0 0.0
    %5970 = vmatpush1.xpose.msra.mxu0 0.0
    %5971 = vmatprep.subr.mxu0 0.0
    %5972 = vmatpush1.xpose.msra.mxu0 0.0
    %5973 = vmatprep.subr.mxu0 0.0
    %5974 = vmatpush1.xpose.msra.mxu0 0.0
    %5975 = vmatprep.subr.mxu0 0.0
    %5976 = vmatpush1.xpose.msra.mxu0 0.0
    %5977 = vmatprep.subr.mxu0 0.0
    %5978 = vmatpush1.xpose.msra.mxu0 0.0
    %5979 = vmatprep.subr.mxu0 0.0
    %5980 = vmatpush1.xpose.msra.mxu0 0.0
    %5981 = vmatprep.subr.mxu0 0.0
    %5982 = vmatpush1.xpose.msra.mxu0 0.0
    %5983 = vmatprep.subr.mxu0 0.0
    %5984 = vmatpush1.xpose.msra.mxu0 0.0
    %5985 = vmatprep.subr.mxu0 0.0
    %5986 = vmatpush1.xpose.msra.mxu0 %v5953
    %5987 = vmatprep.subr.mxu0 0.0
    %5988 = vmatpush2.xpose.msra.mxu0 0.0
    %5989 = vmatprep.subr.mxu0 0.0
    %5990 = vmatpush2.xpose.msra.mxu0 0.0
    %5991 = vmatprep.subr.mxu0 0.0
    %5992 = vmatpush2.xpose.msra.mxu0 0.0
    %5993 = vmatprep.subr.mxu0 0.0
    %5994 = vmatpush2.xpose.msra.mxu0 0.0
    %5995 = vmatprep.subr.mxu0 0.0
    %5996 = vmatpush2.xpose.msra.mxu0 0.0
    %5997 = vmatprep.subr.mxu0 0.0
    %5998 = vmatpush2.xpose.msra.mxu0 0.0
    %5999 = vmatprep.subr.mxu0 0.0
    %6000 = vmatpush2.xpose.msra.mxu0 0.0
    %6001 = vmatprep.subr.mxu0 0.0
    %6002 = vmatpush2.xpose.msra.mxu0 0.0
    %6003 = vmatprep.subr.mxu0 0.0
    %6004 = vmatpush2.xpose.msra.mxu0 0.0
    %6005 = vmatprep.subr.mxu0 0.0
    %6006 = vmatpush2.xpose.msra.mxu0 0.0
    %6007 = vmatprep.subr.mxu0 0.0
    %6008 = vmatpush2.xpose.msra.mxu0 0.0
    %6009 = vmatprep.subr.mxu0 0.0
    %6010 = vmatpush2.xpose.msra.mxu0 0.0
    %6011 = vmatprep.subr.mxu0 0.0
    %6012 = vmatpush2.xpose.msra.mxu0 0.0
    %6013 = vmatprep.subr.mxu0 0.0
    %6014 = vmatpush2.xpose.msra.mxu0 0.0
    %6015 = vmatprep.subr.mxu0 0.0
    %6016 = vmatpush2.xpose.msra.mxu0 0.0
    %6017 = vmatprep.subr.mxu0 0.0
    %6018 = vmatpush2.xpose.msra.mxu0 0.0
    %6019 = vmatprep.mubr.f32.mxu0 0.0
    %6020 = vmatmul.mubr.f32.gmra.mxu0 %v5950
    %v6021 = vpop.f32.mrf.mxu0
    %v6022 = vadd.f32 %v5416, %v6021
    %v6023 = vpop.f32.mrf.mxu0
    %6024 = vdwg.mxu0
    %v6025 = vsel %vm2445, %v5490, -inf
    %6026 = vmax.xlane.f32.xlu0 %v6025
    %v6027 = vpop.xlane.xlu0 %6026
    %v6028 = vsel %vm2445, %v5566, -inf
    %6029 = vmax.xlane.f32.xlu0 %v6028
    %v6030 = vpop.xlane.xlu0 %6029
    %v6031 = vsel %vm2445, %v5642, -inf
    %6032 = vmax.xlane.f32.xlu0 %v6031
    %v6033 = vpop.xlane.xlu0 %6032
    %v6034 = vsel %vm2445, %v5718, -inf
    %6035 = vmax.xlane.f32.xlu0 %v6034
    %v6036 = vpop.xlane.xlu0 %6035
    %v6037 = vsel %vm2445, %v5794, -inf
    %6038 = vmax.xlane.f32.xlu0 %v6037
    %v6039 = vpop.xlane.xlu0 %6038
    %v6040 = vsel %vm2445, %v5870, -inf
    %6041 = vmax.xlane.f32.xlu0 %v6040
    %v6042 = vpop.xlane.xlu0 %6041
    %v6043 = vsel %vm2445, %v5946, -inf
    %6044 = vmax.xlane.f32.xlu0 %v6043
    %v6045 = vpop.xlane.xlu0 %6044
    %v6046 = vsel %vm2445, %v6022, -inf
    %6047 = vmax.xlane.f32.xlu0 %v6046
    %v6048 = vpop.xlane.xlu0 %6047
    %v6049 = vsub.f32 %v5490, %v6027
    %v6050 = vsub.f32 %v5566, %v6030
    %v6051 = vsub.f32 %v5642, %v6033
    %v6052 = vsub.f32 %v5718, %v6036
    %v6053 = vsub.f32 %v5794, %v6039
    %v6054 = vsub.f32 %v5870, %v6042
    %v6055 = vsub.f32 %v5946, %v6045
    %v6056 = vsub.f32 %v6022, %v6048
    %v6057 = vmul.f32 %v6049, 1.442695
    %v6058 = vpow.pop %v6057
    %v6059 = vmul.f32 %v6050, 1.442695
    %v6060 = vpow.pop %v6059
    %v6061 = vmul.f32 %v6051, 1.442695
    %v6062 = vpow.pop %v6061
    %v6063 = vmul.f32 %v6052, 1.442695
    %v6064 = vpow.pop %v6063
    %v6065 = vmul.f32 %v6053, 1.442695
    %v6066 = vpow.pop %v6065
    %v6067 = vmul.f32 %v6054, 1.442695
    %v6068 = vpow.pop %v6067
    %v6069 = vmul.f32 %v6055, 1.442695
    %v6070 = vpow.pop %v6069
    %v6071 = vmul.f32 %v6056, 1.442695
    %v6072 = vpow.pop %v6071
    %v6073 = vsel %vm2445, %v6058, 0.0
    %6074 = vadd.xlane.f32.xlu0 %v6073
    %v6075 = vpop.xlane.xlu0 %6074
    %v6076 = vsel %vm2445, %v6060, 0.0
    %6077 = vadd.xlane.f32.xlu0 %v6076
    %v6078 = vpop.xlane.xlu0 %6077
    %v6079 = vsel %vm2445, %v6062, 0.0
    %6080 = vadd.xlane.f32.xlu0 %v6079
    %v6081 = vpop.xlane.xlu0 %6080
    %v6082 = vsel %vm2445, %v6064, 0.0
    %6083 = vadd.xlane.f32.xlu0 %v6082
    %v6084 = vpop.xlane.xlu0 %6083
    %v6085 = vsel %vm2445, %v6066, 0.0
    %6086 = vadd.xlane.f32.xlu0 %v6085
    %v6087 = vpop.xlane.xlu0 %6086
    %v6088 = vsel %vm2445, %v6068, 0.0
    %6089 = vadd.xlane.f32.xlu0 %v6088
    %v6090 = vpop.xlane.xlu0 %6089
    %v6091 = vsel %vm2445, %v6070, 0.0
    %6092 = vadd.xlane.f32.xlu0 %v6091
    %v6093 = vpop.xlane.xlu0 %6092
    %v6094 = vsel %vm2445, %v6072, 0.0
    %6095 = vadd.xlane.f32.xlu0 %v6094
    %v6096 = vpop.xlane.xlu0 %6095
    %v6097 = vrcp.pop %v6075
    %v6098 = vmul.f32 %v6058, %v6097
    %v6099 = vrcp.pop %v6078
    %v6100 = vmul.f32 %v6060, %v6099
    %v6101 = vrcp.pop %v6081
    %v6102 = vmul.f32 %v6062, %v6101
    %v6103 = vrcp.pop %v6084
    %v6104 = vmul.f32 %v6064, %v6103
    %v6105 = vrcp.pop %v6087
    %v6106 = vmul.f32 %v6066, %v6105
    %v6107 = vrcp.pop %v6090
    %v6108 = vmul.f32 %v6068, %v6107
    %v6109 = vrcp.pop %v6093
    %v6110 = vmul.f32 %v6070, %v6109
    %v6111 = vrcp.pop %v6096
    %v6112 = vmul.f32 %v6072, %v6111
    %v6114 = vsel %vm2445, %v6098, 0
    %6116 = vmatprep.subr.mxu0 0.0
    %6117 = vmatpush1.msra.mxu0 0.0
    %6118 = vmatprep.subr.mxu0 0.0
    %6119 = vmatpush1.msra.mxu0 0.0
    %6120 = vmatprep.subr.mxu0 0.0
    %6121 = vmatpush1.msra.mxu0 0.0
    %6122 = vmatprep.subr.mxu0 0.0
    %6123 = vmatpush1.msra.mxu0 0.0
    %6124 = vmatprep.subr.mxu0 0.0
    %6125 = vmatpush1.msra.mxu0 0.0
    %6126 = vmatprep.subr.mxu0 0.0
    %6127 = vmatpush1.msra.mxu0 0.0
    %6128 = vmatprep.subr.mxu0 0.0
    %6129 = vmatpush1.msra.mxu0 0.0
    %6130 = vmatprep.subr.mxu0 0.0
    %6131 = vmatpush1.msra.mxu0 0.0
    %6132 = vmatprep.subr.mxu0 0.0
    %6133 = vmatpush1.msra.mxu0 0.0
    %6134 = vmatprep.subr.mxu0 0.0
    %6135 = vmatpush1.msra.mxu0 0.0
    %6136 = vmatprep.subr.mxu0 0.0
    %6137 = vmatpush1.msra.mxu0 0.0
    %6138 = vmatprep.subr.mxu0 0.0
    %6139 = vmatpush1.msra.mxu0 0.0
    %6140 = vmatprep.subr.mxu0 0.0
    %6141 = vmatpush1.msra.mxu0 0.0
    %6142 = vmatprep.subr.mxu0 0.0
    %6143 = vmatpush1.msra.mxu0 0.0
    %6144 = vmatprep.subr.mxu0 0.0
    %6145 = vmatpush1.msra.mxu0 0.0
    %6146 = vmatprep.subr.mxu0 0.0
    %6147 = vmatpush1.msra.mxu0 %v4915
    %6148 = vmatprep.subr.mxu0 0.0
    %6149 = vmatpush2.msra.mxu0 0.0
    %6150 = vmatprep.subr.mxu0 0.0
    %6151 = vmatpush2.msra.mxu0 0.0
    %6152 = vmatprep.subr.mxu0 0.0
    %6153 = vmatpush2.msra.mxu0 0.0
    %6154 = vmatprep.subr.mxu0 0.0
    %6155 = vmatpush2.msra.mxu0 0.0
    %6156 = vmatprep.subr.mxu0 0.0
    %6157 = vmatpush2.msra.mxu0 0.0
    %6158 = vmatprep.subr.mxu0 0.0
    %6159 = vmatpush2.msra.mxu0 0.0
    %6160 = vmatprep.subr.mxu0 0.0
    %6161 = vmatpush2.msra.mxu0 0.0
    %6162 = vmatprep.subr.mxu0 0.0
    %6163 = vmatpush2.msra.mxu0 0.0
    %6164 = vmatprep.subr.mxu0 0.0
    %6165 = vmatpush2.msra.mxu0 0.0
    %6166 = vmatprep.subr.mxu0 0.0
    %6167 = vmatpush2.msra.mxu0 0.0
    %6168 = vmatprep.subr.mxu0 0.0
    %6169 = vmatpush2.msra.mxu0 0.0
    %6170 = vmatprep.subr.mxu0 0.0
    %6171 = vmatpush2.msra.mxu0 0.0
    %6172 = vmatprep.subr.mxu0 0.0
    %6173 = vmatpush2.msra.mxu0 0.0
    %6174 = vmatprep.subr.mxu0 0.0
    %6175 = vmatpush2.msra.mxu0 0.0
    %6176 = vmatprep.subr.mxu0 0.0
    %6177 = vmatpush2.msra.mxu0 0.0
    %6178 = vmatprep.subr.mxu0 0.0
    %6179 = vmatpush2.msra.mxu0 0.0
    %6180 = vmatprep.mubr.f32.mxu0 0.0
    %6181 = vmatmul.mubr.f32.gmra.mxu0 %v6114
    %v6182 = vpop.f32.mrf.mxu0
    %v6183 = vadd.f32 0.0, %v6182
    %v6184 = vpop.f32.mrf.mxu0
    %6185 = vdwg.mxu0
    %v6187 = vsel %vm2445, %v6100, 0
    %6189 = vmatprep.subr.mxu0 0.0
    %6190 = vmatpush1.msra.mxu0 0.0
    %6191 = vmatprep.subr.mxu0 0.0
    %6192 = vmatpush1.msra.mxu0 0.0
    %6193 = vmatprep.subr.mxu0 0.0
    %6194 = vmatpush1.msra.mxu0 0.0
    %6195 = vmatprep.subr.mxu0 0.0
    %6196 = vmatpush1.msra.mxu0 0.0
    %6197 = vmatprep.subr.mxu0 0.0
    %6198 = vmatpush1.msra.mxu0 0.0
    %6199 = vmatprep.subr.mxu0 0.0
    %6200 = vmatpush1.msra.mxu0 0.0
    %6201 = vmatprep.subr.mxu0 0.0
    %6202 = vmatpush1.msra.mxu0 0.0
    %6203 = vmatprep.subr.mxu0 0.0
    %6204 = vmatpush1.msra.mxu0 0.0
    %6205 = vmatprep.subr.mxu0 0.0
    %6206 = vmatpush1.msra.mxu0 0.0
    %6207 = vmatprep.subr.mxu0 0.0
    %6208 = vmatpush1.msra.mxu0 0.0
    %6209 = vmatprep.subr.mxu0 0.0
    %6210 = vmatpush1.msra.mxu0 0.0
    %6211 = vmatprep.subr.mxu0 0.0
    %6212 = vmatpush1.msra.mxu0 0.0
    %6213 = vmatprep.subr.mxu0 0.0
    %6214 = vmatpush1.msra.mxu0 0.0
    %6215 = vmatprep.subr.mxu0 0.0
    %6216 = vmatpush1.msra.mxu0 0.0
    %6217 = vmatprep.subr.mxu0 0.0
    %6218 = vmatpush1.msra.mxu0 0.0
    %6219 = vmatprep.subr.mxu0 0.0
    %6220 = vmatpush1.msra.mxu0 %v4985
    %6221 = vmatprep.subr.mxu0 0.0
    %6222 = vmatpush2.msra.mxu0 0.0
    %6223 = vmatprep.subr.mxu0 0.0
    %6224 = vmatpush2.msra.mxu0 0.0
    %6225 = vmatprep.subr.mxu0 0.0
    %6226 = vmatpush2.msra.mxu0 0.0
    %6227 = vmatprep.subr.mxu0 0.0
    %6228 = vmatpush2.msra.mxu0 0.0
    %6229 = vmatprep.subr.mxu0 0.0
    %6230 = vmatpush2.msra.mxu0 0.0
    %6231 = vmatprep.subr.mxu0 0.0
    %6232 = vmatpush2.msra.mxu0 0.0
    %6233 = vmatprep.subr.mxu0 0.0
    %6234 = vmatpush2.msra.mxu0 0.0
    %6235 = vmatprep.subr.mxu0 0.0
    %6236 = vmatpush2.msra.mxu0 0.0
    %6237 = vmatprep.subr.mxu0 0.0
    %6238 = vmatpush2.msra.mxu0 0.0
    %6239 = vmatprep.subr.mxu0 0.0
    %6240 = vmatpush2.msra.mxu0 0.0
    %6241 = vmatprep.subr.mxu0 0.0
    %6242 = vmatpush2.msra.mxu0 0.0
    %6243 = vmatprep.subr.mxu0 0.0
    %6244 = vmatpush2.msra.mxu0 0.0
    %6245 = vmatprep.subr.mxu0 0.0
    %6246 = vmatpush2.msra.mxu0 0.0
    %6247 = vmatprep.subr.mxu0 0.0
    %6248 = vmatpush2.msra.mxu0 0.0
    %6249 = vmatprep.subr.mxu0 0.0
    %6250 = vmatpush2.msra.mxu0 0.0
    %6251 = vmatprep.subr.mxu0 0.0
    %6252 = vmatpush2.msra.mxu0 0.0
    %6253 = vmatprep.mubr.f32.mxu0 0.0
    %6254 = vmatmul.mubr.f32.gmra.mxu0 %v6187
    %v6255 = vpop.f32.mrf.mxu0
    %v6256 = vadd.f32 0.0, %v6255
    %v6257 = vpop.f32.mrf.mxu0
    %6258 = vdwg.mxu0
    %v6260 = vsel %vm2445, %v6102, 0
    %6262 = vmatprep.subr.mxu0 0.0
    %6263 = vmatpush1.msra.mxu0 0.0
    %6264 = vmatprep.subr.mxu0 0.0
    %6265 = vmatpush1.msra.mxu0 0.0
    %6266 = vmatprep.subr.mxu0 0.0
    %6267 = vmatpush1.msra.mxu0 0.0
    %6268 = vmatprep.subr.mxu0 0.0
    %6269 = vmatpush1.msra.mxu0 0.0
    %6270 = vmatprep.subr.mxu0 0.0
    %6271 = vmatpush1.msra.mxu0 0.0
    %6272 = vmatprep.subr.mxu0 0.0
    %6273 = vmatpush1.msra.mxu0 0.0
    %6274 = vmatprep.subr.mxu0 0.0
    %6275 = vmatpush1.msra.mxu0 0.0
    %6276 = vmatprep.subr.mxu0 0.0
    %6277 = vmatpush1.msra.mxu0 0.0
    %6278 = vmatprep.subr.mxu0 0.0
    %6279 = vmatpush1.msra.mxu0 0.0
    %6280 = vmatprep.subr.mxu0 0.0
    %6281 = vmatpush1.msra.mxu0 0.0
    %6282 = vmatprep.subr.mxu0 0.0
    %6283 = vmatpush1.msra.mxu0 0.0
    %6284 = vmatprep.subr.mxu0 0.0
    %6285 = vmatpush1.msra.mxu0 0.0
    %6286 = vmatprep.subr.mxu0 0.0
    %6287 = vmatpush1.msra.mxu0 0.0
    %6288 = vmatprep.subr.mxu0 0.0
    %6289 = vmatpush1.msra.mxu0 0.0
    %6290 = vmatprep.subr.mxu0 0.0
    %6291 = vmatpush1.msra.mxu0 0.0
    %6292 = vmatprep.subr.mxu0 0.0
    %6293 = vmatpush1.msra.mxu0 %v5055
    %6294 = vmatprep.subr.mxu0 0.0
    %6295 = vmatpush2.msra.mxu0 0.0
    %6296 = vmatprep.subr.mxu0 0.0
    %6297 = vmatpush2.msra.mxu0 0.0
    %6298 = vmatprep.subr.mxu0 0.0
    %6299 = vmatpush2.msra.mxu0 0.0
    %6300 = vmatprep.subr.mxu0 0.0
    %6301 = vmatpush2.msra.mxu0 0.0
    %6302 = vmatprep.subr.mxu0 0.0
    %6303 = vmatpush2.msra.mxu0 0.0
    %6304 = vmatprep.subr.mxu0 0.0
    %6305 = vmatpush2.msra.mxu0 0.0
    %6306 = vmatprep.subr.mxu0 0.0
    %6307 = vmatpush2.msra.mxu0 0.0
    %6308 = vmatprep.subr.mxu0 0.0
    %6309 = vmatpush2.msra.mxu0 0.0
    %6310 = vmatprep.subr.mxu0 0.0
    %6311 = vmatpush2.msra.mxu0 0.0
    %6312 = vmatprep.subr.mxu0 0.0
    %6313 = vmatpush2.msra.mxu0 0.0
    %6314 = vmatprep.subr.mxu0 0.0
    %6315 = vmatpush2.msra.mxu0 0.0
    %6316 = vmatprep.subr.mxu0 0.0
    %6317 = vmatpush2.msra.mxu0 0.0
    %6318 = vmatprep.subr.mxu0 0.0
    %6319 = vmatpush2.msra.mxu0 0.0
    %6320 = vmatprep.subr.mxu0 0.0
    %6321 = vmatpush2.msra.mxu0 0.0
    %6322 = vmatprep.subr.mxu0 0.0
    %6323 = vmatpush2.msra.mxu0 0.0
    %6324 = vmatprep.subr.mxu0 0.0
    %6325 = vmatpush2.msra.mxu0 0.0
    %6326 = vmatprep.mubr.f32.mxu0 0.0
    %6327 = vmatmul.mubr.f32.gmra.mxu0 %v6260
    %v6328 = vpop.f32.mrf.mxu0
    %v6329 = vadd.f32 0.0, %v6328
    %v6330 = vpop.f32.mrf.mxu0
    %6331 = vdwg.mxu0
    %v6333 = vsel %vm2445, %v6104, 0
    %6335 = vmatprep.subr.mxu0 0.0
    %6336 = vmatpush1.msra.mxu0 0.0
    %6337 = vmatprep.subr.mxu0 0.0
    %6338 = vmatpush1.msra.mxu0 0.0
    %6339 = vmatprep.subr.mxu0 0.0
    %6340 = vmatpush1.msra.mxu0 0.0
    %6341 = vmatprep.subr.mxu0 0.0
    %6342 = vmatpush1.msra.mxu0 0.0
    %6343 = vmatprep.subr.mxu0 0.0
    %6344 = vmatpush1.msra.mxu0 0.0
    %6345 = vmatprep.subr.mxu0 0.0
    %6346 = vmatpush1.msra.mxu0 0.0
    %6347 = vmatprep.subr.mxu0 0.0
    %6348 = vmatpush1.msra.mxu0 0.0
    %6349 = vmatprep.subr.mxu0 0.0
    %6350 = vmatpush1.msra.mxu0 0.0
    %6351 = vmatprep.subr.mxu0 0.0
    %6352 = vmatpush1.msra.mxu0 0.0
    %6353 = vmatprep.subr.mxu0 0.0
    %6354 = vmatpush1.msra.mxu0 0.0
    %6355 = vmatprep.subr.mxu0 0.0
    %6356 = vmatpush1.msra.mxu0 0.0
    %6357 = vmatprep.subr.mxu0 0.0
    %6358 = vmatpush1.msra.mxu0 0.0
    %6359 = vmatprep.subr.mxu0 0.0
    %6360 = vmatpush1.msra.mxu0 0.0
    %6361 = vmatprep.subr.mxu0 0.0
    %6362 = vmatpush1.msra.mxu0 0.0
    %6363 = vmatprep.subr.mxu0 0.0
    %6364 = vmatpush1.msra.mxu0 0.0
    %6365 = vmatprep.subr.mxu0 0.0
    %6366 = vmatpush1.msra.mxu0 %v5125
    %6367 = vmatprep.subr.mxu0 0.0
    %6368 = vmatpush2.msra.mxu0 0.0
    %6369 = vmatprep.subr.mxu0 0.0
    %6370 = vmatpush2.msra.mxu0 0.0
    %6371 = vmatprep.subr.mxu0 0.0
    %6372 = vmatpush2.msra.mxu0 0.0
    %6373 = vmatprep.subr.mxu0 0.0
    %6374 = vmatpush2.msra.mxu0 0.0
    %6375 = vmatprep.subr.mxu0 0.0
    %6376 = vmatpush2.msra.mxu0 0.0
    %6377 = vmatprep.subr.mxu0 0.0
    %6378 = vmatpush2.msra.mxu0 0.0
    %6379 = vmatprep.subr.mxu0 0.0
    %6380 = vmatpush2.msra.mxu0 0.0
    %6381 = vmatprep.subr.mxu0 0.0
    %6382 = vmatpush2.msra.mxu0 0.0
    %6383 = vmatprep.subr.mxu0 0.0
    %6384 = vmatpush2.msra.mxu0 0.0
    %6385 = vmatprep.subr.mxu0 0.0
    %6386 = vmatpush2.msra.mxu0 0.0
    %6387 = vmatprep.subr.mxu0 0.0
    %6388 = vmatpush2.msra.mxu0 0.0
    %6389 = vmatprep.subr.mxu0 0.0
    %6390 = vmatpush2.msra.mxu0 0.0
    %6391 = vmatprep.subr.mxu0 0.0
    %6392 = vmatpush2.msra.mxu0 0.0
    %6393 = vmatprep.subr.mxu0 0.0
    %6394 = vmatpush2.msra.mxu0 0.0
    %6395 = vmatprep.subr.mxu0 0.0
    %6396 = vmatpush2.msra.mxu0 0.0
    %6397 = vmatprep.subr.mxu0 0.0
    %6398 = vmatpush2.msra.mxu0 0.0
    %6399 = vmatprep.mubr.f32.mxu0 0.0
    %6400 = vmatmul.mubr.f32.gmra.mxu0 %v6333
    %v6401 = vpop.f32.mrf.mxu0
    %v6402 = vadd.f32 0.0, %v6401
    %v6403 = vpop.f32.mrf.mxu0
    %6404 = vdwg.mxu0
    %v6406 = vsel %vm2445, %v6106, 0
    %6408 = vmatprep.subr.mxu0 0.0
    %6409 = vmatpush1.msra.mxu0 0.0
    %6410 = vmatprep.subr.mxu0 0.0
    %6411 = vmatpush1.msra.mxu0 0.0
    %6412 = vmatprep.subr.mxu0 0.0
    %6413 = vmatpush1.msra.mxu0 0.0
    %6414 = vmatprep.subr.mxu0 0.0
    %6415 = vmatpush1.msra.mxu0 0.0
    %6416 = vmatprep.subr.mxu0 0.0
    %6417 = vmatpush1.msra.mxu0 0.0
    %6418 = vmatprep.subr.mxu0 0.0
    %6419 = vmatpush1.msra.mxu0 0.0
    %6420 = vmatprep.subr.mxu0 0.0
    %6421 = vmatpush1.msra.mxu0 0.0
    %6422 = vmatprep.subr.mxu0 0.0
    %6423 = vmatpush1.msra.mxu0 0.0
    %6424 = vmatprep.subr.mxu0 0.0
    %6425 = vmatpush1.msra.mxu0 0.0
    %6426 = vmatprep.subr.mxu0 0.0
    %6427 = vmatpush1.msra.mxu0 0.0
    %6428 = vmatprep.subr.mxu0 0.0
    %6429 = vmatpush1.msra.mxu0 0.0
    %6430 = vmatprep.subr.mxu0 0.0
    %6431 = vmatpush1.msra.mxu0 0.0
    %6432 = vmatprep.subr.mxu0 0.0
    %6433 = vmatpush1.msra.mxu0 0.0
    %6434 = vmatprep.subr.mxu0 0.0
    %6435 = vmatpush1.msra.mxu0 0.0
    %6436 = vmatprep.subr.mxu0 0.0
    %6437 = vmatpush1.msra.mxu0 0.0
    %6438 = vmatprep.subr.mxu0 0.0
    %6439 = vmatpush1.msra.mxu0 %v5195
    %6440 = vmatprep.subr.mxu0 0.0
    %6441 = vmatpush2.msra.mxu0 0.0
    %6442 = vmatprep.subr.mxu0 0.0
    %6443 = vmatpush2.msra.mxu0 0.0
    %6444 = vmatprep.subr.mxu0 0.0
    %6445 = vmatpush2.msra.mxu0 0.0
    %6446 = vmatprep.subr.mxu0 0.0
    %6447 = vmatpush2.msra.mxu0 0.0
    %6448 = vmatprep.subr.mxu0 0.0
    %6449 = vmatpush2.msra.mxu0 0.0
    %6450 = vmatprep.subr.mxu0 0.0
    %6451 = vmatpush2.msra.mxu0 0.0
    %6452 = vmatprep.subr.mxu0 0.0
    %6453 = vmatpush2.msra.mxu0 0.0
    %6454 = vmatprep.subr.mxu0 0.0
    %6455 = vmatpush2.msra.mxu0 0.0
    %6456 = vmatprep.subr.mxu0 0.0
    %6457 = vmatpush2.msra.mxu0 0.0
    %6458 = vmatprep.subr.mxu0 0.0
    %6459 = vmatpush2.msra.mxu0 0.0
    %6460 = vmatprep.subr.mxu0 0.0
    %6461 = vmatpush2.msra.mxu0 0.0
    %6462 = vmatprep.subr.mxu0 0.0
    %6463 = vmatpush2.msra.mxu0 0.0
    %6464 = vmatprep.subr.mxu0 0.0
    %6465 = vmatpush2.msra.mxu0 0.0
    %6466 = vmatprep.subr.mxu0 0.0
    %6467 = vmatpush2.msra.mxu0 0.0
    %6468 = vmatprep.subr.mxu0 0.0
    %6469 = vmatpush2.msra.mxu0 0.0
    %6470 = vmatprep.subr.mxu0 0.0
    %6471 = vmatpush2.msra.mxu0 0.0
    %6472 = vmatprep.mubr.f32.mxu0 0.0
    %6473 = vmatmul.mubr.f32.gmra.mxu0 %v6406
    %v6474 = vpop.f32.mrf.mxu0
    %v6475 = vadd.f32 0.0, %v6474
    %v6476 = vpop.f32.mrf.mxu0
    %6477 = vdwg.mxu0
    %v6479 = vsel %vm2445, %v6108, 0
    %6481 = vmatprep.subr.mxu0 0.0
    %6482 = vmatpush1.msra.mxu0 0.0
    %6483 = vmatprep.subr.mxu0 0.0
    %6484 = vmatpush1.msra.mxu0 0.0
    %6485 = vmatprep.subr.mxu0 0.0
    %6486 = vmatpush1.msra.mxu0 0.0
    %6487 = vmatprep.subr.mxu0 0.0
    %6488 = vmatpush1.msra.mxu0 0.0
    %6489 = vmatprep.subr.mxu0 0.0
    %6490 = vmatpush1.msra.mxu0 0.0
    %6491 = vmatprep.subr.mxu0 0.0
    %6492 = vmatpush1.msra.mxu0 0.0
    %6493 = vmatprep.subr.mxu0 0.0
    %6494 = vmatpush1.msra.mxu0 0.0
    %6495 = vmatprep.subr.mxu0 0.0
    %6496 = vmatpush1.msra.mxu0 0.0
    %6497 = vmatprep.subr.mxu0 0.0
    %6498 = vmatpush1.msra.mxu0 0.0
    %6499 = vmatprep.subr.mxu0 0.0
    %6500 = vmatpush1.msra.mxu0 0.0
    %6501 = vmatprep.subr.mxu0 0.0
    %6502 = vmatpush1.msra.mxu0 0.0
    %6503 = vmatprep.subr.mxu0 0.0
    %6504 = vmatpush1.msra.mxu0 0.0
    %6505 = vmatprep.subr.mxu0 0.0
    %6506 = vmatpush1.msra.mxu0 0.0
    %6507 = vmatprep.subr.mxu0 0.0
    %6508 = vmatpush1.msra.mxu0 0.0
    %6509 = vmatprep.subr.mxu0 0.0
    %6510 = vmatpush1.msra.mxu0 0.0
    %6511 = vmatprep.subr.mxu0 0.0
    %6512 = vmatpush1.msra.mxu0 %v5265
    %6513 = vmatprep.subr.mxu0 0.0
    %6514 = vmatpush2.msra.mxu0 0.0
    %6515 = vmatprep.subr.mxu0 0.0
    %6516 = vmatpush2.msra.mxu0 0.0
    %6517 = vmatprep.subr.mxu0 0.0
    %6518 = vmatpush2.msra.mxu0 0.0
    %6519 = vmatprep.subr.mxu0 0.0
    %6520 = vmatpush2.msra.mxu0 0.0
    %6521 = vmatprep.subr.mxu0 0.0
    %6522 = vmatpush2.msra.mxu0 0.0
    %6523 = vmatprep.subr.mxu0 0.0
    %6524 = vmatpush2.msra.mxu0 0.0
    %6525 = vmatprep.subr.mxu0 0.0
    %6526 = vmatpush2.msra.mxu0 0.0
    %6527 = vmatprep.subr.mxu0 0.0
    %6528 = vmatpush2.msra.mxu0 0.0
    %6529 = vmatprep.subr.mxu0 0.0
    %6530 = vmatpush2.msra.mxu0 0.0
    %6531 = vmatprep.subr.mxu0 0.0
    %6532 = vmatpush2.msra.mxu0 0.0
    %6533 = vmatprep.subr.mxu0 0.0
    %6534 = vmatpush2.msra.mxu0 0.0
    %6535 = vmatprep.subr.mxu0 0.0
    %6536 = vmatpush2.msra.mxu0 0.0
    %6537 = vmatprep.subr.mxu0 0.0
    %6538 = vmatpush2.msra.mxu0 0.0
    %6539 = vmatprep.subr.mxu0 0.0
    %6540 = vmatpush2.msra.mxu0 0.0
    %6541 = vmatprep.subr.mxu0 0.0
    %6542 = vmatpush2.msra.mxu0 0.0
    %6543 = vmatprep.subr.mxu0 0.0
    %6544 = vmatpush2.msra.mxu0 0.0
    %6545 = vmatprep.mubr.f32.mxu0 0.0
    %6546 = vmatmul.mubr.f32.gmra.mxu0 %v6479
    %v6547 = vpop.f32.mrf.mxu0
    %v6548 = vadd.f32 0.0, %v6547
    %v6549 = vpop.f32.mrf.mxu0
    %6550 = vdwg.mxu0
    %v6552 = vsel %vm2445, %v6110, 0
    %6554 = vmatprep.subr.mxu0 0.0
    %6555 = vmatpush1.msra.mxu0 0.0
    %6556 = vmatprep.subr.mxu0 0.0
    %6557 = vmatpush1.msra.mxu0 0.0
    %6558 = vmatprep.subr.mxu0 0.0
    %6559 = vmatpush1.msra.mxu0 0.0
    %6560 = vmatprep.subr.mxu0 0.0
    %6561 = vmatpush1.msra.mxu0 0.0
    %6562 = vmatprep.subr.mxu0 0.0
    %6563 = vmatpush1.msra.mxu0 0.0
    %6564 = vmatprep.subr.mxu0 0.0
    %6565 = vmatpush1.msra.mxu0 0.0
    %6566 = vmatprep.subr.mxu0 0.0
    %6567 = vmatpush1.msra.mxu0 0.0
    %6568 = vmatprep.subr.mxu0 0.0
    %6569 = vmatpush1.msra.mxu0 0.0
    %6570 = vmatprep.subr.mxu0 0.0
    %6571 = vmatpush1.msra.mxu0 0.0
    %6572 = vmatprep.subr.mxu0 0.0
    %6573 = vmatpush1.msra.mxu0 0.0
    %6574 = vmatprep.subr.mxu0 0.0
    %6575 = vmatpush1.msra.mxu0 0.0
    %6576 = vmatprep.subr.mxu0 0.0
    %6577 = vmatpush1.msra.mxu0 0.0
    %6578 = vmatprep.subr.mxu0 0.0
    %6579 = vmatpush1.msra.mxu0 0.0
    %6580 = vmatprep.subr.mxu0 0.0
    %6581 = vmatpush1.msra.mxu0 0.0
    %6582 = vmatprep.subr.mxu0 0.0
    %6583 = vmatpush1.msra.mxu0 0.0
    %6584 = vmatprep.subr.mxu0 0.0
    %6585 = vmatpush1.msra.mxu0 %v5335
    %6586 = vmatprep.subr.mxu0 0.0
    %6587 = vmatpush2.msra.mxu0 0.0
    %6588 = vmatprep.subr.mxu0 0.0
    %6589 = vmatpush2.msra.mxu0 0.0
    %6590 = vmatprep.subr.mxu0 0.0
    %6591 = vmatpush2.msra.mxu0 0.0
    %6592 = vmatprep.subr.mxu0 0.0
    %6593 = vmatpush2.msra.mxu0 0.0
    %6594 = vmatprep.subr.mxu0 0.0
    %6595 = vmatpush2.msra.mxu0 0.0
    %6596 = vmatprep.subr.mxu0 0.0
    %6597 = vmatpush2.msra.mxu0 0.0
    %6598 = vmatprep.subr.mxu0 0.0
    %6599 = vmatpush2.msra.mxu0 0.0
    %6600 = vmatprep.subr.mxu0 0.0
    %6601 = vmatpush2.msra.mxu0 0.0
    %6602 = vmatprep.subr.mxu0 0.0
    %6603 = vmatpush2.msra.mxu0 0.0
    %6604 = vmatprep.subr.mxu0 0.0
    %6605 = vmatpush2.msra.mxu0 0.0
    %6606 = vmatprep.subr.mxu0 0.0
    %6607 = vmatpush2.msra.mxu0 0.0
    %6608 = vmatprep.subr.mxu0 0.0
    %6609 = vmatpush2.msra.mxu0 0.0
    %6610 = vmatprep.subr.mxu0 0.0
    %6611 = vmatpush2.msra.mxu0 0.0
    %6612 = vmatprep.subr.mxu0 0.0
    %6613 = vmatpush2.msra.mxu0 0.0
    %6614 = vmatprep.subr.mxu0 0.0
    %6615 = vmatpush2.msra.mxu0 0.0
    %6616 = vmatprep.subr.mxu0 0.0
    %6617 = vmatpush2.msra.mxu0 0.0
    %6618 = vmatprep.mubr.f32.mxu0 0.0
    %6619 = vmatmul.mubr.f32.gmra.mxu0 %v6552
    %v6620 = vpop.f32.mrf.mxu0
    %v6621 = vadd.f32 0.0, %v6620
    %v6622 = vpop.f32.mrf.mxu0
    %6623 = vdwg.mxu0
    %v6625 = vsel %vm2445, %v6112, 0
    %6627 = vmatprep.subr.mxu0 0.0
    %6628 = vmatpush1.msra.mxu0 0.0
    %6629 = vmatprep.subr.mxu0 0.0
    %6630 = vmatpush1.msra.mxu0 0.0
    %6631 = vmatprep.subr.mxu0 0.0
    %6632 = vmatpush1.msra.mxu0 0.0
    %6633 = vmatprep.subr.mxu0 0.0
    %6634 = vmatpush1.msra.mxu0 0.0
    %6635 = vmatprep.subr.mxu0 0.0
    %6636 = vmatpush1.msra.mxu0 0.0
    %6637 = vmatprep.subr.mxu0 0.0
    %6638 = vmatpush1.msra.mxu0 0.0
    %6639 = vmatprep.subr.mxu0 0.0
    %6640 = vmatpush1.msra.mxu0 0.0
    %6641 = vmatprep.subr.mxu0 0.0
    %6642 = vmatpush1.msra.mxu0 0.0
    %6643 = vmatprep.subr.mxu0 0.0
    %6644 = vmatpush1.msra.mxu0 0.0
    %6645 = vmatprep.subr.mxu0 0.0
    %6646 = vmatpush1.msra.mxu0 0.0
    %6647 = vmatprep.subr.mxu0 0.0
    %6648 = vmatpush1.msra.mxu0 0.0
    %6649 = vmatprep.subr.mxu0 0.0
    %6650 = vmatpush1.msra.mxu0 0.0
    %6651 = vmatprep.subr.mxu0 0.0
    %6652 = vmatpush1.msra.mxu0 0.0
    %6653 = vmatprep.subr.mxu0 0.0
    %6654 = vmatpush1.msra.mxu0 0.0
    %6655 = vmatprep.subr.mxu0 0.0
    %6656 = vmatpush1.msra.mxu0 0.0
    %6657 = vmatprep.subr.mxu0 0.0
    %6658 = vmatpush1.msra.mxu0 %v5405
    %6659 = vmatprep.subr.mxu0 0.0
    %6660 = vmatpush2.msra.mxu0 0.0
    %6661 = vmatprep.subr.mxu0 0.0
    %6662 = vmatpush2.msra.mxu0 0.0
    %6663 = vmatprep.subr.mxu0 0.0
    %6664 = vmatpush2.msra.mxu0 0.0
    %6665 = vmatprep.subr.mxu0 0.0
    %6666 = vmatpush2.msra.mxu0 0.0
    %6667 = vmatprep.subr.mxu0 0.0
    %6668 = vmatpush2.msra.mxu0 0.0
    %6669 = vmatprep.subr.mxu0 0.0
    %6670 = vmatpush2.msra.mxu0 0.0
    %6671 = vmatprep.subr.mxu0 0.0
    %6672 = vmatpush2.msra.mxu0 0.0
    %6673 = vmatprep.subr.mxu0 0.0
    %6674 = vmatpush2.msra.mxu0 0.0
    %6675 = vmatprep.subr.mxu0 0.0
    %6676 = vmatpush2.msra.mxu0 0.0
    %6677 = vmatprep.subr.mxu0 0.0
    %6678 = vmatpush2.msra.mxu0 0.0
    %6679 = vmatprep.subr.mxu0 0.0
    %6680 = vmatpush2.msra.mxu0 0.0
    %6681 = vmatprep.subr.mxu0 0.0
    %6682 = vmatpush2.msra.mxu0 0.0
    %6683 = vmatprep.subr.mxu0 0.0
    %6684 = vmatpush2.msra.mxu0 0.0
    %6685 = vmatprep.subr.mxu0 0.0
    %6686 = vmatpush2.msra.mxu0 0.0
    %6687 = vmatprep.subr.mxu0 0.0
    %6688 = vmatpush2.msra.mxu0 0.0
    %6689 = vmatprep.subr.mxu0 0.0
    %6690 = vmatpush2.msra.mxu0 0.0
    %6691 = vmatprep.mubr.f32.mxu0 0.0
    %6692 = vmatmul.mubr.f32.gmra.mxu0 %v6625
    %v6693 = vpop.f32.mrf.mxu0
    %v6694 = vadd.f32 0.0, %v6693
    %v6695 = vpop.f32.mrf.mxu0
    %6696 = vdwg.mxu0
    %v6698 = vsel %vm1836, %v6183, 0
    %6700 = vmatprep.subr.mxu0 0.0
    %6701 = vmatpush1.msra.mxu0 0.0
    %6702 = vmatprep.subr.mxu0 0.0
    %6703 = vmatpush1.msra.mxu0 0.0
    %6704 = vmatprep.subr.mxu0 0.0
    %6705 = vmatpush1.msra.mxu0 0.0
    %6706 = vmatprep.subr.mxu0 0.0
    %6707 = vmatpush1.msra.mxu0 0.0
    %6708 = vmatprep.subr.mxu0 0.0
    %6709 = vmatpush1.msra.mxu0 0.0
    %6710 = vmatprep.subr.mxu0 0.0
    %6711 = vmatpush1.msra.mxu0 0.0
    %6712 = vmatprep.subr.mxu0 0.0
    %6713 = vmatpush1.msra.mxu0 0.0
    %6714 = vmatprep.subr.mxu0 0.0
    %6715 = vmatpush1.msra.mxu0 0.0
    %6716 = vmatprep.subr.mxu0 0.0
    %6717 = vmatpush1.msra.mxu0 0.0
    %6718 = vmatprep.subr.mxu0 0.0
    %6719 = vmatpush1.msra.mxu0 0.0
    %6720 = vmatprep.subr.mxu0 0.0
    %6721 = vmatpush1.msra.mxu0 0.0
    %6722 = vmatprep.subr.mxu0 0.0
    %6723 = vmatpush1.msra.mxu0 0.0
    %6724 = vmatprep.subr.mxu0 0.0
    %6725 = vmatpush1.msra.mxu0 0.0
    %6726 = vmatprep.subr.mxu0 0.0
    %6727 = vmatpush1.msra.mxu0 0.0
    %6728 = vmatprep.subr.mxu0 0.0
    %6729 = vmatpush1.msra.mxu0 %v124
    %6730 = vmatprep.subr.mxu0 0.0
    %6731 = vmatpush1.msra.mxu0 %v123
    %6732 = vmatprep.subr.mxu0 0.0
    %6733 = vmatpush2.msra.mxu0 0.0
    %6734 = vmatprep.subr.mxu0 0.0
    %6735 = vmatpush2.msra.mxu0 0.0
    %6736 = vmatprep.subr.mxu0 0.0
    %6737 = vmatpush2.msra.mxu0 0.0
    %6738 = vmatprep.subr.mxu0 0.0
    %6739 = vmatpush2.msra.mxu0 0.0
    %6740 = vmatprep.subr.mxu0 0.0
    %6741 = vmatpush2.msra.mxu0 0.0
    %6742 = vmatprep.subr.mxu0 0.0
    %6743 = vmatpush2.msra.mxu0 0.0
    %6744 = vmatprep.subr.mxu0 0.0
    %6745 = vmatpush2.msra.mxu0 0.0
    %6746 = vmatprep.subr.mxu0 0.0
    %6747 = vmatpush2.msra.mxu0 0.0
    %6748 = vmatprep.subr.mxu0 0.0
    %6749 = vmatpush2.msra.mxu0 0.0
    %6750 = vmatprep.subr.mxu0 0.0
    %6751 = vmatpush2.msra.mxu0 0.0
    %6752 = vmatprep.subr.mxu0 0.0
    %6753 = vmatpush2.msra.mxu0 0.0
    %6754 = vmatprep.subr.mxu0 0.0
    %6755 = vmatpush2.msra.mxu0 0.0
    %6756 = vmatprep.subr.mxu0 0.0
    %6757 = vmatpush2.msra.mxu0 0.0
    %6758 = vmatprep.subr.mxu0 0.0
    %6759 = vmatpush2.msra.mxu0 0.0
    %6760 = vmatprep.subr.mxu0 0.0
    %6761 = vmatpush2.msra.mxu0 0.0
    %6762 = vmatprep.subr.mxu0 0.0
    %6763 = vmatpush2.msra.mxu0 0.0
    %6764 = vmatprep.mubr.f32.mxu0 0.0
    %6765 = vmatmul.mubr.f32.gmra.mxu0 %v6698
    %v6766 = vpop.f32.mrf.mxu0
    %v6767 = vadd.f32 0.0, %v6766
    %v6768 = vpop.f32.mrf.mxu0
    %6769 = vdwg.mxu0
    %v6771 = vsel %vm1836, %v6256, 0
    %6773 = vmatprep.subr.mxu0 0.0
    %6774 = vmatpush1.msra.mxu0 0.0
    %6775 = vmatprep.subr.mxu0 0.0
    %6776 = vmatpush1.msra.mxu0 0.0
    %6777 = vmatprep.subr.mxu0 0.0
    %6778 = vmatpush1.msra.mxu0 0.0
    %6779 = vmatprep.subr.mxu0 0.0
    %6780 = vmatpush1.msra.mxu0 0.0
    %6781 = vmatprep.subr.mxu0 0.0
    %6782 = vmatpush1.msra.mxu0 0.0
    %6783 = vmatprep.subr.mxu0 0.0
    %6784 = vmatpush1.msra.mxu0 0.0
    %6785 = vmatprep.subr.mxu0 0.0
    %6786 = vmatpush1.msra.mxu0 0.0
    %6787 = vmatprep.subr.mxu0 0.0
    %6788 = vmatpush1.msra.mxu0 0.0
    %6789 = vmatprep.subr.mxu0 0.0
    %6790 = vmatpush1.msra.mxu0 0.0
    %6791 = vmatprep.subr.mxu0 0.0
    %6792 = vmatpush1.msra.mxu0 0.0
    %6793 = vmatprep.subr.mxu0 0.0
    %6794 = vmatpush1.msra.mxu0 0.0
    %6795 = vmatprep.subr.mxu0 0.0
    %6796 = vmatpush1.msra.mxu0 0.0
    %6797 = vmatprep.subr.mxu0 0.0
    %6798 = vmatpush1.msra.mxu0 0.0
    %6799 = vmatprep.subr.mxu0 0.0
    %6800 = vmatpush1.msra.mxu0 0.0
    %6801 = vmatprep.subr.mxu0 0.0
    %6802 = vmatpush1.msra.mxu0 %v126
    %6803 = vmatprep.subr.mxu0 0.0
    %6804 = vmatpush1.msra.mxu0 %v125
    %6805 = vmatprep.subr.mxu0 0.0
    %6806 = vmatpush2.msra.mxu0 0.0
    %6807 = vmatprep.subr.mxu0 0.0
    %6808 = vmatpush2.msra.mxu0 0.0
    %6809 = vmatprep.subr.mxu0 0.0
    %6810 = vmatpush2.msra.mxu0 0.0
    %6811 = vmatprep.subr.mxu0 0.0
    %6812 = vmatpush2.msra.mxu0 0.0
    %6813 = vmatprep.subr.mxu0 0.0
    %6814 = vmatpush2.msra.mxu0 0.0
    %6815 = vmatprep.subr.mxu0 0.0
    %6816 = vmatpush2.msra.mxu0 0.0
    %6817 = vmatprep.subr.mxu0 0.0
    %6818 = vmatpush2.msra.mxu0 0.0
    %6819 = vmatprep.subr.mxu0 0.0
    %6820 = vmatpush2.msra.mxu0 0.0
    %6821 = vmatprep.subr.mxu0 0.0
    %6822 = vmatpush2.msra.mxu0 0.0
    %6823 = vmatprep.subr.mxu0 0.0
    %6824 = vmatpush2.msra.mxu0 0.0
    %6825 = vmatprep.subr.mxu0 0.0
    %6826 = vmatpush2.msra.mxu0 0.0
    %6827 = vmatprep.subr.mxu0 0.0
    %6828 = vmatpush2.msra.mxu0 0.0
    %6829 = vmatprep.subr.mxu0 0.0
    %6830 = vmatpush2.msra.mxu0 0.0
    %6831 = vmatprep.subr.mxu0 0.0
    %6832 = vmatpush2.msra.mxu0 0.0
    %6833 = vmatprep.subr.mxu0 0.0
    %6834 = vmatpush2.msra.mxu0 0.0
    %6835 = vmatprep.subr.mxu0 0.0
    %6836 = vmatpush2.msra.mxu0 0.0
    %6837 = vmatprep.mubr.f32.mxu0 0.0
    %6838 = vmatmul.mubr.f32.gmra.mxu0 %v6771
    %v6839 = vpop.f32.mrf.mxu0
    %v6840 = vadd.f32 0.0, %v6839
    %v6841 = vpop.f32.mrf.mxu0
    %6842 = vdwg.mxu0
    %v6844 = vsel %vm1836, %v6329, 0
    %6846 = vmatprep.subr.mxu0 0.0
    %6847 = vmatpush1.msra.mxu0 0.0
    %6848 = vmatprep.subr.mxu0 0.0
    %6849 = vmatpush1.msra.mxu0 0.0
    %6850 = vmatprep.subr.mxu0 0.0
    %6851 = vmatpush1.msra.mxu0 0.0
    %6852 = vmatprep.subr.mxu0 0.0
    %6853 = vmatpush1.msra.mxu0 0.0
    %6854 = vmatprep.subr.mxu0 0.0
    %6855 = vmatpush1.msra.mxu0 0.0
    %6856 = vmatprep.subr.mxu0 0.0
    %6857 = vmatpush1.msra.mxu0 0.0
    %6858 = vmatprep.subr.mxu0 0.0
    %6859 = vmatpush1.msra.mxu0 0.0
    %6860 = vmatprep.subr.mxu0 0.0
    %6861 = vmatpush1.msra.mxu0 0.0
    %6862 = vmatprep.subr.mxu0 0.0
    %6863 = vmatpush1.msra.mxu0 0.0
    %6864 = vmatprep.subr.mxu0 0.0
    %6865 = vmatpush1.msra.mxu0 0.0
    %6866 = vmatprep.subr.mxu0 0.0
    %6867 = vmatpush1.msra.mxu0 0.0
    %6868 = vmatprep.subr.mxu0 0.0
    %6869 = vmatpush1.msra.mxu0 0.0
    %6870 = vmatprep.subr.mxu0 0.0
    %6871 = vmatpush1.msra.mxu0 0.0
    %6872 = vmatprep.subr.mxu0 0.0
    %6873 = vmatpush1.msra.mxu0 0.0
    %6874 = vmatprep.subr.mxu0 0.0
    %6875 = vmatpush1.msra.mxu0 %v128
    %6876 = vmatprep.subr.mxu0 0.0
    %6877 = vmatpush1.msra.mxu0 %v127
    %6878 = vmatprep.subr.mxu0 0.0
    %6879 = vmatpush2.msra.mxu0 0.0
    %6880 = vmatprep.subr.mxu0 0.0
    %6881 = vmatpush2.msra.mxu0 0.0
    %6882 = vmatprep.subr.mxu0 0.0
    %6883 = vmatpush2.msra.mxu0 0.0
    %6884 = vmatprep.subr.mxu0 0.0
    %6885 = vmatpush2.msra.mxu0 0.0
    %6886 = vmatprep.subr.mxu0 0.0
    %6887 = vmatpush2.msra.mxu0 0.0
    %6888 = vmatprep.subr.mxu0 0.0
    %6889 = vmatpush2.msra.mxu0 0.0
    %6890 = vmatprep.subr.mxu0 0.0
    %6891 = vmatpush2.msra.mxu0 0.0
    %6892 = vmatprep.subr.mxu0 0.0
    %6893 = vmatpush2.msra.mxu0 0.0
    %6894 = vmatprep.subr.mxu0 0.0
    %6895 = vmatpush2.msra.mxu0 0.0
    %6896 = vmatprep.subr.mxu0 0.0
    %6897 = vmatpush2.msra.mxu0 0.0
    %6898 = vmatprep.subr.mxu0 0.0
    %6899 = vmatpush2.msra.mxu0 0.0
    %6900 = vmatprep.subr.mxu0 0.0
    %6901 = vmatpush2.msra.mxu0 0.0
    %6902 = vmatprep.subr.mxu0 0.0
    %6903 = vmatpush2.msra.mxu0 0.0
    %6904 = vmatprep.subr.mxu0 0.0
    %6905 = vmatpush2.msra.mxu0 0.0
    %6906 = vmatprep.subr.mxu0 0.0
    %6907 = vmatpush2.msra.mxu0 0.0
    %6908 = vmatprep.subr.mxu0 0.0
    %6909 = vmatpush2.msra.mxu0 0.0
    %6910 = vmatprep.mubr.f32.mxu0 0.0
    %6911 = vmatmul.mubr.f32.gmra.mxu0 %v6844
    %v6912 = vpop.f32.mrf.mxu0
    %v6913 = vadd.f32 0.0, %v6912
    %v6914 = vpop.f32.mrf.mxu0
    %6915 = vdwg.mxu0
    %v6917 = vsel %vm1836, %v6402, 0
    %6919 = vmatprep.subr.mxu0 0.0
    %6920 = vmatpush1.msra.mxu0 0.0
    %6921 = vmatprep.subr.mxu0 0.0
    %6922 = vmatpush1.msra.mxu0 0.0
    %6923 = vmatprep.subr.mxu0 0.0
    %6924 = vmatpush1.msra.mxu0 0.0
    %6925 = vmatprep.subr.mxu0 0.0
    %6926 = vmatpush1.msra.mxu0 0.0
    %6927 = vmatprep.subr.mxu0 0.0
    %6928 = vmatpush1.msra.mxu0 0.0
    %6929 = vmatprep.subr.mxu0 0.0
    %6930 = vmatpush1.msra.mxu0 0.0
    %6931 = vmatprep.subr.mxu0 0.0
    %6932 = vmatpush1.msra.mxu0 0.0
    %6933 = vmatprep.subr.mxu0 0.0
    %6934 = vmatpush1.msra.mxu0 0.0
    %6935 = vmatprep.subr.mxu0 0.0
    %6936 = vmatpush1.msra.mxu0 0.0
    %6937 = vmatprep.subr.mxu0 0.0
    %6938 = vmatpush1.msra.mxu0 0.0
    %6939 = vmatprep.subr.mxu0 0.0
    %6940 = vmatpush1.msra.mxu0 0.0
    %6941 = vmatprep.subr.mxu0 0.0
    %6942 = vmatpush1.msra.mxu0 0.0
    %6943 = vmatprep.subr.mxu0 0.0
    %6944 = vmatpush1.msra.mxu0 0.0
    %6945 = vmatprep.subr.mxu0 0.0
    %6946 = vmatpush1.msra.mxu0 0.0
    %6947 = vmatprep.subr.mxu0 0.0
    %6948 = vmatpush1.msra.mxu0 %v130
    %6949 = vmatprep.subr.mxu0 0.0
    %6950 = vmatpush1.msra.mxu0 %v129
    %6951 = vmatprep.subr.mxu0 0.0
    %6952 = vmatpush2.msra.mxu0 0.0
    %6953 = vmatprep.subr.mxu0 0.0
    %6954 = vmatpush2.msra.mxu0 0.0
    %6955 = vmatprep.subr.mxu0 0.0
    %6956 = vmatpush2.msra.mxu0 0.0
    %6957 = vmatprep.subr.mxu0 0.0
    %6958 = vmatpush2.msra.mxu0 0.0
    %6959 = vmatprep.subr.mxu0 0.0
    %6960 = vmatpush2.msra.mxu0 0.0
    %6961 = vmatprep.subr.mxu0 0.0
    %6962 = vmatpush2.msra.mxu0 0.0
    %6963 = vmatprep.subr.mxu0 0.0
    %6964 = vmatpush2.msra.mxu0 0.0
    %6965 = vmatprep.subr.mxu0 0.0
    %6966 = vmatpush2.msra.mxu0 0.0
    %6967 = vmatprep.subr.mxu0 0.0
    %6968 = vmatpush2.msra.mxu0 0.0
    %6969 = vmatprep.subr.mxu0 0.0
    %6970 = vmatpush2.msra.mxu0 0.0
    %6971 = vmatprep.subr.mxu0 0.0
    %6972 = vmatpush2.msra.mxu0 0.0
    %6973 = vmatprep.subr.mxu0 0.0
    %6974 = vmatpush2.msra.mxu0 0.0
    %6975 = vmatprep.subr.mxu0 0.0
    %6976 = vmatpush2.msra.mxu0 0.0
    %6977 = vmatprep.subr.mxu0 0.0
    %6978 = vmatpush2.msra.mxu0 0.0
    %6979 = vmatprep.subr.mxu0 0.0
    %6980 = vmatpush2.msra.mxu0 0.0
    %6981 = vmatprep.subr.mxu0 0.0
    %6982 = vmatpush2.msra.mxu0 0.0
    %6983 = vmatprep.mubr.f32.mxu0 0.0
    %6984 = vmatmul.mubr.f32.gmra.mxu0 %v6917
    %v6985 = vpop.f32.mrf.mxu0
    %v6986 = vadd.f32 0.0, %v6985
    %v6987 = vpop.f32.mrf.mxu0
    %6988 = vdwg.mxu0
    %v6990 = vsel %vm1836, %v6475, 0
    %6992 = vmatprep.subr.mxu0 0.0
    %6993 = vmatpush1.msra.mxu0 0.0
    %6994 = vmatprep.subr.mxu0 0.0
    %6995 = vmatpush1.msra.mxu0 0.0
    %6996 = vmatprep.subr.mxu0 0.0
    %6997 = vmatpush1.msra.mxu0 0.0
    %6998 = vmatprep.subr.mxu0 0.0
    %6999 = vmatpush1.msra.mxu0 0.0
    %7000 = vmatprep.subr.mxu0 0.0
    %7001 = vmatpush1.msra.mxu0 0.0
    %7002 = vmatprep.subr.mxu0 0.0
    %7003 = vmatpush1.msra.mxu0 0.0
    %7004 = vmatprep.subr.mxu0 0.0
    %7005 = vmatpush1.msra.mxu0 0.0
    %7006 = vmatprep.subr.mxu0 0.0
    %7007 = vmatpush1.msra.mxu0 0.0
    %7008 = vmatprep.subr.mxu0 0.0
    %7009 = vmatpush1.msra.mxu0 0.0
    %7010 = vmatprep.subr.mxu0 0.0
    %7011 = vmatpush1.msra.mxu0 0.0
    %7012 = vmatprep.subr.mxu0 0.0
    %7013 = vmatpush1.msra.mxu0 0.0
    %7014 = vmatprep.subr.mxu0 0.0
    %7015 = vmatpush1.msra.mxu0 0.0
    %7016 = vmatprep.subr.mxu0 0.0
    %7017 = vmatpush1.msra.mxu0 0.0
    %7018 = vmatprep.subr.mxu0 0.0
    %7019 = vmatpush1.msra.mxu0 0.0
    %7020 = vmatprep.subr.mxu0 0.0
    %7021 = vmatpush1.msra.mxu0 %v132
    %7022 = vmatprep.subr.mxu0 0.0
    %7023 = vmatpush1.msra.mxu0 %v131
    %7024 = vmatprep.subr.mxu0 0.0
    %7025 = vmatpush2.msra.mxu0 0.0
    %7026 = vmatprep.subr.mxu0 0.0
    %7027 = vmatpush2.msra.mxu0 0.0
    %7028 = vmatprep.subr.mxu0 0.0
    %7029 = vmatpush2.msra.mxu0 0.0
    %7030 = vmatprep.subr.mxu0 0.0
    %7031 = vmatpush2.msra.mxu0 0.0
    %7032 = vmatprep.subr.mxu0 0.0
    %7033 = vmatpush2.msra.mxu0 0.0
    %7034 = vmatprep.subr.mxu0 0.0
    %7035 = vmatpush2.msra.mxu0 0.0
    %7036 = vmatprep.subr.mxu0 0.0
    %7037 = vmatpush2.msra.mxu0 0.0
    %7038 = vmatprep.subr.mxu0 0.0
    %7039 = vmatpush2.msra.mxu0 0.0
    %7040 = vmatprep.subr.mxu0 0.0
    %7041 = vmatpush2.msra.mxu0 0.0
    %7042 = vmatprep.subr.mxu0 0.0
    %7043 = vmatpush2.msra.mxu0 0.0
    %7044 = vmatprep.subr.mxu0 0.0
    %7045 = vmatpush2.msra.mxu0 0.0
    %7046 = vmatprep.subr.mxu0 0.0
    %7047 = vmatpush2.msra.mxu0 0.0
    %7048 = vmatprep.subr.mxu0 0.0
    %7049 = vmatpush2.msra.mxu0 0.0
    %7050 = vmatprep.subr.mxu0 0.0
    %7051 = vmatpush2.msra.mxu0 0.0
    %7052 = vmatprep.subr.mxu0 0.0
    %7053 = vmatpush2.msra.mxu0 0.0
    %7054 = vmatprep.subr.mxu0 0.0
    %7055 = vmatpush2.msra.mxu0 0.0
    %7056 = vmatprep.mubr.f32.mxu0 0.0
    %7057 = vmatmul.mubr.f32.gmra.mxu0 %v6990
    %v7058 = vpop.f32.mrf.mxu0
    %v7059 = vadd.f32 0.0, %v7058
    %v7060 = vpop.f32.mrf.mxu0
    %7061 = vdwg.mxu0
    %v7063 = vsel %vm1836, %v6548, 0
    %7065 = vmatprep.subr.mxu0 0.0
    %7066 = vmatpush1.msra.mxu0 0.0
    %7067 = vmatprep.subr.mxu0 0.0
    %7068 = vmatpush1.msra.mxu0 0.0
    %7069 = vmatprep.subr.mxu0 0.0
    %7070 = vmatpush1.msra.mxu0 0.0
    %7071 = vmatprep.subr.mxu0 0.0
    %7072 = vmatpush1.msra.mxu0 0.0
    %7073 = vmatprep.subr.mxu0 0.0
    %7074 = vmatpush1.msra.mxu0 0.0
    %7075 = vmatprep.subr.mxu0 0.0
    %7076 = vmatpush1.msra.mxu0 0.0
    %7077 = vmatprep.subr.mxu0 0.0
    %7078 = vmatpush1.msra.mxu0 0.0
    %7079 = vmatprep.subr.mxu0 0.0
    %7080 = vmatpush1.msra.mxu0 0.0
    %7081 = vmatprep.subr.mxu0 0.0
    %7082 = vmatpush1.msra.mxu0 0.0
    %7083 = vmatprep.subr.mxu0 0.0
    %7084 = vmatpush1.msra.mxu0 0.0
    %7085 = vmatprep.subr.mxu0 0.0
    %7086 = vmatpush1.msra.mxu0 0.0
    %7087 = vmatprep.subr.mxu0 0.0
    %7088 = vmatpush1.msra.mxu0 0.0
    %7089 = vmatprep.subr.mxu0 0.0
    %7090 = vmatpush1.msra.mxu0 0.0
    %7091 = vmatprep.subr.mxu0 0.0
    %7092 = vmatpush1.msra.mxu0 0.0
    %7093 = vmatprep.subr.mxu0 0.0
    %7094 = vmatpush1.msra.mxu0 %v134
    %7095 = vmatprep.subr.mxu0 0.0
    %7096 = vmatpush1.msra.mxu0 %v133
    %7097 = vmatprep.subr.mxu0 0.0
    %7098 = vmatpush2.msra.mxu0 0.0
    %7099 = vmatprep.subr.mxu0 0.0
    %7100 = vmatpush2.msra.mxu0 0.0
    %7101 = vmatprep.subr.mxu0 0.0
    %7102 = vmatpush2.msra.mxu0 0.0
    %7103 = vmatprep.subr.mxu0 0.0
    %7104 = vmatpush2.msra.mxu0 0.0
    %7105 = vmatprep.subr.mxu0 0.0
    %7106 = vmatpush2.msra.mxu0 0.0
    %7107 = vmatprep.subr.mxu0 0.0
    %7108 = vmatpush2.msra.mxu0 0.0
    %7109 = vmatprep.subr.mxu0 0.0
    %7110 = vmatpush2.msra.mxu0 0.0
    %7111 = vmatprep.subr.mxu0 0.0
    %7112 = vmatpush2.msra.mxu0 0.0
    %7113 = vmatprep.subr.mxu0 0.0
    %7114 = vmatpush2.msra.mxu0 0.0
    %7115 = vmatprep.subr.mxu0 0.0
    %7116 = vmatpush2.msra.mxu0 0.0
    %7117 = vmatprep.subr.mxu0 0.0
    %7118 = vmatpush2.msra.mxu0 0.0
    %7119 = vmatprep.subr.mxu0 0.0
    %7120 = vmatpush2.msra.mxu0 0.0
    %7121 = vmatprep.subr.mxu0 0.0
    %7122 = vmatpush2.msra.mxu0 0.0
    %7123 = vmatprep.subr.mxu0 0.0
    %7124 = vmatpush2.msra.mxu0 0.0
    %7125 = vmatprep.subr.mxu0 0.0
    %7126 = vmatpush2.msra.mxu0 0.0
    %7127 = vmatprep.subr.mxu0 0.0
    %7128 = vmatpush2.msra.mxu0 0.0
    %7129 = vmatprep.mubr.f32.mxu0 0.0
    %7130 = vmatmul.mubr.f32.gmra.mxu0 %v7063
    %v7131 = vpop.f32.mrf.mxu0
    %v7132 = vadd.f32 0.0, %v7131
    %v7133 = vpop.f32.mrf.mxu0
    %7134 = vdwg.mxu0
    %v7136 = vsel %vm1836, %v6621, 0
    %7138 = vmatprep.subr.mxu0 0.0
    %7139 = vmatpush1.msra.mxu0 0.0
    %7140 = vmatprep.subr.mxu0 0.0
    %7141 = vmatpush1.msra.mxu0 0.0
    %7142 = vmatprep.subr.mxu0 0.0
    %7143 = vmatpush1.msra.mxu0 0.0
    %7144 = vmatprep.subr.mxu0 0.0
    %7145 = vmatpush1.msra.mxu0 0.0
    %7146 = vmatprep.subr.mxu0 0.0
    %7147 = vmatpush1.msra.mxu0 0.0
    %7148 = vmatprep.subr.mxu0 0.0
    %7149 = vmatpush1.msra.mxu0 0.0
    %7150 = vmatprep.subr.mxu0 0.0
    %7151 = vmatpush1.msra.mxu0 0.0
    %7152 = vmatprep.subr.mxu0 0.0
    %7153 = vmatpush1.msra.mxu0 0.0
    %7154 = vmatprep.subr.mxu0 0.0
    %7155 = vmatpush1.msra.mxu0 0.0
    %7156 = vmatprep.subr.mxu0 0.0
    %7157 = vmatpush1.msra.mxu0 0.0
    %7158 = vmatprep.subr.mxu0 0.0
    %7159 = vmatpush1.msra.mxu0 0.0
    %7160 = vmatprep.subr.mxu0 0.0
    %7161 = vmatpush1.msra.mxu0 0.0
    %7162 = vmatprep.subr.mxu0 0.0
    %7163 = vmatpush1.msra.mxu0 0.0
    %7164 = vmatprep.subr.mxu0 0.0
    %7165 = vmatpush1.msra.mxu0 0.0
    %7166 = vmatprep.subr.mxu0 0.0
    %7167 = vmatpush1.msra.mxu0 %v136
    %7168 = vmatprep.subr.mxu0 0.0
    %7169 = vmatpush1.msra.mxu0 %v135
    %7170 = vmatprep.subr.mxu0 0.0
    %7171 = vmatpush2.msra.mxu0 0.0
    %7172 = vmatprep.subr.mxu0 0.0
    %7173 = vmatpush2.msra.mxu0 0.0
    %7174 = vmatprep.subr.mxu0 0.0
    %7175 = vmatpush2.msra.mxu0 0.0
    %7176 = vmatprep.subr.mxu0 0.0
    %7177 = vmatpush2.msra.mxu0 0.0
    %7178 = vmatprep.subr.mxu0 0.0
    %7179 = vmatpush2.msra.mxu0 0.0
    %7180 = vmatprep.subr.mxu0 0.0
    %7181 = vmatpush2.msra.mxu0 0.0
    %7182 = vmatprep.subr.mxu0 0.0
    %7183 = vmatpush2.msra.mxu0 0.0
    %7184 = vmatprep.subr.mxu0 0.0
    %7185 = vmatpush2.msra.mxu0 0.0
    %7186 = vmatprep.subr.mxu0 0.0
    %7187 = vmatpush2.msra.mxu0 0.0
    %7188 = vmatprep.subr.mxu0 0.0
    %7189 = vmatpush2.msra.mxu0 0.0
    %7190 = vmatprep.subr.mxu0 0.0
    %7191 = vmatpush2.msra.mxu0 0.0
    %7192 = vmatprep.subr.mxu0 0.0
    %7193 = vmatpush2.msra.mxu0 0.0
    %7194 = vmatprep.subr.mxu0 0.0
    %7195 = vmatpush2.msra.mxu0 0.0
    %7196 = vmatprep.subr.mxu0 0.0
    %7197 = vmatpush2.msra.mxu0 0.0
    %7198 = vmatprep.subr.mxu0 0.0
    %7199 = vmatpush2.msra.mxu0 0.0
    %7200 = vmatprep.subr.mxu0 0.0
    %7201 = vmatpush2.msra.mxu0 0.0
    %7202 = vmatprep.mubr.f32.mxu0 0.0
    %7203 = vmatmul.mubr.f32.gmra.mxu0 %v7136
    %v7204 = vpop.f32.mrf.mxu0
    %v7205 = vadd.f32 0.0, %v7204
    %v7206 = vpop.f32.mrf.mxu0
    %7207 = vdwg.mxu0
    %v7209 = vsel %vm1836, %v6694, 0
    %7211 = vmatprep.subr.mxu0 0.0
    %7212 = vmatpush1.msra.mxu0 0.0
    %7213 = vmatprep.subr.mxu0 0.0
    %7214 = vmatpush1.msra.mxu0 0.0
    %7215 = vmatprep.subr.mxu0 0.0
    %7216 = vmatpush1.msra.mxu0 0.0
    %7217 = vmatprep.subr.mxu0 0.0
    %7218 = vmatpush1.msra.mxu0 0.0
    %7219 = vmatprep.subr.mxu0 0.0
    %7220 = vmatpush1.msra.mxu0 0.0
    %7221 = vmatprep.subr.mxu0 0.0
    %7222 = vmatpush1.msra.mxu0 0.0
    %7223 = vmatprep.subr.mxu0 0.0
    %7224 = vmatpush1.msra.mxu0 0.0
    %7225 = vmatprep.subr.mxu0 0.0
    %7226 = vmatpush1.msra.mxu0 0.0
    %7227 = vmatprep.subr.mxu0 0.0
    %7228 = vmatpush1.msra.mxu0 0.0
    %7229 = vmatprep.subr.mxu0 0.0
    %7230 = vmatpush1.msra.mxu0 0.0
    %7231 = vmatprep.subr.mxu0 0.0
    %7232 = vmatpush1.msra.mxu0 0.0
    %7233 = vmatprep.subr.mxu0 0.0
    %7234 = vmatpush1.msra.mxu0 0.0
    %7235 = vmatprep.subr.mxu0 0.0
    %7236 = vmatpush1.msra.mxu0 0.0
    %7237 = vmatprep.subr.mxu0 0.0
    %7238 = vmatpush1.msra.mxu0 0.0
    %7239 = vmatprep.subr.mxu0 0.0
    %7240 = vmatpush1.msra.mxu0 %v138
    %7241 = vmatprep.subr.mxu0 0.0
    %7242 = vmatpush1.msra.mxu0 %v137
    %7243 = vmatprep.subr.mxu0 0.0
    %7244 = vmatpush2.msra.mxu0 0.0
    %7245 = vmatprep.subr.mxu0 0.0
    %7246 = vmatpush2.msra.mxu0 0.0
    %7247 = vmatprep.subr.mxu0 0.0
    %7248 = vmatpush2.msra.mxu0 0.0
    %7249 = vmatprep.subr.mxu0 0.0
    %7250 = vmatpush2.msra.mxu0 0.0
    %7251 = vmatprep.subr.mxu0 0.0
    %7252 = vmatpush2.msra.mxu0 0.0
    %7253 = vmatprep.subr.mxu0 0.0
    %7254 = vmatpush2.msra.mxu0 0.0
    %7255 = vmatprep.subr.mxu0 0.0
    %7256 = vmatpush2.msra.mxu0 0.0
    %7257 = vmatprep.subr.mxu0 0.0
    %7258 = vmatpush2.msra.mxu0 0.0
    %7259 = vmatprep.subr.mxu0 0.0
    %7260 = vmatpush2.msra.mxu0 0.0
    %7261 = vmatprep.subr.mxu0 0.0
    %7262 = vmatpush2.msra.mxu0 0.0
    %7263 = vmatprep.subr.mxu0 0.0
    %7264 = vmatpush2.msra.mxu0 0.0
    %7265 = vmatprep.subr.mxu0 0.0
    %7266 = vmatpush2.msra.mxu0 0.0
    %7267 = vmatprep.subr.mxu0 0.0
    %7268 = vmatpush2.msra.mxu0 0.0
    %7269 = vmatprep.subr.mxu0 0.0
    %7270 = vmatpush2.msra.mxu0 0.0
    %7271 = vmatprep.subr.mxu0 0.0
    %7272 = vmatpush2.msra.mxu0 0.0
    %7273 = vmatprep.subr.mxu0 0.0
    %7274 = vmatpush2.msra.mxu0 0.0
    %7275 = vmatprep.mubr.f32.mxu0 0.0
    %7276 = vmatmul.mubr.f32.gmra.mxu0 %v7209
    %v7277 = vpop.f32.mrf.mxu0
    %v7278 = vadd.f32 0.0, %v7277
    %v7279 = vpop.f32.mrf.mxu0
    %7280 = vdwg.mxu0
    %v7281 = vsel %vm141, %v6767, 0.0
    %v7282 = vsel %vm141, %v6840, 0.0
    %v7283 = vadd.f32 %v7281, %v7282
    %v7284 = vsel %vm141, %v6913, 0.0
    %v7285 = vadd.f32 %v7283, %v7284
    %v7286 = vsel %vm141, %v6986, 0.0
    %v7287 = vadd.f32 %v7285, %v7286
    %v7288 = vsel %vm141, %v7059, 0.0
    %v7289 = vadd.f32 %v7287, %v7288
    %v7290 = vsel %vm141, %v7132, 0.0
    %v7291 = vadd.f32 %v7289, %v7290
    %v7292 = vsel %vm141, %v7205, 0.0
    %v7293 = vadd.f32 %v7291, %v7292
    %v7294 = vsel %vm141, %v7278, 0.0
    %v7295 = vadd.f32 %v7293, %v7294
    %s7296 = scalar_lea.vmem [#allocation2], 8
    %7297 = vst.msk [vmem:[%s7296] sm:$0xff] %vm141, %v7295
    // Predicated region
    $region30: #{tpu_custom_call.1} parent=1 // pred_check
      _
    $region31: #{tpu_custom_call.1} parent=1 // pred_check_branch
      %7299 = sbr.rel (0) target = $region33
    $region32: #{tpu_custom_call.1} parent=1 // pred_region
      %s7301 = ssub.s32 256, 256
      %7302 = vsyncadd [#allocation3], %s7301
      %s7303 = sshll.u32 [#allocation2], 4
      %s7304 = int_to_ptr.vmem [resolvable:$true] %s7303
      %7309 = dma.vmem_to_hbm [thread:$0]  %s7304, 256, %s7, [#allocation3], 128, 128, 8
    $region33: #{tpu_custom_call.1} parent=1 // pred_fallthru
      _
    // Predicated region
    $region34: #{tpu_custom_call.1} parent=1 // pred_check
      _
    $region35: #{tpu_custom_call.1} parent=1 // pred_check_branch
      %7311 = sbr.rel (0) target = $region37
    $region36: #{tpu_custom_call.1} parent=1 // pred_region
      %7312 = dma.done [#allocation3], 256
    $region37: #{tpu_custom_call.1} parent=1 // pred_fallthru
      _
    %7313 = vsyncpa [#allocation3], 1

</llo_original>
